<compile_context>
chip_gen: v7x
topology: tpu7x:2x2x1
jax: 0.10.0
libtpu: 0.0.40
codegen_flags: <defaults>
</compile_context>

<pallas_src>
import jax
import jax.numpy as jnp
from jax.experimental import pallas as pl
from jax.experimental.pallas import tpu as pltpu


def _round_up(x, m):
    return ((x + m - 1) // m) * m


# ----------------------------------------------------------------------------
# Kernel 1: fused conv1 + relu + conv2 + relu + (H-direction half of maxpool)
# ----------------------------------------------------------------------------
def _conv_block_kernel(p1_ref, w1_ref, b1_ref, w2_ref, b2_ref, o_ref):
    # p1_ref: (1, 28, 32, 9) bf16  conv1 3x3 patches, H padded 26->28, W 26->32
    # w1_ref: (9, 32) bf16         conv1 weight, taps (ky,kx) major
    # b1_ref: (1, 32) f32
    # w2_ref: (9, 32, 64) bf16     conv2 weight [tap, cin, cout]
    # b2_ref: (1, 64) f32
    # o_ref : (1, 288, 64) bf16    rows (i, w2): max_p relu(conv2[2i+p, w2, :])
    p1 = p1_ref[0]                                   # (28, 32, 9)
    p1m = p1.reshape(28 * 32, 9)                     # merge leading with sublane (32 % 16 == 0)
    y1 = jnp.dot(p1m, w1_ref[...], preferred_element_type=jnp.float32)   # (896, 32)
    y1 = jnp.maximum(y1 + b1_ref[...], 0.0)
    y1 = y1.reshape(28, 32, 32)                      # (Hpad, Wpad, C1) f32; pad region unused

    def tap_lhs(s, kx):
        # rows (i, w2):  y1[2*i + s, w2 + kx, :],  i in [0,12), w2 in [0,24)
        ysl = y1[s:s + 24, kx:kx + 24, :]            # (24, 24, 32)
        ysl = ysl.reshape(12, 2, 24, 32)[:, 0]       # stride-2 along H via leading-dim split
        return ysl.reshape(288, 32).astype(jnp.bfloat16)

    lhs = {(s, kx): tap_lhs(s, kx) for s in range(4) for kx in range(3)}

    pooled_h = None
    for p in range(2):                               # H parity of the 2x2 pool window
        acc = jnp.zeros((288, 64), jnp.float32)
        for ky in range(3):
            for kx in range(3):
                acc = acc + jnp.dot(lhs[(p + ky, kx)], w2_ref[ky * 3 + kx],
                                    preferred_element_type=jnp.float32)
        act = jnp.maximum(acc + b2_ref[...], 0.0)
        pooled_h = act if pooled_h is None else jnp.maximum(pooled_h, act)

    o_ref[0] = pooled_h.astype(o_ref.dtype)


def conv_block(p1, w1, b1, w2, b2):
    n = p1.shape[0]
    return pl.pallas_call(
        _conv_block_kernel,
        out_shape=jax.ShapeDtypeStruct((n, 288, 64), jnp.bfloat16),
        grid=(n,),
        in_specs=[
            pl.BlockSpec((1, 28, 32, 9), lambda i: (i, 0, 0, 0)),
            pl.BlockSpec((9, 32), lambda i: (0, 0)),
            pl.BlockSpec((1, 32), lambda i: (0, 0)),
            pl.BlockSpec((9, 32, 64), lambda i: (0, 0, 0)),
            pl.BlockSpec((1, 64), lambda i: (0, 0)),
        ],
        out_specs=pl.BlockSpec((1, 288, 64), lambda i: (i, 0, 0)),
        compiler_params=pltpu.CompilerParams(
            dimension_semantics=("parallel",)),
    )(p1, w1, b1, w2, b2)


# ----------------------------------------------------------------------------
# Kernel 2: fused fc1 + relu + fc2 + log_softmax
# ----------------------------------------------------------------------------
def _mlp_head_kernel(x_ref, w1_ref, b1_ref, w2_ref, b2_ref, o_ref):
    h = jnp.dot(x_ref[...], w1_ref[...], preferred_element_type=jnp.float32)
    h = jnp.maximum(h + b1_ref[...], 0.0)                       # (tm, 128) f32, stays in VMEM
    logits = jnp.dot(h, w2_ref[...], preferred_element_type=jnp.float32) + b2_ref[...]
    m = jnp.max(logits, axis=-1, keepdims=True)
    s = logits - m
    o_ref[...] = s - jnp.log(jnp.sum(jnp.exp(s), axis=-1, keepdims=True))


def mlp_head(flat, w1, b1, w2, b2, tm=256):
    m, k = flat.shape
    tm = min(tm, _round_up(m, 8))
    m_pad = _round_up(m, tm)
    if m_pad != m:
        flat = jnp.pad(flat, ((0, m_pad - m), (0, 0)))
    out = pl.pallas_call(
        _mlp_head_kernel,
        out_shape=jax.ShapeDtypeStruct((m_pad, 10), jnp.float32),
        grid=(m_pad // tm,),
        in_specs=[
            pl.BlockSpec((tm, k), lambda i: (i, 0)),
            pl.BlockSpec((k, 128), lambda i: (0, 0)),
            pl.BlockSpec((1, 128), lambda i: (0, 0)),
            pl.BlockSpec((128, 10), lambda i: (0, 0)),
            pl.BlockSpec((1, 10), lambda i: (0, 0)),
        ],
        out_specs=pl.BlockSpec((tm, 10), lambda i: (i, 0)),
        compiler_params=pltpu.CompilerParams(
            dimension_semantics=("parallel",)),
    )(flat, w1, b1, w2, b2)
    return out[:m]


# ----------------------------------------------------------------------------
# Glue (plain JAX) + parameters
# ----------------------------------------------------------------------------
def _conv1_patches(x_nchw):
    """(N,1,28,28) -> (N, 28, 32, 9) bf16 im2col for conv1 (taps in (ky,kx) order).

    H padded 26->28 and W padded 26->32 with zeros; the padded region is
    computed inside the kernel but never read by the conv2 taps."""
    x = x_nchw[:, 0, :, :]
    taps = [x[:, dy:dy + 26, dx:dx + 26] for dy in range(3) for dx in range(3)]
    p1 = jnp.stack(taps, axis=-1)                     # (N, 26, 26, 9)
    p1 = jnp.pad(p1, ((0, 0), (0, 2), (0, 6), (0, 0)))
    return p1.astype(jnp.bfloat16)


def init_params(key):
    ks = jax.random.split(key, 8)

    def w(k, shape, fan_in):
        return jax.random.normal(k, shape, jnp.float32) / jnp.sqrt(fan_in)

    # conv weights in (ky, kx, cin, cout) order
    #   == torch weight (Cout, Cin, kh, kw) permuted (2, 3, 1, 0) then reshaped.
    conv1_w = w(ks[0], (3, 3, 1, 32), 9.0).reshape(9, 32)
    conv2_w = w(ks[1], (3, 3, 32, 64), 288.0).reshape(9, 32, 64)

    # fc1 weight in torch layout (fc1.weight.T, rows in NCHW flatten order
    # c*144 + i*12 + j), then rows permuted once to our NHWC flatten order
    # (i*768 + j*64 + c) so the hot path needs no transpose before flatten.
    fc1_w_torch = w(ks[2], (9216, 128), 9216.0)
    ii, jj, cc = jnp.meshgrid(jnp.arange(12), jnp.arange(12), jnp.arange(64),
                              indexing="ij")
    perm = (cc * 144 + ii * 12 + jj).reshape(-1)
    fc1_w = fc1_w_torch[perm]

    return {
        "conv1_w": conv1_w.astype(jnp.bfloat16),
        "conv1_b": jax.random.normal(ks[3], (1, 32), jnp.float32) * 0.01,
        "conv2_w": conv2_w.astype(jnp.bfloat16),
        "conv2_b": jax.random.normal(ks[4], (1, 64), jnp.float32) * 0.01,
        "fc1_w": fc1_w.astype(jnp.bfloat16),
        "fc1_b": jax.random.normal(ks[5], (1, 128), jnp.float32) * 0.01,
        "fc2_w": w(ks[6], (128, 10), 128.0),           # torch fc2.weight.T (f32)
        "fc2_b": jax.random.normal(ks[7], (1, 10), jnp.float32) * 0.01,
    }


def net_forward(params, x_nchw):
    n, c, h, w = x_nchw.shape
    assert (c, h, w) == (1, 28, 28), "Net requires (N, 1, 28, 28) input"

    p1 = _conv1_patches(x_nchw)                                   # (N, 28, 32, 9)
    # fused conv1 -> relu -> conv2 -> relu -> max over H-pairs of the 2x2 pool
    hp = conv_block(p1, params["conv1_w"], params["conv1_b"],
                    params["conv2_w"], params["conv2_b"])         # (N, 288, 64)
    hp = hp.reshape(n, 12, 24, 64)
    # remaining W-pair max of the 2x2 pool (cheap elementwise on the small tensor)
    pooled = jnp.maximum(hp[:, :, 0::2, :], hp[:, :, 1::2, :])    # (N, 12, 12, 64)

    # TODO(synk): dropout1/dropout2 are eval-mode identities (no RNG masking).
    flat = pooled.reshape(n, 9216)          # NHWC flatten; fc1_w rows pre-permuted to match

    # fused fc1 -> relu -> fc2 -> log_softmax
    return mlp_head(flat, params["fc1_w"], params["fc1_b"],
                    params["fc2_w"], params["fc2_b"])


if __name__ == "__main__":
    key = jax.random.PRNGKey(0)
    params = init_params(key)
    # MNIST-shaped input: batch=2, 1 channel, 28x28 (required so flatten == 9216)
    x = jax.random.normal(jax.random.PRNGKey(0), (2, 1, 28, 28), jnp.float32)

    out = jax.jit(net_forward)(params, x)
    out = jax.block_until_ready(out)

    assert out.shape == (2, 10), out.shape
    # rows of exp(log_softmax) must sum to 1
    assert bool(jnp.allclose(jnp.sum(jnp.exp(out), axis=1), 1.0, atol=1e-4))
    print("KERNEL_OK")
</pallas_src>

<mosaic_0001>
module attributes {stable_mosaic.version = 11 : i64} {
  func.func @_conv_block_kernel(%arg0: i32, %arg1: memref<1x28x32x9xbf16, #tpu.memory_space<vmem>>, %arg2: memref<9x32xbf16, #tpu.memory_space<vmem>>, %arg3: memref<1x32xf32, #tpu.memory_space<vmem>>, %arg4: memref<9x32x64xbf16, #tpu.memory_space<vmem>>, %arg5: memref<1x64xf32, #tpu.memory_space<vmem>>, %arg6: memref<1x288x64xbf16, #tpu.memory_space<vmem>>) attributes {dimension_semantics = [#tpu.dimension_semantics<parallel>], iteration_bounds = array<i64: 2>, scalar_prefetch = 0 : i64, scratch_operands = 0 : i64, tpu.core_type = #tpu.core_type<tc>, window_params = [{transform_indices = @transform_0, window_bounds = array<i64: 1, 28, 32, 9>}, {pipeline_mode = #tpu.pipeline_mode<synchronous>, transform_indices = @transform_1, window_bounds = array<i64: 9, 32>}, {pipeline_mode = #tpu.pipeline_mode<synchronous>, transform_indices = @transform_2, window_bounds = array<i64: 1, 32>}, {pipeline_mode = #tpu.pipeline_mode<synchronous>, transform_indices = @transform_3, window_bounds = array<i64: 9, 32, 64>}, {pipeline_mode = #tpu.pipeline_mode<synchronous>, transform_indices = @transform_4, window_bounds = array<i64: 1, 64>}, {transform_indices = @transform_5, window_bounds = array<i64: 1, 288, 64>}]} {
    %c0 = arith.constant 0 : index
    %c0_0 = arith.constant 0 : index
    %c0_1 = arith.constant 0 : index
    %c0_2 = arith.constant 0 : index
    %0 = vector.load %arg1[%c0, %c0_0, %c0_1, %c0_2] : memref<1x28x32x9xbf16, #tpu.memory_space<vmem>>, vector<1x28x32x9xbf16>
    %1 = vector.shape_cast %0 : vector<1x28x32x9xbf16> to vector<28x32x9xbf16>
    %2 = vector.shape_cast %1 : vector<28x32x9xbf16> to vector<896x9xbf16>
    %c0_3 = arith.constant 0 : index
    %c0_4 = arith.constant 0 : index
    %3 = vector.load %arg2[%c0_3, %c0_4] : memref<9x32xbf16, #tpu.memory_space<vmem>>, vector<9x32xbf16>
    %cst = arith.constant dense<0.000000e+00> : vector<896x32xf32>
    %4 = tpu.matmul %2, %3, %cst {dimension_numbers = #tpu.dot_dimension_numbers<[1], [0], [0], [1], [0, 0, 1, 1], [], []>} : vector<896x9xbf16>, vector<9x32xbf16>, vector<896x32xf32> -> vector<896x32xf32>
    %c0_5 = arith.constant 0 : index
    %c0_6 = arith.constant 0 : index
    %5 = vector.load %arg3[%c0_5, %c0_6] : memref<1x32xf32, #tpu.memory_space<vmem>>, vector<1x32xf32>
    %6 = vector.broadcast %5 : vector<1x32xf32> to vector<896x32xf32>
    %7 = arith.addf %4, %6 : vector<896x32xf32>
    %cst_7 = arith.constant 0.000000e+00 : f32
    %8 = vector.broadcast %cst_7 : f32 to vector<896x32xf32>
    %9 = arith.maximumf %7, %8 : vector<896x32xf32>
    %10 = vector.shape_cast %9 : vector<896x32xf32> to vector<28x32x32xf32>
    %11 = vector.extract_strided_slice %10 {offsets = [0, 0, 0], sizes = [24, 24, 32], strides = [1, 1, 1]} : vector<28x32x32xf32> to vector<24x24x32xf32>
    %12 = vector.shape_cast %11 : vector<24x24x32xf32> to vector<12x2x24x32xf32>
    %13 = vector.extract_strided_slice %12 {offsets = [0, 0, 0, 0], sizes = [12, 1, 24, 32], strides = [1, 1, 1, 1]} : vector<12x2x24x32xf32> to vector<12x1x24x32xf32>
    %14 = vector.shape_cast %13 : vector<12x1x24x32xf32> to vector<12x24x32xf32>
    %15 = vector.shape_cast %14 : vector<12x24x32xf32> to vector<288x32xf32>
    %16 = arith.truncf %15 : vector<288x32xf32> to vector<288x32xbf16>
    %17 = vector.extract_strided_slice %10 {offsets = [0, 1, 0], sizes = [24, 24, 32], strides = [1, 1, 1]} : vector<28x32x32xf32> to vector<24x24x32xf32>
    %18 = vector.shape_cast %17 : vector<24x24x32xf32> to vector<12x2x24x32xf32>
    %19 = vector.extract_strided_slice %18 {offsets = [0, 0, 0, 0], sizes = [12, 1, 24, 32], strides = [1, 1, 1, 1]} : vector<12x2x24x32xf32> to vector<12x1x24x32xf32>
    %20 = vector.shape_cast %19 : vector<12x1x24x32xf32> to vector<12x24x32xf32>
    %21 = vector.shape_cast %20 : vector<12x24x32xf32> to vector<288x32xf32>
    %22 = arith.truncf %21 : vector<288x32xf32> to vector<288x32xbf16>
    %23 = vector.extract_strided_slice %10 {offsets = [0, 2, 0], sizes = [24, 24, 32], strides = [1, 1, 1]} : vector<28x32x32xf32> to vector<24x24x32xf32>
    %24 = vector.shape_cast %23 : vector<24x24x32xf32> to vector<12x2x24x32xf32>
    %25 = vector.extract_strided_slice %24 {offsets = [0, 0, 0, 0], sizes = [12, 1, 24, 32], strides = [1, 1, 1, 1]} : vector<12x2x24x32xf32> to vector<12x1x24x32xf32>
    %26 = vector.shape_cast %25 : vector<12x1x24x32xf32> to vector<12x24x32xf32>
    %27 = vector.shape_cast %26 : vector<12x24x32xf32> to vector<288x32xf32>
    %28 = arith.truncf %27 : vector<288x32xf32> to vector<288x32xbf16>
    %29 = vector.extract_strided_slice %10 {offsets = [1, 0, 0], sizes = [24, 24, 32], strides = [1, 1, 1]} : vector<28x32x32xf32> to vector<24x24x32xf32>
    %30 = vector.shape_cast %29 : vector<24x24x32xf32> to vector<12x2x24x32xf32>
    %31 = vector.extract_strided_slice %30 {offsets = [0, 0, 0, 0], sizes = [12, 1, 24, 32], strides = [1, 1, 1, 1]} : vector<12x2x24x32xf32> to vector<12x1x24x32xf32>
    %32 = vector.shape_cast %31 : vector<12x1x24x32xf32> to vector<12x24x32xf32>
    %33 = vector.shape_cast %32 : vector<12x24x32xf32> to vector<288x32xf32>
    %34 = arith.truncf %33 : vector<288x32xf32> to vector<288x32xbf16>
    %35 = vector.extract_strided_slice %10 {offsets = [1, 1, 0], sizes = [24, 24, 32], strides = [1, 1, 1]} : vector<28x32x32xf32> to vector<24x24x32xf32>
    %36 = vector.shape_cast %35 : vector<24x24x32xf32> to vector<12x2x24x32xf32>
    %37 = vector.extract_strided_slice %36 {offsets = [0, 0, 0, 0], sizes = [12, 1, 24, 32], strides = [1, 1, 1, 1]} : vector<12x2x24x32xf32> to vector<12x1x24x32xf32>
    %38 = vector.shape_cast %37 : vector<12x1x24x32xf32> to vector<12x24x32xf32>
    %39 = vector.shape_cast %38 : vector<12x24x32xf32> to vector<288x32xf32>
    %40 = arith.truncf %39 : vector<288x32xf32> to vector<288x32xbf16>
    %41 = vector.extract_strided_slice %10 {offsets = [1, 2, 0], sizes = [24, 24, 32], strides = [1, 1, 1]} : vector<28x32x32xf32> to vector<24x24x32xf32>
    %42 = vector.shape_cast %41 : vector<24x24x32xf32> to vector<12x2x24x32xf32>
    %43 = vector.extract_strided_slice %42 {offsets = [0, 0, 0, 0], sizes = [12, 1, 24, 32], strides = [1, 1, 1, 1]} : vector<12x2x24x32xf32> to vector<12x1x24x32xf32>
    %44 = vector.shape_cast %43 : vector<12x1x24x32xf32> to vector<12x24x32xf32>
    %45 = vector.shape_cast %44 : vector<12x24x32xf32> to vector<288x32xf32>
    %46 = arith.truncf %45 : vector<288x32xf32> to vector<288x32xbf16>
    %47 = vector.extract_strided_slice %10 {offsets = [2, 0, 0], sizes = [24, 24, 32], strides = [1, 1, 1]} : vector<28x32x32xf32> to vector<24x24x32xf32>
    %48 = vector.shape_cast %47 : vector<24x24x32xf32> to vector<12x2x24x32xf32>
    %49 = vector.extract_strided_slice %48 {offsets = [0, 0, 0, 0], sizes = [12, 1, 24, 32], strides = [1, 1, 1, 1]} : vector<12x2x24x32xf32> to vector<12x1x24x32xf32>
    %50 = vector.shape_cast %49 : vector<12x1x24x32xf32> to vector<12x24x32xf32>
    %51 = vector.shape_cast %50 : vector<12x24x32xf32> to vector<288x32xf32>
    %52 = arith.truncf %51 : vector<288x32xf32> to vector<288x32xbf16>
    %53 = vector.extract_strided_slice %10 {offsets = [2, 1, 0], sizes = [24, 24, 32], strides = [1, 1, 1]} : vector<28x32x32xf32> to vector<24x24x32xf32>
    %54 = vector.shape_cast %53 : vector<24x24x32xf32> to vector<12x2x24x32xf32>
    %55 = vector.extract_strided_slice %54 {offsets = [0, 0, 0, 0], sizes = [12, 1, 24, 32], strides = [1, 1, 1, 1]} : vector<12x2x24x32xf32> to vector<12x1x24x32xf32>
    %56 = vector.shape_cast %55 : vector<12x1x24x32xf32> to vector<12x24x32xf32>
    %57 = vector.shape_cast %56 : vector<12x24x32xf32> to vector<288x32xf32>
    %58 = arith.truncf %57 : vector<288x32xf32> to vector<288x32xbf16>
    %59 = vector.extract_strided_slice %10 {offsets = [2, 2, 0], sizes = [24, 24, 32], strides = [1, 1, 1]} : vector<28x32x32xf32> to vector<24x24x32xf32>
    %60 = vector.shape_cast %59 : vector<24x24x32xf32> to vector<12x2x24x32xf32>
    %61 = vector.extract_strided_slice %60 {offsets = [0, 0, 0, 0], sizes = [12, 1, 24, 32], strides = [1, 1, 1, 1]} : vector<12x2x24x32xf32> to vector<12x1x24x32xf32>
    %62 = vector.shape_cast %61 : vector<12x1x24x32xf32> to vector<12x24x32xf32>
    %63 = vector.shape_cast %62 : vector<12x24x32xf32> to vector<288x32xf32>
    %64 = arith.truncf %63 : vector<288x32xf32> to vector<288x32xbf16>
    %65 = vector.extract_strided_slice %10 {offsets = [3, 0, 0], sizes = [24, 24, 32], strides = [1, 1, 1]} : vector<28x32x32xf32> to vector<24x24x32xf32>
    %66 = vector.shape_cast %65 : vector<24x24x32xf32> to vector<12x2x24x32xf32>
    %67 = vector.extract_strided_slice %66 {offsets = [0, 0, 0, 0], sizes = [12, 1, 24, 32], strides = [1, 1, 1, 1]} : vector<12x2x24x32xf32> to vector<12x1x24x32xf32>
    %68 = vector.shape_cast %67 : vector<12x1x24x32xf32> to vector<12x24x32xf32>
    %69 = vector.shape_cast %68 : vector<12x24x32xf32> to vector<288x32xf32>
    %70 = arith.truncf %69 : vector<288x32xf32> to vector<288x32xbf16>
    %71 = vector.extract_strided_slice %10 {offsets = [3, 1, 0], sizes = [24, 24, 32], strides = [1, 1, 1]} : vector<28x32x32xf32> to vector<24x24x32xf32>
    %72 = vector.shape_cast %71 : vector<24x24x32xf32> to vector<12x2x24x32xf32>
    %73 = vector.extract_strided_slice %72 {offsets = [0, 0, 0, 0], sizes = [12, 1, 24, 32], strides = [1, 1, 1, 1]} : vector<12x2x24x32xf32> to vector<12x1x24x32xf32>
    %74 = vector.shape_cast %73 : vector<12x1x24x32xf32> to vector<12x24x32xf32>
    %75 = vector.shape_cast %74 : vector<12x24x32xf32> to vector<288x32xf32>
    %76 = arith.truncf %75 : vector<288x32xf32> to vector<288x32xbf16>
    %77 = vector.extract_strided_slice %10 {offsets = [3, 2, 0], sizes = [24, 24, 32], strides = [1, 1, 1]} : vector<28x32x32xf32> to vector<24x24x32xf32>
    %78 = vector.shape_cast %77 : vector<24x24x32xf32> to vector<12x2x24x32xf32>
    %79 = vector.extract_strided_slice %78 {offsets = [0, 0, 0, 0], sizes = [12, 1, 24, 32], strides = [1, 1, 1, 1]} : vector<12x2x24x32xf32> to vector<12x1x24x32xf32>
    %80 = vector.shape_cast %79 : vector<12x1x24x32xf32> to vector<12x24x32xf32>
    %81 = vector.shape_cast %80 : vector<12x24x32xf32> to vector<288x32xf32>
    %82 = arith.truncf %81 : vector<288x32xf32> to vector<288x32xbf16>
    %cst_8 = arith.constant 0.000000e+00 : f32
    %83 = vector.broadcast %cst_8 : f32 to vector<288x64xf32>
    %c0_9 = arith.constant 0 : index
    %c0_10 = arith.constant 0 : index
    %c0_11 = arith.constant 0 : index
    %84 = vector.load %arg4[%c0_9, %c0_10, %c0_11] : memref<9x32x64xbf16, #tpu.memory_space<vmem>>, vector<1x32x64xbf16>
    %85 = vector.shape_cast %84 : vector<1x32x64xbf16> to vector<32x64xbf16>
    %cst_12 = arith.constant dense<0.000000e+00> : vector<288x64xf32>
    %86 = tpu.matmul %16, %85, %cst_12 {dimension_numbers = #tpu.dot_dimension_numbers<[1], [0], [0], [1], [0, 0, 1, 1], [], []>} : vector<288x32xbf16>, vector<32x64xbf16>, vector<288x64xf32> -> vector<288x64xf32>
    %87 = arith.addf %83, %86 : vector<288x64xf32>
    %c1 = arith.constant 1 : index
    %c0_13 = arith.constant 0 : index
    %c0_14 = arith.constant 0 : index
    %88 = vector.load %arg4[%c1, %c0_13, %c0_14] : memref<9x32x64xbf16, #tpu.memory_space<vmem>>, vector<1x32x64xbf16>
    %89 = vector.shape_cast %88 : vector<1x32x64xbf16> to vector<32x64xbf16>
    %cst_15 = arith.constant dense<0.000000e+00> : vector<288x64xf32>
    %90 = tpu.matmul %22, %89, %cst_15 {dimension_numbers = #tpu.dot_dimension_numbers<[1], [0], [0], [1], [0, 0, 1, 1], [], []>} : vector<288x32xbf16>, vector<32x64xbf16>, vector<288x64xf32> -> vector<288x64xf32>
    %91 = arith.addf %87, %90 : vector<288x64xf32>
    %c2 = arith.constant 2 : index
    %c0_16 = arith.constant 0 : index
    %c0_17 = arith.constant 0 : index
    %92 = vector.load %arg4[%c2, %c0_16, %c0_17] : memref<9x32x64xbf16, #tpu.memory_space<vmem>>, vector<1x32x64xbf16>
    %93 = vector.shape_cast %92 : vector<1x32x64xbf16> to vector<32x64xbf16>
    %cst_18 = arith.constant dense<0.000000e+00> : vector<288x64xf32>
    %94 = tpu.matmul %28, %93, %cst_18 {dimension_numbers = #tpu.dot_dimension_numbers<[1], [0], [0], [1], [0, 0, 1, 1], [], []>} : vector<288x32xbf16>, vector<32x64xbf16>, vector<288x64xf32> -> vector<288x64xf32>
    %95 = arith.addf %91, %94 : vector<288x64xf32>
    %c3 = arith.constant 3 : index
    %c0_19 = arith.constant 0 : index
    %c0_20 = arith.constant 0 : index
    %96 = vector.load %arg4[%c3, %c0_19, %c0_20] : memref<9x32x64xbf16, #tpu.memory_space<vmem>>, vector<1x32x64xbf16>
    %97 = vector.shape_cast %96 : vector<1x32x64xbf16> to vector<32x64xbf16>
    %cst_21 = arith.constant dense<0.000000e+00> : vector<288x64xf32>
    %98 = tpu.matmul %34, %97, %cst_21 {dimension_numbers = #tpu.dot_dimension_numbers<[1], [0], [0], [1], [0, 0, 1, 1], [], []>} : vector<288x32xbf16>, vector<32x64xbf16>, vector<288x64xf32> -> vector<288x64xf32>
    %99 = arith.addf %95, %98 : vector<288x64xf32>
    %c4 = arith.constant 4 : index
    %c0_22 = arith.constant 0 : index
    %c0_23 = arith.constant 0 : index
    %100 = vector.load %arg4[%c4, %c0_22, %c0_23] : memref<9x32x64xbf16, #tpu.memory_space<vmem>>, vector<1x32x64xbf16>
    %101 = vector.shape_cast %100 : vector<1x32x64xbf16> to vector<32x64xbf16>
    %cst_24 = arith.constant dense<0.000000e+00> : vector<288x64xf32>
    %102 = tpu.matmul %40, %101, %cst_24 {dimension_numbers = #tpu.dot_dimension_numbers<[1], [0], [0], [1], [0, 0, 1, 1], [], []>} : vector<288x32xbf16>, vector<32x64xbf16>, vector<288x64xf32> -> vector<288x64xf32>
    %103 = arith.addf %99, %102 : vector<288x64xf32>
    %c5 = arith.constant 5 : index
    %c0_25 = arith.constant 0 : index
    %c0_26 = arith.constant 0 : index
    %104 = vector.load %arg4[%c5, %c0_25, %c0_26] : memref<9x32x64xbf16, #tpu.memory_space<vmem>>, vector<1x32x64xbf16>
    %105 = vector.shape_cast %104 : vector<1x32x64xbf16> to vector<32x64xbf16>
    %cst_27 = arith.constant dense<0.000000e+00> : vector<288x64xf32>
    %106 = tpu.matmul %46, %105, %cst_27 {dimension_numbers = #tpu.dot_dimension_numbers<[1], [0], [0], [1], [0, 0, 1, 1], [], []>} : vector<288x32xbf16>, vector<32x64xbf16>, vector<288x64xf32> -> vector<288x64xf32>
    %107 = arith.addf %103, %106 : vector<288x64xf32>
    %c6 = arith.constant 6 : index
    %c0_28 = arith.constant 0 : index
    %c0_29 = arith.constant 0 : index
    %108 = vector.load %arg4[%c6, %c0_28, %c0_29] : memref<9x32x64xbf16, #tpu.memory_space<vmem>>, vector<1x32x64xbf16>
    %109 = vector.shape_cast %108 : vector<1x32x64xbf16> to vector<32x64xbf16>
    %cst_30 = arith.constant dense<0.000000e+00> : vector<288x64xf32>
    %110 = tpu.matmul %52, %109, %cst_30 {dimension_numbers = #tpu.dot_dimension_numbers<[1], [0], [0], [1], [0, 0, 1, 1], [], []>} : vector<288x32xbf16>, vector<32x64xbf16>, vector<288x64xf32> -> vector<288x64xf32>
    %111 = arith.addf %107, %110 : vector<288x64xf32>
    %c7 = arith.constant 7 : index
    %c0_31 = arith.constant 0 : index
    %c0_32 = arith.constant 0 : index
    %112 = vector.load %arg4[%c7, %c0_31, %c0_32] : memref<9x32x64xbf16, #tpu.memory_space<vmem>>, vector<1x32x64xbf16>
    %113 = vector.shape_cast %112 : vector<1x32x64xbf16> to vector<32x64xbf16>
    %cst_33 = arith.constant dense<0.000000e+00> : vector<288x64xf32>
    %114 = tpu.matmul %58, %113, %cst_33 {dimension_numbers = #tpu.dot_dimension_numbers<[1], [0], [0], [1], [0, 0, 1, 1], [], []>} : vector<288x32xbf16>, vector<32x64xbf16>, vector<288x64xf32> -> vector<288x64xf32>
    %115 = arith.addf %111, %114 : vector<288x64xf32>
    %c8 = arith.constant 8 : index
    %c0_34 = arith.constant 0 : index
    %c0_35 = arith.constant 0 : index
    %116 = vector.load %arg4[%c8, %c0_34, %c0_35] : memref<9x32x64xbf16, #tpu.memory_space<vmem>>, vector<1x32x64xbf16>
    %117 = vector.shape_cast %116 : vector<1x32x64xbf16> to vector<32x64xbf16>
    %cst_36 = arith.constant dense<0.000000e+00> : vector<288x64xf32>
    %118 = tpu.matmul %64, %117, %cst_36 {dimension_numbers = #tpu.dot_dimension_numbers<[1], [0], [0], [1], [0, 0, 1, 1], [], []>} : vector<288x32xbf16>, vector<32x64xbf16>, vector<288x64xf32> -> vector<288x64xf32>
    %119 = arith.addf %115, %118 : vector<288x64xf32>
    %c0_37 = arith.constant 0 : index
    %c0_38 = arith.constant 0 : index
    %120 = vector.load %arg5[%c0_37, %c0_38] : memref<1x64xf32, #tpu.memory_space<vmem>>, vector<1x64xf32>
    %121 = vector.broadcast %120 : vector<1x64xf32> to vector<288x64xf32>
    %122 = arith.addf %119, %121 : vector<288x64xf32>
    %cst_39 = arith.constant 0.000000e+00 : f32
    %123 = vector.broadcast %cst_39 : f32 to vector<288x64xf32>
    %124 = arith.maximumf %122, %123 : vector<288x64xf32>
    %cst_40 = arith.constant 0.000000e+00 : f32
    %125 = vector.broadcast %cst_40 : f32 to vector<288x64xf32>
    %c0_41 = arith.constant 0 : index
    %c0_42 = arith.constant 0 : index
    %c0_43 = arith.constant 0 : index
    %126 = vector.load %arg4[%c0_41, %c0_42, %c0_43] : memref<9x32x64xbf16, #tpu.memory_space<vmem>>, vector<1x32x64xbf16>
    %127 = vector.shape_cast %126 : vector<1x32x64xbf16> to vector<32x64xbf16>
    %cst_44 = arith.constant dense<0.000000e+00> : vector<288x64xf32>
    %128 = tpu.matmul %34, %127, %cst_44 {dimension_numbers = #tpu.dot_dimension_numbers<[1], [0], [0], [1], [0, 0, 1, 1], [], []>} : vector<288x32xbf16>, vector<32x64xbf16>, vector<288x64xf32> -> vector<288x64xf32>
    %129 = arith.addf %125, %128 : vector<288x64xf32>
    %c1_45 = arith.constant 1 : index
    %c0_46 = arith.constant 0 : index
    %c0_47 = arith.constant 0 : index
    %130 = vector.load %arg4[%c1_45, %c0_46, %c0_47] : memref<9x32x64xbf16, #tpu.memory_space<vmem>>, vector<1x32x64xbf16>
    %131 = vector.shape_cast %130 : vector<1x32x64xbf16> to vector<32x64xbf16>
    %cst_48 = arith.constant dense<0.000000e+00> : vector<288x64xf32>
    %132 = tpu.matmul %40, %131, %cst_48 {dimension_numbers = #tpu.dot_dimension_numbers<[1], [0], [0], [1], [0, 0, 1, 1], [], []>} : vector<288x32xbf16>, vector<32x64xbf16>, vector<288x64xf32> -> vector<288x64xf32>
    %133 = arith.addf %129, %132 : vector<288x64xf32>
    %c2_49 = arith.constant 2 : index
    %c0_50 = arith.constant 0 : index
    %c0_51 = arith.constant 0 : index
    %134 = vector.load %arg4[%c2_49, %c0_50, %c0_51] : memref<9x32x64xbf16, #tpu.memory_space<vmem>>, vector<1x32x64xbf16>
    %135 = vector.shape_cast %134 : vector<1x32x64xbf16> to vector<32x64xbf16>
    %cst_52 = arith.constant dense<0.000000e+00> : vector<288x64xf32>
    %136 = tpu.matmul %46, %135, %cst_52 {dimension_numbers = #tpu.dot_dimension_numbers<[1], [0], [0], [1], [0, 0, 1, 1], [], []>} : vector<288x32xbf16>, vector<32x64xbf16>, vector<288x64xf32> -> vector<288x64xf32>
    %137 = arith.addf %133, %136 : vector<288x64xf32>
    %c3_53 = arith.constant 3 : index
    %c0_54 = arith.constant 0 : index
    %c0_55 = arith.constant 0 : index
    %138 = vector.load %arg4[%c3_53, %c0_54, %c0_55] : memref<9x32x64xbf16, #tpu.memory_space<vmem>>, vector<1x32x64xbf16>
    %139 = vector.shape_cast %138 : vector<1x32x64xbf16> to vector<32x64xbf16>
    %cst_56 = arith.constant dense<0.000000e+00> : vector<288x64xf32>
    %140 = tpu.matmul %52, %139, %cst_56 {dimension_numbers = #tpu.dot_dimension_numbers<[1], [0], [0], [1], [0, 0, 1, 1], [], []>} : vector<288x32xbf16>, vector<32x64xbf16>, vector<288x64xf32> -> vector<288x64xf32>
    %141 = arith.addf %137, %140 : vector<288x64xf32>
    %c4_57 = arith.constant 4 : index
    %c0_58 = arith.constant 0 : index
    %c0_59 = arith.constant 0 : index
    %142 = vector.load %arg4[%c4_57, %c0_58, %c0_59] : memref<9x32x64xbf16, #tpu.memory_space<vmem>>, vector<1x32x64xbf16>
    %143 = vector.shape_cast %142 : vector<1x32x64xbf16> to vector<32x64xbf16>
    %cst_60 = arith.constant dense<0.000000e+00> : vector<288x64xf32>
    %144 = tpu.matmul %58, %143, %cst_60 {dimension_numbers = #tpu.dot_dimension_numbers<[1], [0], [0], [1], [0, 0, 1, 1], [], []>} : vector<288x32xbf16>, vector<32x64xbf16>, vector<288x64xf32> -> vector<288x64xf32>
    %145 = arith.addf %141, %144 : vector<288x64xf32>
    %c5_61 = arith.constant 5 : index
    %c0_62 = arith.constant 0 : index
    %c0_63 = arith.constant 0 : index
    %146 = vector.load %arg4[%c5_61, %c0_62, %c0_63] : memref<9x32x64xbf16, #tpu.memory_space<vmem>>, vector<1x32x64xbf16>
    %147 = vector.shape_cast %146 : vector<1x32x64xbf16> to vector<32x64xbf16>
    %cst_64 = arith.constant dense<0.000000e+00> : vector<288x64xf32>
    %148 = tpu.matmul %64, %147, %cst_64 {dimension_numbers = #tpu.dot_dimension_numbers<[1], [0], [0], [1], [0, 0, 1, 1], [], []>} : vector<288x32xbf16>, vector<32x64xbf16>, vector<288x64xf32> -> vector<288x64xf32>
    %149 = arith.addf %145, %148 : vector<288x64xf32>
    %c6_65 = arith.constant 6 : index
    %c0_66 = arith.constant 0 : index
    %c0_67 = arith.constant 0 : index
    %150 = vector.load %arg4[%c6_65, %c0_66, %c0_67] : memref<9x32x64xbf16, #tpu.memory_space<vmem>>, vector<1x32x64xbf16>
    %151 = vector.shape_cast %150 : vector<1x32x64xbf16> to vector<32x64xbf16>
    %cst_68 = arith.constant dense<0.000000e+00> : vector<288x64xf32>
    %152 = tpu.matmul %70, %151, %cst_68 {dimension_numbers = #tpu.dot_dimension_numbers<[1], [0], [0], [1], [0, 0, 1, 1], [], []>} : vector<288x32xbf16>, vector<32x64xbf16>, vector<288x64xf32> -> vector<288x64xf32>
    %153 = arith.addf %149, %152 : vector<288x64xf32>
    %c7_69 = arith.constant 7 : index
    %c0_70 = arith.constant 0 : index
    %c0_71 = arith.constant 0 : index
    %154 = vector.load %arg4[%c7_69, %c0_70, %c0_71] : memref<9x32x64xbf16, #tpu.memory_space<vmem>>, vector<1x32x64xbf16>
    %155 = vector.shape_cast %154 : vector<1x32x64xbf16> to vector<32x64xbf16>
    %cst_72 = arith.constant dense<0.000000e+00> : vector<288x64xf32>
    %156 = tpu.matmul %76, %155, %cst_72 {dimension_numbers = #tpu.dot_dimension_numbers<[1], [0], [0], [1], [0, 0, 1, 1], [], []>} : vector<288x32xbf16>, vector<32x64xbf16>, vector<288x64xf32> -> vector<288x64xf32>
    %157 = arith.addf %153, %156 : vector<288x64xf32>
    %c8_73 = arith.constant 8 : index
    %c0_74 = arith.constant 0 : index
    %c0_75 = arith.constant 0 : index
    %158 = vector.load %arg4[%c8_73, %c0_74, %c0_75] : memref<9x32x64xbf16, #tpu.memory_space<vmem>>, vector<1x32x64xbf16>
    %159 = vector.shape_cast %158 : vector<1x32x64xbf16> to vector<32x64xbf16>
    %cst_76 = arith.constant dense<0.000000e+00> : vector<288x64xf32>
    %160 = tpu.matmul %82, %159, %cst_76 {dimension_numbers = #tpu.dot_dimension_numbers<[1], [0], [0], [1], [0, 0, 1, 1], [], []>} : vector<288x32xbf16>, vector<32x64xbf16>, vector<288x64xf32> -> vector<288x64xf32>
    %161 = arith.addf %157, %160 : vector<288x64xf32>
    %c0_77 = arith.constant 0 : index
    %c0_78 = arith.constant 0 : index
    %162 = vector.load %arg5[%c0_77, %c0_78] : memref<1x64xf32, #tpu.memory_space<vmem>>, vector<1x64xf32>
    %163 = vector.broadcast %162 : vector<1x64xf32> to vector<288x64xf32>
    %164 = arith.addf %161, %163 : vector<288x64xf32>
    %cst_79 = arith.constant 0.000000e+00 : f32
    %165 = vector.broadcast %cst_79 : f32 to vector<288x64xf32>
    %166 = arith.maximumf %164, %165 : vector<288x64xf32>
    %167 = arith.maximumf %124, %166 : vector<288x64xf32>
    %168 = arith.truncf %167 : vector<288x64xf32> to vector<288x64xbf16>
    %c0_80 = arith.constant 0 : index
    %c0_81 = arith.constant 0 : index
    %c0_82 = arith.constant 0 : index
    %169 = vector.load %arg6[%c0_80, %c0_81, %c0_82] : memref<1x288x64xbf16, #tpu.memory_space<vmem>>, vector<1x288x64xbf16>
    %170 = vector.shape_cast %169 : vector<1x288x64xbf16> to vector<288x64xbf16>
    %171 = vector.shape_cast %168 : vector<288x64xbf16> to vector<1x288x64xbf16>
    tpu.vector_store %arg6[%c0_80, %c0_81, %c0_82], %171 {strides = array<i32>} : memref<1x288x64xbf16, #tpu.memory_space<vmem>>, vector<1x288x64xbf16>,
    return
  }
  func.func @transform_0(%arg0: i32) -> (i32, i32, i32, i32) {
    %c0_i32 = arith.constant 0 : i32
    %c0_i32_0 = arith.constant 0 : i32
    %c0_i32_1 = arith.constant 0 : i32
    %c0_i32_2 = arith.constant 0 : i32
    return %arg0, %c0_i32, %c0_i32_0, %c0_i32_1 : i32, i32, i32, i32
  }
  func.func @transform_1(%arg0: i32) -> (i32, i32) {
    %c0_i32 = arith.constant 0 : i32
    %c0_i32_0 = arith.constant 0 : i32
    %c0_i32_1 = arith.constant 0 : i32
    return %c0_i32, %c0_i32_0 : i32, i32
  }
  func.func @transform_2(%arg0: i32) -> (i32, i32) {
    %c0_i32 = arith.constant 0 : i32
    %c0_i32_0 = arith.constant 0 : i32
    %c0_i32_1 = arith.constant 0 : i32
    return %c0_i32, %c0_i32_0 : i32, i32
  }
  func.func @transform_3(%arg0: i32) -> (i32, i32, i32) {
    %c0_i32 = arith.constant 0 : i32
    %c0_i32_0 = arith.constant 0 : i32
    %c0_i32_1 = arith.constant 0 : i32
    %c0_i32_2 = arith.constant 0 : i32
    return %c0_i32, %c0_i32_0, %c0_i32_1 : i32, i32, i32
  }
  func.func @transform_4(%arg0: i32) -> (i32, i32) {
    %c0_i32 = arith.constant 0 : i32
    %c0_i32_0 = arith.constant 0 : i32
    %c0_i32_1 = arith.constant 0 : i32
    return %c0_i32, %c0_i32_0 : i32, i32
  }
  func.func @transform_5(%arg0: i32) -> (i32, i32, i32) {
    %c0_i32 = arith.constant 0 : i32
    %c0_i32_0 = arith.constant 0 : i32
    %c0_i32_1 = arith.constant 0 : i32
    return %arg0, %c0_i32, %c0_i32_0 : i32, i32, i32
  }
}

module attributes {stable_mosaic.version = 11 : i64} {
  func.func @_mlp_head_kernel(%arg0: i32, %arg1: memref<8x9216xbf16, #tpu.memory_space<vmem>>, %arg2: memref<9216x128xbf16, #tpu.memory_space<vmem>>, %arg3: memref<1x128xf32, #tpu.memory_space<vmem>>, %arg4: memref<128x10xf32, #tpu.memory_space<vmem>>, %arg5: memref<1x10xf32, #tpu.memory_space<vmem>>, %arg6: memref<8x10xf32, #tpu.memory_space<vmem>>) attributes {dimension_semantics = [#tpu.dimension_semantics<parallel>], iteration_bounds = array<i64: 1>, scalar_prefetch = 0 : i64, scratch_operands = 0 : i64, tpu.core_type = #tpu.core_type<tc>, window_params = [{transform_indices = @transform_0, window_bounds = array<i64: 8, 9216>}, {pipeline_mode = #tpu.pipeline_mode<synchronous>, transform_indices = @transform_1, window_bounds = array<i64: 9216, 128>}, {pipeline_mode = #tpu.pipeline_mode<synchronous>, transform_indices = @transform_2, window_bounds = array<i64: 1, 128>}, {pipeline_mode = #tpu.pipeline_mode<synchronous>, transform_indices = @transform_3, window_bounds = array<i64: 128, 10>}, {pipeline_mode = #tpu.pipeline_mode<synchronous>, transform_indices = @transform_4, window_bounds = array<i64: 1, 10>}, {transform_indices = @transform_5, window_bounds = array<i64: 8, 10>}]} {
    %c0 = arith.constant 0 : index
    %c0_0 = arith.constant 0 : index
    %0 = vector.load %arg1[%c0, %c0_0] : memref<8x9216xbf16, #tpu.memory_space<vmem>>, vector<8x9216xbf16>
    %c0_1 = arith.constant 0 : index
    %c0_2 = arith.constant 0 : index
    %1 = vector.load %arg2[%c0_1, %c0_2] : memref<9216x128xbf16, #tpu.memory_space<vmem>>, vector<9216x128xbf16>
    %cst = arith.constant dense<0.000000e+00> : vector<8x128xf32>
    %2 = tpu.matmul %0, %1, %cst {dimension_numbers = #tpu.dot_dimension_numbers<[1], [0], [0], [1], [0, 0, 1, 1], [], []>} : vector<8x9216xbf16>, vector<9216x128xbf16>, vector<8x128xf32> -> vector<8x128xf32>
    %c0_3 = arith.constant 0 : index
    %c0_4 = arith.constant 0 : index
    %3 = vector.load %arg3[%c0_3, %c0_4] : memref<1x128xf32, #tpu.memory_space<vmem>>, vector<1x128xf32>
    %4 = vector.broadcast %3 : vector<1x128xf32> to vector<8x128xf32>
    %5 = arith.addf %2, %4 : vector<8x128xf32>
    %cst_5 = arith.constant 0.000000e+00 : f32
    %6 = vector.broadcast %cst_5 : f32 to vector<8x128xf32>
    %7 = arith.maximumf %5, %6 : vector<8x128xf32>
    %c0_6 = arith.constant 0 : index
    %c0_7 = arith.constant 0 : index
    %8 = vector.load %arg4[%c0_6, %c0_7] : memref<128x10xf32, #tpu.memory_space<vmem>>, vector<128x10xf32>
    %cst_8 = arith.constant dense<0.000000e+00> : vector<8x10xf32>
    %9 = tpu.matmul %7, %8, %cst_8 {dimension_numbers = #tpu.dot_dimension_numbers<[1], [0], [0], [1], [0, 0, 1, 1], [], []>} : vector<8x128xf32>, vector<128x10xf32>, vector<8x10xf32> -> vector<8x10xf32>
    %c0_9 = arith.constant 0 : index
    %c0_10 = arith.constant 0 : index
    %10 = vector.load %arg5[%c0_9, %c0_10] : memref<1x10xf32, #tpu.memory_space<vmem>>, vector<1x10xf32>
    %11 = vector.broadcast %10 : vector<1x10xf32> to vector<8x10xf32>
    %12 = arith.addf %9, %11 : vector<8x10xf32>
    %cst_11 = arith.constant dense<0xFF800000> : vector<8xf32>
    %13 = vector.multi_reduction <maximumf>, %12, %cst_11 [1] : vector<8x10xf32> to vector<8xf32>
    %14 = vector.shape_cast %13 : vector<8xf32> to vector<8x1xf32>
    %15 = vector.broadcast %14 : vector<8x1xf32> to vector<8x10xf32>
    %16 = arith.subf %12, %15 : vector<8x10xf32>
    %17 = math.exp %16 : vector<8x10xf32>
    %cst_12 = arith.constant dense<0.000000e+00> : vector<8xf32>
    %18 = vector.multi_reduction <add>, %17, %cst_12 [1] : vector<8x10xf32> to vector<8xf32>
    %19 = vector.shape_cast %18 : vector<8xf32> to vector<8x1xf32>
    %20 = math.log %19 : vector<8x1xf32>
    %21 = vector.broadcast %20 : vector<8x1xf32> to vector<8x10xf32>
    %22 = arith.subf %16, %21 : vector<8x10xf32>
    %c0_13 = arith.constant 0 : index
    %c0_14 = arith.constant 0 : index
    %23 = vector.load %arg6[%c0_13, %c0_14] : memref<8x10xf32, #tpu.memory_space<vmem>>, vector<8x10xf32>
    tpu.vector_store %arg6[%c0_13, %c0_14], %22 {strides = array<i32>} : memref<8x10xf32, #tpu.memory_space<vmem>>, vector<8x10xf32>,
    return
  }
  func.func @transform_0(%arg0: i32) -> (i32, i32) {
    %c0_i32 = arith.constant 0 : i32
    %c0_i32_0 = arith.constant 0 : i32
    return %arg0, %c0_i32 : i32, i32
  }
  func.func @transform_1(%arg0: i32) -> (i32, i32) {
    %c0_i32 = arith.constant 0 : i32
    %c0_i32_0 = arith.constant 0 : i32
    %c0_i32_1 = arith.constant 0 : i32
    return %c0_i32, %c0_i32_0 : i32, i32
  }
  func.func @transform_2(%arg0: i32) -> (i32, i32) {
    %c0_i32 = arith.constant 0 : i32
    %c0_i32_0 = arith.constant 0 : i32
    %c0_i32_1 = arith.constant 0 : i32
    return %c0_i32, %c0_i32_0 : i32, i32
  }
  func.func @transform_3(%arg0: i32) -> (i32, i32) {
    %c0_i32 = arith.constant 0 : i32
    %c0_i32_0 = arith.constant 0 : i32
    %c0_i32_1 = arith.constant 0 : i32
    return %c0_i32, %c0_i32_0 : i32, i32
  }
  func.func @transform_4(%arg0: i32) -> (i32, i32) {
    %c0_i32 = arith.constant 0 : i32
    %c0_i32_0 = arith.constant 0 : i32
    %c0_i32_1 = arith.constant 0 : i32
    return %c0_i32, %c0_i32_0 : i32, i32
  }
  func.func @transform_5(%arg0: i32) -> (i32, i32) {
    %c0_i32 = arith.constant 0 : i32
    %c0_i32_0 = arith.constant 0 : i32
    return %arg0, %c0_i32 : i32, i32
  }
}

</mosaic_0001>

<llo_original>
// kernel: net_forward.2
$region0: #{net_forward.2}
  #allocation0 [shape = 'u32[]', space=smem, size = 0x4, offset = 0x4, fixed_abs, tag = 'smem constant byte address 0x4 - core index']
  #allocation1 [shape = 'u32[144,128]{1,0:T(1,128)}', space=vmem, size = 0x12000, scoped, tag = 'internal scratch']
  %s0 = inlined_call_operand.vmem [shape: bf16[2,28,32,9], index: 0, kind: input, shape index: {}]
  %s1 = inlined_call_operand.vmem [shape: bf16[9,32], index: 1, kind: input, shape index: {}]
  %s2 = inlined_call_operand.vmem [shape: f32[1,32], index: 2, kind: input, shape index: {}]
  %s3 = inlined_call_operand.vmem [shape: bf16[9,32,64], index: 3, kind: input, shape index: {}]
  %s4 = inlined_call_operand.vmem [shape: f32[1,64], index: 4, kind: input, shape index: {}]
  %s5 = inlined_call_operand.vmem [shape: bf16[2,288,64], index: 5, kind: output, shape index: {}]
  %s6 = sld [smem:[#allocation0]]
  $region53: #{net_forward.2} parent=0
    _
  %s8 = ssub.s32 1, %s6
  %s9 = scalar_select 0, %s8, %s6
  loop: start=0, step=1, limit=4
  $region2: #{net_forward.2} parent=0 // loop_pre_header
    _
  $region3: #{net_forward.2} parent=0 // loop_header
    %s11 = sphi 0, %s15
    %p12 = scmp.ge.s32.totalorder %s11, 4
    %s21 = sphi 0, %s23
    %s24 = sphi 0, %s21
    %s25 = sphi 0, %s24
    %s41 = sphi 0, %s25
    %s45 = sphi 0, %s45
    %s47 = sphi 0, %s45
    %s48 = sphi 0, %s47
    %s62 = sphi 0, %s48
    %s66 = sphi 0, %s66
    %s68 = sphi 0, %s66
    %s69 = sphi 0, %s68
    %s83 = sphi 0, %s69
    %s87 = sphi 0, %s87
    %s89 = sphi 0, %s87
    %s90 = sphi 0, %s89
    %s104 = sphi 0, %s90
    %s108 = sphi 0, %s108
    %s110 = sphi 0, %s108
    %s111 = sphi 0, %s110
    %s125 = sphi 0, %s111
    %s131 = sphi 0, %s133
    %s134 = sphi 0, %s131
    %s135 = sphi 0, %s134
    %s151 = sphi 0, %s135
  $region4: #{net_forward.2} parent=0 // loop_header_branch
    %14 = sbr.rel (%p12) target = $region8
  $region5: #{net_forward.2} parent=0 // loop_body
    %s16 = ssub.s32 %s11, 1
    %s17 = ssub.s32 %s11, 2
    %s18 = sadd.s32 %s11, 1
    %s19 = ssub.s32 %s11, %s18
    %p20 = scmp.eq.s32.totalorder %s19, 0
    %s22 = sadd.s32 %s21, 1
    %s23 = scalar_select %p20, %s21, %s22
    %p26 = pneg %p20
    %p27 = scmp.eq.s32.totalorder %s11, 1
    %p28 = por %p26, %p27
    %p29 = scmp.ne.s32.totalorder %s21, %s24
    %p30 = scmp.eq.s32.totalorder %s11, 0
    %p31 = por %p29, %p30
    %p32 = scmp.ne.s32.totalorder %s21, %s24
    %p33 = scmp.eq.s32.totalorder %s16, 1
    %p34 = por %p32, %p33
    %p35 = scmp.ne.s32.totalorder %s24, %s25
    %p36 = scmp.eq.s32.totalorder %s16, 0
    %p37 = por %p35, %p36
    %p38 = scmp.ne.s32.totalorder %s24, %s25
    %p39 = scmp.eq.s32.totalorder %s17, 1
    %p40 = por %p38, %p39
    %p42 = scmp.ne.s32.totalorder %s25, %s41
    %p43 = scmp.eq.s32.totalorder %s17, 0
    %p44 = por %p42, %p43
    %s46 = sadd.s32 %s45, 1
    %p49 = scmp.eq.s32.totalorder %s11, 1
    %p50 = scmp.ne.s32.totalorder %s45, %s47
    %p51 = scmp.eq.s32.totalorder %s11, 0
    %p52 = por %p50, %p51
    %p53 = scmp.ne.s32.totalorder %s45, %s47
    %p54 = scmp.eq.s32.totalorder %s16, 1
    %p55 = por %p53, %p54
    %p56 = scmp.ne.s32.totalorder %s47, %s48
    %p57 = scmp.eq.s32.totalorder %s16, 0
    %p58 = por %p56, %p57
    %p59 = scmp.ne.s32.totalorder %s47, %s48
    %p60 = scmp.eq.s32.totalorder %s17, 1
    %p61 = por %p59, %p60
    %p63 = scmp.ne.s32.totalorder %s48, %s62
    %p64 = scmp.eq.s32.totalorder %s17, 0
    %p65 = por %p63, %p64
    %s67 = sadd.s32 %s66, 1
    %p70 = scmp.eq.s32.totalorder %s11, 1
    %p71 = scmp.ne.s32.totalorder %s66, %s68
    %p72 = scmp.eq.s32.totalorder %s11, 0
    %p73 = por %p71, %p72
    %p74 = scmp.ne.s32.totalorder %s66, %s68
    %p75 = scmp.eq.s32.totalorder %s16, 1
    %p76 = por %p74, %p75
    %p77 = scmp.ne.s32.totalorder %s68, %s69
    %p78 = scmp.eq.s32.totalorder %s16, 0
    %p79 = por %p77, %p78
    %p80 = scmp.ne.s32.totalorder %s68, %s69
    %p81 = scmp.eq.s32.totalorder %s17, 1
    %p82 = por %p80, %p81
    %p84 = scmp.ne.s32.totalorder %s69, %s83
    %p85 = scmp.eq.s32.totalorder %s17, 0
    %p86 = por %p84, %p85
    %s88 = sadd.s32 %s87, 1
    %p91 = scmp.eq.s32.totalorder %s11, 1
    %p92 = scmp.ne.s32.totalorder %s87, %s89
    %p93 = scmp.eq.s32.totalorder %s11, 0
    %p94 = por %p92, %p93
    %p95 = scmp.ne.s32.totalorder %s87, %s89
    %p96 = scmp.eq.s32.totalorder %s16, 1
    %p97 = por %p95, %p96
    %p98 = scmp.ne.s32.totalorder %s89, %s90
    %p99 = scmp.eq.s32.totalorder %s16, 0
    %p100 = por %p98, %p99
    %p101 = scmp.ne.s32.totalorder %s89, %s90
    %p102 = scmp.eq.s32.totalorder %s17, 1
    %p103 = por %p101, %p102
    %p105 = scmp.ne.s32.totalorder %s90, %s104
    %p106 = scmp.eq.s32.totalorder %s17, 0
    %p107 = por %p105, %p106
    %s109 = sadd.s32 %s108, 1
    %p112 = scmp.eq.s32.totalorder %s11, 1
    %p113 = scmp.ne.s32.totalorder %s108, %s110
    %p114 = scmp.eq.s32.totalorder %s11, 0
    %p115 = por %p113, %p114
    %p116 = scmp.ne.s32.totalorder %s108, %s110
    %p117 = scmp.eq.s32.totalorder %s16, 1
    %p118 = por %p116, %p117
    %p119 = scmp.ne.s32.totalorder %s110, %s111
    %p120 = scmp.eq.s32.totalorder %s16, 0
    %p121 = por %p119, %p120
    %p122 = scmp.ne.s32.totalorder %s110, %s111
    %p123 = scmp.eq.s32.totalorder %s17, 1
    %p124 = por %p122, %p123
    %p126 = scmp.ne.s32.totalorder %s111, %s125
    %p127 = scmp.eq.s32.totalorder %s17, 0
    %p128 = por %p126, %p127
    %s129 = ssub.s32 %s11, %s18
    %p130 = scmp.eq.s32.totalorder %s129, 0
    %s132 = sadd.s32 %s131, 1
    %s133 = scalar_select %p130, %s131, %s132
    %p136 = pneg %p130
    %p137 = scmp.eq.s32.totalorder %s11, 1
    %p138 = por %p136, %p137
    %p139 = scmp.ne.s32.totalorder %s131, %s134
    %p140 = scmp.eq.s32.totalorder %s11, 0
    %p141 = por %p139, %p140
    %p142 = scmp.ne.s32.totalorder %s131, %s134
    %p143 = scmp.eq.s32.totalorder %s16, 1
    %p144 = por %p142, %p143
    %p145 = scmp.ne.s32.totalorder %s134, %s135
    %p146 = scmp.eq.s32.totalorder %s16, 0
    %p147 = por %p145, %p146
    %p148 = scmp.ne.s32.totalorder %s134, %s135
    %p149 = scmp.eq.s32.totalorder %s17, 1
    %p150 = por %p148, %p149
    %p152 = scmp.ne.s32.totalorder %s135, %s151
    %p153 = scmp.eq.s32.totalorder %s17, 0
    %p154 = por %p152, %p153
    %p155 = scmp.le.s32.totalorder 1, %s11
    %p156 = scmp.lt.s32.totalorder %s11, 3
    %p157 = pnand %p155, %p156
    %p158 = pneg %p157
    // Predicated region
    $region9: #{net_forward.2} parent=5 // pred_check
      _
    $region10: #{net_forward.2} parent=5 // pred_check_branch
      %160 = sbr.rel (%p157) target = $region12
    $region11: #{net_forward.2} parent=5 // pred_region
      %s161 = ssub.s32 %s11, 1
      // Predicated region
      $region13: #{net_forward.2} parent=11 // pred_check
        %p162 = pneg %p58
      $region14: #{net_forward.2} parent=11 // pred_check_branch
        %164 = sbr.rel (%p162) target = $region16
      $region15: #{net_forward.2} parent=11 // pred_region
        _
      $region16: #{net_forward.2} parent=11 // pred_fallthru
        _
      // Predicated region
      $region17: #{net_forward.2} parent=11 // pred_check
        %p165 = pneg %p79
      $region18: #{net_forward.2} parent=11 // pred_check_branch
        %167 = sbr.rel (%p165) target = $region20
      $region19: #{net_forward.2} parent=11 // pred_region
        _
      $region20: #{net_forward.2} parent=11 // pred_fallthru
        _
      // Predicated region
      $region21: #{net_forward.2} parent=11 // pred_check
        %p168 = pneg %p100
      $region22: #{net_forward.2} parent=11 // pred_check_branch
        %170 = sbr.rel (%p168) target = $region24
      $region23: #{net_forward.2} parent=11 // pred_region
        _
      $region24: #{net_forward.2} parent=11 // pred_fallthru
        _
      // Predicated region
      $region25: #{net_forward.2} parent=11 // pred_check
        %p171 = pneg %p121
      $region26: #{net_forward.2} parent=11 // pred_check_branch
        %173 = sbr.rel (%p171) target = $region28
      $region27: #{net_forward.2} parent=11 // pred_region
        _
      $region28: #{net_forward.2} parent=11 // pred_fallthru
        _
    $region12: #{net_forward.2} parent=5 // pred_fallthru
      _
    %p174 = scmp.lt.s32.totalorder %s11, 2
    // Predicated region
    $region29: #{net_forward.2} parent=5 // pred_check
      %p175 = pneg %p174
    $region30: #{net_forward.2} parent=5 // pred_check_branch
      %177 = sbr.rel (%p175) target = $region32
    $region31: #{net_forward.2} parent=5 // pred_region
      // Predicated region
      $region33: #{net_forward.2} parent=31 // pred_check
        %p178 = pneg %p31
      $region34: #{net_forward.2} parent=31 // pred_check_branch
        %180 = sbr.rel (%p178) target = $region36
      $region35: #{net_forward.2} parent=31 // pred_region
        %p181 = scmp.lt.s32.totalorder %s11, 1
        %s182 = scalar_select %p181, %s11, 1
        %s183 = smul.addr %s182, 112
        %s184 = smul.addr %s183, 4
        %s185 = scalar_lea.vmem %s0, %s184
      $region36: #{net_forward.2} parent=31 // pred_fallthru
        _
    $region32: #{net_forward.2} parent=5 // pred_fallthru
      _
    %p186 = scmp.le.s32.totalorder 1, %s11
    %p187 = scmp.lt.s32.totalorder %s11, 3
    %p188 = pnand %p186, %p187
    %p189 = pneg %p188
    // Predicated region
    $region37: #{net_forward.2} parent=5 // pred_check
      _
    $region38: #{net_forward.2} parent=5 // pred_check_branch
      %191 = sbr.rel (%p188) target = $region40
    $region39: #{net_forward.2} parent=5 // pred_region
      %s192 = ssub.s32 %s11, 1
      %p193 = scmp.lt.s32.totalorder %s16, 1
      %s194 = scalar_select %p193, %s16, 1
      %s195 = smul.addr %s194, 112
      %s196 = smul.addr %s195, 4
      %s197 = scalar_lea.vmem %s0, %s196
      %p198 = pneg %p37
      %p199 = pneg %p34
      %p200 = pneg %p58
      %p201 = pneg %p55
      %p202 = pneg %p79
      %p203 = pneg %p76
      %p204 = pneg %p100
      %p205 = pneg %p97
      %p206 = pneg %p121
      %p207 = pneg %p118
      %p208 = pneg %p147
      %p209 = pneg %p144
      %p210 = scmp.lt.s32.totalorder %s16, 1
      %s211 = scalar_select %p210, %s16, 1
      %s212 = smul.addr %s211, 36
      %s213 = smul.addr %s212, 4
      %s214 = scalar_lea.vmem %s5, %s213
      %p215 = scmp.lt.s32.totalorder %s16, 1
      %s216 = scalar_select %p215, %s16, 1
      %s217 = smul.addr %s216, 112
      %s218 = smul.addr %s217, 4
      %s219 = scalar_lea.vmem %s0, %s218
      %p220 = scmp.lt.s32.totalorder %s16, 1
      %s221 = scalar_select %p220, %s16, 1
      %s222 = smul.addr %s221, 36
      %s223 = smul.addr %s222, 4
      %s224 = scalar_lea.vmem %s5, %s223
      %v226 = vld [vmem:[%s219] sm:$0xf]
      %v227 = vld [vmem:[%s219 + $0x4] sm:$0xf]
      %v228 = vld [vmem:[%s219 + $0x8] sm:$0xf]
      %v229 = vld [vmem:[%s219 + $0xc] sm:$0xf]
      %v230 = vld [vmem:[%s219 + $0x10] sm:$0xf]
      %v231 = vld [vmem:[%s219 + $0x14] sm:$0xf]
      %v232 = vld [vmem:[%s219 + $0x18] sm:$0xf]
      %v233 = vld [vmem:[%s219 + $0x1c] sm:$0xf]
      %v234 = vld [vmem:[%s219 + $0x20] sm:$0xf]
      %v235 = vld [vmem:[%s219 + $0x24] sm:$0xf]
      %v236 = vld [vmem:[%s219 + $0x28] sm:$0xf]
      %v237 = vld [vmem:[%s219 + $0x2c] sm:$0xf]
      %v238 = vld [vmem:[%s219 + $0x30] sm:$0xf]
      %v239 = vld [vmem:[%s219 + $0x34] sm:$0xf]
      %v240 = vld [vmem:[%s219 + $0x38] sm:$0xf]
      %v241 = vld [vmem:[%s219 + $0x3c] sm:$0xf]
      %v242 = vld [vmem:[%s219 + $0x40] sm:$0xf]
      %v243 = vld [vmem:[%s219 + $0x44] sm:$0xf]
      %v244 = vld [vmem:[%s219 + $0x48] sm:$0xf]
      %v245 = vld [vmem:[%s219 + $0x4c] sm:$0xf]
      %v246 = vld [vmem:[%s219 + $0x50] sm:$0xf]
      %v247 = vld [vmem:[%s219 + $0x54] sm:$0xf]
      %v248 = vld [vmem:[%s219 + $0x58] sm:$0xf]
      %v249 = vld [vmem:[%s219 + $0x5c] sm:$0xf]
      %v250 = vld [vmem:[%s219 + $0x60] sm:$0xf]
      %v251 = vld [vmem:[%s219 + $0x64] sm:$0xf]
      %v252 = vld [vmem:[%s219 + $0x68] sm:$0xf]
      %v253 = vld [vmem:[%s219 + $0x6c] sm:$0xf]
      %v254 = vld [vmem:[%s219 + $0x70] sm:$0xf]
      %v255 = vld [vmem:[%s219 + $0x74] sm:$0xf]
      %v256 = vld [vmem:[%s219 + $0x78] sm:$0xf]
      %v257 = vld [vmem:[%s219 + $0x7c] sm:$0xf]
      %v258 = vld [vmem:[%s219 + $0x80] sm:$0xf]
      %v259 = vld [vmem:[%s219 + $0x84] sm:$0xf]
      %v260 = vld [vmem:[%s219 + $0x88] sm:$0xf]
      %v261 = vld [vmem:[%s219 + $0x8c] sm:$0xf]
      %v262 = vld [vmem:[%s219 + $0x90] sm:$0xf]
      %v263 = vld [vmem:[%s219 + $0x94] sm:$0xf]
      %v264 = vld [vmem:[%s219 + $0x98] sm:$0xf]
      %v265 = vld [vmem:[%s219 + $0x9c] sm:$0xf]
      %v266 = vld [vmem:[%s219 + $0xa0] sm:$0xf]
      %v267 = vld [vmem:[%s219 + $0xa4] sm:$0xf]
      %v268 = vld [vmem:[%s219 + $0xa8] sm:$0xf]
      %v269 = vld [vmem:[%s219 + $0xac] sm:$0xf]
      %v270 = vld [vmem:[%s219 + $0xb0] sm:$0xf]
      %v271 = vld [vmem:[%s219 + $0xb4] sm:$0xf]
      %v272 = vld [vmem:[%s219 + $0xb8] sm:$0xf]
      %v273 = vld [vmem:[%s219 + $0xbc] sm:$0xf]
      %v274 = vld [vmem:[%s219 + $0xc0] sm:$0xf]
      %v275 = vld [vmem:[%s219 + $0xc4] sm:$0xf]
      %v276 = vld [vmem:[%s219 + $0xc8] sm:$0xf]
      %v277 = vld [vmem:[%s219 + $0xcc] sm:$0xf]
      %v278 = vld [vmem:[%s219 + $0xd0] sm:$0xf]
      %v279 = vld [vmem:[%s219 + $0xd4] sm:$0xf]
      %v280 = vld [vmem:[%s219 + $0xd8] sm:$0xf]
      %v281 = vld [vmem:[%s219 + $0xdc] sm:$0xf]
      %v282 = vld [vmem:[%s219 + $0xe0] sm:$0xf]
      %v283 = vld [vmem:[%s219 + $0xe4] sm:$0xf]
      %v284 = vld [vmem:[%s219 + $0xe8] sm:$0xf]
      %v285 = vld [vmem:[%s219 + $0xec] sm:$0xf]
      %v286 = vld [vmem:[%s219 + $0xf0] sm:$0xf]
      %v287 = vld [vmem:[%s219 + $0xf4] sm:$0xf]
      %v288 = vld [vmem:[%s219 + $0xf8] sm:$0xf]
      %v289 = vld [vmem:[%s219 + $0xfc] sm:$0xf]
      %v290 = vld [vmem:[%s219 + $0x100] sm:$0xf]
      %v291 = vld [vmem:[%s219 + $0x104] sm:$0xf]
      %v292 = vld [vmem:[%s219 + $0x108] sm:$0xf]
      %v293 = vld [vmem:[%s219 + $0x10c] sm:$0xf]
      %v294 = vld [vmem:[%s219 + $0x110] sm:$0xf]
      %v295 = vld [vmem:[%s219 + $0x114] sm:$0xf]
      %v296 = vld [vmem:[%s219 + $0x118] sm:$0xf]
      %v297 = vld [vmem:[%s219 + $0x11c] sm:$0xf]
      %v298 = vld [vmem:[%s219 + $0x120] sm:$0xf]
      %v299 = vld [vmem:[%s219 + $0x124] sm:$0xf]
      %v300 = vld [vmem:[%s219 + $0x128] sm:$0xf]
      %v301 = vld [vmem:[%s219 + $0x12c] sm:$0xf]
      %v302 = vld [vmem:[%s219 + $0x130] sm:$0xf]
      %v303 = vld [vmem:[%s219 + $0x134] sm:$0xf]
      %v304 = vld [vmem:[%s219 + $0x138] sm:$0xf]
      %v305 = vld [vmem:[%s219 + $0x13c] sm:$0xf]
      %v306 = vld [vmem:[%s219 + $0x140] sm:$0xf]
      %v307 = vld [vmem:[%s219 + $0x144] sm:$0xf]
      %v308 = vld [vmem:[%s219 + $0x148] sm:$0xf]
      %v309 = vld [vmem:[%s219 + $0x14c] sm:$0xf]
      %v310 = vld [vmem:[%s219 + $0x150] sm:$0xf]
      %v311 = vld [vmem:[%s219 + $0x154] sm:$0xf]
      %v312 = vld [vmem:[%s219 + $0x158] sm:$0xf]
      %v313 = vld [vmem:[%s219 + $0x15c] sm:$0xf]
      %v314 = vld [vmem:[%s219 + $0x160] sm:$0xf]
      %v315 = vld [vmem:[%s219 + $0x164] sm:$0xf]
      %v316 = vld [vmem:[%s219 + $0x168] sm:$0xf]
      %v317 = vld [vmem:[%s219 + $0x16c] sm:$0xf]
      %v318 = vld [vmem:[%s219 + $0x170] sm:$0xf]
      %v319 = vld [vmem:[%s219 + $0x174] sm:$0xf]
      %v320 = vld [vmem:[%s219 + $0x178] sm:$0xf]
      %v321 = vld [vmem:[%s219 + $0x17c] sm:$0xf]
      %v322 = vld [vmem:[%s219 + $0x180] sm:$0xf]
      %v323 = vld [vmem:[%s219 + $0x184] sm:$0xf]
      %v324 = vld [vmem:[%s219 + $0x188] sm:$0xf]
      %v325 = vld [vmem:[%s219 + $0x18c] sm:$0xf]
      %v326 = vld [vmem:[%s219 + $0x190] sm:$0xf]
      %v327 = vld [vmem:[%s219 + $0x194] sm:$0xf]
      %v328 = vld [vmem:[%s219 + $0x198] sm:$0xf]
      %v329 = vld [vmem:[%s219 + $0x19c] sm:$0xf]
      %v330 = vld [vmem:[%s219 + $0x1a0] sm:$0xf]
      %v331 = vld [vmem:[%s219 + $0x1a4] sm:$0xf]
      %v332 = vld [vmem:[%s219 + $0x1a8] sm:$0xf]
      %v333 = vld [vmem:[%s219 + $0x1ac] sm:$0xf]
      %v334 = vld [vmem:[%s219 + $0x1b0] sm:$0xf]
      %v335 = vld [vmem:[%s219 + $0x1b4] sm:$0xf]
      %v336 = vld [vmem:[%s219 + $0x1b8] sm:$0xf]
      %v337 = vld [vmem:[%s219 + $0x1bc] sm:$0xf]
      %v338 = vld [vmem:[%s1] sm:$0xf]
      %v339 = vld [vmem:[%s1 + $0x4] sm:$0x1]
      %v340 = vld [vmem:[%s2] sm:$0x1]
      %v342 = vlaneseq
      %v343 = vshrl.u32 %v342, 7
      %v344 = vsub.s32 0, %v343
      %v345 = vrot.slane %v340, %v344
      %v459 = vunpack.c.l.b16 %v226
      %v460 = vunpack.c.l.b16 %v227
      %v461 = vunpack.c.l.b16 %v228
      %v462 = vunpack.c.l.b16 %v229
      %v463 = vunpack.c.l.b16 %v230
      %v464 = vunpack.c.l.b16 %v231
      %v465 = vunpack.c.l.b16 %v232
      %v466 = vunpack.c.l.b16 %v233
      %v467 = vunpack.c.l.b16 %v234
      %v468 = vunpack.c.l.b16 %v235
      %v469 = vunpack.c.l.b16 %v236
      %v470 = vunpack.c.l.b16 %v237
      %v471 = vunpack.c.l.b16 %v238
      %v472 = vunpack.c.l.b16 %v239
      %v473 = vunpack.c.l.b16 %v240
      %v474 = vunpack.c.l.b16 %v241
      %v475 = vunpack.c.l.b16 %v242
      %v476 = vunpack.c.l.b16 %v243
      %v477 = vunpack.c.l.b16 %v244
      %v478 = vunpack.c.l.b16 %v245
      %v479 = vunpack.c.l.b16 %v246
      %v480 = vunpack.c.l.b16 %v247
      %v481 = vunpack.c.l.b16 %v248
      %v482 = vunpack.c.l.b16 %v249
      %v483 = vunpack.c.l.b16 %v250
      %v484 = vunpack.c.l.b16 %v251
      %v485 = vunpack.c.l.b16 %v252
      %v486 = vunpack.c.l.b16 %v253
      %v487 = vunpack.c.l.b16 %v254
      %v488 = vunpack.c.l.b16 %v255
      %v489 = vunpack.c.l.b16 %v256
      %v490 = vunpack.c.l.b16 %v257
      %v491 = vunpack.c.l.b16 %v258
      %v492 = vunpack.c.l.b16 %v259
      %v493 = vunpack.c.l.b16 %v260
      %v494 = vunpack.c.l.b16 %v261
      %v495 = vunpack.c.l.b16 %v262
      %v496 = vunpack.c.l.b16 %v263
      %v497 = vunpack.c.l.b16 %v264
      %v498 = vunpack.c.l.b16 %v265
      %v499 = vunpack.c.l.b16 %v266
      %v500 = vunpack.c.l.b16 %v267
      %v501 = vunpack.c.l.b16 %v268
      %v502 = vunpack.c.l.b16 %v269
      %v503 = vunpack.c.l.b16 %v270
      %v504 = vunpack.c.l.b16 %v271
      %v505 = vunpack.c.l.b16 %v272
      %v506 = vunpack.c.l.b16 %v273
      %v507 = vunpack.c.l.b16 %v274
      %v508 = vunpack.c.l.b16 %v275
      %v509 = vunpack.c.l.b16 %v276
      %v510 = vunpack.c.l.b16 %v277
      %v511 = vunpack.c.l.b16 %v278
      %v512 = vunpack.c.l.b16 %v279
      %v513 = vunpack.c.l.b16 %v280
      %v514 = vunpack.c.l.b16 %v281
      %v515 = vunpack.c.l.b16 %v282
      %v516 = vunpack.c.l.b16 %v283
      %v517 = vunpack.c.l.b16 %v284
      %v518 = vunpack.c.l.b16 %v285
      %v519 = vunpack.c.l.b16 %v286
      %v520 = vunpack.c.l.b16 %v287
      %v521 = vunpack.c.l.b16 %v288
      %v522 = vunpack.c.l.b16 %v289
      %v523 = vunpack.c.l.b16 %v290
      %v524 = vunpack.c.l.b16 %v291
      %v525 = vunpack.c.l.b16 %v292
      %v526 = vunpack.c.l.b16 %v293
      %v527 = vunpack.c.l.b16 %v294
      %v528 = vunpack.c.l.b16 %v295
      %v529 = vunpack.c.l.b16 %v296
      %v530 = vunpack.c.l.b16 %v297
      %v531 = vunpack.c.l.b16 %v298
      %v532 = vunpack.c.l.b16 %v299
      %v533 = vunpack.c.l.b16 %v300
      %v534 = vunpack.c.l.b16 %v301
      %v535 = vunpack.c.l.b16 %v302
      %v536 = vunpack.c.l.b16 %v303
      %v537 = vunpack.c.l.b16 %v304
      %v538 = vunpack.c.l.b16 %v305
      %v539 = vunpack.c.l.b16 %v306
      %v540 = vunpack.c.l.b16 %v307
      %v541 = vunpack.c.l.b16 %v308
      %v542 = vunpack.c.l.b16 %v309
      %v543 = vunpack.c.l.b16 %v310
      %v544 = vunpack.c.l.b16 %v311
      %v545 = vunpack.c.l.b16 %v312
      %v546 = vunpack.c.l.b16 %v313
      %v547 = vunpack.c.l.b16 %v314
      %v548 = vunpack.c.l.b16 %v315
      %v549 = vunpack.c.l.b16 %v316
      %v550 = vunpack.c.l.b16 %v317
      %v551 = vunpack.c.l.b16 %v318
      %v552 = vunpack.c.l.b16 %v319
      %v553 = vunpack.c.l.b16 %v320
      %v554 = vunpack.c.l.b16 %v321
      %v555 = vunpack.c.l.b16 %v322
      %v556 = vunpack.c.l.b16 %v323
      %v557 = vunpack.c.l.b16 %v324
      %v558 = vunpack.c.l.b16 %v325
      %v559 = vunpack.c.l.b16 %v326
      %v560 = vunpack.c.l.b16 %v327
      %v561 = vunpack.c.l.b16 %v328
      %v562 = vunpack.c.l.b16 %v329
      %v563 = vunpack.c.l.b16 %v330
      %v564 = vunpack.c.l.b16 %v331
      %v565 = vunpack.c.l.b16 %v332
      %v566 = vunpack.c.l.b16 %v333
      %v567 = vunpack.c.l.b16 %v334
      %v568 = vunpack.c.l.b16 %v335
      %v569 = vunpack.c.l.b16 %v336
      %v570 = vunpack.c.l.b16 %v337
      %v571 = vpack.c.b16 %v460, %v459
      %v572 = vpack.c.b16 %v462, %v461
      %v573 = vpack.c.b16 %v464, %v463
      %v574 = vpack.c.b16 %v466, %v465
      %v575 = vpack.c.b16 %v468, %v467
      %v576 = vpack.c.b16 %v470, %v469
      %v577 = vpack.c.b16 %v472, %v471
      %v578 = vpack.c.b16 %v474, %v473
      %v579 = vpack.c.b16 %v476, %v475
      %v580 = vpack.c.b16 %v478, %v477
      %v581 = vpack.c.b16 %v480, %v479
      %v582 = vpack.c.b16 %v482, %v481
      %v583 = vpack.c.b16 %v484, %v483
      %v584 = vpack.c.b16 %v486, %v485
      %v585 = vpack.c.b16 %v488, %v487
      %v586 = vpack.c.b16 %v490, %v489
      %v587 = vpack.c.b16 %v492, %v491
      %v588 = vpack.c.b16 %v494, %v493
      %v589 = vpack.c.b16 %v496, %v495
      %v590 = vpack.c.b16 %v498, %v497
      %v591 = vpack.c.b16 %v500, %v499
      %v592 = vpack.c.b16 %v502, %v501
      %v593 = vpack.c.b16 %v504, %v503
      %v594 = vpack.c.b16 %v506, %v505
      %v595 = vpack.c.b16 %v508, %v507
      %v596 = vpack.c.b16 %v510, %v509
      %v597 = vpack.c.b16 %v512, %v511
      %v598 = vpack.c.b16 %v514, %v513
      %v599 = vpack.c.b16 %v516, %v515
      %v600 = vpack.c.b16 %v518, %v517
      %v601 = vpack.c.b16 %v520, %v519
      %v602 = vpack.c.b16 %v522, %v521
      %v603 = vpack.c.b16 %v524, %v523
      %v604 = vpack.c.b16 %v526, %v525
      %v605 = vpack.c.b16 %v528, %v527
      %v606 = vpack.c.b16 %v530, %v529
      %v607 = vpack.c.b16 %v532, %v531
      %v608 = vpack.c.b16 %v534, %v533
      %v609 = vpack.c.b16 %v536, %v535
      %v610 = vpack.c.b16 %v538, %v537
      %v611 = vpack.c.b16 %v540, %v539
      %v612 = vpack.c.b16 %v542, %v541
      %v613 = vpack.c.b16 %v544, %v543
      %v614 = vpack.c.b16 %v546, %v545
      %v615 = vpack.c.b16 %v548, %v547
      %v616 = vpack.c.b16 %v550, %v549
      %v617 = vpack.c.b16 %v552, %v551
      %v618 = vpack.c.b16 %v554, %v553
      %v619 = vpack.c.b16 %v556, %v555
      %v620 = vpack.c.b16 %v558, %v557
      %v621 = vpack.c.b16 %v560, %v559
      %v622 = vpack.c.b16 %v562, %v561
      %v623 = vpack.c.b16 %v564, %v563
      %v624 = vpack.c.b16 %v566, %v565
      %v625 = vpack.c.b16 %v568, %v567
      %v626 = vpack.c.b16 %v570, %v569
      %v629 = vunpack.c.l.b16 %v338
      %v630 = vunpack.c.l.b16 %v339
      %v631 = vpack.c.b16 %v630, %v629
      %vm632 = vcmask 72704
      %v634 = vsel %vm632, %v571, 0
      %v637 = vsel %vm632, %v572, 0
      %v640 = vsel %vm632, %v573, 0
      %v643 = vsel %vm632, %v574, 0
      %v646 = vsel %vm632, %v575, 0
      %v649 = vsel %vm632, %v576, 0
      %v652 = vsel %vm632, %v577, 0
      %v655 = vsel %vm632, %v578, 0
      %v658 = vsel %vm632, %v579, 0
      %v661 = vsel %vm632, %v580, 0
      %v664 = vsel %vm632, %v581, 0
      %v667 = vsel %vm632, %v582, 0
      %v670 = vsel %vm632, %v583, 0
      %v673 = vsel %vm632, %v584, 0
      %v676 = vsel %vm632, %v585, 0
      %v679 = vsel %vm632, %v586, 0
      %v682 = vsel %vm632, %v587, 0
      %v685 = vsel %vm632, %v588, 0
      %v688 = vsel %vm632, %v589, 0
      %v691 = vsel %vm632, %v590, 0
      %v694 = vsel %vm632, %v591, 0
      %v697 = vsel %vm632, %v592, 0
      %v700 = vsel %vm632, %v593, 0
      %v703 = vsel %vm632, %v594, 0
      %v706 = vsel %vm632, %v595, 0
      %v709 = vsel %vm632, %v596, 0
      %v712 = vsel %vm632, %v597, 0
      %v715 = vsel %vm632, %v598, 0
      %v718 = vsel %vm632, %v599, 0
      %v721 = vsel %vm632, %v600, 0
      %v724 = vsel %vm632, %v601, 0
      %v727 = vsel %vm632, %v602, 0
      %v730 = vsel %vm632, %v603, 0
      %v733 = vsel %vm632, %v604, 0
      %v736 = vsel %vm632, %v605, 0
      %v739 = vsel %vm632, %v606, 0
      %v742 = vsel %vm632, %v607, 0
      %v745 = vsel %vm632, %v608, 0
      %v748 = vsel %vm632, %v609, 0
      %v751 = vsel %vm632, %v610, 0
      %v754 = vsel %vm632, %v611, 0
      %v757 = vsel %vm632, %v612, 0
      %v760 = vsel %vm632, %v613, 0
      %v763 = vsel %vm632, %v614, 0
      %v766 = vsel %vm632, %v615, 0
      %v769 = vsel %vm632, %v616, 0
      %v772 = vsel %vm632, %v617, 0
      %v775 = vsel %vm632, %v618, 0
      %v778 = vsel %vm632, %v619, 0
      %v781 = vsel %vm632, %v620, 0
      %v784 = vsel %vm632, %v621, 0
      %v787 = vsel %vm632, %v622, 0
      %v790 = vsel %vm632, %v623, 0
      %v793 = vsel %vm632, %v624, 0
      %v796 = vsel %vm632, %v625, 0
      %v799 = vsel %vm632, %v626, 0
      %vm801 = vcmask 1043456
      %vm802 = vcmask 1044480
      %v803 = vsel %vm801, 4294967295, 65535
      %v804 = vsel %vm802, %v803, 0
      %v806 = vand.u32 %v631, %v804
      %808 = vmatprep.subr.bf16.mxu0 0
      %809 = vmatpush1.bf16.msra.mxu0 %v806
      %810 = vmatprep.subr.bf16.mxu0 0
      %811 = vmatpush1.bf16.msra.mxu0 0
      %812 = vmatprep.subr.bf16.mxu0 0
      %813 = vmatpush1.bf16.msra.mxu0 0
      %814 = vmatprep.subr.bf16.mxu0 0
      %815 = vmatpush1.bf16.msra.mxu0 0
      %816 = vmatprep.subr.bf16.mxu0 0
      %817 = vmatpush1.bf16.msra.mxu0 0
      %818 = vmatprep.subr.bf16.mxu0 0
      %819 = vmatpush1.bf16.msra.mxu0 0
      %820 = vmatprep.subr.bf16.mxu0 0
      %821 = vmatpush1.bf16.msra.mxu0 0
      %822 = vmatprep.subr.bf16.mxu0 0
      %823 = vmatpush1.bf16.msra.mxu0 0
      %824 = vmatprep.subr.bf16.mxu0 0
      %825 = vmatpush1.bf16.msra.mxu0 0
      %826 = vmatprep.subr.bf16.mxu0 0
      %827 = vmatpush1.bf16.msra.mxu0 0
      %828 = vmatprep.subr.bf16.mxu0 0
      %829 = vmatpush1.bf16.msra.mxu0 0
      %830 = vmatprep.subr.bf16.mxu0 0
      %831 = vmatpush1.bf16.msra.mxu0 0
      %832 = vmatprep.subr.bf16.mxu0 0
      %833 = vmatpush1.bf16.msra.mxu0 0
      %834 = vmatprep.subr.bf16.mxu0 0
      %835 = vmatpush1.bf16.msra.mxu0 0
      %836 = vmatprep.subr.bf16.mxu0 0
      %837 = vmatpush1.bf16.msra.mxu0 0
      %838 = vmatprep.subr.bf16.mxu0 0
      %839 = vmatpush1.bf16.msra.mxu0 0
      %840 = vmatprep.mubr.bf16.mxu0 0
      %841 = vmatmul.mubr.bf16.gmra.mrb[0].mxu0 %v634
      %v842 = vpop.f32.mrb[0].mxu0
      %v843 = vadd.f32 %v345, %v842
      %v844 = vpop.f32.mrb[0].mxu0
      %v845 = vpop.f32.mrb[0].mxu0
      %v846 = vadd.f32 %v345, %v845
      %v847 = vpop.f32.mrb[0].mxu0
      %848 = vmatprep.mubr.bf16.mxu0 0
      %849 = vmatmul.mubr.bf16.gmra.mrb[0].mxu0 %v637
      %v850 = vpop.f32.mrb[0].mxu0
      %v851 = vadd.f32 %v345, %v850
      %v852 = vpop.f32.mrb[0].mxu0
      %v853 = vpop.f32.mrb[0].mxu0
      %v854 = vadd.f32 %v345, %v853
      %v855 = vpop.f32.mrb[0].mxu0
      %856 = vmatprep.mubr.bf16.mxu0 0
      %857 = vmatmul.mubr.bf16.gmra.mrb[0].mxu0 %v640
      %v858 = vpop.f32.mrb[0].mxu0
      %v859 = vadd.f32 %v345, %v858
      %v860 = vpop.f32.mrb[0].mxu0
      %v861 = vpop.f32.mrb[0].mxu0
      %v862 = vadd.f32 %v345, %v861
      %v863 = vpop.f32.mrb[0].mxu0
      %864 = vmatprep.mubr.bf16.mxu0 0
      %865 = vmatmul.mubr.bf16.gmra.mrb[0].mxu0 %v643
      %v866 = vpop.f32.mrb[0].mxu0
      %v867 = vadd.f32 %v345, %v866
      %v868 = vpop.f32.mrb[0].mxu0
      %v869 = vpop.f32.mrb[0].mxu0
      %v870 = vadd.f32 %v345, %v869
      %v871 = vpop.f32.mrb[0].mxu0
      %872 = vmatprep.mubr.bf16.mxu0 0
      %873 = vmatmul.mubr.bf16.gmra.mrb[0].mxu0 %v646
      %v874 = vpop.f32.mrb[0].mxu0
      %v875 = vadd.f32 %v345, %v874
      %v876 = vpop.f32.mrb[0].mxu0
      %v877 = vpop.f32.mrb[0].mxu0
      %v878 = vadd.f32 %v345, %v877
      %v879 = vpop.f32.mrb[0].mxu0
      %880 = vmatprep.mubr.bf16.mxu0 0
      %881 = vmatmul.mubr.bf16.gmra.mrb[0].mxu0 %v649
      %v882 = vpop.f32.mrb[0].mxu0
      %v883 = vadd.f32 %v345, %v882
      %v884 = vpop.f32.mrb[0].mxu0
      %v885 = vpop.f32.mrb[0].mxu0
      %v886 = vadd.f32 %v345, %v885
      %v887 = vpop.f32.mrb[0].mxu0
      %888 = vmatprep.mubr.bf16.mxu0 0
      %889 = vmatmul.mubr.bf16.gmra.mrb[0].mxu0 %v652
      %v890 = vpop.f32.mrb[0].mxu0
      %v891 = vadd.f32 %v345, %v890
      %v892 = vpop.f32.mrb[0].mxu0
      %v893 = vpop.f32.mrb[0].mxu0
      %v894 = vadd.f32 %v345, %v893
      %v895 = vpop.f32.mrb[0].mxu0
      %896 = vmatprep.mubr.bf16.mxu0 0
      %897 = vmatmul.mubr.bf16.gmra.mrb[0].mxu0 %v655
      %v898 = vpop.f32.mrb[0].mxu0
      %v899 = vadd.f32 %v345, %v898
      %v900 = vpop.f32.mrb[0].mxu0
      %v901 = vpop.f32.mrb[0].mxu0
      %v902 = vadd.f32 %v345, %v901
      %v903 = vpop.f32.mrb[0].mxu0
      %904 = vmatprep.mubr.bf16.mxu0 0
      %905 = vmatmul.mubr.bf16.gmra.mrb[0].mxu0 %v658
      %v906 = vpop.f32.mrb[0].mxu0
      %v907 = vadd.f32 %v345, %v906
      %v908 = vpop.f32.mrb[0].mxu0
      %v909 = vpop.f32.mrb[0].mxu0
      %v910 = vadd.f32 %v345, %v909
      %v911 = vpop.f32.mrb[0].mxu0
      %912 = vmatprep.mubr.bf16.mxu0 0
      %913 = vmatmul.mubr.bf16.gmra.mrb[0].mxu0 %v661
      %v914 = vpop.f32.mrb[0].mxu0
      %v915 = vadd.f32 %v345, %v914
      %v916 = vpop.f32.mrb[0].mxu0
      %v917 = vpop.f32.mrb[0].mxu0
      %v918 = vadd.f32 %v345, %v917
      %v919 = vpop.f32.mrb[0].mxu0
      %920 = vmatprep.mubr.bf16.mxu0 0
      %921 = vmatmul.mubr.bf16.gmra.mrb[0].mxu0 %v664
      %v922 = vpop.f32.mrb[0].mxu0
      %v923 = vadd.f32 %v345, %v922
      %v924 = vpop.f32.mrb[0].mxu0
      %v925 = vpop.f32.mrb[0].mxu0
      %v926 = vadd.f32 %v345, %v925
      %v927 = vpop.f32.mrb[0].mxu0
      %928 = vmatprep.mubr.bf16.mxu0 0
      %929 = vmatmul.mubr.bf16.gmra.mrb[0].mxu0 %v667
      %v930 = vpop.f32.mrb[0].mxu0
      %v931 = vadd.f32 %v345, %v930
      %v932 = vpop.f32.mrb[0].mxu0
      %v933 = vpop.f32.mrb[0].mxu0
      %v934 = vadd.f32 %v345, %v933
      %v935 = vpop.f32.mrb[0].mxu0
      %936 = vmatprep.mubr.bf16.mxu0 0
      %937 = vmatmul.mubr.bf16.gmra.mrb[0].mxu0 %v670
      %v938 = vpop.f32.mrb[0].mxu0
      %v939 = vadd.f32 %v345, %v938
      %v940 = vpop.f32.mrb[0].mxu0
      %v941 = vpop.f32.mrb[0].mxu0
      %v942 = vadd.f32 %v345, %v941
      %v943 = vpop.f32.mrb[0].mxu0
      %944 = vmatprep.mubr.bf16.mxu0 0
      %945 = vmatmul.mubr.bf16.gmra.mrb[0].mxu0 %v673
      %v946 = vpop.f32.mrb[0].mxu0
      %v947 = vadd.f32 %v345, %v946
      %v948 = vpop.f32.mrb[0].mxu0
      %v949 = vpop.f32.mrb[0].mxu0
      %v950 = vadd.f32 %v345, %v949
      %v951 = vpop.f32.mrb[0].mxu0
      %952 = vmatprep.mubr.bf16.mxu0 0
      %953 = vmatmul.mubr.bf16.gmra.mrb[0].mxu0 %v676
      %v954 = vpop.f32.mrb[0].mxu0
      %v955 = vadd.f32 %v345, %v954
      %v956 = vpop.f32.mrb[0].mxu0
      %v957 = vpop.f32.mrb[0].mxu0
      %v958 = vadd.f32 %v345, %v957
      %v959 = vpop.f32.mrb[0].mxu0
      %960 = vmatprep.mubr.bf16.mxu0 0
      %961 = vmatmul.mubr.bf16.gmra.mrb[0].mxu0 %v679
      %v962 = vpop.f32.mrb[0].mxu0
      %v963 = vadd.f32 %v345, %v962
      %v964 = vpop.f32.mrb[0].mxu0
      %v965 = vpop.f32.mrb[0].mxu0
      %v966 = vadd.f32 %v345, %v965
      %v967 = vpop.f32.mrb[0].mxu0
      %968 = vmatprep.mubr.bf16.mxu0 0
      %969 = vmatmul.mubr.bf16.gmra.mrb[0].mxu0 %v682
      %v970 = vpop.f32.mrb[0].mxu0
      %v971 = vadd.f32 %v345, %v970
      %v972 = vpop.f32.mrb[0].mxu0
      %v973 = vpop.f32.mrb[0].mxu0
      %v974 = vadd.f32 %v345, %v973
      %v975 = vpop.f32.mrb[0].mxu0
      %976 = vmatprep.mubr.bf16.mxu0 0
      %977 = vmatmul.mubr.bf16.gmra.mrb[0].mxu0 %v685
      %v978 = vpop.f32.mrb[0].mxu0
      %v979 = vadd.f32 %v345, %v978
      %v980 = vpop.f32.mrb[0].mxu0
      %v981 = vpop.f32.mrb[0].mxu0
      %v982 = vadd.f32 %v345, %v981
      %v983 = vpop.f32.mrb[0].mxu0
      %984 = vmatprep.mubr.bf16.mxu0 0
      %985 = vmatmul.mubr.bf16.gmra.mrb[0].mxu0 %v688
      %v986 = vpop.f32.mrb[0].mxu0
      %v987 = vadd.f32 %v345, %v986
      %v988 = vpop.f32.mrb[0].mxu0
      %v989 = vpop.f32.mrb[0].mxu0
      %v990 = vadd.f32 %v345, %v989
      %v991 = vpop.f32.mrb[0].mxu0
      %992 = vmatprep.mubr.bf16.mxu0 0
      %993 = vmatmul.mubr.bf16.gmra.mrb[0].mxu0 %v691
      %v994 = vpop.f32.mrb[0].mxu0
      %v995 = vadd.f32 %v345, %v994
      %v996 = vpop.f32.mrb[0].mxu0
      %v997 = vpop.f32.mrb[0].mxu0
      %v998 = vadd.f32 %v345, %v997
      %v999 = vpop.f32.mrb[0].mxu0
      %1000 = vmatprep.mubr.bf16.mxu0 0
      %1001 = vmatmul.mubr.bf16.gmra.mrb[0].mxu0 %v694
      %v1002 = vpop.f32.mrb[0].mxu0
      %v1003 = vadd.f32 %v345, %v1002
      %v1004 = vpop.f32.mrb[0].mxu0
      %v1005 = vpop.f32.mrb[0].mxu0
      %v1006 = vadd.f32 %v345, %v1005
      %v1007 = vpop.f32.mrb[0].mxu0
      %1008 = vmatprep.mubr.bf16.mxu0 0
      %1009 = vmatmul.mubr.bf16.gmra.mrb[0].mxu0 %v697
      %v1010 = vpop.f32.mrb[0].mxu0
      %v1011 = vadd.f32 %v345, %v1010
      %v1012 = vpop.f32.mrb[0].mxu0
      %v1013 = vpop.f32.mrb[0].mxu0
      %v1014 = vadd.f32 %v345, %v1013
      %v1015 = vpop.f32.mrb[0].mxu0
      %1016 = vmatprep.mubr.bf16.mxu0 0
      %1017 = vmatmul.mubr.bf16.gmra.mrb[0].mxu0 %v700
      %v1018 = vpop.f32.mrb[0].mxu0
      %v1019 = vadd.f32 %v345, %v1018
      %v1020 = vpop.f32.mrb[0].mxu0
      %v1021 = vpop.f32.mrb[0].mxu0
      %v1022 = vadd.f32 %v345, %v1021
      %v1023 = vpop.f32.mrb[0].mxu0
      %1024 = vmatprep.mubr.bf16.mxu0 0
      %1025 = vmatmul.mubr.bf16.gmra.mrb[0].mxu0 %v703
      %v1026 = vpop.f32.mrb[0].mxu0
      %v1027 = vadd.f32 %v345, %v1026
      %v1028 = vpop.f32.mrb[0].mxu0
      %v1029 = vpop.f32.mrb[0].mxu0
      %v1030 = vadd.f32 %v345, %v1029
      %v1031 = vpop.f32.mrb[0].mxu0
      %1032 = vmatprep.mubr.bf16.mxu0 0
      %1033 = vmatmul.mubr.bf16.gmra.mrb[0].mxu0 %v706
      %v1034 = vpop.f32.mrb[0].mxu0
      %v1035 = vadd.f32 %v345, %v1034
      %v1036 = vpop.f32.mrb[0].mxu0
      %v1037 = vpop.f32.mrb[0].mxu0
      %v1038 = vadd.f32 %v345, %v1037
      %v1039 = vpop.f32.mrb[0].mxu0
      %1040 = vmatprep.mubr.bf16.mxu0 0
      %1041 = vmatmul.mubr.bf16.gmra.mrb[0].mxu0 %v709
      %v1042 = vpop.f32.mrb[0].mxu0
      %v1043 = vadd.f32 %v345, %v1042
      %v1044 = vpop.f32.mrb[0].mxu0
      %v1045 = vpop.f32.mrb[0].mxu0
      %v1046 = vadd.f32 %v345, %v1045
      %v1047 = vpop.f32.mrb[0].mxu0
      %1048 = vmatprep.mubr.bf16.mxu0 0
      %1049 = vmatmul.mubr.bf16.gmra.mrb[0].mxu0 %v712
      %v1050 = vpop.f32.mrb[0].mxu0
      %v1051 = vadd.f32 %v345, %v1050
      %v1052 = vpop.f32.mrb[0].mxu0
      %v1053 = vpop.f32.mrb[0].mxu0
      %v1054 = vadd.f32 %v345, %v1053
      %v1055 = vpop.f32.mrb[0].mxu0
      %1056 = vmatprep.mubr.bf16.mxu0 0
      %1057 = vmatmul.mubr.bf16.gmra.mrb[0].mxu0 %v715
      %v1058 = vpop.f32.mrb[0].mxu0
      %v1059 = vadd.f32 %v345, %v1058
      %v1060 = vpop.f32.mrb[0].mxu0
      %v1061 = vpop.f32.mrb[0].mxu0
      %v1062 = vadd.f32 %v345, %v1061
      %v1063 = vpop.f32.mrb[0].mxu0
      %1064 = vmatprep.mubr.bf16.mxu0 0
      %1065 = vmatmul.mubr.bf16.gmra.mrb[0].mxu0 %v718
      %v1066 = vpop.f32.mrb[0].mxu0
      %v1067 = vadd.f32 %v345, %v1066
      %v1068 = vpop.f32.mrb[0].mxu0
      %v1069 = vpop.f32.mrb[0].mxu0
      %v1070 = vadd.f32 %v345, %v1069
      %v1071 = vpop.f32.mrb[0].mxu0
      %1072 = vmatprep.mubr.bf16.mxu0 0
      %1073 = vmatmul.mubr.bf16.gmra.mrb[0].mxu0 %v721
      %v1074 = vpop.f32.mrb[0].mxu0
      %v1075 = vadd.f32 %v345, %v1074
      %v1076 = vpop.f32.mrb[0].mxu0
      %v1077 = vpop.f32.mrb[0].mxu0
      %v1078 = vadd.f32 %v345, %v1077
      %v1079 = vpop.f32.mrb[0].mxu0
      %1080 = vmatprep.mubr.bf16.mxu0 0
      %1081 = vmatmul.mubr.bf16.gmra.mrb[0].mxu0 %v724
      %v1082 = vpop.f32.mrb[0].mxu0
      %v1083 = vadd.f32 %v345, %v1082
      %v1084 = vpop.f32.mrb[0].mxu0
      %v1085 = vpop.f32.mrb[0].mxu0
      %v1086 = vadd.f32 %v345, %v1085
      %v1087 = vpop.f32.mrb[0].mxu0
      %1088 = vmatprep.mubr.bf16.mxu0 0
      %1089 = vmatmul.mubr.bf16.gmra.mrb[0].mxu0 %v727
      %v1090 = vpop.f32.mrb[0].mxu0
      %v1091 = vadd.f32 %v345, %v1090
      %v1092 = vpop.f32.mrb[0].mxu0
      %v1093 = vpop.f32.mrb[0].mxu0
      %v1094 = vadd.f32 %v345, %v1093
      %v1095 = vpop.f32.mrb[0].mxu0
      %1096 = vmatprep.mubr.bf16.mxu0 0
      %1097 = vmatmul.mubr.bf16.gmra.mrb[0].mxu0 %v730
      %v1098 = vpop.f32.mrb[0].mxu0
      %v1099 = vadd.f32 %v345, %v1098
      %v1100 = vpop.f32.mrb[0].mxu0
      %v1101 = vpop.f32.mrb[0].mxu0
      %v1102 = vadd.f32 %v345, %v1101
      %v1103 = vpop.f32.mrb[0].mxu0
      %1104 = vmatprep.mubr.bf16.mxu0 0
      %1105 = vmatmul.mubr.bf16.gmra.mrb[0].mxu0 %v733
      %v1106 = vpop.f32.mrb[0].mxu0
      %v1107 = vadd.f32 %v345, %v1106
      %v1108 = vpop.f32.mrb[0].mxu0
      %v1109 = vpop.f32.mrb[0].mxu0
      %v1110 = vadd.f32 %v345, %v1109
      %v1111 = vpop.f32.mrb[0].mxu0
      %1112 = vmatprep.mubr.bf16.mxu0 0
      %1113 = vmatmul.mubr.bf16.gmra.mrb[0].mxu0 %v736
      %v1114 = vpop.f32.mrb[0].mxu0
      %v1115 = vadd.f32 %v345, %v1114
      %v1116 = vpop.f32.mrb[0].mxu0
      %v1117 = vpop.f32.mrb[0].mxu0
      %v1118 = vadd.f32 %v345, %v1117
      %v1119 = vpop.f32.mrb[0].mxu0
      %1120 = vmatprep.mubr.bf16.mxu0 0
      %1121 = vmatmul.mubr.bf16.gmra.mrb[0].mxu0 %v739
      %v1122 = vpop.f32.mrb[0].mxu0
      %v1123 = vadd.f32 %v345, %v1122
      %v1124 = vpop.f32.mrb[0].mxu0
      %v1125 = vpop.f32.mrb[0].mxu0
      %v1126 = vadd.f32 %v345, %v1125
      %v1127 = vpop.f32.mrb[0].mxu0
      %1128 = vmatprep.mubr.bf16.mxu0 0
      %1129 = vmatmul.mubr.bf16.gmra.mrb[0].mxu0 %v742
      %v1130 = vpop.f32.mrb[0].mxu0
      %v1131 = vadd.f32 %v345, %v1130
      %v1132 = vpop.f32.mrb[0].mxu0
      %v1133 = vpop.f32.mrb[0].mxu0
      %v1134 = vadd.f32 %v345, %v1133
      %v1135 = vpop.f32.mrb[0].mxu0
      %1136 = vmatprep.mubr.bf16.mxu0 0
      %1137 = vmatmul.mubr.bf16.gmra.mrb[0].mxu0 %v745
      %v1138 = vpop.f32.mrb[0].mxu0
      %v1139 = vadd.f32 %v345, %v1138
      %v1140 = vpop.f32.mrb[0].mxu0
      %v1141 = vpop.f32.mrb[0].mxu0
      %v1142 = vadd.f32 %v345, %v1141
      %v1143 = vpop.f32.mrb[0].mxu0
      %1144 = vmatprep.mubr.bf16.mxu0 0
      %1145 = vmatmul.mubr.bf16.gmra.mrb[0].mxu0 %v748
      %v1146 = vpop.f32.mrb[0].mxu0
      %v1147 = vadd.f32 %v345, %v1146
      %v1148 = vpop.f32.mrb[0].mxu0
      %v1149 = vpop.f32.mrb[0].mxu0
      %v1150 = vadd.f32 %v345, %v1149
      %v1151 = vpop.f32.mrb[0].mxu0
      %1152 = vmatprep.mubr.bf16.mxu0 0
      %1153 = vmatmul.mubr.bf16.gmra.mrb[0].mxu0 %v751
      %v1154 = vpop.f32.mrb[0].mxu0
      %v1155 = vadd.f32 %v345, %v1154
      %v1156 = vpop.f32.mrb[0].mxu0
      %v1157 = vpop.f32.mrb[0].mxu0
      %v1158 = vadd.f32 %v345, %v1157
      %v1159 = vpop.f32.mrb[0].mxu0
      %1160 = vmatprep.mubr.bf16.mxu0 0
      %1161 = vmatmul.mubr.bf16.gmra.mrb[0].mxu0 %v754
      %v1162 = vpop.f32.mrb[0].mxu0
      %v1163 = vadd.f32 %v345, %v1162
      %v1164 = vpop.f32.mrb[0].mxu0
      %v1165 = vpop.f32.mrb[0].mxu0
      %v1166 = vadd.f32 %v345, %v1165
      %v1167 = vpop.f32.mrb[0].mxu0
      %1168 = vmatprep.mubr.bf16.mxu0 0
      %1169 = vmatmul.mubr.bf16.gmra.mrb[0].mxu0 %v757
      %v1170 = vpop.f32.mrb[0].mxu0
      %v1171 = vadd.f32 %v345, %v1170
      %v1172 = vpop.f32.mrb[0].mxu0
      %v1173 = vpop.f32.mrb[0].mxu0
      %v1174 = vadd.f32 %v345, %v1173
      %v1175 = vpop.f32.mrb[0].mxu0
      %1176 = vmatprep.mubr.bf16.mxu0 0
      %1177 = vmatmul.mubr.bf16.gmra.mrb[0].mxu0 %v760
      %v1178 = vpop.f32.mrb[0].mxu0
      %v1179 = vadd.f32 %v345, %v1178
      %v1180 = vpop.f32.mrb[0].mxu0
      %v1181 = vpop.f32.mrb[0].mxu0
      %v1182 = vadd.f32 %v345, %v1181
      %v1183 = vpop.f32.mrb[0].mxu0
      %1184 = vmatprep.mubr.bf16.mxu0 0
      %1185 = vmatmul.mubr.bf16.gmra.mrb[0].mxu0 %v763
      %v1186 = vpop.f32.mrb[0].mxu0
      %v1187 = vadd.f32 %v345, %v1186
      %v1188 = vpop.f32.mrb[0].mxu0
      %v1189 = vpop.f32.mrb[0].mxu0
      %v1190 = vadd.f32 %v345, %v1189
      %v1191 = vpop.f32.mrb[0].mxu0
      %1192 = vmatprep.mubr.bf16.mxu0 0
      %1193 = vmatmul.mubr.bf16.gmra.mrb[0].mxu0 %v766
      %v1194 = vpop.f32.mrb[0].mxu0
      %v1195 = vadd.f32 %v345, %v1194
      %v1196 = vpop.f32.mrb[0].mxu0
      %v1197 = vpop.f32.mrb[0].mxu0
      %v1198 = vadd.f32 %v345, %v1197
      %v1199 = vpop.f32.mrb[0].mxu0
      %1200 = vmatprep.mubr.bf16.mxu0 0
      %1201 = vmatmul.mubr.bf16.gmra.mrb[0].mxu0 %v769
      %v1202 = vpop.f32.mrb[0].mxu0
      %v1203 = vadd.f32 %v345, %v1202
      %v1204 = vpop.f32.mrb[0].mxu0
      %v1205 = vpop.f32.mrb[0].mxu0
      %v1206 = vadd.f32 %v345, %v1205
      %v1207 = vpop.f32.mrb[0].mxu0
      %1208 = vmatprep.mubr.bf16.mxu0 0
      %1209 = vmatmul.mubr.bf16.gmra.mrb[0].mxu0 %v772
      %v1210 = vpop.f32.mrb[0].mxu0
      %v1211 = vadd.f32 %v345, %v1210
      %v1212 = vpop.f32.mrb[0].mxu0
      %v1213 = vpop.f32.mrb[0].mxu0
      %v1214 = vadd.f32 %v345, %v1213
      %v1215 = vpop.f32.mrb[0].mxu0
      %1216 = vmatprep.mubr.bf16.mxu0 0
      %1217 = vmatmul.mubr.bf16.gmra.mrb[0].mxu0 %v775
      %v1218 = vpop.f32.mrb[0].mxu0
      %v1219 = vadd.f32 %v345, %v1218
      %v1220 = vpop.f32.mrb[0].mxu0
      %v1221 = vpop.f32.mrb[0].mxu0
      %v1222 = vadd.f32 %v345, %v1221
      %v1223 = vpop.f32.mrb[0].mxu0
      %1224 = vmatprep.mubr.bf16.mxu0 0
      %1225 = vmatmul.mubr.bf16.gmra.mrb[0].mxu0 %v778
      %v1226 = vpop.f32.mrb[0].mxu0
      %v1227 = vadd.f32 %v345, %v1226
      %v1228 = vpop.f32.mrb[0].mxu0
      %v1229 = vpop.f32.mrb[0].mxu0
      %v1230 = vadd.f32 %v345, %v1229
      %v1231 = vpop.f32.mrb[0].mxu0
      %1232 = vmatprep.mubr.bf16.mxu0 0
      %1233 = vmatmul.mubr.bf16.gmra.mrb[0].mxu0 %v781
      %v1234 = vpop.f32.mrb[0].mxu0
      %v1235 = vadd.f32 %v345, %v1234
      %v1236 = vpop.f32.mrb[0].mxu0
      %v1237 = vpop.f32.mrb[0].mxu0
      %v1238 = vadd.f32 %v345, %v1237
      %v1239 = vpop.f32.mrb[0].mxu0
      %1240 = vmatprep.mubr.bf16.mxu0 0
      %1241 = vmatmul.mubr.bf16.gmra.mrb[0].mxu0 %v784
      %v1242 = vpop.f32.mrb[0].mxu0
      %v1243 = vadd.f32 %v345, %v1242
      %v1244 = vpop.f32.mrb[0].mxu0
      %v1245 = vpop.f32.mrb[0].mxu0
      %v1246 = vadd.f32 %v345, %v1245
      %v1247 = vpop.f32.mrb[0].mxu0
      %1248 = vmatprep.mubr.bf16.mxu0 0
      %1249 = vmatmul.mubr.bf16.gmra.mrb[0].mxu0 %v787
      %v1250 = vpop.f32.mrb[0].mxu0
      %v1251 = vadd.f32 %v345, %v1250
      %v1252 = vpop.f32.mrb[0].mxu0
      %v1253 = vpop.f32.mrb[0].mxu0
      %v1254 = vadd.f32 %v345, %v1253
      %v1255 = vpop.f32.mrb[0].mxu0
      %1256 = vmatprep.mubr.bf16.mxu0 0
      %1257 = vmatmul.mubr.bf16.gmra.mrb[0].mxu0 %v790
      %v1258 = vpop.f32.mrb[0].mxu0
      %v1259 = vpop.f32.mrb[0].mxu0
      %v1260 = vpop.f32.mrb[0].mxu0
      %v1261 = vpop.f32.mrb[0].mxu0
      %1262 = vmatprep.mubr.bf16.mxu0 0
      %1263 = vmatmul.mubr.bf16.gmra.mrb[0].mxu0 %v793
      %v1264 = vpop.f32.mrb[0].mxu0
      %v1265 = vpop.f32.mrb[0].mxu0
      %v1266 = vpop.f32.mrb[0].mxu0
      %v1267 = vpop.f32.mrb[0].mxu0
      %1268 = vmatprep.mubr.bf16.mxu0 0
      %1269 = vmatmul.mubr.bf16.gmra.mrb[0].mxu0 %v796
      %v1270 = vpop.f32.mrb[0].mxu0
      %v1271 = vpop.f32.mrb[0].mxu0
      %v1272 = vpop.f32.mrb[0].mxu0
      %v1273 = vpop.f32.mrb[0].mxu0
      %1274 = vmatprep.mubr.bf16.mxu0 0
      %1275 = vmatmul.mubr.bf16.gmra.mrb[0].mxu0 %v799
      %v1276 = vpop.f32.mrb[0].mxu0
      %v1277 = vpop.f32.mrb[0].mxu0
      %v1278 = vpop.f32.mrb[0].mxu0
      %v1279 = vpop.f32.mrb[0].mxu0
      %1280 = vdwg.mxu0
      %v1281 = vmax.f32 %v843, 0.0
      %v1282 = vmax.f32 %v846, 0.0
      %v1283 = vmax.f32 %v851, 0.0
      %v1284 = vmax.f32 %v854, 0.0
      %v1285 = vmax.f32 %v859, 0.0
      %v1286 = vmax.f32 %v862, 0.0
      %v1287 = vmax.f32 %v867, 0.0
      %v1288 = vmax.f32 %v870, 0.0
      %v1289 = vmax.f32 %v875, 0.0
      %v1290 = vmax.f32 %v878, 0.0
      %v1291 = vmax.f32 %v883, 0.0
      %v1292 = vmax.f32 %v886, 0.0
      %v1293 = vmax.f32 %v891, 0.0
      %v1294 = vmax.f32 %v894, 0.0
      %v1295 = vmax.f32 %v899, 0.0
      %v1296 = vmax.f32 %v902, 0.0
      %v1297 = vmax.f32 %v907, 0.0
      %v1298 = vmax.f32 %v910, 0.0
      %v1299 = vmax.f32 %v915, 0.0
      %v1300 = vmax.f32 %v918, 0.0
      %v1301 = vmax.f32 %v923, 0.0
      %v1302 = vmax.f32 %v926, 0.0
      %v1303 = vmax.f32 %v931, 0.0
      %v1304 = vmax.f32 %v934, 0.0
      %v1305 = vmax.f32 %v939, 0.0
      %v1306 = vmax.f32 %v942, 0.0
      %v1307 = vmax.f32 %v947, 0.0
      %v1308 = vmax.f32 %v950, 0.0
      %v1309 = vmax.f32 %v955, 0.0
      %v1310 = vmax.f32 %v958, 0.0
      %v1311 = vmax.f32 %v963, 0.0
      %v1312 = vmax.f32 %v966, 0.0
      %v1313 = vmax.f32 %v971, 0.0
      %v1314 = vmax.f32 %v974, 0.0
      %v1315 = vmax.f32 %v979, 0.0
      %v1316 = vmax.f32 %v982, 0.0
      %v1317 = vmax.f32 %v987, 0.0
      %v1318 = vmax.f32 %v990, 0.0
      %v1319 = vmax.f32 %v995, 0.0
      %v1320 = vmax.f32 %v998, 0.0
      %v1321 = vmax.f32 %v1003, 0.0
      %v1322 = vmax.f32 %v1006, 0.0
      %v1323 = vmax.f32 %v1011, 0.0
      %v1324 = vmax.f32 %v1014, 0.0
      %v1325 = vmax.f32 %v1019, 0.0
      %v1326 = vmax.f32 %v1022, 0.0
      %v1327 = vmax.f32 %v1027, 0.0
      %v1328 = vmax.f32 %v1030, 0.0
      %v1329 = vmax.f32 %v1035, 0.0
      %v1330 = vmax.f32 %v1038, 0.0
      %v1331 = vmax.f32 %v1043, 0.0
      %v1332 = vmax.f32 %v1046, 0.0
      %v1333 = vmax.f32 %v1051, 0.0
      %v1334 = vmax.f32 %v1054, 0.0
      %v1335 = vmax.f32 %v1059, 0.0
      %v1336 = vmax.f32 %v1062, 0.0
      %v1337 = vmax.f32 %v1067, 0.0
      %v1338 = vmax.f32 %v1070, 0.0
      %v1339 = vmax.f32 %v1075, 0.0
      %v1340 = vmax.f32 %v1078, 0.0
      %v1341 = vmax.f32 %v1083, 0.0
      %v1342 = vmax.f32 %v1086, 0.0
      %v1343 = vmax.f32 %v1091, 0.0
      %v1344 = vmax.f32 %v1094, 0.0
      %v1345 = vmax.f32 %v1099, 0.0
      %v1346 = vmax.f32 %v1102, 0.0
      %v1347 = vmax.f32 %v1107, 0.0
      %v1348 = vmax.f32 %v1110, 0.0
      %v1349 = vmax.f32 %v1115, 0.0
      %v1350 = vmax.f32 %v1118, 0.0
      %v1351 = vmax.f32 %v1123, 0.0
      %v1352 = vmax.f32 %v1126, 0.0
      %v1353 = vmax.f32 %v1131, 0.0
      %v1354 = vmax.f32 %v1134, 0.0
      %v1355 = vmax.f32 %v1139, 0.0
      %v1356 = vmax.f32 %v1142, 0.0
      %v1357 = vmax.f32 %v1147, 0.0
      %v1358 = vmax.f32 %v1150, 0.0
      %v1359 = vmax.f32 %v1155, 0.0
      %v1360 = vmax.f32 %v1158, 0.0
      %v1361 = vmax.f32 %v1163, 0.0
      %v1362 = vmax.f32 %v1166, 0.0
      %v1363 = vmax.f32 %v1171, 0.0
      %v1364 = vmax.f32 %v1174, 0.0
      %v1365 = vmax.f32 %v1179, 0.0
      %v1366 = vmax.f32 %v1182, 0.0
      %v1367 = vmax.f32 %v1187, 0.0
      %v1368 = vmax.f32 %v1190, 0.0
      %v1369 = vmax.f32 %v1195, 0.0
      %v1370 = vmax.f32 %v1198, 0.0
      %v1371 = vmax.f32 %v1203, 0.0
      %v1372 = vmax.f32 %v1206, 0.0
      %v1373 = vmax.f32 %v1211, 0.0
      %v1374 = vmax.f32 %v1214, 0.0
      %v1375 = vmax.f32 %v1219, 0.0
      %v1376 = vmax.f32 %v1222, 0.0
      %v1377 = vmax.f32 %v1227, 0.0
      %v1378 = vmax.f32 %v1230, 0.0
      %v1379 = vmax.f32 %v1235, 0.0
      %v1380 = vmax.f32 %v1238, 0.0
      %v1381 = vmax.f32 %v1243, 0.0
      %v1382 = vmax.f32 %v1246, 0.0
      %v1383 = vmax.f32 %v1251, 0.0
      %v1384 = vmax.f32 %v1254, 0.0
      %v1385 = vpack.c.bf16 %v1282, %v1281
      %v1386 = vpack.c.bf16 %v1289, %v1283
      %v1387 = vpack.c.bf16 %v1291, %v1290
      %v1388 = vpack.c.bf16 %v1298, %v1297
      %v1389 = vpack.c.bf16 %v1305, %v1299
      %v1390 = vpack.c.bf16 %v1307, %v1306
      %v1391 = vpack.c.bf16 %v1314, %v1313
      %v1392 = vpack.c.bf16 %v1321, %v1315
      %v1393 = vpack.c.bf16 %v1323, %v1322
      %v1394 = vpack.c.bf16 %v1330, %v1329
      %v1395 = vpack.c.bf16 %v1337, %v1331
      %v1396 = vpack.c.bf16 %v1339, %v1338
      %v1397 = vpack.c.bf16 %v1346, %v1345
      %v1398 = vpack.c.bf16 %v1353, %v1347
      %v1399 = vpack.c.bf16 %v1355, %v1354
      %v1400 = vpack.c.bf16 %v1362, %v1361
      %v1401 = vpack.c.bf16 %v1369, %v1363
      %v1402 = vpack.c.bf16 %v1371, %v1370
      %vm1451 = vcmask 1046528
      %v1452 = vrot.slane %v1281, 1
      %v1453 = vrot.slane %v1282, 1
      %v1454 = vsel %vm1451, %v1452, %v1453
      %v1455 = vrot.slane %v1283, 1
      %v1456 = vsel %vm1451, %v1453, %v1455
      %v1457 = vrot.slane %v1284, 1
      %v1458 = vsel %vm1451, %v1455, %v1457
      %v1459 = vrot.slane %v1289, 1
      %v1460 = vrot.slane %v1290, 1
      %v1461 = vsel %vm1451, %v1459, %v1460
      %v1462 = vrot.slane %v1291, 1
      %v1463 = vsel %vm1451, %v1460, %v1462
      %v1464 = vrot.slane %v1292, 1
      %v1465 = vsel %vm1451, %v1462, %v1464
      %v1466 = vrot.slane %v1297, 1
      %v1467 = vrot.slane %v1298, 1
      %v1468 = vsel %vm1451, %v1466, %v1467
      %v1469 = vrot.slane %v1299, 1
      %v1470 = vsel %vm1451, %v1467, %v1469
      %v1471 = vrot.slane %v1300, 1
      %v1472 = vsel %vm1451, %v1469, %v1471
      %v1473 = vrot.slane %v1305, 1
      %v1474 = vrot.slane %v1306, 1
      %v1475 = vsel %vm1451, %v1473, %v1474
      %v1476 = vrot.slane %v1307, 1
      %v1477 = vsel %vm1451, %v1474, %v1476
      %v1478 = vrot.slane %v1308, 1
      %v1479 = vsel %vm1451, %v1476, %v1478
      %v1480 = vrot.slane %v1313, 1
      %v1481 = vrot.slane %v1314, 1
      %v1482 = vsel %vm1451, %v1480, %v1481
      %v1483 = vrot.slane %v1315, 1
      %v1484 = vsel %vm1451, %v1481, %v1483
      %v1485 = vrot.slane %v1316, 1
      %v1486 = vsel %vm1451, %v1483, %v1485
      %v1487 = vrot.slane %v1321, 1
      %v1488 = vrot.slane %v1322, 1
      %v1489 = vsel %vm1451, %v1487, %v1488
      %v1490 = vrot.slane %v1323, 1
      %v1491 = vsel %vm1451, %v1488, %v1490
      %v1492 = vrot.slane %v1324, 1
      %v1493 = vsel %vm1451, %v1490, %v1492
      %v1494 = vrot.slane %v1329, 1
      %v1495 = vrot.slane %v1330, 1
      %v1496 = vsel %vm1451, %v1494, %v1495
      %v1497 = vrot.slane %v1331, 1
      %v1498 = vsel %vm1451, %v1495, %v1497
      %v1499 = vrot.slane %v1332, 1
      %v1500 = vsel %vm1451, %v1497, %v1499
      %v1501 = vrot.slane %v1337, 1
      %v1502 = vrot.slane %v1338, 1
      %v1503 = vsel %vm1451, %v1501, %v1502
      %v1504 = vrot.slane %v1339, 1
      %v1505 = vsel %vm1451, %v1502, %v1504
      %v1506 = vrot.slane %v1340, 1
      %v1507 = vsel %vm1451, %v1504, %v1506
      %v1508 = vrot.slane %v1345, 1
      %v1509 = vrot.slane %v1346, 1
      %v1510 = vsel %vm1451, %v1508, %v1509
      %v1511 = vrot.slane %v1347, 1
      %v1512 = vsel %vm1451, %v1509, %v1511
      %v1513 = vrot.slane %v1348, 1
      %v1514 = vsel %vm1451, %v1511, %v1513
      %v1515 = vrot.slane %v1353, 1
      %v1516 = vrot.slane %v1354, 1
      %v1517 = vsel %vm1451, %v1515, %v1516
      %v1518 = vrot.slane %v1355, 1
      %v1519 = vsel %vm1451, %v1516, %v1518
      %v1520 = vrot.slane %v1356, 1
      %v1521 = vsel %vm1451, %v1518, %v1520
      %v1522 = vrot.slane %v1361, 1
      %v1523 = vrot.slane %v1362, 1
      %v1524 = vsel %vm1451, %v1522, %v1523
      %v1525 = vrot.slane %v1363, 1
      %v1526 = vsel %vm1451, %v1523, %v1525
      %v1527 = vrot.slane %v1364, 1
      %v1528 = vsel %vm1451, %v1525, %v1527
      %v1529 = vrot.slane %v1369, 1
      %v1530 = vrot.slane %v1370, 1
      %v1531 = vsel %vm1451, %v1529, %v1530
      %v1532 = vrot.slane %v1371, 1
      %v1533 = vsel %vm1451, %v1530, %v1532
      %v1534 = vrot.slane %v1372, 1
      %v1535 = vsel %vm1451, %v1532, %v1534
      %v1572 = vpack.c.bf16 %v1456, %v1454
      %v1573 = vpack.c.bf16 %v1461, %v1458
      %v1574 = vpack.c.bf16 %v1465, %v1463
      %v1575 = vpack.c.bf16 %v1470, %v1468
      %v1576 = vpack.c.bf16 %v1475, %v1472
      %v1577 = vpack.c.bf16 %v1479, %v1477
      %v1578 = vpack.c.bf16 %v1484, %v1482
      %v1579 = vpack.c.bf16 %v1489, %v1486
      %v1580 = vpack.c.bf16 %v1493, %v1491
      %v1581 = vpack.c.bf16 %v1498, %v1496
      %v1582 = vpack.c.bf16 %v1503, %v1500
      %v1583 = vpack.c.bf16 %v1507, %v1505
      %v1584 = vpack.c.bf16 %v1512, %v1510
      %v1585 = vpack.c.bf16 %v1517, %v1514
      %v1586 = vpack.c.bf16 %v1521, %v1519
      %v1587 = vpack.c.bf16 %v1526, %v1524
      %v1588 = vpack.c.bf16 %v1531, %v1528
      %v1589 = vpack.c.bf16 %v1535, %v1533
      %vm1590 = vcmask 1045504
      %v1591 = vrot.slane %v1281, 2
      %v1592 = vrot.slane %v1282, 2
      %v1593 = vsel %vm1590, %v1591, %v1592
      %v1594 = vrot.slane %v1283, 2
      %v1595 = vsel %vm1590, %v1592, %v1594
      %v1596 = vrot.slane %v1284, 2
      %v1597 = vsel %vm1590, %v1594, %v1596
      %v1598 = vrot.slane %v1289, 2
      %v1599 = vrot.slane %v1290, 2
      %v1600 = vsel %vm1590, %v1598, %v1599
      %v1601 = vrot.slane %v1291, 2
      %v1602 = vsel %vm1590, %v1599, %v1601
      %v1603 = vrot.slane %v1292, 2
      %v1604 = vsel %vm1590, %v1601, %v1603
      %v1605 = vrot.slane %v1297, 2
      %v1606 = vrot.slane %v1298, 2
      %v1607 = vsel %vm1590, %v1605, %v1606
      %v1608 = vrot.slane %v1299, 2
      %v1609 = vsel %vm1590, %v1606, %v1608
      %v1610 = vrot.slane %v1300, 2
      %v1611 = vsel %vm1590, %v1608, %v1610
      %v1612 = vrot.slane %v1305, 2
      %v1613 = vrot.slane %v1306, 2
      %v1614 = vsel %vm1590, %v1612, %v1613
      %v1615 = vrot.slane %v1307, 2
      %v1616 = vsel %vm1590, %v1613, %v1615
      %v1617 = vrot.slane %v1308, 2
      %v1618 = vsel %vm1590, %v1615, %v1617
      %v1619 = vrot.slane %v1313, 2
      %v1620 = vrot.slane %v1314, 2
      %v1621 = vsel %vm1590, %v1619, %v1620
      %v1622 = vrot.slane %v1315, 2
      %v1623 = vsel %vm1590, %v1620, %v1622
      %v1624 = vrot.slane %v1316, 2
      %v1625 = vsel %vm1590, %v1622, %v1624
      %v1626 = vrot.slane %v1321, 2
      %v1627 = vrot.slane %v1322, 2
      %v1628 = vsel %vm1590, %v1626, %v1627
      %v1629 = vrot.slane %v1323, 2
      %v1630 = vsel %vm1590, %v1627, %v1629
      %v1631 = vrot.slane %v1324, 2
      %v1632 = vsel %vm1590, %v1629, %v1631
      %v1633 = vrot.slane %v1329, 2
      %v1634 = vrot.slane %v1330, 2
      %v1635 = vsel %vm1590, %v1633, %v1634
      %v1636 = vrot.slane %v1331, 2
      %v1637 = vsel %vm1590, %v1634, %v1636
      %v1638 = vrot.slane %v1332, 2
      %v1639 = vsel %vm1590, %v1636, %v1638
      %v1640 = vrot.slane %v1337, 2
      %v1641 = vrot.slane %v1338, 2
      %v1642 = vsel %vm1590, %v1640, %v1641
      %v1643 = vrot.slane %v1339, 2
      %v1644 = vsel %vm1590, %v1641, %v1643
      %v1645 = vrot.slane %v1340, 2
      %v1646 = vsel %vm1590, %v1643, %v1645
      %v1647 = vrot.slane %v1345, 2
      %v1648 = vrot.slane %v1346, 2
      %v1649 = vsel %vm1590, %v1647, %v1648
      %v1650 = vrot.slane %v1347, 2
      %v1651 = vsel %vm1590, %v1648, %v1650
      %v1652 = vrot.slane %v1348, 2
      %v1653 = vsel %vm1590, %v1650, %v1652
      %v1654 = vrot.slane %v1353, 2
      %v1655 = vrot.slane %v1354, 2
      %v1656 = vsel %vm1590, %v1654, %v1655
      %v1657 = vrot.slane %v1355, 2
      %v1658 = vsel %vm1590, %v1655, %v1657
      %v1659 = vrot.slane %v1356, 2
      %v1660 = vsel %vm1590, %v1657, %v1659
      %v1661 = vrot.slane %v1361, 2
      %v1662 = vrot.slane %v1362, 2
      %v1663 = vsel %vm1590, %v1661, %v1662
      %v1664 = vrot.slane %v1363, 2
      %v1665 = vsel %vm1590, %v1662, %v1664
      %v1666 = vrot.slane %v1364, 2
      %v1667 = vsel %vm1590, %v1664, %v1666
      %v1668 = vrot.slane %v1369, 2
      %v1669 = vrot.slane %v1370, 2
      %v1670 = vsel %vm1590, %v1668, %v1669
      %v1671 = vrot.slane %v1371, 2
      %v1672 = vsel %vm1590, %v1669, %v1671
      %v1673 = vrot.slane %v1372, 2
      %v1674 = vsel %vm1590, %v1671, %v1673
      %v1711 = vpack.c.bf16 %v1595, %v1593
      %v1712 = vpack.c.bf16 %v1600, %v1597
      %v1713 = vpack.c.bf16 %v1604, %v1602
      %v1714 = vpack.c.bf16 %v1609, %v1607
      %v1715 = vpack.c.bf16 %v1614, %v1611
      %v1716 = vpack.c.bf16 %v1618, %v1616
      %v1717 = vpack.c.bf16 %v1623, %v1621
      %v1718 = vpack.c.bf16 %v1628, %v1625
      %v1719 = vpack.c.bf16 %v1632, %v1630
      %v1720 = vpack.c.bf16 %v1637, %v1635
      %v1721 = vpack.c.bf16 %v1642, %v1639
      %v1722 = vpack.c.bf16 %v1646, %v1644
      %v1723 = vpack.c.bf16 %v1651, %v1649
      %v1724 = vpack.c.bf16 %v1656, %v1653
      %v1725 = vpack.c.bf16 %v1660, %v1658
      %v1726 = vpack.c.bf16 %v1665, %v1663
      %v1727 = vpack.c.bf16 %v1670, %v1667
      %v1728 = vpack.c.bf16 %v1674, %v1672
      %v1729 = vpack.c.bf16 %v1286, %v1285
      %v1730 = vpack.c.bf16 %v1293, %v1287
      %v1731 = vpack.c.bf16 %v1295, %v1294
      %v1732 = vpack.c.bf16 %v1302, %v1301
      %v1733 = vpack.c.bf16 %v1309, %v1303
      %v1734 = vpack.c.bf16 %v1311, %v1310
      %v1735 = vpack.c.bf16 %v1318, %v1317
      %v1736 = vpack.c.bf16 %v1325, %v1319
      %v1737 = vpack.c.bf16 %v1327, %v1326
      %v1738 = vpack.c.bf16 %v1334, %v1333
      %v1739 = vpack.c.bf16 %v1341, %v1335
      %v1740 = vpack.c.bf16 %v1343, %v1342
      %v1741 = vpack.c.bf16 %v1350, %v1349
      %v1742 = vpack.c.bf16 %v1357, %v1351
      %v1743 = vpack.c.bf16 %v1359, %v1358
      %v1744 = vpack.c.bf16 %v1366, %v1365
      %v1745 = vpack.c.bf16 %v1373, %v1367
      %v1746 = vpack.c.bf16 %v1375, %v1374
      %v1795 = vrot.slane %v1285, 1
      %v1796 = vrot.slane %v1286, 1
      %v1797 = vsel %vm1451, %v1795, %v1796
      %v1798 = vrot.slane %v1287, 1
      %v1799 = vsel %vm1451, %v1796, %v1798
      %v1800 = vrot.slane %v1288, 1
      %v1801 = vsel %vm1451, %v1798, %v1800
      %v1802 = vrot.slane %v1293, 1
      %v1803 = vrot.slane %v1294, 1
      %v1804 = vsel %vm1451, %v1802, %v1803
      %v1805 = vrot.slane %v1295, 1
      %v1806 = vsel %vm1451, %v1803, %v1805
      %v1807 = vrot.slane %v1296, 1
      %v1808 = vsel %vm1451, %v1805, %v1807
      %v1809 = vrot.slane %v1301, 1
      %v1810 = vrot.slane %v1302, 1
      %v1811 = vsel %vm1451, %v1809, %v1810
      %v1812 = vrot.slane %v1303, 1
      %v1813 = vsel %vm1451, %v1810, %v1812
      %v1814 = vrot.slane %v1304, 1
      %v1815 = vsel %vm1451, %v1812, %v1814
      %v1816 = vrot.slane %v1309, 1
      %v1817 = vrot.slane %v1310, 1
      %v1818 = vsel %vm1451, %v1816, %v1817
      %v1819 = vrot.slane %v1311, 1
      %v1820 = vsel %vm1451, %v1817, %v1819
      %v1821 = vrot.slane %v1312, 1
      %v1822 = vsel %vm1451, %v1819, %v1821
      %v1823 = vrot.slane %v1317, 1
      %v1824 = vrot.slane %v1318, 1
      %v1825 = vsel %vm1451, %v1823, %v1824
      %v1826 = vrot.slane %v1319, 1
      %v1827 = vsel %vm1451, %v1824, %v1826
      %v1828 = vrot.slane %v1320, 1
      %v1829 = vsel %vm1451, %v1826, %v1828
      %v1830 = vrot.slane %v1325, 1
      %v1831 = vrot.slane %v1326, 1
      %v1832 = vsel %vm1451, %v1830, %v1831
      %v1833 = vrot.slane %v1327, 1
      %v1834 = vsel %vm1451, %v1831, %v1833
      %v1835 = vrot.slane %v1328, 1
      %v1836 = vsel %vm1451, %v1833, %v1835
      %v1837 = vrot.slane %v1333, 1
      %v1838 = vrot.slane %v1334, 1
      %v1839 = vsel %vm1451, %v1837, %v1838
      %v1840 = vrot.slane %v1335, 1
      %v1841 = vsel %vm1451, %v1838, %v1840
      %v1842 = vrot.slane %v1336, 1
      %v1843 = vsel %vm1451, %v1840, %v1842
      %v1844 = vrot.slane %v1341, 1
      %v1845 = vrot.slane %v1342, 1
      %v1846 = vsel %vm1451, %v1844, %v1845
      %v1847 = vrot.slane %v1343, 1
      %v1848 = vsel %vm1451, %v1845, %v1847
      %v1849 = vrot.slane %v1344, 1
      %v1850 = vsel %vm1451, %v1847, %v1849
      %v1851 = vrot.slane %v1349, 1
      %v1852 = vrot.slane %v1350, 1
      %v1853 = vsel %vm1451, %v1851, %v1852
      %v1854 = vrot.slane %v1351, 1
      %v1855 = vsel %vm1451, %v1852, %v1854
      %v1856 = vrot.slane %v1352, 1
      %v1857 = vsel %vm1451, %v1854, %v1856
      %v1858 = vrot.slane %v1357, 1
      %v1859 = vrot.slane %v1358, 1
      %v1860 = vsel %vm1451, %v1858, %v1859
      %v1861 = vrot.slane %v1359, 1
      %v1862 = vsel %vm1451, %v1859, %v1861
      %v1863 = vrot.slane %v1360, 1
      %v1864 = vsel %vm1451, %v1861, %v1863
      %v1865 = vrot.slane %v1365, 1
      %v1866 = vrot.slane %v1366, 1
      %v1867 = vsel %vm1451, %v1865, %v1866
      %v1868 = vrot.slane %v1367, 1
      %v1869 = vsel %vm1451, %v1866, %v1868
      %v1870 = vrot.slane %v1368, 1
      %v1871 = vsel %vm1451, %v1868, %v1870
      %v1872 = vrot.slane %v1373, 1
      %v1873 = vrot.slane %v1374, 1
      %v1874 = vsel %vm1451, %v1872, %v1873
      %v1875 = vrot.slane %v1375, 1
      %v1876 = vsel %vm1451, %v1873, %v1875
      %v1877 = vrot.slane %v1376, 1
      %v1878 = vsel %vm1451, %v1875, %v1877
      %v1915 = vpack.c.bf16 %v1799, %v1797
      %v1916 = vpack.c.bf16 %v1804, %v1801
      %v1917 = vpack.c.bf16 %v1808, %v1806
      %v1918 = vpack.c.bf16 %v1813, %v1811
      %v1919 = vpack.c.bf16 %v1818, %v1815
      %v1920 = vpack.c.bf16 %v1822, %v1820
      %v1921 = vpack.c.bf16 %v1827, %v1825
      %v1922 = vpack.c.bf16 %v1832, %v1829
      %v1923 = vpack.c.bf16 %v1836, %v1834
      %v1924 = vpack.c.bf16 %v1841, %v1839
      %v1925 = vpack.c.bf16 %v1846, %v1843
      %v1926 = vpack.c.bf16 %v1850, %v1848
      %v1927 = vpack.c.bf16 %v1855, %v1853
      %v1928 = vpack.c.bf16 %v1860, %v1857
      %v1929 = vpack.c.bf16 %v1864, %v1862
      %v1930 = vpack.c.bf16 %v1869, %v1867
      %v1931 = vpack.c.bf16 %v1874, %v1871
      %v1932 = vpack.c.bf16 %v1878, %v1876
      %v1933 = vrot.slane %v1285, 2
      %v1934 = vrot.slane %v1286, 2
      %v1935 = vsel %vm1590, %v1933, %v1934
      %v1936 = vrot.slane %v1287, 2
      %v1937 = vsel %vm1590, %v1934, %v1936
      %v1938 = vrot.slane %v1288, 2
      %v1939 = vsel %vm1590, %v1936, %v1938
      %v1940 = vrot.slane %v1293, 2
      %v1941 = vrot.slane %v1294, 2
      %v1942 = vsel %vm1590, %v1940, %v1941
      %v1943 = vrot.slane %v1295, 2
      %v1944 = vsel %vm1590, %v1941, %v1943
      %v1945 = vrot.slane %v1296, 2
      %v1946 = vsel %vm1590, %v1943, %v1945
      %v1947 = vrot.slane %v1301, 2
      %v1948 = vrot.slane %v1302, 2
      %v1949 = vsel %vm1590, %v1947, %v1948
      %v1950 = vrot.slane %v1303, 2
      %v1951 = vsel %vm1590, %v1948, %v1950
      %v1952 = vrot.slane %v1304, 2
      %v1953 = vsel %vm1590, %v1950, %v1952
      %v1954 = vrot.slane %v1309, 2
      %v1955 = vrot.slane %v1310, 2
      %v1956 = vsel %vm1590, %v1954, %v1955
      %v1957 = vrot.slane %v1311, 2
      %v1958 = vsel %vm1590, %v1955, %v1957
      %v1959 = vrot.slane %v1312, 2
      %v1960 = vsel %vm1590, %v1957, %v1959
      %v1961 = vrot.slane %v1317, 2
      %v1962 = vrot.slane %v1318, 2
      %v1963 = vsel %vm1590, %v1961, %v1962
      %v1964 = vrot.slane %v1319, 2
      %v1965 = vsel %vm1590, %v1962, %v1964
      %v1966 = vrot.slane %v1320, 2
      %v1967 = vsel %vm1590, %v1964, %v1966
      %v1968 = vrot.slane %v1325, 2
      %v1969 = vrot.slane %v1326, 2
      %v1970 = vsel %vm1590, %v1968, %v1969
      %v1971 = vrot.slane %v1327, 2
      %v1972 = vsel %vm1590, %v1969, %v1971
      %v1973 = vrot.slane %v1328, 2
      %v1974 = vsel %vm1590, %v1971, %v1973
      %v1975 = vrot.slane %v1333, 2
      %v1976 = vrot.slane %v1334, 2
      %v1977 = vsel %vm1590, %v1975, %v1976
      %v1978 = vrot.slane %v1335, 2
      %v1979 = vsel %vm1590, %v1976, %v1978
      %v1980 = vrot.slane %v1336, 2
      %v1981 = vsel %vm1590, %v1978, %v1980
      %v1982 = vrot.slane %v1341, 2
      %v1983 = vrot.slane %v1342, 2
      %v1984 = vsel %vm1590, %v1982, %v1983
      %v1985 = vrot.slane %v1343, 2
      %v1986 = vsel %vm1590, %v1983, %v1985
      %v1987 = vrot.slane %v1344, 2
      %v1988 = vsel %vm1590, %v1985, %v1987
      %v1989 = vrot.slane %v1349, 2
      %v1990 = vrot.slane %v1350, 2
      %v1991 = vsel %vm1590, %v1989, %v1990
      %v1992 = vrot.slane %v1351, 2
      %v1993 = vsel %vm1590, %v1990, %v1992
      %v1994 = vrot.slane %v1352, 2
      %v1995 = vsel %vm1590, %v1992, %v1994
      %v1996 = vrot.slane %v1357, 2
      %v1997 = vrot.slane %v1358, 2
      %v1998 = vsel %vm1590, %v1996, %v1997
      %v1999 = vrot.slane %v1359, 2
      %v2000 = vsel %vm1590, %v1997, %v1999
      %v2001 = vrot.slane %v1360, 2
      %v2002 = vsel %vm1590, %v1999, %v2001
      %v2003 = vrot.slane %v1365, 2
      %v2004 = vrot.slane %v1366, 2
      %v2005 = vsel %vm1590, %v2003, %v2004
      %v2006 = vrot.slane %v1367, 2
      %v2007 = vsel %vm1590, %v2004, %v2006
      %v2008 = vrot.slane %v1368, 2
      %v2009 = vsel %vm1590, %v2006, %v2008
      %v2010 = vrot.slane %v1373, 2
      %v2011 = vrot.slane %v1374, 2
      %v2012 = vsel %vm1590, %v2010, %v2011
      %v2013 = vrot.slane %v1375, 2
      %v2014 = vsel %vm1590, %v2011, %v2013
      %v2015 = vrot.slane %v1376, 2
      %v2016 = vsel %vm1590, %v2013, %v2015
      %v2053 = vpack.c.bf16 %v1937, %v1935
      %v2054 = vpack.c.bf16 %v1942, %v1939
      %v2055 = vpack.c.bf16 %v1946, %v1944
      %v2056 = vpack.c.bf16 %v1951, %v1949
      %v2057 = vpack.c.bf16 %v1956, %v1953
      %v2058 = vpack.c.bf16 %v1960, %v1958
      %v2059 = vpack.c.bf16 %v1965, %v1963
      %v2060 = vpack.c.bf16 %v1970, %v1967
      %v2061 = vpack.c.bf16 %v1974, %v1972
      %v2062 = vpack.c.bf16 %v1979, %v1977
      %v2063 = vpack.c.bf16 %v1984, %v1981
      %v2064 = vpack.c.bf16 %v1988, %v1986
      %v2065 = vpack.c.bf16 %v1993, %v1991
      %v2066 = vpack.c.bf16 %v1998, %v1995
      %v2067 = vpack.c.bf16 %v2002, %v2000
      %v2068 = vpack.c.bf16 %v2007, %v2005
      %v2069 = vpack.c.bf16 %v2012, %v2009
      %v2070 = vpack.c.bf16 %v2016, %v2014
      %v2071 = vpack.c.bf16 %v1290, %v1289
      %v2072 = vpack.c.bf16 %v1297, %v1291
      %v2073 = vpack.c.bf16 %v1299, %v1298
      %v2074 = vpack.c.bf16 %v1306, %v1305
      %v2075 = vpack.c.bf16 %v1313, %v1307
      %v2076 = vpack.c.bf16 %v1315, %v1314
      %v2077 = vpack.c.bf16 %v1322, %v1321
      %v2078 = vpack.c.bf16 %v1329, %v1323
      %v2079 = vpack.c.bf16 %v1331, %v1330
      %v2080 = vpack.c.bf16 %v1338, %v1337
      %v2081 = vpack.c.bf16 %v1345, %v1339
      %v2082 = vpack.c.bf16 %v1347, %v1346
      %v2083 = vpack.c.bf16 %v1354, %v1353
      %v2084 = vpack.c.bf16 %v1361, %v1355
      %v2085 = vpack.c.bf16 %v1363, %v1362
      %v2086 = vpack.c.bf16 %v1370, %v1369
      %v2087 = vpack.c.bf16 %v1377, %v1371
      %v2088 = vpack.c.bf16 %v1379, %v1378
      %v2093 = vrot.slane %v1377, 1
      %v2094 = vrot.slane %v1378, 1
      %v2095 = vsel %vm1451, %v2093, %v2094
      %v2096 = vrot.slane %v1379, 1
      %v2097 = vsel %vm1451, %v2094, %v2096
      %v2098 = vrot.slane %v1380, 1
      %v2099 = vsel %vm1451, %v2096, %v2098
      %v2103 = vpack.c.bf16 %v1463, %v1461
      %v2104 = vpack.c.bf16 %v1468, %v1465
      %v2105 = vpack.c.bf16 %v1472, %v1470
      %v2106 = vpack.c.bf16 %v1477, %v1475
      %v2107 = vpack.c.bf16 %v1482, %v1479
      %v2108 = vpack.c.bf16 %v1486, %v1484
      %v2109 = vpack.c.bf16 %v1491, %v1489
      %v2110 = vpack.c.bf16 %v1496, %v1493
      %v2111 = vpack.c.bf16 %v1500, %v1498
      %v2112 = vpack.c.bf16 %v1505, %v1503
      %v2113 = vpack.c.bf16 %v1510, %v1507
      %v2114 = vpack.c.bf16 %v1514, %v1512
      %v2115 = vpack.c.bf16 %v1519, %v1517
      %v2116 = vpack.c.bf16 %v1524, %v1521
      %v2117 = vpack.c.bf16 %v1528, %v1526
      %v2118 = vpack.c.bf16 %v1533, %v1531
      %v2119 = vpack.c.bf16 %v2095, %v1535
      %v2120 = vpack.c.bf16 %v2099, %v2097
      %v2121 = vrot.slane %v1377, 2
      %v2122 = vrot.slane %v1378, 2
      %v2123 = vsel %vm1590, %v2121, %v2122
      %v2124 = vrot.slane %v1379, 2
      %v2125 = vsel %vm1590, %v2122, %v2124
      %v2126 = vrot.slane %v1380, 2
      %v2127 = vsel %vm1590, %v2124, %v2126
      %v2131 = vpack.c.bf16 %v1602, %v1600
      %v2132 = vpack.c.bf16 %v1607, %v1604
      %v2133 = vpack.c.bf16 %v1611, %v1609
      %v2134 = vpack.c.bf16 %v1616, %v1614
      %v2135 = vpack.c.bf16 %v1621, %v1618
      %v2136 = vpack.c.bf16 %v1625, %v1623
      %v2137 = vpack.c.bf16 %v1630, %v1628
      %v2138 = vpack.c.bf16 %v1635, %v1632
      %v2139 = vpack.c.bf16 %v1639, %v1637
      %v2140 = vpack.c.bf16 %v1644, %v1642
      %v2141 = vpack.c.bf16 %v1649, %v1646
      %v2142 = vpack.c.bf16 %v1653, %v1651
      %v2143 = vpack.c.bf16 %v1658, %v1656
      %v2144 = vpack.c.bf16 %v1663, %v1660
      %v2145 = vpack.c.bf16 %v1667, %v1665
      %v2146 = vpack.c.bf16 %v1672, %v1670
      %v2147 = vpack.c.bf16 %v2123, %v1674
      %v2148 = vpack.c.bf16 %v2127, %v2125
      %v2149 = vpack.c.bf16 %v1294, %v1293
      %v2150 = vpack.c.bf16 %v1301, %v1295
      %v2151 = vpack.c.bf16 %v1303, %v1302
      %v2152 = vpack.c.bf16 %v1310, %v1309
      %v2153 = vpack.c.bf16 %v1317, %v1311
      %v2154 = vpack.c.bf16 %v1319, %v1318
      %v2155 = vpack.c.bf16 %v1326, %v1325
      %v2156 = vpack.c.bf16 %v1333, %v1327
      %v2157 = vpack.c.bf16 %v1335, %v1334
      %v2158 = vpack.c.bf16 %v1342, %v1341
      %v2159 = vpack.c.bf16 %v1349, %v1343
      %v2160 = vpack.c.bf16 %v1351, %v1350
      %v2161 = vpack.c.bf16 %v1358, %v1357
      %v2162 = vpack.c.bf16 %v1365, %v1359
      %v2163 = vpack.c.bf16 %v1367, %v1366
      %v2164 = vpack.c.bf16 %v1374, %v1373
      %v2165 = vpack.c.bf16 %v1381, %v1375
      %v2166 = vpack.c.bf16 %v1383, %v1382
      %v2171 = vrot.slane %v1381, 1
      %v2172 = vrot.slane %v1382, 1
      %v2173 = vsel %vm1451, %v2171, %v2172
      %v2174 = vrot.slane %v1383, 1
      %v2175 = vsel %vm1451, %v2172, %v2174
      %v2176 = vrot.slane %v1384, 1
      %v2177 = vsel %vm1451, %v2174, %v2176
      %v2181 = vpack.c.bf16 %v1806, %v1804
      %v2182 = vpack.c.bf16 %v1811, %v1808
      %v2183 = vpack.c.bf16 %v1815, %v1813
      %v2184 = vpack.c.bf16 %v1820, %v1818
      %v2185 = vpack.c.bf16 %v1825, %v1822
      %v2186 = vpack.c.bf16 %v1829, %v1827
      %v2187 = vpack.c.bf16 %v1834, %v1832
      %v2188 = vpack.c.bf16 %v1839, %v1836
      %v2189 = vpack.c.bf16 %v1843, %v1841
      %v2190 = vpack.c.bf16 %v1848, %v1846
      %v2191 = vpack.c.bf16 %v1853, %v1850
      %v2192 = vpack.c.bf16 %v1857, %v1855
      %v2193 = vpack.c.bf16 %v1862, %v1860
      %v2194 = vpack.c.bf16 %v1867, %v1864
      %v2195 = vpack.c.bf16 %v1871, %v1869
      %v2196 = vpack.c.bf16 %v1876, %v1874
      %v2197 = vpack.c.bf16 %v2173, %v1878
      %v2198 = vpack.c.bf16 %v2177, %v2175
      %v2199 = vrot.slane %v1381, 2
      %v2200 = vrot.slane %v1382, 2
      %v2201 = vsel %vm1590, %v2199, %v2200
      %v2202 = vrot.slane %v1383, 2
      %v2203 = vsel %vm1590, %v2200, %v2202
      %v2204 = vrot.slane %v1384, 2
      %v2205 = vsel %vm1590, %v2202, %v2204
      %v2209 = vpack.c.bf16 %v1944, %v1942
      %v2210 = vpack.c.bf16 %v1949, %v1946
      %v2211 = vpack.c.bf16 %v1953, %v1951
      %v2212 = vpack.c.bf16 %v1958, %v1956
      %v2213 = vpack.c.bf16 %v1963, %v1960
      %v2214 = vpack.c.bf16 %v1967, %v1965
      %v2215 = vpack.c.bf16 %v1972, %v1970
      %v2216 = vpack.c.bf16 %v1977, %v1974
      %v2217 = vpack.c.bf16 %v1981, %v1979
      %v2218 = vpack.c.bf16 %v1986, %v1984
      %v2219 = vpack.c.bf16 %v1991, %v1988
      %v2220 = vpack.c.bf16 %v1995, %v1993
      %v2221 = vpack.c.bf16 %v2000, %v1998
      %v2222 = vpack.c.bf16 %v2005, %v2002
      %v2223 = vpack.c.bf16 %v2009, %v2007
      %v2224 = vpack.c.bf16 %v2014, %v2012
      %v2225 = vpack.c.bf16 %v2201, %v2016
      %v2226 = vpack.c.bf16 %v2205, %v2203
      %v2227 = vld [vmem:[%s3] sm:$0xf]
      %v2228 = vld [vmem:[%s3 + $0x4] sm:$0xf]
      %v2229 = vld [vmem:[%s3 + $0x8] sm:$0xf]
      %v2230 = vld [vmem:[%s3 + $0xc] sm:$0xf]
      %s2231 = scalar_lea.vmem %s3, 16
      %v2232 = vld [vmem:[%s2231] sm:$0xf]
      %v2233 = vld [vmem:[%s2231 + $0x4] sm:$0xf]
      %v2234 = vld [vmem:[%s2231 + $0x8] sm:$0xf]
      %v2235 = vld [vmem:[%s2231 + $0xc] sm:$0xf]
      %v2240 = vunpack.c.l.b16 %v2232
      %v2241 = vunpack.c.l.b16 %v2233
      %v2242 = vunpack.c.l.b16 %v2234
      %v2243 = vunpack.c.l.b16 %v2235
      %v2244 = vpack.c.b16 %v2241, %v2240
      %v2245 = vpack.c.b16 %v2243, %v2242
      %vm2248 = vcmask 261120
      %v2250 = vsel %vm2248, %v1572, 0
      %v2253 = vsel %vm2248, %v1573, 0
      %v2256 = vsel %vm2248, %v1574, 0
      %v2259 = vsel %vm2248, %v1575, 0
      %v2262 = vsel %vm2248, %v1576, 0
      %v2265 = vsel %vm2248, %v1577, 0
      %v2268 = vsel %vm2248, %v1578, 0
      %v2271 = vsel %vm2248, %v1579, 0
      %v2274 = vsel %vm2248, %v1580, 0
      %v2277 = vsel %vm2248, %v1581, 0
      %v2280 = vsel %vm2248, %v1582, 0
      %v2283 = vsel %vm2248, %v1583, 0
      %v2286 = vsel %vm2248, %v1584, 0
      %v2289 = vsel %vm2248, %v1585, 0
      %v2292 = vsel %vm2248, %v1586, 0
      %v2295 = vsel %vm2248, %v1587, 0
      %v2298 = vsel %vm2248, %v1588, 0
      %v2301 = vsel %vm2248, %v1589, 0
      %2303 = vmatprep.subr.bf16.mxu0 0
      %2304 = vmatpush1.bf16.msra.mxu0 %v2244
      %2305 = vmatprep.subr.bf16.mxu0 0
      %2306 = vmatpush1.bf16.msra.mxu0 %v2245
      %2307 = vmatprep.subr.bf16.mxu0 0
      %2308 = vmatpush1.bf16.msra.mxu0 0
      %2309 = vmatprep.subr.bf16.mxu0 0
      %2310 = vmatpush1.bf16.msra.mxu0 0
      %2311 = vmatprep.subr.bf16.mxu0 0
      %2312 = vmatpush1.bf16.msra.mxu0 0
      %2313 = vmatprep.subr.bf16.mxu0 0
      %2314 = vmatpush1.bf16.msra.mxu0 0
      %2315 = vmatprep.subr.bf16.mxu0 0
      %2316 = vmatpush1.bf16.msra.mxu0 0
      %2317 = vmatprep.subr.bf16.mxu0 0
      %2318 = vmatpush1.bf16.msra.mxu0 0
      %2319 = vmatprep.subr.bf16.mxu0 0
      %2320 = vmatpush1.bf16.msra.mxu0 0
      %2321 = vmatprep.subr.bf16.mxu0 0
      %2322 = vmatpush1.bf16.msra.mxu0 0
      %2323 = vmatprep.subr.bf16.mxu0 0
      %2324 = vmatpush1.bf16.msra.mxu0 0
      %2325 = vmatprep.subr.bf16.mxu0 0
      %2326 = vmatpush1.bf16.msra.mxu0 0
      %2327 = vmatprep.subr.bf16.mxu0 0
      %2328 = vmatpush1.bf16.msra.mxu0 0
      %2329 = vmatprep.subr.bf16.mxu0 0
      %2330 = vmatpush1.bf16.msra.mxu0 0
      %2331 = vmatprep.subr.bf16.mxu0 0
      %2332 = vmatpush1.bf16.msra.mxu0 0
      %2333 = vmatprep.subr.bf16.mxu0 0
      %2334 = vmatpush1.bf16.msra.mxu0 0
      %2335 = vmatprep.mubr.bf16.mxu0 0
      %2336 = vmatmul.mubr.bf16.gmra.mrb[0].mxu0 %v2250
      %v2337 = vpop.f32.mrb[0].mxu0
      %v2338 = vadd.f32 0.0, %v2337
      %v2339 = vpop.f32.mrb[0].mxu0
      %v2340 = vpop.f32.mrb[0].mxu0
      %v2341 = vadd.f32 0.0, %v2340
      %v2342 = vpop.f32.mrb[0].mxu0
      %2343 = vmatprep.mubr.bf16.mxu0 0
      %2344 = vmatmul.mubr.bf16.gmra.mrb[0].mxu0 %v2253
      %v2345 = vpop.f32.mrb[0].mxu0
      %v2346 = vadd.f32 0.0, %v2345
      %v2347 = vpop.f32.mrb[0].mxu0
      %v2348 = vpop.f32.mrb[0].mxu0
      %v2349 = vadd.f32 0.0, %v2348
      %v2350 = vpop.f32.mrb[0].mxu0
      %2351 = vmatprep.mubr.bf16.mxu0 0
      %2352 = vmatmul.mubr.bf16.gmra.mrb[0].mxu0 %v2256
      %v2353 = vpop.f32.mrb[0].mxu0
      %v2354 = vadd.f32 0.0, %v2353
      %v2355 = vpop.f32.mrb[0].mxu0
      %v2356 = vpop.f32.mrb[0].mxu0
      %v2357 = vadd.f32 0.0, %v2356
      %v2358 = vpop.f32.mrb[0].mxu0
      %2359 = vmatprep.mubr.bf16.mxu0 0
      %2360 = vmatmul.mubr.bf16.gmra.mrb[0].mxu0 %v2259
      %v2361 = vpop.f32.mrb[0].mxu0
      %v2362 = vadd.f32 0.0, %v2361
      %v2363 = vpop.f32.mrb[0].mxu0
      %v2364 = vpop.f32.mrb[0].mxu0
      %v2365 = vadd.f32 0.0, %v2364
      %v2366 = vpop.f32.mrb[0].mxu0
      %2367 = vmatprep.mubr.bf16.mxu0 0
      %2368 = vmatmul.mubr.bf16.gmra.mrb[0].mxu0 %v2262
      %v2369 = vpop.f32.mrb[0].mxu0
      %v2370 = vadd.f32 0.0, %v2369
      %v2371 = vpop.f32.mrb[0].mxu0
      %v2372 = vpop.f32.mrb[0].mxu0
      %v2373 = vadd.f32 0.0, %v2372
      %v2374 = vpop.f32.mrb[0].mxu0
      %2375 = vmatprep.mubr.bf16.mxu0 0
      %2376 = vmatmul.mubr.bf16.gmra.mrb[0].mxu0 %v2265
      %v2377 = vpop.f32.mrb[0].mxu0
      %v2378 = vadd.f32 0.0, %v2377
      %v2379 = vpop.f32.mrb[0].mxu0
      %v2380 = vpop.f32.mrb[0].mxu0
      %v2381 = vadd.f32 0.0, %v2380
      %v2382 = vpop.f32.mrb[0].mxu0
      %2383 = vmatprep.mubr.bf16.mxu0 0
      %2384 = vmatmul.mubr.bf16.gmra.mrb[0].mxu0 %v2268
      %v2385 = vpop.f32.mrb[0].mxu0
      %v2386 = vadd.f32 0.0, %v2385
      %v2387 = vpop.f32.mrb[0].mxu0
      %v2388 = vpop.f32.mrb[0].mxu0
      %v2389 = vadd.f32 0.0, %v2388
      %v2390 = vpop.f32.mrb[0].mxu0
      %2391 = vmatprep.mubr.bf16.mxu0 0
      %2392 = vmatmul.mubr.bf16.gmra.mrb[0].mxu0 %v2271
      %v2393 = vpop.f32.mrb[0].mxu0
      %v2394 = vadd.f32 0.0, %v2393
      %v2395 = vpop.f32.mrb[0].mxu0
      %v2396 = vpop.f32.mrb[0].mxu0
      %v2397 = vadd.f32 0.0, %v2396
      %v2398 = vpop.f32.mrb[0].mxu0
      %2399 = vmatprep.mubr.bf16.mxu0 0
      %2400 = vmatmul.mubr.bf16.gmra.mrb[0].mxu0 %v2274
      %v2401 = vpop.f32.mrb[0].mxu0
      %v2402 = vadd.f32 0.0, %v2401
      %v2403 = vpop.f32.mrb[0].mxu0
      %v2404 = vpop.f32.mrb[0].mxu0
      %v2405 = vadd.f32 0.0, %v2404
      %v2406 = vpop.f32.mrb[0].mxu0
      %2407 = vmatprep.mubr.bf16.mxu0 0
      %2408 = vmatmul.mubr.bf16.gmra.mrb[0].mxu0 %v2277
      %v2409 = vpop.f32.mrb[0].mxu0
      %v2410 = vadd.f32 0.0, %v2409
      %v2411 = vpop.f32.mrb[0].mxu0
      %v2412 = vpop.f32.mrb[0].mxu0
      %v2413 = vadd.f32 0.0, %v2412
      %v2414 = vpop.f32.mrb[0].mxu0
      %2415 = vmatprep.mubr.bf16.mxu0 0
      %2416 = vmatmul.mubr.bf16.gmra.mrb[0].mxu0 %v2280
      %v2417 = vpop.f32.mrb[0].mxu0
      %v2418 = vadd.f32 0.0, %v2417
      %v2419 = vpop.f32.mrb[0].mxu0
      %v2420 = vpop.f32.mrb[0].mxu0
      %v2421 = vadd.f32 0.0, %v2420
      %v2422 = vpop.f32.mrb[0].mxu0
      %2423 = vmatprep.mubr.bf16.mxu0 0
      %2424 = vmatmul.mubr.bf16.gmra.mrb[0].mxu0 %v2283
      %v2425 = vpop.f32.mrb[0].mxu0
      %v2426 = vadd.f32 0.0, %v2425
      %v2427 = vpop.f32.mrb[0].mxu0
      %v2428 = vpop.f32.mrb[0].mxu0
      %v2429 = vadd.f32 0.0, %v2428
      %v2430 = vpop.f32.mrb[0].mxu0
      %2431 = vmatprep.mubr.bf16.mxu0 0
      %2432 = vmatmul.mubr.bf16.gmra.mrb[0].mxu0 %v2286
      %v2433 = vpop.f32.mrb[0].mxu0
      %v2434 = vadd.f32 0.0, %v2433
      %v2435 = vpop.f32.mrb[0].mxu0
      %v2436 = vpop.f32.mrb[0].mxu0
      %v2437 = vadd.f32 0.0, %v2436
      %v2438 = vpop.f32.mrb[0].mxu0
      %2439 = vmatprep.mubr.bf16.mxu0 0
      %2440 = vmatmul.mubr.bf16.gmra.mrb[0].mxu0 %v2289
      %v2441 = vpop.f32.mrb[0].mxu0
      %v2442 = vadd.f32 0.0, %v2441
      %v2443 = vpop.f32.mrb[0].mxu0
      %v2444 = vpop.f32.mrb[0].mxu0
      %v2445 = vadd.f32 0.0, %v2444
      %v2446 = vpop.f32.mrb[0].mxu0
      %2447 = vmatprep.mubr.bf16.mxu0 0
      %2448 = vmatmul.mubr.bf16.gmra.mrb[0].mxu0 %v2292
      %v2449 = vpop.f32.mrb[0].mxu0
      %v2450 = vadd.f32 0.0, %v2449
      %v2451 = vpop.f32.mrb[0].mxu0
      %v2452 = vpop.f32.mrb[0].mxu0
      %v2453 = vadd.f32 0.0, %v2452
      %v2454 = vpop.f32.mrb[0].mxu0
      %2455 = vmatprep.mubr.bf16.mxu0 0
      %2456 = vmatmul.mubr.bf16.gmra.mrb[0].mxu0 %v2295
      %v2457 = vpop.f32.mrb[0].mxu0
      %v2458 = vadd.f32 0.0, %v2457
      %v2459 = vpop.f32.mrb[0].mxu0
      %v2460 = vpop.f32.mrb[0].mxu0
      %v2461 = vadd.f32 0.0, %v2460
      %v2462 = vpop.f32.mrb[0].mxu0
      %2463 = vmatprep.mubr.bf16.mxu0 0
      %2464 = vmatmul.mubr.bf16.gmra.mrb[0].mxu0 %v2298
      %v2465 = vpop.f32.mrb[0].mxu0
      %v2466 = vadd.f32 0.0, %v2465
      %v2467 = vpop.f32.mrb[0].mxu0
      %v2468 = vpop.f32.mrb[0].mxu0
      %v2469 = vadd.f32 0.0, %v2468
      %v2470 = vpop.f32.mrb[0].mxu0
      %2471 = vmatprep.mubr.bf16.mxu0 0
      %2472 = vmatmul.mubr.bf16.gmra.mrb[0].mxu0 %v2301
      %v2473 = vpop.f32.mrb[0].mxu0
      %v2474 = vadd.f32 0.0, %v2473
      %v2475 = vpop.f32.mrb[0].mxu0
      %v2476 = vpop.f32.mrb[0].mxu0
      %v2477 = vadd.f32 0.0, %v2476
      %v2478 = vpop.f32.mrb[0].mxu0
      %2479 = vdwg.mxu0
      %v2484 = vunpack.c.l.b16 %v2227
      %v2485 = vunpack.c.l.b16 %v2228
      %v2486 = vunpack.c.l.b16 %v2229
      %v2487 = vunpack.c.l.b16 %v2230
      %v2488 = vpack.c.b16 %v2485, %v2484
      %v2489 = vpack.c.b16 %v2487, %v2486
      %v2493 = vsel %vm2248, %v1385, 0
      %v2496 = vsel %vm2248, %v1386, 0
      %v2499 = vsel %vm2248, %v1387, 0
      %v2502 = vsel %vm2248, %v1388, 0
      %v2505 = vsel %vm2248, %v1389, 0
      %v2508 = vsel %vm2248, %v1390, 0
      %v2511 = vsel %vm2248, %v1391, 0
      %v2514 = vsel %vm2248, %v1392, 0
      %v2517 = vsel %vm2248, %v1393, 0
      %v2520 = vsel %vm2248, %v1394, 0
      %v2523 = vsel %vm2248, %v1395, 0
      %v2526 = vsel %vm2248, %v1396, 0
      %v2529 = vsel %vm2248, %v1397, 0
      %v2532 = vsel %vm2248, %v1398, 0
      %v2535 = vsel %vm2248, %v1399, 0
      %v2538 = vsel %vm2248, %v1400, 0
      %v2541 = vsel %vm2248, %v1401, 0
      %v2544 = vsel %vm2248, %v1402, 0
      %2546 = vmatprep.subr.bf16.mxu0 0
      %2547 = vmatpush1.bf16.msra.mxu0 %v2488
      %2548 = vmatprep.subr.bf16.mxu0 0
      %2549 = vmatpush1.bf16.msra.mxu0 %v2489
      %2550 = vmatprep.subr.bf16.mxu0 0
      %2551 = vmatpush1.bf16.msra.mxu0 0
      %2552 = vmatprep.subr.bf16.mxu0 0
      %2553 = vmatpush1.bf16.msra.mxu0 0
      %2554 = vmatprep.subr.bf16.mxu0 0
      %2555 = vmatpush1.bf16.msra.mxu0 0
      %2556 = vmatprep.subr.bf16.mxu0 0
      %2557 = vmatpush1.bf16.msra.mxu0 0
      %2558 = vmatprep.subr.bf16.mxu0 0
      %2559 = vmatpush1.bf16.msra.mxu0 0
      %2560 = vmatprep.subr.bf16.mxu0 0
      %2561 = vmatpush1.bf16.msra.mxu0 0
      %2562 = vmatprep.subr.bf16.mxu0 0
      %2563 = vmatpush1.bf16.msra.mxu0 0
      %2564 = vmatprep.subr.bf16.mxu0 0
      %2565 = vmatpush1.bf16.msra.mxu0 0
      %2566 = vmatprep.subr.bf16.mxu0 0
      %2567 = vmatpush1.bf16.msra.mxu0 0
      %2568 = vmatprep.subr.bf16.mxu0 0
      %2569 = vmatpush1.bf16.msra.mxu0 0
      %2570 = vmatprep.subr.bf16.mxu0 0
      %2571 = vmatpush1.bf16.msra.mxu0 0
      %2572 = vmatprep.subr.bf16.mxu0 0
      %2573 = vmatpush1.bf16.msra.mxu0 0
      %2574 = vmatprep.subr.bf16.mxu0 0
      %2575 = vmatpush1.bf16.msra.mxu0 0
      %2576 = vmatprep.subr.bf16.mxu0 0
      %2577 = vmatpush1.bf16.msra.mxu0 0
      %2578 = vmatprep.mubr.bf16.mxu0 0
      %2579 = vmatmul.mubr.bf16.gmra.mrb[0].mxu0 %v2493
      %v2580 = vpop.f32.mrb[0].mxu0
      %v2581 = vadd.f32 %v2338, %v2580
      %v2582 = vpop.f32.mrb[0].mxu0
      %v2583 = vpop.f32.mrb[0].mxu0
      %v2584 = vadd.f32 %v2341, %v2583
      %v2585 = vpop.f32.mrb[0].mxu0
      %2586 = vmatprep.mubr.bf16.mxu0 0
      %2587 = vmatmul.mubr.bf16.gmra.mrb[0].mxu0 %v2496
      %v2588 = vpop.f32.mrb[0].mxu0
      %v2589 = vadd.f32 %v2346, %v2588
      %v2590 = vpop.f32.mrb[0].mxu0
      %v2591 = vpop.f32.mrb[0].mxu0
      %v2592 = vadd.f32 %v2349, %v2591
      %v2593 = vpop.f32.mrb[0].mxu0
      %2594 = vmatprep.mubr.bf16.mxu0 0
      %2595 = vmatmul.mubr.bf16.gmra.mrb[0].mxu0 %v2499
      %v2596 = vpop.f32.mrb[0].mxu0
      %v2597 = vadd.f32 %v2354, %v2596
      %v2598 = vpop.f32.mrb[0].mxu0
      %v2599 = vpop.f32.mrb[0].mxu0
      %v2600 = vadd.f32 %v2357, %v2599
      %v2601 = vpop.f32.mrb[0].mxu0
      %2602 = vmatprep.mubr.bf16.mxu0 0
      %2603 = vmatmul.mubr.bf16.gmra.mrb[0].mxu0 %v2502
      %v2604 = vpop.f32.mrb[0].mxu0
      %v2605 = vadd.f32 %v2362, %v2604
      %v2606 = vpop.f32.mrb[0].mxu0
      %v2607 = vpop.f32.mrb[0].mxu0
      %v2608 = vadd.f32 %v2365, %v2607
      %v2609 = vpop.f32.mrb[0].mxu0
      %2610 = vmatprep.mubr.bf16.mxu0 0
      %2611 = vmatmul.mubr.bf16.gmra.mrb[0].mxu0 %v2505
      %v2612 = vpop.f32.mrb[0].mxu0
      %v2613 = vadd.f32 %v2370, %v2612
      %v2614 = vpop.f32.mrb[0].mxu0
      %v2615 = vpop.f32.mrb[0].mxu0
      %v2616 = vadd.f32 %v2373, %v2615
      %v2617 = vpop.f32.mrb[0].mxu0
      %2618 = vmatprep.mubr.bf16.mxu0 0
      %2619 = vmatmul.mubr.bf16.gmra.mrb[0].mxu0 %v2508
      %v2620 = vpop.f32.mrb[0].mxu0
      %v2621 = vadd.f32 %v2378, %v2620
      %v2622 = vpop.f32.mrb[0].mxu0
      %v2623 = vpop.f32.mrb[0].mxu0
      %v2624 = vadd.f32 %v2381, %v2623
      %v2625 = vpop.f32.mrb[0].mxu0
      %2626 = vmatprep.mubr.bf16.mxu0 0
      %2627 = vmatmul.mubr.bf16.gmra.mrb[0].mxu0 %v2511
      %v2628 = vpop.f32.mrb[0].mxu0
      %v2629 = vadd.f32 %v2386, %v2628
      %v2630 = vpop.f32.mrb[0].mxu0
      %v2631 = vpop.f32.mrb[0].mxu0
      %v2632 = vadd.f32 %v2389, %v2631
      %v2633 = vpop.f32.mrb[0].mxu0
      %2634 = vmatprep.mubr.bf16.mxu0 0
      %2635 = vmatmul.mubr.bf16.gmra.mrb[0].mxu0 %v2514
      %v2636 = vpop.f32.mrb[0].mxu0
      %v2637 = vadd.f32 %v2394, %v2636
      %v2638 = vpop.f32.mrb[0].mxu0
      %v2639 = vpop.f32.mrb[0].mxu0
      %v2640 = vadd.f32 %v2397, %v2639
      %v2641 = vpop.f32.mrb[0].mxu0
      %2642 = vmatprep.mubr.bf16.mxu0 0
      %2643 = vmatmul.mubr.bf16.gmra.mrb[0].mxu0 %v2517
      %v2644 = vpop.f32.mrb[0].mxu0
      %v2645 = vadd.f32 %v2402, %v2644
      %v2646 = vpop.f32.mrb[0].mxu0
      %v2647 = vpop.f32.mrb[0].mxu0
      %v2648 = vadd.f32 %v2405, %v2647
      %v2649 = vpop.f32.mrb[0].mxu0
      %2650 = vmatprep.mubr.bf16.mxu0 0
      %2651 = vmatmul.mubr.bf16.gmra.mrb[0].mxu0 %v2520
      %v2652 = vpop.f32.mrb[0].mxu0
      %v2653 = vadd.f32 %v2410, %v2652
      %v2654 = vpop.f32.mrb[0].mxu0
      %v2655 = vpop.f32.mrb[0].mxu0
      %v2656 = vadd.f32 %v2413, %v2655
      %v2657 = vpop.f32.mrb[0].mxu0
      %2658 = vmatprep.mubr.bf16.mxu0 0
      %2659 = vmatmul.mubr.bf16.gmra.mrb[0].mxu0 %v2523
      %v2660 = vpop.f32.mrb[0].mxu0
      %v2661 = vadd.f32 %v2418, %v2660
      %v2662 = vpop.f32.mrb[0].mxu0
      %v2663 = vpop.f32.mrb[0].mxu0
      %v2664 = vadd.f32 %v2421, %v2663
      %v2665 = vpop.f32.mrb[0].mxu0
      %2666 = vmatprep.mubr.bf16.mxu0 0
      %2667 = vmatmul.mubr.bf16.gmra.mrb[0].mxu0 %v2526
      %v2668 = vpop.f32.mrb[0].mxu0
      %v2669 = vadd.f32 %v2426, %v2668
      %v2670 = vpop.f32.mrb[0].mxu0
      %v2671 = vpop.f32.mrb[0].mxu0
      %v2672 = vadd.f32 %v2429, %v2671
      %v2673 = vpop.f32.mrb[0].mxu0
      %2674 = vmatprep.mubr.bf16.mxu0 0
      %2675 = vmatmul.mubr.bf16.gmra.mrb[0].mxu0 %v2529
      %v2676 = vpop.f32.mrb[0].mxu0
      %v2677 = vadd.f32 %v2434, %v2676
      %v2678 = vpop.f32.mrb[0].mxu0
      %v2679 = vpop.f32.mrb[0].mxu0
      %v2680 = vadd.f32 %v2437, %v2679
      %v2681 = vpop.f32.mrb[0].mxu0
      %2682 = vmatprep.mubr.bf16.mxu0 0
      %2683 = vmatmul.mubr.bf16.gmra.mrb[0].mxu0 %v2532
      %v2684 = vpop.f32.mrb[0].mxu0
      %v2685 = vadd.f32 %v2442, %v2684
      %v2686 = vpop.f32.mrb[0].mxu0
      %v2687 = vpop.f32.mrb[0].mxu0
      %v2688 = vadd.f32 %v2445, %v2687
      %v2689 = vpop.f32.mrb[0].mxu0
      %2690 = vmatprep.mubr.bf16.mxu0 0
      %2691 = vmatmul.mubr.bf16.gmra.mrb[0].mxu0 %v2535
      %v2692 = vpop.f32.mrb[0].mxu0
      %v2693 = vadd.f32 %v2450, %v2692
      %v2694 = vpop.f32.mrb[0].mxu0
      %v2695 = vpop.f32.mrb[0].mxu0
      %v2696 = vadd.f32 %v2453, %v2695
      %v2697 = vpop.f32.mrb[0].mxu0
      %2698 = vmatprep.mubr.bf16.mxu0 0
      %2699 = vmatmul.mubr.bf16.gmra.mrb[0].mxu0 %v2538
      %v2700 = vpop.f32.mrb[0].mxu0
      %v2701 = vadd.f32 %v2458, %v2700
      %v2702 = vpop.f32.mrb[0].mxu0
      %v2703 = vpop.f32.mrb[0].mxu0
      %v2704 = vadd.f32 %v2461, %v2703
      %v2705 = vpop.f32.mrb[0].mxu0
      %2706 = vmatprep.mubr.bf16.mxu0 0
      %2707 = vmatmul.mubr.bf16.gmra.mrb[0].mxu0 %v2541
      %v2708 = vpop.f32.mrb[0].mxu0
      %v2709 = vadd.f32 %v2466, %v2708
      %v2710 = vpop.f32.mrb[0].mxu0
      %v2711 = vpop.f32.mrb[0].mxu0
      %v2712 = vadd.f32 %v2469, %v2711
      %v2713 = vpop.f32.mrb[0].mxu0
      %2714 = vmatprep.mubr.bf16.mxu0 0
      %2715 = vmatmul.mubr.bf16.gmra.mrb[0].mxu0 %v2544
      %v2716 = vpop.f32.mrb[0].mxu0
      %v2717 = vadd.f32 %v2474, %v2716
      %v2718 = vpop.f32.mrb[0].mxu0
      %v2719 = vpop.f32.mrb[0].mxu0
      %v2720 = vadd.f32 %v2477, %v2719
      %v2721 = vpop.f32.mrb[0].mxu0
      %2722 = vdwg.mxu0
      %s2723 = scalar_lea.vmem %s3, 32
      %v2724 = vld [vmem:[%s2723] sm:$0xf]
      %v2725 = vld [vmem:[%s2723 + $0x4] sm:$0xf]
      %v2726 = vld [vmem:[%s2723 + $0x8] sm:$0xf]
      %v2727 = vld [vmem:[%s2723 + $0xc] sm:$0xf]
      %v2732 = vunpack.c.l.b16 %v2724
      %v2733 = vunpack.c.l.b16 %v2725
      %v2734 = vunpack.c.l.b16 %v2726
      %v2735 = vunpack.c.l.b16 %v2727
      %v2736 = vpack.c.b16 %v2733, %v2732
      %v2737 = vpack.c.b16 %v2735, %v2734
      %v2741 = vsel %vm2248, %v1711, 0
      %v2744 = vsel %vm2248, %v1712, 0
      %v2747 = vsel %vm2248, %v1713, 0
      %v2750 = vsel %vm2248, %v1714, 0
      %v2753 = vsel %vm2248, %v1715, 0
      %v2756 = vsel %vm2248, %v1716, 0
      %v2759 = vsel %vm2248, %v1717, 0
      %v2762 = vsel %vm2248, %v1718, 0
      %v2765 = vsel %vm2248, %v1719, 0
      %v2768 = vsel %vm2248, %v1720, 0
      %v2771 = vsel %vm2248, %v1721, 0
      %v2774 = vsel %vm2248, %v1722, 0
      %v2777 = vsel %vm2248, %v1723, 0
      %v2780 = vsel %vm2248, %v1724, 0
      %v2783 = vsel %vm2248, %v1725, 0
      %v2786 = vsel %vm2248, %v1726, 0
      %v2789 = vsel %vm2248, %v1727, 0
      %v2792 = vsel %vm2248, %v1728, 0
      %2794 = vmatprep.subr.bf16.mxu0 0
      %2795 = vmatpush1.bf16.msra.mxu0 %v2736
      %2796 = vmatprep.subr.bf16.mxu0 0
      %2797 = vmatpush1.bf16.msra.mxu0 %v2737
      %2798 = vmatprep.subr.bf16.mxu0 0
      %2799 = vmatpush1.bf16.msra.mxu0 0
      %2800 = vmatprep.subr.bf16.mxu0 0
      %2801 = vmatpush1.bf16.msra.mxu0 0
      %2802 = vmatprep.subr.bf16.mxu0 0
      %2803 = vmatpush1.bf16.msra.mxu0 0
      %2804 = vmatprep.subr.bf16.mxu0 0
      %2805 = vmatpush1.bf16.msra.mxu0 0
      %2806 = vmatprep.subr.bf16.mxu0 0
      %2807 = vmatpush1.bf16.msra.mxu0 0
      %2808 = vmatprep.subr.bf16.mxu0 0
      %2809 = vmatpush1.bf16.msra.mxu0 0
      %2810 = vmatprep.subr.bf16.mxu0 0
      %2811 = vmatpush1.bf16.msra.mxu0 0
      %2812 = vmatprep.subr.bf16.mxu0 0
      %2813 = vmatpush1.bf16.msra.mxu0 0
      %2814 = vmatprep.subr.bf16.mxu0 0
      %2815 = vmatpush1.bf16.msra.mxu0 0
      %2816 = vmatprep.subr.bf16.mxu0 0
      %2817 = vmatpush1.bf16.msra.mxu0 0
      %2818 = vmatprep.subr.bf16.mxu0 0
      %2819 = vmatpush1.bf16.msra.mxu0 0
      %2820 = vmatprep.subr.bf16.mxu0 0
      %2821 = vmatpush1.bf16.msra.mxu0 0
      %2822 = vmatprep.subr.bf16.mxu0 0
      %2823 = vmatpush1.bf16.msra.mxu0 0
      %2824 = vmatprep.subr.bf16.mxu0 0
      %2825 = vmatpush1.bf16.msra.mxu0 0
      %2826 = vmatprep.mubr.bf16.mxu0 0
      %2827 = vmatmul.mubr.bf16.gmra.mrb[0].mxu0 %v2741
      %v2828 = vpop.f32.mrb[0].mxu0
      %v2829 = vadd.f32 0.0, %v2828
      %v2830 = vpop.f32.mrb[0].mxu0
      %v2831 = vpop.f32.mrb[0].mxu0
      %v2832 = vadd.f32 0.0, %v2831
      %v2833 = vpop.f32.mrb[0].mxu0
      %2834 = vmatprep.mubr.bf16.mxu0 0
      %2835 = vmatmul.mubr.bf16.gmra.mrb[0].mxu0 %v2744
      %v2836 = vpop.f32.mrb[0].mxu0
      %v2837 = vadd.f32 0.0, %v2836
      %v2838 = vpop.f32.mrb[0].mxu0
      %v2839 = vpop.f32.mrb[0].mxu0
      %v2840 = vadd.f32 0.0, %v2839
      %v2841 = vpop.f32.mrb[0].mxu0
      %2842 = vmatprep.mubr.bf16.mxu0 0
      %2843 = vmatmul.mubr.bf16.gmra.mrb[0].mxu0 %v2747
      %v2844 = vpop.f32.mrb[0].mxu0
      %v2845 = vadd.f32 0.0, %v2844
      %v2846 = vpop.f32.mrb[0].mxu0
      %v2847 = vpop.f32.mrb[0].mxu0
      %v2848 = vadd.f32 0.0, %v2847
      %v2849 = vpop.f32.mrb[0].mxu0
      %2850 = vmatprep.mubr.bf16.mxu0 0
      %2851 = vmatmul.mubr.bf16.gmra.mrb[0].mxu0 %v2750
      %v2852 = vpop.f32.mrb[0].mxu0
      %v2853 = vadd.f32 0.0, %v2852
      %v2854 = vpop.f32.mrb[0].mxu0
      %v2855 = vpop.f32.mrb[0].mxu0
      %v2856 = vadd.f32 0.0, %v2855
      %v2857 = vpop.f32.mrb[0].mxu0
      %2858 = vmatprep.mubr.bf16.mxu0 0
      %2859 = vmatmul.mubr.bf16.gmra.mrb[0].mxu0 %v2753
      %v2860 = vpop.f32.mrb[0].mxu0
      %v2861 = vadd.f32 0.0, %v2860
      %v2862 = vpop.f32.mrb[0].mxu0
      %v2863 = vpop.f32.mrb[0].mxu0
      %v2864 = vadd.f32 0.0, %v2863
      %v2865 = vpop.f32.mrb[0].mxu0
      %2866 = vmatprep.mubr.bf16.mxu0 0
      %2867 = vmatmul.mubr.bf16.gmra.mrb[0].mxu0 %v2756
      %v2868 = vpop.f32.mrb[0].mxu0
      %v2869 = vadd.f32 0.0, %v2868
      %v2870 = vpop.f32.mrb[0].mxu0
      %v2871 = vpop.f32.mrb[0].mxu0
      %v2872 = vadd.f32 0.0, %v2871
      %v2873 = vpop.f32.mrb[0].mxu0
      %2874 = vmatprep.mubr.bf16.mxu0 0
      %2875 = vmatmul.mubr.bf16.gmra.mrb[0].mxu0 %v2759
      %v2876 = vpop.f32.mrb[0].mxu0
      %v2877 = vadd.f32 0.0, %v2876
      %v2878 = vpop.f32.mrb[0].mxu0
      %v2879 = vpop.f32.mrb[0].mxu0
      %v2880 = vadd.f32 0.0, %v2879
      %v2881 = vpop.f32.mrb[0].mxu0
      %2882 = vmatprep.mubr.bf16.mxu0 0
      %2883 = vmatmul.mubr.bf16.gmra.mrb[0].mxu0 %v2762
      %v2884 = vpop.f32.mrb[0].mxu0
      %v2885 = vadd.f32 0.0, %v2884
      %v2886 = vpop.f32.mrb[0].mxu0
      %v2887 = vpop.f32.mrb[0].mxu0
      %v2888 = vadd.f32 0.0, %v2887
      %v2889 = vpop.f32.mrb[0].mxu0
      %2890 = vmatprep.mubr.bf16.mxu0 0
      %2891 = vmatmul.mubr.bf16.gmra.mrb[0].mxu0 %v2765
      %v2892 = vpop.f32.mrb[0].mxu0
      %v2893 = vadd.f32 0.0, %v2892
      %v2894 = vpop.f32.mrb[0].mxu0
      %v2895 = vpop.f32.mrb[0].mxu0
      %v2896 = vadd.f32 0.0, %v2895
      %v2897 = vpop.f32.mrb[0].mxu0
      %2898 = vmatprep.mubr.bf16.mxu0 0
      %2899 = vmatmul.mubr.bf16.gmra.mrb[0].mxu0 %v2768
      %v2900 = vpop.f32.mrb[0].mxu0
      %v2901 = vadd.f32 0.0, %v2900
      %v2902 = vpop.f32.mrb[0].mxu0
      %v2903 = vpop.f32.mrb[0].mxu0
      %v2904 = vadd.f32 0.0, %v2903
      %v2905 = vpop.f32.mrb[0].mxu0
      %2906 = vmatprep.mubr.bf16.mxu0 0
      %2907 = vmatmul.mubr.bf16.gmra.mrb[0].mxu0 %v2771
      %v2908 = vpop.f32.mrb[0].mxu0
      %v2909 = vadd.f32 0.0, %v2908
      %v2910 = vpop.f32.mrb[0].mxu0
      %v2911 = vpop.f32.mrb[0].mxu0
      %v2912 = vadd.f32 0.0, %v2911
      %v2913 = vpop.f32.mrb[0].mxu0
      %2914 = vmatprep.mubr.bf16.mxu0 0
      %2915 = vmatmul.mubr.bf16.gmra.mrb[0].mxu0 %v2774
      %v2916 = vpop.f32.mrb[0].mxu0
      %v2917 = vadd.f32 0.0, %v2916
      %v2918 = vpop.f32.mrb[0].mxu0
      %v2919 = vpop.f32.mrb[0].mxu0
      %v2920 = vadd.f32 0.0, %v2919
      %v2921 = vpop.f32.mrb[0].mxu0
      %2922 = vmatprep.mubr.bf16.mxu0 0
      %2923 = vmatmul.mubr.bf16.gmra.mrb[0].mxu0 %v2777
      %v2924 = vpop.f32.mrb[0].mxu0
      %v2925 = vadd.f32 0.0, %v2924
      %v2926 = vpop.f32.mrb[0].mxu0
      %v2927 = vpop.f32.mrb[0].mxu0
      %v2928 = vadd.f32 0.0, %v2927
      %v2929 = vpop.f32.mrb[0].mxu0
      %2930 = vmatprep.mubr.bf16.mxu0 0
      %2931 = vmatmul.mubr.bf16.gmra.mrb[0].mxu0 %v2780
      %v2932 = vpop.f32.mrb[0].mxu0
      %v2933 = vadd.f32 0.0, %v2932
      %v2934 = vpop.f32.mrb[0].mxu0
      %v2935 = vpop.f32.mrb[0].mxu0
      %v2936 = vadd.f32 0.0, %v2935
      %v2937 = vpop.f32.mrb[0].mxu0
      %2938 = vmatprep.mubr.bf16.mxu0 0
      %2939 = vmatmul.mubr.bf16.gmra.mrb[0].mxu0 %v2783
      %v2940 = vpop.f32.mrb[0].mxu0
      %v2941 = vadd.f32 0.0, %v2940
      %v2942 = vpop.f32.mrb[0].mxu0
      %v2943 = vpop.f32.mrb[0].mxu0
      %v2944 = vadd.f32 0.0, %v2943
      %v2945 = vpop.f32.mrb[0].mxu0
      %2946 = vmatprep.mubr.bf16.mxu0 0
      %2947 = vmatmul.mubr.bf16.gmra.mrb[0].mxu0 %v2786
      %v2948 = vpop.f32.mrb[0].mxu0
      %v2949 = vadd.f32 0.0, %v2948
      %v2950 = vpop.f32.mrb[0].mxu0
      %v2951 = vpop.f32.mrb[0].mxu0
      %v2952 = vadd.f32 0.0, %v2951
      %v2953 = vpop.f32.mrb[0].mxu0
      %2954 = vmatprep.mubr.bf16.mxu0 0
      %2955 = vmatmul.mubr.bf16.gmra.mrb[0].mxu0 %v2789
      %v2956 = vpop.f32.mrb[0].mxu0
      %v2957 = vadd.f32 0.0, %v2956
      %v2958 = vpop.f32.mrb[0].mxu0
      %v2959 = vpop.f32.mrb[0].mxu0
      %v2960 = vadd.f32 0.0, %v2959
      %v2961 = vpop.f32.mrb[0].mxu0
      %2962 = vmatprep.mubr.bf16.mxu0 0
      %2963 = vmatmul.mubr.bf16.gmra.mrb[0].mxu0 %v2792
      %v2964 = vpop.f32.mrb[0].mxu0
      %v2965 = vadd.f32 0.0, %v2964
      %v2966 = vpop.f32.mrb[0].mxu0
      %v2967 = vpop.f32.mrb[0].mxu0
      %v2968 = vadd.f32 0.0, %v2967
      %v2969 = vpop.f32.mrb[0].mxu0
      %2970 = vdwg.mxu0
      %v2971 = vadd.f32 %v2581, %v2829
      %v2972 = vadd.f32 %v2584, %v2832
      %v2973 = vadd.f32 %v2589, %v2837
      %v2974 = vadd.f32 %v2592, %v2840
      %v2975 = vadd.f32 %v2597, %v2845
      %v2976 = vadd.f32 %v2600, %v2848
      %v2977 = vadd.f32 %v2605, %v2853
      %v2978 = vadd.f32 %v2608, %v2856
      %v2979 = vadd.f32 %v2613, %v2861
      %v2980 = vadd.f32 %v2616, %v2864
      %v2981 = vadd.f32 %v2621, %v2869
      %v2982 = vadd.f32 %v2624, %v2872
      %v2983 = vadd.f32 %v2629, %v2877
      %v2984 = vadd.f32 %v2632, %v2880
      %v2985 = vadd.f32 %v2637, %v2885
      %v2986 = vadd.f32 %v2640, %v2888
      %v2987 = vadd.f32 %v2645, %v2893
      %v2988 = vadd.f32 %v2648, %v2896
      %v2989 = vadd.f32 %v2653, %v2901
      %v2990 = vadd.f32 %v2656, %v2904
      %v2991 = vadd.f32 %v2661, %v2909
      %v2992 = vadd.f32 %v2664, %v2912
      %v2993 = vadd.f32 %v2669, %v2917
      %v2994 = vadd.f32 %v2672, %v2920
      %v2995 = vadd.f32 %v2677, %v2925
      %v2996 = vadd.f32 %v2680, %v2928
      %v2997 = vadd.f32 %v2685, %v2933
      %v2998 = vadd.f32 %v2688, %v2936
      %v2999 = vadd.f32 %v2693, %v2941
      %v3000 = vadd.f32 %v2696, %v2944
      %v3001 = vadd.f32 %v2701, %v2949
      %v3002 = vadd.f32 %v2704, %v2952
      %v3003 = vadd.f32 %v2709, %v2957
      %v3004 = vadd.f32 %v2712, %v2960
      %v3005 = vadd.f32 %v2717, %v2965
      %v3006 = vadd.f32 %v2720, %v2968
      %s3007 = scalar_lea.vmem %s3, 48
      %v3008 = vld [vmem:[%s3007] sm:$0xf]
      %v3009 = vld [vmem:[%s3007 + $0x4] sm:$0xf]
      %v3010 = vld [vmem:[%s3007 + $0x8] sm:$0xf]
      %v3011 = vld [vmem:[%s3007 + $0xc] sm:$0xf]
      %v3016 = vunpack.c.l.b16 %v3008
      %v3017 = vunpack.c.l.b16 %v3009
      %v3018 = vunpack.c.l.b16 %v3010
      %v3019 = vunpack.c.l.b16 %v3011
      %v3020 = vpack.c.b16 %v3017, %v3016
      %v3021 = vpack.c.b16 %v3019, %v3018
      %v3025 = vsel %vm2248, %v1729, 0
      %v3028 = vsel %vm2248, %v1730, 0
      %v3031 = vsel %vm2248, %v1731, 0
      %v3034 = vsel %vm2248, %v1732, 0
      %v3037 = vsel %vm2248, %v1733, 0
      %v3040 = vsel %vm2248, %v1734, 0
      %v3043 = vsel %vm2248, %v1735, 0
      %v3046 = vsel %vm2248, %v1736, 0
      %v3049 = vsel %vm2248, %v1737, 0
      %v3052 = vsel %vm2248, %v1738, 0
      %v3055 = vsel %vm2248, %v1739, 0
      %v3058 = vsel %vm2248, %v1740, 0
      %v3061 = vsel %vm2248, %v1741, 0
      %v3064 = vsel %vm2248, %v1742, 0
      %v3067 = vsel %vm2248, %v1743, 0
      %v3070 = vsel %vm2248, %v1744, 0
      %v3073 = vsel %vm2248, %v1745, 0
      %v3076 = vsel %vm2248, %v1746, 0
      %3078 = vmatprep.subr.bf16.mxu0 0
      %3079 = vmatpush1.bf16.msra.mxu0 %v3020
      %3080 = vmatprep.subr.bf16.mxu0 0
      %3081 = vmatpush1.bf16.msra.mxu0 %v3021
      %3082 = vmatprep.subr.bf16.mxu0 0
      %3083 = vmatpush1.bf16.msra.mxu0 0
      %3084 = vmatprep.subr.bf16.mxu0 0
      %3085 = vmatpush1.bf16.msra.mxu0 0
      %3086 = vmatprep.subr.bf16.mxu0 0
      %3087 = vmatpush1.bf16.msra.mxu0 0
      %3088 = vmatprep.subr.bf16.mxu0 0
      %3089 = vmatpush1.bf16.msra.mxu0 0
      %3090 = vmatprep.subr.bf16.mxu0 0
      %3091 = vmatpush1.bf16.msra.mxu0 0
      %3092 = vmatprep.subr.bf16.mxu0 0
      %3093 = vmatpush1.bf16.msra.mxu0 0
      %3094 = vmatprep.subr.bf16.mxu0 0
      %3095 = vmatpush1.bf16.msra.mxu0 0
      %3096 = vmatprep.subr.bf16.mxu0 0
      %3097 = vmatpush1.bf16.msra.mxu0 0
      %3098 = vmatprep.subr.bf16.mxu0 0
      %3099 = vmatpush1.bf16.msra.mxu0 0
      %3100 = vmatprep.subr.bf16.mxu0 0
      %3101 = vmatpush1.bf16.msra.mxu0 0
      %3102 = vmatprep.subr.bf16.mxu0 0
      %3103 = vmatpush1.bf16.msra.mxu0 0
      %3104 = vmatprep.subr.bf16.mxu0 0
      %3105 = vmatpush1.bf16.msra.mxu0 0
      %3106 = vmatprep.subr.bf16.mxu0 0
      %3107 = vmatpush1.bf16.msra.mxu0 0
      %3108 = vmatprep.subr.bf16.mxu0 0
      %3109 = vmatpush1.bf16.msra.mxu0 0
      %3110 = vmatprep.mubr.bf16.mxu0 0
      %3111 = vmatmul.mubr.bf16.gmra.mrb[0].mxu0 %v3025
      %v3112 = vpop.f32.mrb[0].mxu0
      %v3113 = vadd.f32 0.0, %v3112
      %v3114 = vpop.f32.mrb[0].mxu0
      %v3115 = vpop.f32.mrb[0].mxu0
      %v3116 = vadd.f32 0.0, %v3115
      %v3117 = vpop.f32.mrb[0].mxu0
      %3118 = vmatprep.mubr.bf16.mxu0 0
      %3119 = vmatmul.mubr.bf16.gmra.mrb[0].mxu0 %v3028
      %v3120 = vpop.f32.mrb[0].mxu0
      %v3121 = vadd.f32 0.0, %v3120
      %v3122 = vpop.f32.mrb[0].mxu0
      %v3123 = vpop.f32.mrb[0].mxu0
      %v3124 = vadd.f32 0.0, %v3123
      %v3125 = vpop.f32.mrb[0].mxu0
      %3126 = vmatprep.mubr.bf16.mxu0 0
      %3127 = vmatmul.mubr.bf16.gmra.mrb[0].mxu0 %v3031
      %v3128 = vpop.f32.mrb[0].mxu0
      %v3129 = vadd.f32 0.0, %v3128
      %v3130 = vpop.f32.mrb[0].mxu0
      %v3131 = vpop.f32.mrb[0].mxu0
      %v3132 = vadd.f32 0.0, %v3131
      %v3133 = vpop.f32.mrb[0].mxu0
      %3134 = vmatprep.mubr.bf16.mxu0 0
      %3135 = vmatmul.mubr.bf16.gmra.mrb[0].mxu0 %v3034
      %v3136 = vpop.f32.mrb[0].mxu0
      %v3137 = vadd.f32 0.0, %v3136
      %v3138 = vpop.f32.mrb[0].mxu0
      %v3139 = vpop.f32.mrb[0].mxu0
      %v3140 = vadd.f32 0.0, %v3139
      %v3141 = vpop.f32.mrb[0].mxu0
      %3142 = vmatprep.mubr.bf16.mxu0 0
      %3143 = vmatmul.mubr.bf16.gmra.mrb[0].mxu0 %v3037
      %v3144 = vpop.f32.mrb[0].mxu0
      %v3145 = vadd.f32 0.0, %v3144
      %v3146 = vpop.f32.mrb[0].mxu0
      %v3147 = vpop.f32.mrb[0].mxu0
      %v3148 = vadd.f32 0.0, %v3147
      %v3149 = vpop.f32.mrb[0].mxu0
      %3150 = vmatprep.mubr.bf16.mxu0 0
      %3151 = vmatmul.mubr.bf16.gmra.mrb[0].mxu0 %v3040
      %v3152 = vpop.f32.mrb[0].mxu0
      %v3153 = vadd.f32 0.0, %v3152
      %v3154 = vpop.f32.mrb[0].mxu0
      %v3155 = vpop.f32.mrb[0].mxu0
      %v3156 = vadd.f32 0.0, %v3155
      %v3157 = vpop.f32.mrb[0].mxu0
      %3158 = vmatprep.mubr.bf16.mxu0 0
      %3159 = vmatmul.mubr.bf16.gmra.mrb[0].mxu0 %v3043
      %v3160 = vpop.f32.mrb[0].mxu0
      %v3161 = vadd.f32 0.0, %v3160
      %v3162 = vpop.f32.mrb[0].mxu0
      %v3163 = vpop.f32.mrb[0].mxu0
      %v3164 = vadd.f32 0.0, %v3163
      %v3165 = vpop.f32.mrb[0].mxu0
      %3166 = vmatprep.mubr.bf16.mxu0 0
      %3167 = vmatmul.mubr.bf16.gmra.mrb[0].mxu0 %v3046
      %v3168 = vpop.f32.mrb[0].mxu0
      %v3169 = vadd.f32 0.0, %v3168
      %v3170 = vpop.f32.mrb[0].mxu0
      %v3171 = vpop.f32.mrb[0].mxu0
      %v3172 = vadd.f32 0.0, %v3171
      %v3173 = vpop.f32.mrb[0].mxu0
      %3174 = vmatprep.mubr.bf16.mxu0 0
      %3175 = vmatmul.mubr.bf16.gmra.mrb[0].mxu0 %v3049
      %v3176 = vpop.f32.mrb[0].mxu0
      %v3177 = vadd.f32 0.0, %v3176
      %v3178 = vpop.f32.mrb[0].mxu0
      %v3179 = vpop.f32.mrb[0].mxu0
      %v3180 = vadd.f32 0.0, %v3179
      %v3181 = vpop.f32.mrb[0].mxu0
      %3182 = vmatprep.mubr.bf16.mxu0 0
      %3183 = vmatmul.mubr.bf16.gmra.mrb[0].mxu0 %v3052
      %v3184 = vpop.f32.mrb[0].mxu0
      %v3185 = vadd.f32 0.0, %v3184
      %v3186 = vpop.f32.mrb[0].mxu0
      %v3187 = vpop.f32.mrb[0].mxu0
      %v3188 = vadd.f32 0.0, %v3187
      %v3189 = vpop.f32.mrb[0].mxu0
      %3190 = vmatprep.mubr.bf16.mxu0 0
      %3191 = vmatmul.mubr.bf16.gmra.mrb[0].mxu0 %v3055
      %v3192 = vpop.f32.mrb[0].mxu0
      %v3193 = vadd.f32 0.0, %v3192
      %v3194 = vpop.f32.mrb[0].mxu0
      %v3195 = vpop.f32.mrb[0].mxu0
      %v3196 = vadd.f32 0.0, %v3195
      %v3197 = vpop.f32.mrb[0].mxu0
      %3198 = vmatprep.mubr.bf16.mxu0 0
      %3199 = vmatmul.mubr.bf16.gmra.mrb[0].mxu0 %v3058
      %v3200 = vpop.f32.mrb[0].mxu0
      %v3201 = vadd.f32 0.0, %v3200
      %v3202 = vpop.f32.mrb[0].mxu0
      %v3203 = vpop.f32.mrb[0].mxu0
      %v3204 = vadd.f32 0.0, %v3203
      %v3205 = vpop.f32.mrb[0].mxu0
      %3206 = vmatprep.mubr.bf16.mxu0 0
      %3207 = vmatmul.mubr.bf16.gmra.mrb[0].mxu0 %v3061
      %v3208 = vpop.f32.mrb[0].mxu0
      %v3209 = vadd.f32 0.0, %v3208
      %v3210 = vpop.f32.mrb[0].mxu0
      %v3211 = vpop.f32.mrb[0].mxu0
      %v3212 = vadd.f32 0.0, %v3211
      %v3213 = vpop.f32.mrb[0].mxu0
      %3214 = vmatprep.mubr.bf16.mxu0 0
      %3215 = vmatmul.mubr.bf16.gmra.mrb[0].mxu0 %v3064
      %v3216 = vpop.f32.mrb[0].mxu0
      %v3217 = vadd.f32 0.0, %v3216
      %v3218 = vpop.f32.mrb[0].mxu0
      %v3219 = vpop.f32.mrb[0].mxu0
      %v3220 = vadd.f32 0.0, %v3219
      %v3221 = vpop.f32.mrb[0].mxu0
      %3222 = vmatprep.mubr.bf16.mxu0 0
      %3223 = vmatmul.mubr.bf16.gmra.mrb[0].mxu0 %v3067
      %v3224 = vpop.f32.mrb[0].mxu0
      %v3225 = vadd.f32 0.0, %v3224
      %v3226 = vpop.f32.mrb[0].mxu0
      %v3227 = vpop.f32.mrb[0].mxu0
      %v3228 = vadd.f32 0.0, %v3227
      %v3229 = vpop.f32.mrb[0].mxu0
      %3230 = vmatprep.mubr.bf16.mxu0 0
      %3231 = vmatmul.mubr.bf16.gmra.mrb[0].mxu0 %v3070
      %v3232 = vpop.f32.mrb[0].mxu0
      %v3233 = vadd.f32 0.0, %v3232
      %v3234 = vpop.f32.mrb[0].mxu0
      %v3235 = vpop.f32.mrb[0].mxu0
      %v3236 = vadd.f32 0.0, %v3235
      %v3237 = vpop.f32.mrb[0].mxu0
      %3238 = vmatprep.mubr.bf16.mxu0 0
      %3239 = vmatmul.mubr.bf16.gmra.mrb[0].mxu0 %v3073
      %v3240 = vpop.f32.mrb[0].mxu0
      %v3241 = vadd.f32 0.0, %v3240
      %v3242 = vpop.f32.mrb[0].mxu0
      %v3243 = vpop.f32.mrb[0].mxu0
      %v3244 = vadd.f32 0.0, %v3243
      %v3245 = vpop.f32.mrb[0].mxu0
      %3246 = vmatprep.mubr.bf16.mxu0 0
      %3247 = vmatmul.mubr.bf16.gmra.mrb[0].mxu0 %v3076
      %v3248 = vpop.f32.mrb[0].mxu0
      %v3249 = vadd.f32 0.0, %v3248
      %v3250 = vpop.f32.mrb[0].mxu0
      %v3251 = vpop.f32.mrb[0].mxu0
      %v3252 = vadd.f32 0.0, %v3251
      %v3253 = vpop.f32.mrb[0].mxu0
      %3254 = vdwg.mxu0
      %v3255 = vadd.f32 %v2971, %v3113
      %v3256 = vadd.f32 %v2972, %v3116
      %v3257 = vadd.f32 %v2973, %v3121
      %v3258 = vadd.f32 %v2974, %v3124
      %v3259 = vadd.f32 %v2975, %v3129
      %v3260 = vadd.f32 %v2976, %v3132
      %v3261 = vadd.f32 %v2977, %v3137
      %v3262 = vadd.f32 %v2978, %v3140
      %v3263 = vadd.f32 %v2979, %v3145
      %v3264 = vadd.f32 %v2980, %v3148
      %v3265 = vadd.f32 %v2981, %v3153
      %v3266 = vadd.f32 %v2982, %v3156
      %v3267 = vadd.f32 %v2983, %v3161
      %v3268 = vadd.f32 %v2984, %v3164
      %v3269 = vadd.f32 %v2985, %v3169
      %v3270 = vadd.f32 %v2986, %v3172
      %v3271 = vadd.f32 %v2987, %v3177
      %v3272 = vadd.f32 %v2988, %v3180
      %v3273 = vadd.f32 %v2989, %v3185
      %v3274 = vadd.f32 %v2990, %v3188
      %v3275 = vadd.f32 %v2991, %v3193
      %v3276 = vadd.f32 %v2992, %v3196
      %v3277 = vadd.f32 %v2993, %v3201
      %v3278 = vadd.f32 %v2994, %v3204
      %v3279 = vadd.f32 %v2995, %v3209
      %v3280 = vadd.f32 %v2996, %v3212
      %v3281 = vadd.f32 %v2997, %v3217
      %v3282 = vadd.f32 %v2998, %v3220
      %v3283 = vadd.f32 %v2999, %v3225
      %v3284 = vadd.f32 %v3000, %v3228
      %v3285 = vadd.f32 %v3001, %v3233
      %v3286 = vadd.f32 %v3002, %v3236
      %v3287 = vadd.f32 %v3003, %v3241
      %v3288 = vadd.f32 %v3004, %v3244
      %v3289 = vadd.f32 %v3005, %v3249
      %v3290 = vadd.f32 %v3006, %v3252
      %s3291 = scalar_lea.vmem %s3, 64
      %v3292 = vld [vmem:[%s3291] sm:$0xf]
      %v3293 = vld [vmem:[%s3291 + $0x4] sm:$0xf]
      %v3294 = vld [vmem:[%s3291 + $0x8] sm:$0xf]
      %v3295 = vld [vmem:[%s3291 + $0xc] sm:$0xf]
      %v3300 = vunpack.c.l.b16 %v3292
      %v3301 = vunpack.c.l.b16 %v3293
      %v3302 = vunpack.c.l.b16 %v3294
      %v3303 = vunpack.c.l.b16 %v3295
      %v3304 = vpack.c.b16 %v3301, %v3300
      %v3305 = vpack.c.b16 %v3303, %v3302
      %v3309 = vsel %vm2248, %v1915, 0
      %v3312 = vsel %vm2248, %v1916, 0
      %v3315 = vsel %vm2248, %v1917, 0
      %v3318 = vsel %vm2248, %v1918, 0
      %v3321 = vsel %vm2248, %v1919, 0
      %v3324 = vsel %vm2248, %v1920, 0
      %v3327 = vsel %vm2248, %v1921, 0
      %v3330 = vsel %vm2248, %v1922, 0
      %v3333 = vsel %vm2248, %v1923, 0
      %v3336 = vsel %vm2248, %v1924, 0
      %v3339 = vsel %vm2248, %v1925, 0
      %v3342 = vsel %vm2248, %v1926, 0
      %v3345 = vsel %vm2248, %v1927, 0
      %v3348 = vsel %vm2248, %v1928, 0
      %v3351 = vsel %vm2248, %v1929, 0
      %v3354 = vsel %vm2248, %v1930, 0
      %v3357 = vsel %vm2248, %v1931, 0
      %v3360 = vsel %vm2248, %v1932, 0
      %3362 = vmatprep.subr.bf16.mxu0 0
      %3363 = vmatpush1.bf16.msra.mxu0 %v3304
      %3364 = vmatprep.subr.bf16.mxu0 0
      %3365 = vmatpush1.bf16.msra.mxu0 %v3305
      %3366 = vmatprep.subr.bf16.mxu0 0
      %3367 = vmatpush1.bf16.msra.mxu0 0
      %3368 = vmatprep.subr.bf16.mxu0 0
      %3369 = vmatpush1.bf16.msra.mxu0 0
      %3370 = vmatprep.subr.bf16.mxu0 0
      %3371 = vmatpush1.bf16.msra.mxu0 0
      %3372 = vmatprep.subr.bf16.mxu0 0
      %3373 = vmatpush1.bf16.msra.mxu0 0
      %3374 = vmatprep.subr.bf16.mxu0 0
      %3375 = vmatpush1.bf16.msra.mxu0 0
      %3376 = vmatprep.subr.bf16.mxu0 0
      %3377 = vmatpush1.bf16.msra.mxu0 0
      %3378 = vmatprep.subr.bf16.mxu0 0
      %3379 = vmatpush1.bf16.msra.mxu0 0
      %3380 = vmatprep.subr.bf16.mxu0 0
      %3381 = vmatpush1.bf16.msra.mxu0 0
      %3382 = vmatprep.subr.bf16.mxu0 0
      %3383 = vmatpush1.bf16.msra.mxu0 0
      %3384 = vmatprep.subr.bf16.mxu0 0
      %3385 = vmatpush1.bf16.msra.mxu0 0
      %3386 = vmatprep.subr.bf16.mxu0 0
      %3387 = vmatpush1.bf16.msra.mxu0 0
      %3388 = vmatprep.subr.bf16.mxu0 0
      %3389 = vmatpush1.bf16.msra.mxu0 0
      %3390 = vmatprep.subr.bf16.mxu0 0
      %3391 = vmatpush1.bf16.msra.mxu0 0
      %3392 = vmatprep.subr.bf16.mxu0 0
      %3393 = vmatpush1.bf16.msra.mxu0 0
      %3394 = vmatprep.mubr.bf16.mxu0 0
      %3395 = vmatmul.mubr.bf16.gmra.mrb[0].mxu0 %v3309
      %v3396 = vpop.f32.mrb[0].mxu0
      %v3397 = vadd.f32 0.0, %v3396
      %v3398 = vpop.f32.mrb[0].mxu0
      %v3399 = vpop.f32.mrb[0].mxu0
      %v3400 = vadd.f32 0.0, %v3399
      %v3401 = vpop.f32.mrb[0].mxu0
      %3402 = vmatprep.mubr.bf16.mxu0 0
      %3403 = vmatmul.mubr.bf16.gmra.mrb[0].mxu0 %v3312
      %v3404 = vpop.f32.mrb[0].mxu0
      %v3405 = vadd.f32 0.0, %v3404
      %v3406 = vpop.f32.mrb[0].mxu0
      %v3407 = vpop.f32.mrb[0].mxu0
      %v3408 = vadd.f32 0.0, %v3407
      %v3409 = vpop.f32.mrb[0].mxu0
      %3410 = vmatprep.mubr.bf16.mxu0 0
      %3411 = vmatmul.mubr.bf16.gmra.mrb[0].mxu0 %v3315
      %v3412 = vpop.f32.mrb[0].mxu0
      %v3413 = vadd.f32 0.0, %v3412
      %v3414 = vpop.f32.mrb[0].mxu0
      %v3415 = vpop.f32.mrb[0].mxu0
      %v3416 = vadd.f32 0.0, %v3415
      %v3417 = vpop.f32.mrb[0].mxu0
      %3418 = vmatprep.mubr.bf16.mxu0 0
      %3419 = vmatmul.mubr.bf16.gmra.mrb[0].mxu0 %v3318
      %v3420 = vpop.f32.mrb[0].mxu0
      %v3421 = vadd.f32 0.0, %v3420
      %v3422 = vpop.f32.mrb[0].mxu0
      %v3423 = vpop.f32.mrb[0].mxu0
      %v3424 = vadd.f32 0.0, %v3423
      %v3425 = vpop.f32.mrb[0].mxu0
      %3426 = vmatprep.mubr.bf16.mxu0 0
      %3427 = vmatmul.mubr.bf16.gmra.mrb[0].mxu0 %v3321
      %v3428 = vpop.f32.mrb[0].mxu0
      %v3429 = vadd.f32 0.0, %v3428
      %v3430 = vpop.f32.mrb[0].mxu0
      %v3431 = vpop.f32.mrb[0].mxu0
      %v3432 = vadd.f32 0.0, %v3431
      %v3433 = vpop.f32.mrb[0].mxu0
      %3434 = vmatprep.mubr.bf16.mxu0 0
      %3435 = vmatmul.mubr.bf16.gmra.mrb[0].mxu0 %v3324
      %v3436 = vpop.f32.mrb[0].mxu0
      %v3437 = vadd.f32 0.0, %v3436
      %v3438 = vpop.f32.mrb[0].mxu0
      %v3439 = vpop.f32.mrb[0].mxu0
      %v3440 = vadd.f32 0.0, %v3439
      %v3441 = vpop.f32.mrb[0].mxu0
      %3442 = vmatprep.mubr.bf16.mxu0 0
      %3443 = vmatmul.mubr.bf16.gmra.mrb[0].mxu0 %v3327
      %v3444 = vpop.f32.mrb[0].mxu0
      %v3445 = vadd.f32 0.0, %v3444
      %v3446 = vpop.f32.mrb[0].mxu0
      %v3447 = vpop.f32.mrb[0].mxu0
      %v3448 = vadd.f32 0.0, %v3447
      %v3449 = vpop.f32.mrb[0].mxu0
      %3450 = vmatprep.mubr.bf16.mxu0 0
      %3451 = vmatmul.mubr.bf16.gmra.mrb[0].mxu0 %v3330
      %v3452 = vpop.f32.mrb[0].mxu0
      %v3453 = vadd.f32 0.0, %v3452
      %v3454 = vpop.f32.mrb[0].mxu0
      %v3455 = vpop.f32.mrb[0].mxu0
      %v3456 = vadd.f32 0.0, %v3455
      %v3457 = vpop.f32.mrb[0].mxu0
      %3458 = vmatprep.mubr.bf16.mxu0 0
      %3459 = vmatmul.mubr.bf16.gmra.mrb[0].mxu0 %v3333
      %v3460 = vpop.f32.mrb[0].mxu0
      %v3461 = vadd.f32 0.0, %v3460
      %v3462 = vpop.f32.mrb[0].mxu0
      %v3463 = vpop.f32.mrb[0].mxu0
      %v3464 = vadd.f32 0.0, %v3463
      %v3465 = vpop.f32.mrb[0].mxu0
      %3466 = vmatprep.mubr.bf16.mxu0 0
      %3467 = vmatmul.mubr.bf16.gmra.mrb[0].mxu0 %v3336
      %v3468 = vpop.f32.mrb[0].mxu0
      %v3469 = vadd.f32 0.0, %v3468
      %v3470 = vpop.f32.mrb[0].mxu0
      %v3471 = vpop.f32.mrb[0].mxu0
      %v3472 = vadd.f32 0.0, %v3471
      %v3473 = vpop.f32.mrb[0].mxu0
      %3474 = vmatprep.mubr.bf16.mxu0 0
      %3475 = vmatmul.mubr.bf16.gmra.mrb[0].mxu0 %v3339
      %v3476 = vpop.f32.mrb[0].mxu0
      %v3477 = vadd.f32 0.0, %v3476
      %v3478 = vpop.f32.mrb[0].mxu0
      %v3479 = vpop.f32.mrb[0].mxu0
      %v3480 = vadd.f32 0.0, %v3479
      %v3481 = vpop.f32.mrb[0].mxu0
      %3482 = vmatprep.mubr.bf16.mxu0 0
      %3483 = vmatmul.mubr.bf16.gmra.mrb[0].mxu0 %v3342
      %v3484 = vpop.f32.mrb[0].mxu0
      %v3485 = vadd.f32 0.0, %v3484
      %v3486 = vpop.f32.mrb[0].mxu0
      %v3487 = vpop.f32.mrb[0].mxu0
      %v3488 = vadd.f32 0.0, %v3487
      %v3489 = vpop.f32.mrb[0].mxu0
      %3490 = vmatprep.mubr.bf16.mxu0 0
      %3491 = vmatmul.mubr.bf16.gmra.mrb[0].mxu0 %v3345
      %v3492 = vpop.f32.mrb[0].mxu0
      %v3493 = vadd.f32 0.0, %v3492
      %v3494 = vpop.f32.mrb[0].mxu0
      %v3495 = vpop.f32.mrb[0].mxu0
      %v3496 = vadd.f32 0.0, %v3495
      %v3497 = vpop.f32.mrb[0].mxu0
      %3498 = vmatprep.mubr.bf16.mxu0 0
      %3499 = vmatmul.mubr.bf16.gmra.mrb[0].mxu0 %v3348
      %v3500 = vpop.f32.mrb[0].mxu0
      %v3501 = vadd.f32 0.0, %v3500
      %v3502 = vpop.f32.mrb[0].mxu0
      %v3503 = vpop.f32.mrb[0].mxu0
      %v3504 = vadd.f32 0.0, %v3503
      %v3505 = vpop.f32.mrb[0].mxu0
      %3506 = vmatprep.mubr.bf16.mxu0 0
      %3507 = vmatmul.mubr.bf16.gmra.mrb[0].mxu0 %v3351
      %v3508 = vpop.f32.mrb[0].mxu0
      %v3509 = vadd.f32 0.0, %v3508
      %v3510 = vpop.f32.mrb[0].mxu0
      %v3511 = vpop.f32.mrb[0].mxu0
      %v3512 = vadd.f32 0.0, %v3511
      %v3513 = vpop.f32.mrb[0].mxu0
      %3514 = vmatprep.mubr.bf16.mxu0 0
      %3515 = vmatmul.mubr.bf16.gmra.mrb[0].mxu0 %v3354
      %v3516 = vpop.f32.mrb[0].mxu0
      %v3517 = vadd.f32 0.0, %v3516
      %v3518 = vpop.f32.mrb[0].mxu0
      %v3519 = vpop.f32.mrb[0].mxu0
      %v3520 = vadd.f32 0.0, %v3519
      %v3521 = vpop.f32.mrb[0].mxu0
      %3522 = vmatprep.mubr.bf16.mxu0 0
      %3523 = vmatmul.mubr.bf16.gmra.mrb[0].mxu0 %v3357
      %v3524 = vpop.f32.mrb[0].mxu0
      %v3525 = vadd.f32 0.0, %v3524
      %v3526 = vpop.f32.mrb[0].mxu0
      %v3527 = vpop.f32.mrb[0].mxu0
      %v3528 = vadd.f32 0.0, %v3527
      %v3529 = vpop.f32.mrb[0].mxu0
      %3530 = vmatprep.mubr.bf16.mxu0 0
      %3531 = vmatmul.mubr.bf16.gmra.mrb[0].mxu0 %v3360
      %v3532 = vpop.f32.mrb[0].mxu0
      %v3533 = vadd.f32 0.0, %v3532
      %v3534 = vpop.f32.mrb[0].mxu0
      %v3535 = vpop.f32.mrb[0].mxu0
      %v3536 = vadd.f32 0.0, %v3535
      %v3537 = vpop.f32.mrb[0].mxu0
      %3538 = vdwg.mxu0
      %v3539 = vadd.f32 %v3255, %v3397
      %v3540 = vadd.f32 %v3256, %v3400
      %v3541 = vadd.f32 %v3257, %v3405
      %v3542 = vadd.f32 %v3258, %v3408
      %v3543 = vadd.f32 %v3259, %v3413
      %v3544 = vadd.f32 %v3260, %v3416
      %v3545 = vadd.f32 %v3261, %v3421
      %v3546 = vadd.f32 %v3262, %v3424
      %v3547 = vadd.f32 %v3263, %v3429
      %v3548 = vadd.f32 %v3264, %v3432
      %v3549 = vadd.f32 %v3265, %v3437
      %v3550 = vadd.f32 %v3266, %v3440
      %v3551 = vadd.f32 %v3267, %v3445
      %v3552 = vadd.f32 %v3268, %v3448
      %v3553 = vadd.f32 %v3269, %v3453
      %v3554 = vadd.f32 %v3270, %v3456
      %v3555 = vadd.f32 %v3271, %v3461
      %v3556 = vadd.f32 %v3272, %v3464
      %v3557 = vadd.f32 %v3273, %v3469
      %v3558 = vadd.f32 %v3274, %v3472
      %v3559 = vadd.f32 %v3275, %v3477
      %v3560 = vadd.f32 %v3276, %v3480
      %v3561 = vadd.f32 %v3277, %v3485
      %v3562 = vadd.f32 %v3278, %v3488
      %v3563 = vadd.f32 %v3279, %v3493
      %v3564 = vadd.f32 %v3280, %v3496
      %v3565 = vadd.f32 %v3281, %v3501
      %v3566 = vadd.f32 %v3282, %v3504
      %v3567 = vadd.f32 %v3283, %v3509
      %v3568 = vadd.f32 %v3284, %v3512
      %v3569 = vadd.f32 %v3285, %v3517
      %v3570 = vadd.f32 %v3286, %v3520
      %v3571 = vadd.f32 %v3287, %v3525
      %v3572 = vadd.f32 %v3288, %v3528
      %v3573 = vadd.f32 %v3289, %v3533
      %v3574 = vadd.f32 %v3290, %v3536
      %s3575 = scalar_lea.vmem %s3, 80
      %v3576 = vld [vmem:[%s3575] sm:$0xf]
      %v3577 = vld [vmem:[%s3575 + $0x4] sm:$0xf]
      %v3578 = vld [vmem:[%s3575 + $0x8] sm:$0xf]
      %v3579 = vld [vmem:[%s3575 + $0xc] sm:$0xf]
      %v3584 = vunpack.c.l.b16 %v3576
      %v3585 = vunpack.c.l.b16 %v3577
      %v3586 = vunpack.c.l.b16 %v3578
      %v3587 = vunpack.c.l.b16 %v3579
      %v3588 = vpack.c.b16 %v3585, %v3584
      %v3589 = vpack.c.b16 %v3587, %v3586
      %v3593 = vsel %vm2248, %v2053, 0
      %v3596 = vsel %vm2248, %v2054, 0
      %v3599 = vsel %vm2248, %v2055, 0
      %v3602 = vsel %vm2248, %v2056, 0
      %v3605 = vsel %vm2248, %v2057, 0
      %v3608 = vsel %vm2248, %v2058, 0
      %v3611 = vsel %vm2248, %v2059, 0
      %v3614 = vsel %vm2248, %v2060, 0
      %v3617 = vsel %vm2248, %v2061, 0
      %v3620 = vsel %vm2248, %v2062, 0
      %v3623 = vsel %vm2248, %v2063, 0
      %v3626 = vsel %vm2248, %v2064, 0
      %v3629 = vsel %vm2248, %v2065, 0
      %v3632 = vsel %vm2248, %v2066, 0
      %v3635 = vsel %vm2248, %v2067, 0
      %v3638 = vsel %vm2248, %v2068, 0
      %v3641 = vsel %vm2248, %v2069, 0
      %v3644 = vsel %vm2248, %v2070, 0
      %3646 = vmatprep.subr.bf16.mxu0 0
      %3647 = vmatpush1.bf16.msra.mxu0 %v3588
      %3648 = vmatprep.subr.bf16.mxu0 0
      %3649 = vmatpush1.bf16.msra.mxu0 %v3589
      %3650 = vmatprep.subr.bf16.mxu0 0
      %3651 = vmatpush1.bf16.msra.mxu0 0
      %3652 = vmatprep.subr.bf16.mxu0 0
      %3653 = vmatpush1.bf16.msra.mxu0 0
      %3654 = vmatprep.subr.bf16.mxu0 0
      %3655 = vmatpush1.bf16.msra.mxu0 0
      %3656 = vmatprep.subr.bf16.mxu0 0
      %3657 = vmatpush1.bf16.msra.mxu0 0
      %3658 = vmatprep.subr.bf16.mxu0 0
      %3659 = vmatpush1.bf16.msra.mxu0 0
      %3660 = vmatprep.subr.bf16.mxu0 0
      %3661 = vmatpush1.bf16.msra.mxu0 0
      %3662 = vmatprep.subr.bf16.mxu0 0
      %3663 = vmatpush1.bf16.msra.mxu0 0
      %3664 = vmatprep.subr.bf16.mxu0 0
      %3665 = vmatpush1.bf16.msra.mxu0 0
      %3666 = vmatprep.subr.bf16.mxu0 0
      %3667 = vmatpush1.bf16.msra.mxu0 0
      %3668 = vmatprep.subr.bf16.mxu0 0
      %3669 = vmatpush1.bf16.msra.mxu0 0
      %3670 = vmatprep.subr.bf16.mxu0 0
      %3671 = vmatpush1.bf16.msra.mxu0 0
      %3672 = vmatprep.subr.bf16.mxu0 0
      %3673 = vmatpush1.bf16.msra.mxu0 0
      %3674 = vmatprep.subr.bf16.mxu0 0
      %3675 = vmatpush1.bf16.msra.mxu0 0
      %3676 = vmatprep.subr.bf16.mxu0 0
      %3677 = vmatpush1.bf16.msra.mxu0 0
      %3678 = vmatprep.mubr.bf16.mxu0 0
      %3679 = vmatmul.mubr.bf16.gmra.mrb[0].mxu0 %v3593
      %v3680 = vpop.f32.mrb[0].mxu0
      %v3681 = vadd.f32 0.0, %v3680
      %v3682 = vpop.f32.mrb[0].mxu0
      %v3683 = vpop.f32.mrb[0].mxu0
      %v3684 = vadd.f32 0.0, %v3683
      %v3685 = vpop.f32.mrb[0].mxu0
      %3686 = vmatprep.mubr.bf16.mxu0 0
      %3687 = vmatmul.mubr.bf16.gmra.mrb[0].mxu0 %v3596
      %v3688 = vpop.f32.mrb[0].mxu0
      %v3689 = vadd.f32 0.0, %v3688
      %v3690 = vpop.f32.mrb[0].mxu0
      %v3691 = vpop.f32.mrb[0].mxu0
      %v3692 = vadd.f32 0.0, %v3691
      %v3693 = vpop.f32.mrb[0].mxu0
      %3694 = vmatprep.mubr.bf16.mxu0 0
      %3695 = vmatmul.mubr.bf16.gmra.mrb[0].mxu0 %v3599
      %v3696 = vpop.f32.mrb[0].mxu0
      %v3697 = vadd.f32 0.0, %v3696
      %v3698 = vpop.f32.mrb[0].mxu0
      %v3699 = vpop.f32.mrb[0].mxu0
      %v3700 = vadd.f32 0.0, %v3699
      %v3701 = vpop.f32.mrb[0].mxu0
      %3702 = vmatprep.mubr.bf16.mxu0 0
      %3703 = vmatmul.mubr.bf16.gmra.mrb[0].mxu0 %v3602
      %v3704 = vpop.f32.mrb[0].mxu0
      %v3705 = vadd.f32 0.0, %v3704
      %v3706 = vpop.f32.mrb[0].mxu0
      %v3707 = vpop.f32.mrb[0].mxu0
      %v3708 = vadd.f32 0.0, %v3707
      %v3709 = vpop.f32.mrb[0].mxu0
      %3710 = vmatprep.mubr.bf16.mxu0 0
      %3711 = vmatmul.mubr.bf16.gmra.mrb[0].mxu0 %v3605
      %v3712 = vpop.f32.mrb[0].mxu0
      %v3713 = vadd.f32 0.0, %v3712
      %v3714 = vpop.f32.mrb[0].mxu0
      %v3715 = vpop.f32.mrb[0].mxu0
      %v3716 = vadd.f32 0.0, %v3715
      %v3717 = vpop.f32.mrb[0].mxu0
      %3718 = vmatprep.mubr.bf16.mxu0 0
      %3719 = vmatmul.mubr.bf16.gmra.mrb[0].mxu0 %v3608
      %v3720 = vpop.f32.mrb[0].mxu0
      %v3721 = vadd.f32 0.0, %v3720
      %v3722 = vpop.f32.mrb[0].mxu0
      %v3723 = vpop.f32.mrb[0].mxu0
      %v3724 = vadd.f32 0.0, %v3723
      %v3725 = vpop.f32.mrb[0].mxu0
      %3726 = vmatprep.mubr.bf16.mxu0 0
      %3727 = vmatmul.mubr.bf16.gmra.mrb[0].mxu0 %v3611
      %v3728 = vpop.f32.mrb[0].mxu0
      %v3729 = vadd.f32 0.0, %v3728
      %v3730 = vpop.f32.mrb[0].mxu0
      %v3731 = vpop.f32.mrb[0].mxu0
      %v3732 = vadd.f32 0.0, %v3731
      %v3733 = vpop.f32.mrb[0].mxu0
      %3734 = vmatprep.mubr.bf16.mxu0 0
      %3735 = vmatmul.mubr.bf16.gmra.mrb[0].mxu0 %v3614
      %v3736 = vpop.f32.mrb[0].mxu0
      %v3737 = vadd.f32 0.0, %v3736
      %v3738 = vpop.f32.mrb[0].mxu0
      %v3739 = vpop.f32.mrb[0].mxu0
      %v3740 = vadd.f32 0.0, %v3739
      %v3741 = vpop.f32.mrb[0].mxu0
      %3742 = vmatprep.mubr.bf16.mxu0 0
      %3743 = vmatmul.mubr.bf16.gmra.mrb[0].mxu0 %v3617
      %v3744 = vpop.f32.mrb[0].mxu0
      %v3745 = vadd.f32 0.0, %v3744
      %v3746 = vpop.f32.mrb[0].mxu0
      %v3747 = vpop.f32.mrb[0].mxu0
      %v3748 = vadd.f32 0.0, %v3747
      %v3749 = vpop.f32.mrb[0].mxu0
      %3750 = vmatprep.mubr.bf16.mxu0 0
      %3751 = vmatmul.mubr.bf16.gmra.mrb[0].mxu0 %v3620
      %v3752 = vpop.f32.mrb[0].mxu0
      %v3753 = vadd.f32 0.0, %v3752
      %v3754 = vpop.f32.mrb[0].mxu0
      %v3755 = vpop.f32.mrb[0].mxu0
      %v3756 = vadd.f32 0.0, %v3755
      %v3757 = vpop.f32.mrb[0].mxu0
      %3758 = vmatprep.mubr.bf16.mxu0 0
      %3759 = vmatmul.mubr.bf16.gmra.mrb[0].mxu0 %v3623
      %v3760 = vpop.f32.mrb[0].mxu0
      %v3761 = vadd.f32 0.0, %v3760
      %v3762 = vpop.f32.mrb[0].mxu0
      %v3763 = vpop.f32.mrb[0].mxu0
      %v3764 = vadd.f32 0.0, %v3763
      %v3765 = vpop.f32.mrb[0].mxu0
      %3766 = vmatprep.mubr.bf16.mxu0 0
      %3767 = vmatmul.mubr.bf16.gmra.mrb[0].mxu0 %v3626
      %v3768 = vpop.f32.mrb[0].mxu0
      %v3769 = vadd.f32 0.0, %v3768
      %v3770 = vpop.f32.mrb[0].mxu0
      %v3771 = vpop.f32.mrb[0].mxu0
      %v3772 = vadd.f32 0.0, %v3771
      %v3773 = vpop.f32.mrb[0].mxu0
      %3774 = vmatprep.mubr.bf16.mxu0 0
      %3775 = vmatmul.mubr.bf16.gmra.mrb[0].mxu0 %v3629
      %v3776 = vpop.f32.mrb[0].mxu0
      %v3777 = vadd.f32 0.0, %v3776
      %v3778 = vpop.f32.mrb[0].mxu0
      %v3779 = vpop.f32.mrb[0].mxu0
      %v3780 = vadd.f32 0.0, %v3779
      %v3781 = vpop.f32.mrb[0].mxu0
      %3782 = vmatprep.mubr.bf16.mxu0 0
      %3783 = vmatmul.mubr.bf16.gmra.mrb[0].mxu0 %v3632
      %v3784 = vpop.f32.mrb[0].mxu0
      %v3785 = vadd.f32 0.0, %v3784
      %v3786 = vpop.f32.mrb[0].mxu0
      %v3787 = vpop.f32.mrb[0].mxu0
      %v3788 = vadd.f32 0.0, %v3787
      %v3789 = vpop.f32.mrb[0].mxu0
      %3790 = vmatprep.mubr.bf16.mxu0 0
      %3791 = vmatmul.mubr.bf16.gmra.mrb[0].mxu0 %v3635
      %v3792 = vpop.f32.mrb[0].mxu0
      %v3793 = vadd.f32 0.0, %v3792
      %v3794 = vpop.f32.mrb[0].mxu0
      %v3795 = vpop.f32.mrb[0].mxu0
      %v3796 = vadd.f32 0.0, %v3795
      %v3797 = vpop.f32.mrb[0].mxu0
      %3798 = vmatprep.mubr.bf16.mxu0 0
      %3799 = vmatmul.mubr.bf16.gmra.mrb[0].mxu0 %v3638
      %v3800 = vpop.f32.mrb[0].mxu0
      %v3801 = vadd.f32 0.0, %v3800
      %v3802 = vpop.f32.mrb[0].mxu0
      %v3803 = vpop.f32.mrb[0].mxu0
      %v3804 = vadd.f32 0.0, %v3803
      %v3805 = vpop.f32.mrb[0].mxu0
      %3806 = vmatprep.mubr.bf16.mxu0 0
      %3807 = vmatmul.mubr.bf16.gmra.mrb[0].mxu0 %v3641
      %v3808 = vpop.f32.mrb[0].mxu0
      %v3809 = vadd.f32 0.0, %v3808
      %v3810 = vpop.f32.mrb[0].mxu0
      %v3811 = vpop.f32.mrb[0].mxu0
      %v3812 = vadd.f32 0.0, %v3811
      %v3813 = vpop.f32.mrb[0].mxu0
      %3814 = vmatprep.mubr.bf16.mxu0 0
      %3815 = vmatmul.mubr.bf16.gmra.mrb[0].mxu0 %v3644
      %v3816 = vpop.f32.mrb[0].mxu0
      %v3817 = vadd.f32 0.0, %v3816
      %v3818 = vpop.f32.mrb[0].mxu0
      %v3819 = vpop.f32.mrb[0].mxu0
      %v3820 = vadd.f32 0.0, %v3819
      %v3821 = vpop.f32.mrb[0].mxu0
      %3822 = vdwg.mxu0
      %v3823 = vadd.f32 %v3539, %v3681
      %v3824 = vadd.f32 %v3540, %v3684
      %v3825 = vadd.f32 %v3541, %v3689
      %v3826 = vadd.f32 %v3542, %v3692
      %v3827 = vadd.f32 %v3543, %v3697
      %v3828 = vadd.f32 %v3544, %v3700
      %v3829 = vadd.f32 %v3545, %v3705
      %v3830 = vadd.f32 %v3546, %v3708
      %v3831 = vadd.f32 %v3547, %v3713
      %v3832 = vadd.f32 %v3548, %v3716
      %v3833 = vadd.f32 %v3549, %v3721
      %v3834 = vadd.f32 %v3550, %v3724
      %v3835 = vadd.f32 %v3551, %v3729
      %v3836 = vadd.f32 %v3552, %v3732
      %v3837 = vadd.f32 %v3553, %v3737
      %v3838 = vadd.f32 %v3554, %v3740
      %v3839 = vadd.f32 %v3555, %v3745
      %v3840 = vadd.f32 %v3556, %v3748
      %v3841 = vadd.f32 %v3557, %v3753
      %v3842 = vadd.f32 %v3558, %v3756
      %v3843 = vadd.f32 %v3559, %v3761
      %v3844 = vadd.f32 %v3560, %v3764
      %v3845 = vadd.f32 %v3561, %v3769
      %v3846 = vadd.f32 %v3562, %v3772
      %v3847 = vadd.f32 %v3563, %v3777
      %v3848 = vadd.f32 %v3564, %v3780
      %v3849 = vadd.f32 %v3565, %v3785
      %v3850 = vadd.f32 %v3566, %v3788
      %v3851 = vadd.f32 %v3567, %v3793
      %v3852 = vadd.f32 %v3568, %v3796
      %v3853 = vadd.f32 %v3569, %v3801
      %v3854 = vadd.f32 %v3570, %v3804
      %v3855 = vadd.f32 %v3571, %v3809
      %v3856 = vadd.f32 %v3572, %v3812
      %v3857 = vadd.f32 %v3573, %v3817
      %v3858 = vadd.f32 %v3574, %v3820
      %s3859 = scalar_lea.vmem %s3, 96
      %v3860 = vld [vmem:[%s3859] sm:$0xf]
      %v3861 = vld [vmem:[%s3859 + $0x4] sm:$0xf]
      %v3862 = vld [vmem:[%s3859 + $0x8] sm:$0xf]
      %v3863 = vld [vmem:[%s3859 + $0xc] sm:$0xf]
      %v3868 = vunpack.c.l.b16 %v3860
      %v3869 = vunpack.c.l.b16 %v3861
      %v3870 = vunpack.c.l.b16 %v3862
      %v3871 = vunpack.c.l.b16 %v3863
      %v3872 = vpack.c.b16 %v3869, %v3868
      %v3873 = vpack.c.b16 %v3871, %v3870
      %v3877 = vsel %vm2248, %v2071, 0
      %v3880 = vsel %vm2248, %v2072, 0
      %v3883 = vsel %vm2248, %v2073, 0
      %v3886 = vsel %vm2248, %v2074, 0
      %v3889 = vsel %vm2248, %v2075, 0
      %v3892 = vsel %vm2248, %v2076, 0
      %v3895 = vsel %vm2248, %v2077, 0
      %v3898 = vsel %vm2248, %v2078, 0
      %v3901 = vsel %vm2248, %v2079, 0
      %v3904 = vsel %vm2248, %v2080, 0
      %v3907 = vsel %vm2248, %v2081, 0
      %v3910 = vsel %vm2248, %v2082, 0
      %v3913 = vsel %vm2248, %v2083, 0
      %v3916 = vsel %vm2248, %v2084, 0
      %v3919 = vsel %vm2248, %v2085, 0
      %v3922 = vsel %vm2248, %v2086, 0
      %v3925 = vsel %vm2248, %v2087, 0
      %v3928 = vsel %vm2248, %v2088, 0
      %3930 = vmatprep.subr.bf16.mxu0 0
      %3931 = vmatpush1.bf16.msra.mxu0 %v3872
      %3932 = vmatprep.subr.bf16.mxu0 0
      %3933 = vmatpush1.bf16.msra.mxu0 %v3873
      %3934 = vmatprep.subr.bf16.mxu0 0
      %3935 = vmatpush1.bf16.msra.mxu0 0
      %3936 = vmatprep.subr.bf16.mxu0 0
      %3937 = vmatpush1.bf16.msra.mxu0 0
      %3938 = vmatprep.subr.bf16.mxu0 0
      %3939 = vmatpush1.bf16.msra.mxu0 0
      %3940 = vmatprep.subr.bf16.mxu0 0
      %3941 = vmatpush1.bf16.msra.mxu0 0
      %3942 = vmatprep.subr.bf16.mxu0 0
      %3943 = vmatpush1.bf16.msra.mxu0 0
      %3944 = vmatprep.subr.bf16.mxu0 0
      %3945 = vmatpush1.bf16.msra.mxu0 0
      %3946 = vmatprep.subr.bf16.mxu0 0
      %3947 = vmatpush1.bf16.msra.mxu0 0
      %3948 = vmatprep.subr.bf16.mxu0 0
      %3949 = vmatpush1.bf16.msra.mxu0 0
      %3950 = vmatprep.subr.bf16.mxu0 0
      %3951 = vmatpush1.bf16.msra.mxu0 0
      %3952 = vmatprep.subr.bf16.mxu0 0
      %3953 = vmatpush1.bf16.msra.mxu0 0
      %3954 = vmatprep.subr.bf16.mxu0 0
      %3955 = vmatpush1.bf16.msra.mxu0 0
      %3956 = vmatprep.subr.bf16.mxu0 0
      %3957 = vmatpush1.bf16.msra.mxu0 0
      %3958 = vmatprep.subr.bf16.mxu0 0
      %3959 = vmatpush1.bf16.msra.mxu0 0
      %3960 = vmatprep.subr.bf16.mxu0 0
      %3961 = vmatpush1.bf16.msra.mxu0 0
      %3962 = vmatprep.mubr.bf16.mxu0 0
      %3963 = vmatmul.mubr.bf16.gmra.mrb[0].mxu0 %v3877
      %v3964 = vpop.f32.mrb[0].mxu0
      %v3965 = vadd.f32 0.0, %v3964
      %v3966 = vpop.f32.mrb[0].mxu0
      %v3967 = vpop.f32.mrb[0].mxu0
      %v3968 = vadd.f32 0.0, %v3967
      %v3969 = vpop.f32.mrb[0].mxu0
      %3970 = vmatprep.mubr.bf16.mxu0 0
      %3971 = vmatmul.mubr.bf16.gmra.mrb[0].mxu0 %v3880
      %v3972 = vpop.f32.mrb[0].mxu0
      %v3973 = vadd.f32 0.0, %v3972
      %v3974 = vpop.f32.mrb[0].mxu0
      %v3975 = vpop.f32.mrb[0].mxu0
      %v3976 = vadd.f32 0.0, %v3975
      %v3977 = vpop.f32.mrb[0].mxu0
      %3978 = vmatprep.mubr.bf16.mxu0 0
      %3979 = vmatmul.mubr.bf16.gmra.mrb[0].mxu0 %v3883
      %v3980 = vpop.f32.mrb[0].mxu0
      %v3981 = vadd.f32 0.0, %v3980
      %v3982 = vpop.f32.mrb[0].mxu0
      %v3983 = vpop.f32.mrb[0].mxu0
      %v3984 = vadd.f32 0.0, %v3983
      %v3985 = vpop.f32.mrb[0].mxu0
      %3986 = vmatprep.mubr.bf16.mxu0 0
      %3987 = vmatmul.mubr.bf16.gmra.mrb[0].mxu0 %v3886
      %v3988 = vpop.f32.mrb[0].mxu0
      %v3989 = vadd.f32 0.0, %v3988
      %v3990 = vpop.f32.mrb[0].mxu0
      %v3991 = vpop.f32.mrb[0].mxu0
      %v3992 = vadd.f32 0.0, %v3991
      %v3993 = vpop.f32.mrb[0].mxu0
      %3994 = vmatprep.mubr.bf16.mxu0 0
      %3995 = vmatmul.mubr.bf16.gmra.mrb[0].mxu0 %v3889
      %v3996 = vpop.f32.mrb[0].mxu0
      %v3997 = vadd.f32 0.0, %v3996
      %v3998 = vpop.f32.mrb[0].mxu0
      %v3999 = vpop.f32.mrb[0].mxu0
      %v4000 = vadd.f32 0.0, %v3999
      %v4001 = vpop.f32.mrb[0].mxu0
      %4002 = vmatprep.mubr.bf16.mxu0 0
      %4003 = vmatmul.mubr.bf16.gmra.mrb[0].mxu0 %v3892
      %v4004 = vpop.f32.mrb[0].mxu0
      %v4005 = vadd.f32 0.0, %v4004
      %v4006 = vpop.f32.mrb[0].mxu0
      %v4007 = vpop.f32.mrb[0].mxu0
      %v4008 = vadd.f32 0.0, %v4007
      %v4009 = vpop.f32.mrb[0].mxu0
      %4010 = vmatprep.mubr.bf16.mxu0 0
      %4011 = vmatmul.mubr.bf16.gmra.mrb[0].mxu0 %v3895
      %v4012 = vpop.f32.mrb[0].mxu0
      %v4013 = vadd.f32 0.0, %v4012
      %v4014 = vpop.f32.mrb[0].mxu0
      %v4015 = vpop.f32.mrb[0].mxu0
      %v4016 = vadd.f32 0.0, %v4015
      %v4017 = vpop.f32.mrb[0].mxu0
      %4018 = vmatprep.mubr.bf16.mxu0 0
      %4019 = vmatmul.mubr.bf16.gmra.mrb[0].mxu0 %v3898
      %v4020 = vpop.f32.mrb[0].mxu0
      %v4021 = vadd.f32 0.0, %v4020
      %v4022 = vpop.f32.mrb[0].mxu0
      %v4023 = vpop.f32.mrb[0].mxu0
      %v4024 = vadd.f32 0.0, %v4023
      %v4025 = vpop.f32.mrb[0].mxu0
      %4026 = vmatprep.mubr.bf16.mxu0 0
      %4027 = vmatmul.mubr.bf16.gmra.mrb[0].mxu0 %v3901
      %v4028 = vpop.f32.mrb[0].mxu0
      %v4029 = vadd.f32 0.0, %v4028
      %v4030 = vpop.f32.mrb[0].mxu0
      %v4031 = vpop.f32.mrb[0].mxu0
      %v4032 = vadd.f32 0.0, %v4031
      %v4033 = vpop.f32.mrb[0].mxu0
      %4034 = vmatprep.mubr.bf16.mxu0 0
      %4035 = vmatmul.mubr.bf16.gmra.mrb[0].mxu0 %v3904
      %v4036 = vpop.f32.mrb[0].mxu0
      %v4037 = vadd.f32 0.0, %v4036
      %v4038 = vpop.f32.mrb[0].mxu0
      %v4039 = vpop.f32.mrb[0].mxu0
      %v4040 = vadd.f32 0.0, %v4039
      %v4041 = vpop.f32.mrb[0].mxu0
      %4042 = vmatprep.mubr.bf16.mxu0 0
      %4043 = vmatmul.mubr.bf16.gmra.mrb[0].mxu0 %v3907
      %v4044 = vpop.f32.mrb[0].mxu0
      %v4045 = vadd.f32 0.0, %v4044
      %v4046 = vpop.f32.mrb[0].mxu0
      %v4047 = vpop.f32.mrb[0].mxu0
      %v4048 = vadd.f32 0.0, %v4047
      %v4049 = vpop.f32.mrb[0].mxu0
      %4050 = vmatprep.mubr.bf16.mxu0 0
      %4051 = vmatmul.mubr.bf16.gmra.mrb[0].mxu0 %v3910
      %v4052 = vpop.f32.mrb[0].mxu0
      %v4053 = vadd.f32 0.0, %v4052
      %v4054 = vpop.f32.mrb[0].mxu0
      %v4055 = vpop.f32.mrb[0].mxu0
      %v4056 = vadd.f32 0.0, %v4055
      %v4057 = vpop.f32.mrb[0].mxu0
      %4058 = vmatprep.mubr.bf16.mxu0 0
      %4059 = vmatmul.mubr.bf16.gmra.mrb[0].mxu0 %v3913
      %v4060 = vpop.f32.mrb[0].mxu0
      %v4061 = vadd.f32 0.0, %v4060
      %v4062 = vpop.f32.mrb[0].mxu0
      %v4063 = vpop.f32.mrb[0].mxu0
      %v4064 = vadd.f32 0.0, %v4063
      %v4065 = vpop.f32.mrb[0].mxu0
      %4066 = vmatprep.mubr.bf16.mxu0 0
      %4067 = vmatmul.mubr.bf16.gmra.mrb[0].mxu0 %v3916
      %v4068 = vpop.f32.mrb[0].mxu0
      %v4069 = vadd.f32 0.0, %v4068
      %v4070 = vpop.f32.mrb[0].mxu0
      %v4071 = vpop.f32.mrb[0].mxu0
      %v4072 = vadd.f32 0.0, %v4071
      %v4073 = vpop.f32.mrb[0].mxu0
      %4074 = vmatprep.mubr.bf16.mxu0 0
      %4075 = vmatmul.mubr.bf16.gmra.mrb[0].mxu0 %v3919
      %v4076 = vpop.f32.mrb[0].mxu0
      %v4077 = vadd.f32 0.0, %v4076
      %v4078 = vpop.f32.mrb[0].mxu0
      %v4079 = vpop.f32.mrb[0].mxu0
      %v4080 = vadd.f32 0.0, %v4079
      %v4081 = vpop.f32.mrb[0].mxu0
      %4082 = vmatprep.mubr.bf16.mxu0 0
      %4083 = vmatmul.mubr.bf16.gmra.mrb[0].mxu0 %v3922
      %v4084 = vpop.f32.mrb[0].mxu0
      %v4085 = vadd.f32 0.0, %v4084
      %v4086 = vpop.f32.mrb[0].mxu0
      %v4087 = vpop.f32.mrb[0].mxu0
      %v4088 = vadd.f32 0.0, %v4087
      %v4089 = vpop.f32.mrb[0].mxu0
      %4090 = vmatprep.mubr.bf16.mxu0 0
      %4091 = vmatmul.mubr.bf16.gmra.mrb[0].mxu0 %v3925
      %v4092 = vpop.f32.mrb[0].mxu0
      %v4093 = vadd.f32 0.0, %v4092
      %v4094 = vpop.f32.mrb[0].mxu0
      %v4095 = vpop.f32.mrb[0].mxu0
      %v4096 = vadd.f32 0.0, %v4095
      %v4097 = vpop.f32.mrb[0].mxu0
      %4098 = vmatprep.mubr.bf16.mxu0 0
      %4099 = vmatmul.mubr.bf16.gmra.mrb[0].mxu0 %v3928
      %v4100 = vpop.f32.mrb[0].mxu0
      %v4101 = vadd.f32 0.0, %v4100
      %v4102 = vpop.f32.mrb[0].mxu0
      %v4103 = vpop.f32.mrb[0].mxu0
      %v4104 = vadd.f32 0.0, %v4103
      %v4105 = vpop.f32.mrb[0].mxu0
      %4106 = vdwg.mxu0
      %v4107 = vadd.f32 %v3823, %v3965
      %v4108 = vadd.f32 %v3824, %v3968
      %v4109 = vadd.f32 %v3825, %v3973
      %v4110 = vadd.f32 %v3826, %v3976
      %v4111 = vadd.f32 %v3827, %v3981
      %v4112 = vadd.f32 %v3828, %v3984
      %v4113 = vadd.f32 %v3829, %v3989
      %v4114 = vadd.f32 %v3830, %v3992
      %v4115 = vadd.f32 %v3831, %v3997
      %v4116 = vadd.f32 %v3832, %v4000
      %v4117 = vadd.f32 %v3833, %v4005
      %v4118 = vadd.f32 %v3834, %v4008
      %v4119 = vadd.f32 %v3835, %v4013
      %v4120 = vadd.f32 %v3836, %v4016
      %v4121 = vadd.f32 %v3837, %v4021
      %v4122 = vadd.f32 %v3838, %v4024
      %v4123 = vadd.f32 %v3839, %v4029
      %v4124 = vadd.f32 %v3840, %v4032
      %v4125 = vadd.f32 %v3841, %v4037
      %v4126 = vadd.f32 %v3842, %v4040
      %v4127 = vadd.f32 %v3843, %v4045
      %v4128 = vadd.f32 %v3844, %v4048
      %v4129 = vadd.f32 %v3845, %v4053
      %v4130 = vadd.f32 %v3846, %v4056
      %v4131 = vadd.f32 %v3847, %v4061
      %v4132 = vadd.f32 %v3848, %v4064
      %v4133 = vadd.f32 %v3849, %v4069
      %v4134 = vadd.f32 %v3850, %v4072
      %v4135 = vadd.f32 %v3851, %v4077
      %v4136 = vadd.f32 %v3852, %v4080
      %v4137 = vadd.f32 %v3853, %v4085
      %v4138 = vadd.f32 %v3854, %v4088
      %v4139 = vadd.f32 %v3855, %v4093
      %v4140 = vadd.f32 %v3856, %v4096
      %v4141 = vadd.f32 %v3857, %v4101
      %v4142 = vadd.f32 %v3858, %v4104
      %s4143 = scalar_lea.vmem %s3, 112
      %v4144 = vld [vmem:[%s4143] sm:$0xf]
      %v4145 = vld [vmem:[%s4143 + $0x4] sm:$0xf]
      %v4146 = vld [vmem:[%s4143 + $0x8] sm:$0xf]
      %v4147 = vld [vmem:[%s4143 + $0xc] sm:$0xf]
      %v4152 = vunpack.c.l.b16 %v4144
      %v4153 = vunpack.c.l.b16 %v4145
      %v4154 = vunpack.c.l.b16 %v4146
      %v4155 = vunpack.c.l.b16 %v4147
      %v4156 = vpack.c.b16 %v4153, %v4152
      %v4157 = vpack.c.b16 %v4155, %v4154
      %v4161 = vsel %vm2248, %v2103, 0
      %v4164 = vsel %vm2248, %v2104, 0
      %v4167 = vsel %vm2248, %v2105, 0
      %v4170 = vsel %vm2248, %v2106, 0
      %v4173 = vsel %vm2248, %v2107, 0
      %v4176 = vsel %vm2248, %v2108, 0
      %v4179 = vsel %vm2248, %v2109, 0
      %v4182 = vsel %vm2248, %v2110, 0
      %v4185 = vsel %vm2248, %v2111, 0
      %v4188 = vsel %vm2248, %v2112, 0
      %v4191 = vsel %vm2248, %v2113, 0
      %v4194 = vsel %vm2248, %v2114, 0
      %v4197 = vsel %vm2248, %v2115, 0
      %v4200 = vsel %vm2248, %v2116, 0
      %v4203 = vsel %vm2248, %v2117, 0
      %v4206 = vsel %vm2248, %v2118, 0
      %v4209 = vsel %vm2248, %v2119, 0
      %v4212 = vsel %vm2248, %v2120, 0
      %4214 = vmatprep.subr.bf16.mxu0 0
      %4215 = vmatpush1.bf16.msra.mxu0 %v4156
      %4216 = vmatprep.subr.bf16.mxu0 0
      %4217 = vmatpush1.bf16.msra.mxu0 %v4157
      %4218 = vmatprep.subr.bf16.mxu0 0
      %4219 = vmatpush1.bf16.msra.mxu0 0
      %4220 = vmatprep.subr.bf16.mxu0 0
      %4221 = vmatpush1.bf16.msra.mxu0 0
      %4222 = vmatprep.subr.bf16.mxu0 0
      %4223 = vmatpush1.bf16.msra.mxu0 0
      %4224 = vmatprep.subr.bf16.mxu0 0
      %4225 = vmatpush1.bf16.msra.mxu0 0
      %4226 = vmatprep.subr.bf16.mxu0 0
      %4227 = vmatpush1.bf16.msra.mxu0 0
      %4228 = vmatprep.subr.bf16.mxu0 0
      %4229 = vmatpush1.bf16.msra.mxu0 0
      %4230 = vmatprep.subr.bf16.mxu0 0
      %4231 = vmatpush1.bf16.msra.mxu0 0
      %4232 = vmatprep.subr.bf16.mxu0 0
      %4233 = vmatpush1.bf16.msra.mxu0 0
      %4234 = vmatprep.subr.bf16.mxu0 0
      %4235 = vmatpush1.bf16.msra.mxu0 0
      %4236 = vmatprep.subr.bf16.mxu0 0
      %4237 = vmatpush1.bf16.msra.mxu0 0
      %4238 = vmatprep.subr.bf16.mxu0 0
      %4239 = vmatpush1.bf16.msra.mxu0 0
      %4240 = vmatprep.subr.bf16.mxu0 0
      %4241 = vmatpush1.bf16.msra.mxu0 0
      %4242 = vmatprep.subr.bf16.mxu0 0
      %4243 = vmatpush1.bf16.msra.mxu0 0
      %4244 = vmatprep.subr.bf16.mxu0 0
      %4245 = vmatpush1.bf16.msra.mxu0 0
      %4246 = vmatprep.mubr.bf16.mxu0 0
      %4247 = vmatmul.mubr.bf16.gmra.mrb[0].mxu0 %v4161
      %v4248 = vpop.f32.mrb[0].mxu0
      %v4249 = vadd.f32 0.0, %v4248
      %v4250 = vpop.f32.mrb[0].mxu0
      %v4251 = vpop.f32.mrb[0].mxu0
      %v4252 = vadd.f32 0.0, %v4251
      %v4253 = vpop.f32.mrb[0].mxu0
      %4254 = vmatprep.mubr.bf16.mxu0 0
      %4255 = vmatmul.mubr.bf16.gmra.mrb[0].mxu0 %v4164
      %v4256 = vpop.f32.mrb[0].mxu0
      %v4257 = vadd.f32 0.0, %v4256
      %v4258 = vpop.f32.mrb[0].mxu0
      %v4259 = vpop.f32.mrb[0].mxu0
      %v4260 = vadd.f32 0.0, %v4259
      %v4261 = vpop.f32.mrb[0].mxu0
      %4262 = vmatprep.mubr.bf16.mxu0 0
      %4263 = vmatmul.mubr.bf16.gmra.mrb[0].mxu0 %v4167
      %v4264 = vpop.f32.mrb[0].mxu0
      %v4265 = vadd.f32 0.0, %v4264
      %v4266 = vpop.f32.mrb[0].mxu0
      %v4267 = vpop.f32.mrb[0].mxu0
      %v4268 = vadd.f32 0.0, %v4267
      %v4269 = vpop.f32.mrb[0].mxu0
      %4270 = vmatprep.mubr.bf16.mxu0 0
      %4271 = vmatmul.mubr.bf16.gmra.mrb[0].mxu0 %v4170
      %v4272 = vpop.f32.mrb[0].mxu0
      %v4273 = vadd.f32 0.0, %v4272
      %v4274 = vpop.f32.mrb[0].mxu0
      %v4275 = vpop.f32.mrb[0].mxu0
      %v4276 = vadd.f32 0.0, %v4275
      %v4277 = vpop.f32.mrb[0].mxu0
      %4278 = vmatprep.mubr.bf16.mxu0 0
      %4279 = vmatmul.mubr.bf16.gmra.mrb[0].mxu0 %v4173
      %v4280 = vpop.f32.mrb[0].mxu0
      %v4281 = vadd.f32 0.0, %v4280
      %v4282 = vpop.f32.mrb[0].mxu0
      %v4283 = vpop.f32.mrb[0].mxu0
      %v4284 = vadd.f32 0.0, %v4283
      %v4285 = vpop.f32.mrb[0].mxu0
      %4286 = vmatprep.mubr.bf16.mxu0 0
      %4287 = vmatmul.mubr.bf16.gmra.mrb[0].mxu0 %v4176
      %v4288 = vpop.f32.mrb[0].mxu0
      %v4289 = vadd.f32 0.0, %v4288
      %v4290 = vpop.f32.mrb[0].mxu0
      %v4291 = vpop.f32.mrb[0].mxu0
      %v4292 = vadd.f32 0.0, %v4291
      %v4293 = vpop.f32.mrb[0].mxu0
      %4294 = vmatprep.mubr.bf16.mxu0 0
      %4295 = vmatmul.mubr.bf16.gmra.mrb[0].mxu0 %v4179
      %v4296 = vpop.f32.mrb[0].mxu0
      %v4297 = vadd.f32 0.0, %v4296
      %v4298 = vpop.f32.mrb[0].mxu0
      %v4299 = vpop.f32.mrb[0].mxu0
      %v4300 = vadd.f32 0.0, %v4299
      %v4301 = vpop.f32.mrb[0].mxu0
      %4302 = vmatprep.mubr.bf16.mxu0 0
      %4303 = vmatmul.mubr.bf16.gmra.mrb[0].mxu0 %v4182
      %v4304 = vpop.f32.mrb[0].mxu0
      %v4305 = vadd.f32 0.0, %v4304
      %v4306 = vpop.f32.mrb[0].mxu0
      %v4307 = vpop.f32.mrb[0].mxu0
      %v4308 = vadd.f32 0.0, %v4307
      %v4309 = vpop.f32.mrb[0].mxu0
      %4310 = vmatprep.mubr.bf16.mxu0 0
      %4311 = vmatmul.mubr.bf16.gmra.mrb[0].mxu0 %v4185
      %v4312 = vpop.f32.mrb[0].mxu0
      %v4313 = vadd.f32 0.0, %v4312
      %v4314 = vpop.f32.mrb[0].mxu0
      %v4315 = vpop.f32.mrb[0].mxu0
      %v4316 = vadd.f32 0.0, %v4315
      %v4317 = vpop.f32.mrb[0].mxu0
      %4318 = vmatprep.mubr.bf16.mxu0 0
      %4319 = vmatmul.mubr.bf16.gmra.mrb[0].mxu0 %v4188
      %v4320 = vpop.f32.mrb[0].mxu0
      %v4321 = vadd.f32 0.0, %v4320
      %v4322 = vpop.f32.mrb[0].mxu0
      %v4323 = vpop.f32.mrb[0].mxu0
      %v4324 = vadd.f32 0.0, %v4323
      %v4325 = vpop.f32.mrb[0].mxu0
      %4326 = vmatprep.mubr.bf16.mxu0 0
      %4327 = vmatmul.mubr.bf16.gmra.mrb[0].mxu0 %v4191
      %v4328 = vpop.f32.mrb[0].mxu0
      %v4329 = vadd.f32 0.0, %v4328
      %v4330 = vpop.f32.mrb[0].mxu0
      %v4331 = vpop.f32.mrb[0].mxu0
      %v4332 = vadd.f32 0.0, %v4331
      %v4333 = vpop.f32.mrb[0].mxu0
      %4334 = vmatprep.mubr.bf16.mxu0 0
      %4335 = vmatmul.mubr.bf16.gmra.mrb[0].mxu0 %v4194
      %v4336 = vpop.f32.mrb[0].mxu0
      %v4337 = vadd.f32 0.0, %v4336
      %v4338 = vpop.f32.mrb[0].mxu0
      %v4339 = vpop.f32.mrb[0].mxu0
      %v4340 = vadd.f32 0.0, %v4339
      %v4341 = vpop.f32.mrb[0].mxu0
      %4342 = vmatprep.mubr.bf16.mxu0 0
      %4343 = vmatmul.mubr.bf16.gmra.mrb[0].mxu0 %v4197
      %v4344 = vpop.f32.mrb[0].mxu0
      %v4345 = vadd.f32 0.0, %v4344
      %v4346 = vpop.f32.mrb[0].mxu0
      %v4347 = vpop.f32.mrb[0].mxu0
      %v4348 = vadd.f32 0.0, %v4347
      %v4349 = vpop.f32.mrb[0].mxu0
      %4350 = vmatprep.mubr.bf16.mxu0 0
      %4351 = vmatmul.mubr.bf16.gmra.mrb[0].mxu0 %v4200
      %v4352 = vpop.f32.mrb[0].mxu0
      %v4353 = vadd.f32 0.0, %v4352
      %v4354 = vpop.f32.mrb[0].mxu0
      %v4355 = vpop.f32.mrb[0].mxu0
      %v4356 = vadd.f32 0.0, %v4355
      %v4357 = vpop.f32.mrb[0].mxu0
      %4358 = vmatprep.mubr.bf16.mxu0 0
      %4359 = vmatmul.mubr.bf16.gmra.mrb[0].mxu0 %v4203
      %v4360 = vpop.f32.mrb[0].mxu0
      %v4361 = vadd.f32 0.0, %v4360
      %v4362 = vpop.f32.mrb[0].mxu0
      %v4363 = vpop.f32.mrb[0].mxu0
      %v4364 = vadd.f32 0.0, %v4363
      %v4365 = vpop.f32.mrb[0].mxu0
      %4366 = vmatprep.mubr.bf16.mxu0 0
      %4367 = vmatmul.mubr.bf16.gmra.mrb[0].mxu0 %v4206
      %v4368 = vpop.f32.mrb[0].mxu0
      %v4369 = vadd.f32 0.0, %v4368
      %v4370 = vpop.f32.mrb[0].mxu0
      %v4371 = vpop.f32.mrb[0].mxu0
      %v4372 = vadd.f32 0.0, %v4371
      %v4373 = vpop.f32.mrb[0].mxu0
      %4374 = vmatprep.mubr.bf16.mxu0 0
      %4375 = vmatmul.mubr.bf16.gmra.mrb[0].mxu0 %v4209
      %v4376 = vpop.f32.mrb[0].mxu0
      %v4377 = vadd.f32 0.0, %v4376
      %v4378 = vpop.f32.mrb[0].mxu0
      %v4379 = vpop.f32.mrb[0].mxu0
      %v4380 = vadd.f32 0.0, %v4379
      %v4381 = vpop.f32.mrb[0].mxu0
      %4382 = vmatprep.mubr.bf16.mxu0 0
      %4383 = vmatmul.mubr.bf16.gmra.mrb[0].mxu0 %v4212
      %v4384 = vpop.f32.mrb[0].mxu0
      %v4385 = vadd.f32 0.0, %v4384
      %v4386 = vpop.f32.mrb[0].mxu0
      %v4387 = vpop.f32.mrb[0].mxu0
      %v4388 = vadd.f32 0.0, %v4387
      %v4389 = vpop.f32.mrb[0].mxu0
      %4390 = vdwg.mxu0
      %v4391 = vadd.f32 %v4107, %v4249
      %v4392 = vadd.f32 %v4108, %v4252
      %v4393 = vadd.f32 %v4109, %v4257
      %v4394 = vadd.f32 %v4110, %v4260
      %v4395 = vadd.f32 %v4111, %v4265
      %v4396 = vadd.f32 %v4112, %v4268
      %v4397 = vadd.f32 %v4113, %v4273
      %v4398 = vadd.f32 %v4114, %v4276
      %v4399 = vadd.f32 %v4115, %v4281
      %v4400 = vadd.f32 %v4116, %v4284
      %v4401 = vadd.f32 %v4117, %v4289
      %v4402 = vadd.f32 %v4118, %v4292
      %v4403 = vadd.f32 %v4119, %v4297
      %v4404 = vadd.f32 %v4120, %v4300
      %v4405 = vadd.f32 %v4121, %v4305
      %v4406 = vadd.f32 %v4122, %v4308
      %v4407 = vadd.f32 %v4123, %v4313
      %v4408 = vadd.f32 %v4124, %v4316
      %v4409 = vadd.f32 %v4125, %v4321
      %v4410 = vadd.f32 %v4126, %v4324
      %v4411 = vadd.f32 %v4127, %v4329
      %v4412 = vadd.f32 %v4128, %v4332
      %v4413 = vadd.f32 %v4129, %v4337
      %v4414 = vadd.f32 %v4130, %v4340
      %v4415 = vadd.f32 %v4131, %v4345
      %v4416 = vadd.f32 %v4132, %v4348
      %v4417 = vadd.f32 %v4133, %v4353
      %v4418 = vadd.f32 %v4134, %v4356
      %v4419 = vadd.f32 %v4135, %v4361
      %v4420 = vadd.f32 %v4136, %v4364
      %v4421 = vadd.f32 %v4137, %v4369
      %v4422 = vadd.f32 %v4138, %v4372
      %v4423 = vadd.f32 %v4139, %v4377
      %v4424 = vadd.f32 %v4140, %v4380
      %v4425 = vadd.f32 %v4141, %v4385
      %v4426 = vadd.f32 %v4142, %v4388
      %s4427 = scalar_lea.vmem %s3, 128
      %v4428 = vld [vmem:[%s4427] sm:$0xf]
      %v4429 = vld [vmem:[%s4427 + $0x4] sm:$0xf]
      %v4430 = vld [vmem:[%s4427 + $0x8] sm:$0xf]
      %v4431 = vld [vmem:[%s4427 + $0xc] sm:$0xf]
      %v4436 = vunpack.c.l.b16 %v4428
      %v4437 = vunpack.c.l.b16 %v4429
      %v4438 = vunpack.c.l.b16 %v4430
      %v4439 = vunpack.c.l.b16 %v4431
      %v4440 = vpack.c.b16 %v4437, %v4436
      %v4441 = vpack.c.b16 %v4439, %v4438
      %v4445 = vsel %vm2248, %v2131, 0
      %v4448 = vsel %vm2248, %v2132, 0
      %v4451 = vsel %vm2248, %v2133, 0
      %v4454 = vsel %vm2248, %v2134, 0
      %v4457 = vsel %vm2248, %v2135, 0
      %v4460 = vsel %vm2248, %v2136, 0
      %v4463 = vsel %vm2248, %v2137, 0
      %v4466 = vsel %vm2248, %v2138, 0
      %v4469 = vsel %vm2248, %v2139, 0
      %v4472 = vsel %vm2248, %v2140, 0
      %v4475 = vsel %vm2248, %v2141, 0
      %v4478 = vsel %vm2248, %v2142, 0
      %v4481 = vsel %vm2248, %v2143, 0
      %v4484 = vsel %vm2248, %v2144, 0
      %v4487 = vsel %vm2248, %v2145, 0
      %v4490 = vsel %vm2248, %v2146, 0
      %v4493 = vsel %vm2248, %v2147, 0
      %v4496 = vsel %vm2248, %v2148, 0
      %4498 = vmatprep.subr.bf16.mxu0 0
      %4499 = vmatpush1.bf16.msra.mxu0 %v4440
      %4500 = vmatprep.subr.bf16.mxu0 0
      %4501 = vmatpush1.bf16.msra.mxu0 %v4441
      %4502 = vmatprep.subr.bf16.mxu0 0
      %4503 = vmatpush1.bf16.msra.mxu0 0
      %4504 = vmatprep.subr.bf16.mxu0 0
      %4505 = vmatpush1.bf16.msra.mxu0 0
      %4506 = vmatprep.subr.bf16.mxu0 0
      %4507 = vmatpush1.bf16.msra.mxu0 0
      %4508 = vmatprep.subr.bf16.mxu0 0
      %4509 = vmatpush1.bf16.msra.mxu0 0
      %4510 = vmatprep.subr.bf16.mxu0 0
      %4511 = vmatpush1.bf16.msra.mxu0 0
      %4512 = vmatprep.subr.bf16.mxu0 0
      %4513 = vmatpush1.bf16.msra.mxu0 0
      %4514 = vmatprep.subr.bf16.mxu0 0
      %4515 = vmatpush1.bf16.msra.mxu0 0
      %4516 = vmatprep.subr.bf16.mxu0 0
      %4517 = vmatpush1.bf16.msra.mxu0 0
      %4518 = vmatprep.subr.bf16.mxu0 0
      %4519 = vmatpush1.bf16.msra.mxu0 0
      %4520 = vmatprep.subr.bf16.mxu0 0
      %4521 = vmatpush1.bf16.msra.mxu0 0
      %4522 = vmatprep.subr.bf16.mxu0 0
      %4523 = vmatpush1.bf16.msra.mxu0 0
      %4524 = vmatprep.subr.bf16.mxu0 0
      %4525 = vmatpush1.bf16.msra.mxu0 0
      %4526 = vmatprep.subr.bf16.mxu0 0
      %4527 = vmatpush1.bf16.msra.mxu0 0
      %4528 = vmatprep.subr.bf16.mxu0 0
      %4529 = vmatpush1.bf16.msra.mxu0 0
      %4530 = vmatprep.mubr.bf16.mxu0 0
      %4531 = vmatmul.mubr.bf16.gmra.mrb[0].mxu0 %v4445
      %v4532 = vpop.f32.mrb[0].mxu0
      %v4533 = vadd.f32 0.0, %v4532
      %v4534 = vpop.f32.mrb[0].mxu0
      %v4535 = vpop.f32.mrb[0].mxu0
      %v4536 = vadd.f32 0.0, %v4535
      %v4537 = vpop.f32.mrb[0].mxu0
      %4538 = vmatprep.mubr.bf16.mxu0 0
      %4539 = vmatmul.mubr.bf16.gmra.mrb[0].mxu0 %v4448
      %v4540 = vpop.f32.mrb[0].mxu0
      %v4541 = vadd.f32 0.0, %v4540
      %v4542 = vpop.f32.mrb[0].mxu0
      %v4543 = vpop.f32.mrb[0].mxu0
      %v4544 = vadd.f32 0.0, %v4543
      %v4545 = vpop.f32.mrb[0].mxu0
      %4546 = vmatprep.mubr.bf16.mxu0 0
      %4547 = vmatmul.mubr.bf16.gmra.mrb[0].mxu0 %v4451
      %v4548 = vpop.f32.mrb[0].mxu0
      %v4549 = vadd.f32 0.0, %v4548
      %v4550 = vpop.f32.mrb[0].mxu0
      %v4551 = vpop.f32.mrb[0].mxu0
      %v4552 = vadd.f32 0.0, %v4551
      %v4553 = vpop.f32.mrb[0].mxu0
      %4554 = vmatprep.mubr.bf16.mxu0 0
      %4555 = vmatmul.mubr.bf16.gmra.mrb[0].mxu0 %v4454
      %v4556 = vpop.f32.mrb[0].mxu0
      %v4557 = vadd.f32 0.0, %v4556
      %v4558 = vpop.f32.mrb[0].mxu0
      %v4559 = vpop.f32.mrb[0].mxu0
      %v4560 = vadd.f32 0.0, %v4559
      %v4561 = vpop.f32.mrb[0].mxu0
      %4562 = vmatprep.mubr.bf16.mxu0 0
      %4563 = vmatmul.mubr.bf16.gmra.mrb[0].mxu0 %v4457
      %v4564 = vpop.f32.mrb[0].mxu0
      %v4565 = vadd.f32 0.0, %v4564
      %v4566 = vpop.f32.mrb[0].mxu0
      %v4567 = vpop.f32.mrb[0].mxu0
      %v4568 = vadd.f32 0.0, %v4567
      %v4569 = vpop.f32.mrb[0].mxu0
      %4570 = vmatprep.mubr.bf16.mxu0 0
      %4571 = vmatmul.mubr.bf16.gmra.mrb[0].mxu0 %v4460
      %v4572 = vpop.f32.mrb[0].mxu0
      %v4573 = vadd.f32 0.0, %v4572
      %v4574 = vpop.f32.mrb[0].mxu0
      %v4575 = vpop.f32.mrb[0].mxu0
      %v4576 = vadd.f32 0.0, %v4575
      %v4577 = vpop.f32.mrb[0].mxu0
      %4578 = vmatprep.mubr.bf16.mxu0 0
      %4579 = vmatmul.mubr.bf16.gmra.mrb[0].mxu0 %v4463
      %v4580 = vpop.f32.mrb[0].mxu0
      %v4581 = vadd.f32 0.0, %v4580
      %v4582 = vpop.f32.mrb[0].mxu0
      %v4583 = vpop.f32.mrb[0].mxu0
      %v4584 = vadd.f32 0.0, %v4583
      %v4585 = vpop.f32.mrb[0].mxu0
      %4586 = vmatprep.mubr.bf16.mxu0 0
      %4587 = vmatmul.mubr.bf16.gmra.mrb[0].mxu0 %v4466
      %v4588 = vpop.f32.mrb[0].mxu0
      %v4589 = vadd.f32 0.0, %v4588
      %v4590 = vpop.f32.mrb[0].mxu0
      %v4591 = vpop.f32.mrb[0].mxu0
      %v4592 = vadd.f32 0.0, %v4591
      %v4593 = vpop.f32.mrb[0].mxu0
      %4594 = vmatprep.mubr.bf16.mxu0 0
      %4595 = vmatmul.mubr.bf16.gmra.mrb[0].mxu0 %v4469
      %v4596 = vpop.f32.mrb[0].mxu0
      %v4597 = vadd.f32 0.0, %v4596
      %v4598 = vpop.f32.mrb[0].mxu0
      %v4599 = vpop.f32.mrb[0].mxu0
      %v4600 = vadd.f32 0.0, %v4599
      %v4601 = vpop.f32.mrb[0].mxu0
      %4602 = vmatprep.mubr.bf16.mxu0 0
      %4603 = vmatmul.mubr.bf16.gmra.mrb[0].mxu0 %v4472
      %v4604 = vpop.f32.mrb[0].mxu0
      %v4605 = vadd.f32 0.0, %v4604
      %v4606 = vpop.f32.mrb[0].mxu0
      %v4607 = vpop.f32.mrb[0].mxu0
      %v4608 = vadd.f32 0.0, %v4607
      %v4609 = vpop.f32.mrb[0].mxu0
      %4610 = vmatprep.mubr.bf16.mxu0 0
      %4611 = vmatmul.mubr.bf16.gmra.mrb[0].mxu0 %v4475
      %v4612 = vpop.f32.mrb[0].mxu0
      %v4613 = vadd.f32 0.0, %v4612
      %v4614 = vpop.f32.mrb[0].mxu0
      %v4615 = vpop.f32.mrb[0].mxu0
      %v4616 = vadd.f32 0.0, %v4615
      %v4617 = vpop.f32.mrb[0].mxu0
      %4618 = vmatprep.mubr.bf16.mxu0 0
      %4619 = vmatmul.mubr.bf16.gmra.mrb[0].mxu0 %v4478
      %v4620 = vpop.f32.mrb[0].mxu0
      %v4621 = vadd.f32 0.0, %v4620
      %v4622 = vpop.f32.mrb[0].mxu0
      %v4623 = vpop.f32.mrb[0].mxu0
      %v4624 = vadd.f32 0.0, %v4623
      %v4625 = vpop.f32.mrb[0].mxu0
      %4626 = vmatprep.mubr.bf16.mxu0 0
      %4627 = vmatmul.mubr.bf16.gmra.mrb[0].mxu0 %v4481
      %v4628 = vpop.f32.mrb[0].mxu0
      %v4629 = vadd.f32 0.0, %v4628
      %v4630 = vpop.f32.mrb[0].mxu0
      %v4631 = vpop.f32.mrb[0].mxu0
      %v4632 = vadd.f32 0.0, %v4631
      %v4633 = vpop.f32.mrb[0].mxu0
      %4634 = vmatprep.mubr.bf16.mxu0 0
      %4635 = vmatmul.mubr.bf16.gmra.mrb[0].mxu0 %v4484
      %v4636 = vpop.f32.mrb[0].mxu0
      %v4637 = vadd.f32 0.0, %v4636
      %v4638 = vpop.f32.mrb[0].mxu0
      %v4639 = vpop.f32.mrb[0].mxu0
      %v4640 = vadd.f32 0.0, %v4639
      %v4641 = vpop.f32.mrb[0].mxu0
      %4642 = vmatprep.mubr.bf16.mxu0 0
      %4643 = vmatmul.mubr.bf16.gmra.mrb[0].mxu0 %v4487
      %v4644 = vpop.f32.mrb[0].mxu0
      %v4645 = vadd.f32 0.0, %v4644
      %v4646 = vpop.f32.mrb[0].mxu0
      %v4647 = vpop.f32.mrb[0].mxu0
      %v4648 = vadd.f32 0.0, %v4647
      %v4649 = vpop.f32.mrb[0].mxu0
      %4650 = vmatprep.mubr.bf16.mxu0 0
      %4651 = vmatmul.mubr.bf16.gmra.mrb[0].mxu0 %v4490
      %v4652 = vpop.f32.mrb[0].mxu0
      %v4653 = vadd.f32 0.0, %v4652
      %v4654 = vpop.f32.mrb[0].mxu0
      %v4655 = vpop.f32.mrb[0].mxu0
      %v4656 = vadd.f32 0.0, %v4655
      %v4657 = vpop.f32.mrb[0].mxu0
      %4658 = vmatprep.mubr.bf16.mxu0 0
      %4659 = vmatmul.mubr.bf16.gmra.mrb[0].mxu0 %v4493
      %v4660 = vpop.f32.mrb[0].mxu0
      %v4661 = vadd.f32 0.0, %v4660
      %v4662 = vpop.f32.mrb[0].mxu0
      %v4663 = vpop.f32.mrb[0].mxu0
      %v4664 = vadd.f32 0.0, %v4663
      %v4665 = vpop.f32.mrb[0].mxu0
      %4666 = vmatprep.mubr.bf16.mxu0 0
      %4667 = vmatmul.mubr.bf16.gmra.mrb[0].mxu0 %v4496
      %v4668 = vpop.f32.mrb[0].mxu0
      %v4669 = vadd.f32 0.0, %v4668
      %v4670 = vpop.f32.mrb[0].mxu0
      %v4671 = vpop.f32.mrb[0].mxu0
      %v4672 = vadd.f32 0.0, %v4671
      %v4673 = vpop.f32.mrb[0].mxu0
      %4674 = vdwg.mxu0
      %v4675 = vadd.f32 %v4391, %v4533
      %v4676 = vadd.f32 %v4392, %v4536
      %v4677 = vadd.f32 %v4393, %v4541
      %v4678 = vadd.f32 %v4394, %v4544
      %v4679 = vadd.f32 %v4395, %v4549
      %v4680 = vadd.f32 %v4396, %v4552
      %v4681 = vadd.f32 %v4397, %v4557
      %v4682 = vadd.f32 %v4398, %v4560
      %v4683 = vadd.f32 %v4399, %v4565
      %v4684 = vadd.f32 %v4400, %v4568
      %v4685 = vadd.f32 %v4401, %v4573
      %v4686 = vadd.f32 %v4402, %v4576
      %v4687 = vadd.f32 %v4403, %v4581
      %v4688 = vadd.f32 %v4404, %v4584
      %v4689 = vadd.f32 %v4405, %v4589
      %v4690 = vadd.f32 %v4406, %v4592
      %v4691 = vadd.f32 %v4407, %v4597
      %v4692 = vadd.f32 %v4408, %v4600
      %v4693 = vadd.f32 %v4409, %v4605
      %v4694 = vadd.f32 %v4410, %v4608
      %v4695 = vadd.f32 %v4411, %v4613
      %v4696 = vadd.f32 %v4412, %v4616
      %v4697 = vadd.f32 %v4413, %v4621
      %v4698 = vadd.f32 %v4414, %v4624
      %v4699 = vadd.f32 %v4415, %v4629
      %v4700 = vadd.f32 %v4416, %v4632
      %v4701 = vadd.f32 %v4417, %v4637
      %v4702 = vadd.f32 %v4418, %v4640
      %v4703 = vadd.f32 %v4419, %v4645
      %v4704 = vadd.f32 %v4420, %v4648
      %v4705 = vadd.f32 %v4421, %v4653
      %v4706 = vadd.f32 %v4422, %v4656
      %v4707 = vadd.f32 %v4423, %v4661
      %v4708 = vadd.f32 %v4424, %v4664
      %v4709 = vadd.f32 %v4425, %v4669
      %v4710 = vadd.f32 %v4426, %v4672
      %v4711 = vld [vmem:[%s4] sm:$0x1]
      %v4713 = vlaneseq
      %v4714 = vshrl.u32 %v4713, 7
      %v4715 = vsub.s32 0, %v4714
      %v4716 = vrot.slane %v4711, %v4715
      %v4718 = vadd.f32 %v4675, %v4716
      %v4719 = vadd.f32 %v4676, %v4716
      %v4720 = vadd.f32 %v4677, %v4716
      %v4721 = vadd.f32 %v4678, %v4716
      %v4722 = vadd.f32 %v4679, %v4716
      %v4723 = vadd.f32 %v4680, %v4716
      %v4724 = vadd.f32 %v4681, %v4716
      %v4725 = vadd.f32 %v4682, %v4716
      %v4726 = vadd.f32 %v4683, %v4716
      %v4727 = vadd.f32 %v4684, %v4716
      %v4728 = vadd.f32 %v4685, %v4716
      %v4729 = vadd.f32 %v4686, %v4716
      %v4730 = vadd.f32 %v4687, %v4716
      %v4731 = vadd.f32 %v4688, %v4716
      %v4732 = vadd.f32 %v4689, %v4716
      %v4733 = vadd.f32 %v4690, %v4716
      %v4734 = vadd.f32 %v4691, %v4716
      %v4735 = vadd.f32 %v4692, %v4716
      %v4736 = vadd.f32 %v4693, %v4716
      %v4737 = vadd.f32 %v4694, %v4716
      %v4738 = vadd.f32 %v4695, %v4716
      %v4739 = vadd.f32 %v4696, %v4716
      %v4740 = vadd.f32 %v4697, %v4716
      %v4741 = vadd.f32 %v4698, %v4716
      %v4742 = vadd.f32 %v4699, %v4716
      %v4743 = vadd.f32 %v4700, %v4716
      %v4744 = vadd.f32 %v4701, %v4716
      %v4745 = vadd.f32 %v4702, %v4716
      %v4746 = vadd.f32 %v4703, %v4716
      %v4747 = vadd.f32 %v4704, %v4716
      %v4748 = vadd.f32 %v4705, %v4716
      %v4749 = vadd.f32 %v4706, %v4716
      %v4750 = vadd.f32 %v4707, %v4716
      %v4751 = vadd.f32 %v4708, %v4716
      %v4752 = vadd.f32 %v4709, %v4716
      %v4753 = vadd.f32 %v4710, %v4716
      %v4754 = vmax.f32 %v4718, 0.0
      %v4755 = vmax.f32 %v4719, 0.0
      %v4756 = vmax.f32 %v4720, 0.0
      %v4757 = vmax.f32 %v4721, 0.0
      %v4758 = vmax.f32 %v4722, 0.0
      %v4759 = vmax.f32 %v4723, 0.0
      %v4760 = vmax.f32 %v4724, 0.0
      %v4761 = vmax.f32 %v4725, 0.0
      %v4762 = vmax.f32 %v4726, 0.0
      %v4763 = vmax.f32 %v4727, 0.0
      %v4764 = vmax.f32 %v4728, 0.0
      %v4765 = vmax.f32 %v4729, 0.0
      %v4766 = vmax.f32 %v4730, 0.0
      %v4767 = vmax.f32 %v4731, 0.0
      %v4768 = vmax.f32 %v4732, 0.0
      %v4769 = vmax.f32 %v4733, 0.0
      %v4770 = vmax.f32 %v4734, 0.0
      %v4771 = vmax.f32 %v4735, 0.0
      %v4772 = vmax.f32 %v4736, 0.0
      %v4773 = vmax.f32 %v4737, 0.0
      %v4774 = vmax.f32 %v4738, 0.0
      %v4775 = vmax.f32 %v4739, 0.0
      %v4776 = vmax.f32 %v4740, 0.0
      %v4777 = vmax.f32 %v4741, 0.0
      %v4778 = vmax.f32 %v4742, 0.0
      %v4779 = vmax.f32 %v4743, 0.0
      %v4780 = vmax.f32 %v4744, 0.0
      %v4781 = vmax.f32 %v4745, 0.0
      %v4782 = vmax.f32 %v4746, 0.0
      %v4783 = vmax.f32 %v4747, 0.0
      %v4784 = vmax.f32 %v4748, 0.0
      %v4785 = vmax.f32 %v4749, 0.0
      %v4786 = vmax.f32 %v4750, 0.0
      %v4787 = vmax.f32 %v4751, 0.0
      %v4788 = vmax.f32 %v4752, 0.0
      %v4789 = vmax.f32 %v4753, 0.0
      %4790 = vmatprep.subr.bf16.mxu0 0
      %4791 = vmatpush1.bf16.msra.mxu0 %v2244
      %4792 = vmatprep.subr.bf16.mxu0 0
      %4793 = vmatpush1.bf16.msra.mxu0 %v2245
      %4794 = vmatprep.subr.bf16.mxu0 0
      %4795 = vmatpush1.bf16.msra.mxu0 0
      %4796 = vmatprep.subr.bf16.mxu0 0
      %4797 = vmatpush1.bf16.msra.mxu0 0
      %4798 = vmatprep.subr.bf16.mxu0 0
      %4799 = vmatpush1.bf16.msra.mxu0 0
      %4800 = vmatprep.subr.bf16.mxu0 0
      %4801 = vmatpush1.bf16.msra.mxu0 0
      %4802 = vmatprep.subr.bf16.mxu0 0
      %4803 = vmatpush1.bf16.msra.mxu0 0
      %4804 = vmatprep.subr.bf16.mxu0 0
      %4805 = vmatpush1.bf16.msra.mxu0 0
      %4806 = vmatprep.subr.bf16.mxu0 0
      %4807 = vmatpush1.bf16.msra.mxu0 0
      %4808 = vmatprep.subr.bf16.mxu0 0
      %4809 = vmatpush1.bf16.msra.mxu0 0
      %4810 = vmatprep.subr.bf16.mxu0 0
      %4811 = vmatpush1.bf16.msra.mxu0 0
      %4812 = vmatprep.subr.bf16.mxu0 0
      %4813 = vmatpush1.bf16.msra.mxu0 0
      %4814 = vmatprep.subr.bf16.mxu0 0
      %4815 = vmatpush1.bf16.msra.mxu0 0
      %4816 = vmatprep.subr.bf16.mxu0 0
      %4817 = vmatpush1.bf16.msra.mxu0 0
      %4818 = vmatprep.subr.bf16.mxu0 0
      %4819 = vmatpush1.bf16.msra.mxu0 0
      %4820 = vmatprep.subr.bf16.mxu0 0
      %4821 = vmatpush1.bf16.msra.mxu0 0
      %4822 = vmatprep.mubr.bf16.mxu0 0
      %4823 = vmatmul.mubr.bf16.gmra.mrb[0].mxu0 %v3309
      %v4824 = vpop.f32.mrb[0].mxu0
      %v4825 = vadd.f32 0.0, %v4824
      %v4826 = vpop.f32.mrb[0].mxu0
      %v4827 = vpop.f32.mrb[0].mxu0
      %v4828 = vadd.f32 0.0, %v4827
      %v4829 = vpop.f32.mrb[0].mxu0
      %4830 = vmatprep.mubr.bf16.mxu0 0
      %4831 = vmatmul.mubr.bf16.gmra.mrb[0].mxu0 %v3312
      %v4832 = vpop.f32.mrb[0].mxu0
      %v4833 = vadd.f32 0.0, %v4832
      %v4834 = vpop.f32.mrb[0].mxu0
      %v4835 = vpop.f32.mrb[0].mxu0
      %v4836 = vadd.f32 0.0, %v4835
      %v4837 = vpop.f32.mrb[0].mxu0
      %4838 = vmatprep.mubr.bf16.mxu0 0
      %4839 = vmatmul.mubr.bf16.gmra.mrb[0].mxu0 %v3315
      %v4840 = vpop.f32.mrb[0].mxu0
      %v4841 = vadd.f32 0.0, %v4840
      %v4842 = vpop.f32.mrb[0].mxu0
      %v4843 = vpop.f32.mrb[0].mxu0
      %v4844 = vadd.f32 0.0, %v4843
      %v4845 = vpop.f32.mrb[0].mxu0
      %4846 = vmatprep.mubr.bf16.mxu0 0
      %4847 = vmatmul.mubr.bf16.gmra.mrb[0].mxu0 %v3318
      %v4848 = vpop.f32.mrb[0].mxu0
      %v4849 = vadd.f32 0.0, %v4848
      %v4850 = vpop.f32.mrb[0].mxu0
      %v4851 = vpop.f32.mrb[0].mxu0
      %v4852 = vadd.f32 0.0, %v4851
      %v4853 = vpop.f32.mrb[0].mxu0
      %4854 = vmatprep.mubr.bf16.mxu0 0
      %4855 = vmatmul.mubr.bf16.gmra.mrb[0].mxu0 %v3321
      %v4856 = vpop.f32.mrb[0].mxu0
      %v4857 = vadd.f32 0.0, %v4856
      %v4858 = vpop.f32.mrb[0].mxu0
      %v4859 = vpop.f32.mrb[0].mxu0
      %v4860 = vadd.f32 0.0, %v4859
      %v4861 = vpop.f32.mrb[0].mxu0
      %4862 = vmatprep.mubr.bf16.mxu0 0
      %4863 = vmatmul.mubr.bf16.gmra.mrb[0].mxu0 %v3324
      %v4864 = vpop.f32.mrb[0].mxu0
      %v4865 = vadd.f32 0.0, %v4864
      %v4866 = vpop.f32.mrb[0].mxu0
      %v4867 = vpop.f32.mrb[0].mxu0
      %v4868 = vadd.f32 0.0, %v4867
      %v4869 = vpop.f32.mrb[0].mxu0
      %4870 = vmatprep.mubr.bf16.mxu0 0
      %4871 = vmatmul.mubr.bf16.gmra.mrb[0].mxu0 %v3327
      %v4872 = vpop.f32.mrb[0].mxu0
      %v4873 = vadd.f32 0.0, %v4872
      %v4874 = vpop.f32.mrb[0].mxu0
      %v4875 = vpop.f32.mrb[0].mxu0
      %v4876 = vadd.f32 0.0, %v4875
      %v4877 = vpop.f32.mrb[0].mxu0
      %4878 = vmatprep.mubr.bf16.mxu0 0
      %4879 = vmatmul.mubr.bf16.gmra.mrb[0].mxu0 %v3330
      %v4880 = vpop.f32.mrb[0].mxu0
      %v4881 = vadd.f32 0.0, %v4880
      %v4882 = vpop.f32.mrb[0].mxu0
      %v4883 = vpop.f32.mrb[0].mxu0
      %v4884 = vadd.f32 0.0, %v4883
      %v4885 = vpop.f32.mrb[0].mxu0
      %4886 = vmatprep.mubr.bf16.mxu0 0
      %4887 = vmatmul.mubr.bf16.gmra.mrb[0].mxu0 %v3333
      %v4888 = vpop.f32.mrb[0].mxu0
      %v4889 = vadd.f32 0.0, %v4888
      %v4890 = vpop.f32.mrb[0].mxu0
      %v4891 = vpop.f32.mrb[0].mxu0
      %v4892 = vadd.f32 0.0, %v4891
      %v4893 = vpop.f32.mrb[0].mxu0
      %4894 = vmatprep.mubr.bf16.mxu0 0
      %4895 = vmatmul.mubr.bf16.gmra.mrb[0].mxu0 %v3336
      %v4896 = vpop.f32.mrb[0].mxu0
      %v4897 = vadd.f32 0.0, %v4896
      %v4898 = vpop.f32.mrb[0].mxu0
      %v4899 = vpop.f32.mrb[0].mxu0
      %v4900 = vadd.f32 0.0, %v4899
      %v4901 = vpop.f32.mrb[0].mxu0
      %4902 = vmatprep.mubr.bf16.mxu0 0
      %4903 = vmatmul.mubr.bf16.gmra.mrb[0].mxu0 %v3339
      %v4904 = vpop.f32.mrb[0].mxu0
      %v4905 = vadd.f32 0.0, %v4904
      %v4906 = vpop.f32.mrb[0].mxu0
      %v4907 = vpop.f32.mrb[0].mxu0
      %v4908 = vadd.f32 0.0, %v4907
      %v4909 = vpop.f32.mrb[0].mxu0
      %4910 = vmatprep.mubr.bf16.mxu0 0
      %4911 = vmatmul.mubr.bf16.gmra.mrb[0].mxu0 %v3342
      %v4912 = vpop.f32.mrb[0].mxu0
      %v4913 = vadd.f32 0.0, %v4912
      %v4914 = vpop.f32.mrb[0].mxu0
      %v4915 = vpop.f32.mrb[0].mxu0
      %v4916 = vadd.f32 0.0, %v4915
      %v4917 = vpop.f32.mrb[0].mxu0
      %4918 = vmatprep.mubr.bf16.mxu0 0
      %4919 = vmatmul.mubr.bf16.gmra.mrb[0].mxu0 %v3345
      %v4920 = vpop.f32.mrb[0].mxu0
      %v4921 = vadd.f32 0.0, %v4920
      %v4922 = vpop.f32.mrb[0].mxu0
      %v4923 = vpop.f32.mrb[0].mxu0
      %v4924 = vadd.f32 0.0, %v4923
      %v4925 = vpop.f32.mrb[0].mxu0
      %4926 = vmatprep.mubr.bf16.mxu0 0
      %4927 = vmatmul.mubr.bf16.gmra.mrb[0].mxu0 %v3348
      %v4928 = vpop.f32.mrb[0].mxu0
      %v4929 = vadd.f32 0.0, %v4928
      %v4930 = vpop.f32.mrb[0].mxu0
      %v4931 = vpop.f32.mrb[0].mxu0
      %v4932 = vadd.f32 0.0, %v4931
      %v4933 = vpop.f32.mrb[0].mxu0
      %4934 = vmatprep.mubr.bf16.mxu0 0
      %4935 = vmatmul.mubr.bf16.gmra.mrb[0].mxu0 %v3351
      %v4936 = vpop.f32.mrb[0].mxu0
      %v4937 = vadd.f32 0.0, %v4936
      %v4938 = vpop.f32.mrb[0].mxu0
      %v4939 = vpop.f32.mrb[0].mxu0
      %v4940 = vadd.f32 0.0, %v4939
      %v4941 = vpop.f32.mrb[0].mxu0
      %4942 = vmatprep.mubr.bf16.mxu0 0
      %4943 = vmatmul.mubr.bf16.gmra.mrb[0].mxu0 %v3354
      %v4944 = vpop.f32.mrb[0].mxu0
      %v4945 = vadd.f32 0.0, %v4944
      %v4946 = vpop.f32.mrb[0].mxu0
      %v4947 = vpop.f32.mrb[0].mxu0
      %v4948 = vadd.f32 0.0, %v4947
      %v4949 = vpop.f32.mrb[0].mxu0
      %4950 = vmatprep.mubr.bf16.mxu0 0
      %4951 = vmatmul.mubr.bf16.gmra.mrb[0].mxu0 %v3357
      %v4952 = vpop.f32.mrb[0].mxu0
      %v4953 = vadd.f32 0.0, %v4952
      %v4954 = vpop.f32.mrb[0].mxu0
      %v4955 = vpop.f32.mrb[0].mxu0
      %v4956 = vadd.f32 0.0, %v4955
      %v4957 = vpop.f32.mrb[0].mxu0
      %4958 = vmatprep.mubr.bf16.mxu0 0
      %4959 = vmatmul.mubr.bf16.gmra.mrb[0].mxu0 %v3360
      %v4960 = vpop.f32.mrb[0].mxu0
      %v4961 = vadd.f32 0.0, %v4960
      %v4962 = vpop.f32.mrb[0].mxu0
      %v4963 = vpop.f32.mrb[0].mxu0
      %v4964 = vadd.f32 0.0, %v4963
      %v4965 = vpop.f32.mrb[0].mxu0
      %4966 = vdwg.mxu0
      %4967 = vmatprep.subr.bf16.mxu0 0
      %4968 = vmatpush1.bf16.msra.mxu0 %v2488
      %4969 = vmatprep.subr.bf16.mxu0 0
      %4970 = vmatpush1.bf16.msra.mxu0 %v2489
      %4971 = vmatprep.subr.bf16.mxu0 0
      %4972 = vmatpush1.bf16.msra.mxu0 0
      %4973 = vmatprep.subr.bf16.mxu0 0
      %4974 = vmatpush1.bf16.msra.mxu0 0
      %4975 = vmatprep.subr.bf16.mxu0 0
      %4976 = vmatpush1.bf16.msra.mxu0 0
      %4977 = vmatprep.subr.bf16.mxu0 0
      %4978 = vmatpush1.bf16.msra.mxu0 0
      %4979 = vmatprep.subr.bf16.mxu0 0
      %4980 = vmatpush1.bf16.msra.mxu0 0
      %4981 = vmatprep.subr.bf16.mxu0 0
      %4982 = vmatpush1.bf16.msra.mxu0 0
      %4983 = vmatprep.subr.bf16.mxu0 0
      %4984 = vmatpush1.bf16.msra.mxu0 0
      %4985 = vmatprep.subr.bf16.mxu0 0
      %4986 = vmatpush1.bf16.msra.mxu0 0
      %4987 = vmatprep.subr.bf16.mxu0 0
      %4988 = vmatpush1.bf16.msra.mxu0 0
      %4989 = vmatprep.subr.bf16.mxu0 0
      %4990 = vmatpush1.bf16.msra.mxu0 0
      %4991 = vmatprep.subr.bf16.mxu0 0
      %4992 = vmatpush1.bf16.msra.mxu0 0
      %4993 = vmatprep.subr.bf16.mxu0 0
      %4994 = vmatpush1.bf16.msra.mxu0 0
      %4995 = vmatprep.subr.bf16.mxu0 0
      %4996 = vmatpush1.bf16.msra.mxu0 0
      %4997 = vmatprep.subr.bf16.mxu0 0
      %4998 = vmatpush1.bf16.msra.mxu0 0
      %4999 = vmatprep.mubr.bf16.mxu0 0
      %5000 = vmatmul.mubr.bf16.gmra.mrb[0].mxu0 %v3025
      %v5001 = vpop.f32.mrb[0].mxu0
      %v5002 = vadd.f32 %v4825, %v5001
      %v5003 = vpop.f32.mrb[0].mxu0
      %v5004 = vpop.f32.mrb[0].mxu0
      %v5005 = vadd.f32 %v4828, %v5004
      %v5006 = vpop.f32.mrb[0].mxu0
      %5007 = vmatprep.mubr.bf16.mxu0 0
      %5008 = vmatmul.mubr.bf16.gmra.mrb[0].mxu0 %v3028
      %v5009 = vpop.f32.mrb[0].mxu0
      %v5010 = vadd.f32 %v4833, %v5009
      %v5011 = vpop.f32.mrb[0].mxu0
      %v5012 = vpop.f32.mrb[0].mxu0
      %v5013 = vadd.f32 %v4836, %v5012
      %v5014 = vpop.f32.mrb[0].mxu0
      %5015 = vmatprep.mubr.bf16.mxu0 0
      %5016 = vmatmul.mubr.bf16.gmra.mrb[0].mxu0 %v3031
      %v5017 = vpop.f32.mrb[0].mxu0
      %v5018 = vadd.f32 %v4841, %v5017
      %v5019 = vpop.f32.mrb[0].mxu0
      %v5020 = vpop.f32.mrb[0].mxu0
      %v5021 = vadd.f32 %v4844, %v5020
      %v5022 = vpop.f32.mrb[0].mxu0
      %5023 = vmatprep.mubr.bf16.mxu0 0
      %5024 = vmatmul.mubr.bf16.gmra.mrb[0].mxu0 %v3034
      %v5025 = vpop.f32.mrb[0].mxu0
      %v5026 = vadd.f32 %v4849, %v5025
      %v5027 = vpop.f32.mrb[0].mxu0
      %v5028 = vpop.f32.mrb[0].mxu0
      %v5029 = vadd.f32 %v4852, %v5028
      %v5030 = vpop.f32.mrb[0].mxu0
      %5031 = vmatprep.mubr.bf16.mxu0 0
      %5032 = vmatmul.mubr.bf16.gmra.mrb[0].mxu0 %v3037
      %v5033 = vpop.f32.mrb[0].mxu0
      %v5034 = vadd.f32 %v4857, %v5033
      %v5035 = vpop.f32.mrb[0].mxu0
      %v5036 = vpop.f32.mrb[0].mxu0
      %v5037 = vadd.f32 %v4860, %v5036
      %v5038 = vpop.f32.mrb[0].mxu0
      %5039 = vmatprep.mubr.bf16.mxu0 0
      %5040 = vmatmul.mubr.bf16.gmra.mrb[0].mxu0 %v3040
      %v5041 = vpop.f32.mrb[0].mxu0
      %v5042 = vadd.f32 %v4865, %v5041
      %v5043 = vpop.f32.mrb[0].mxu0
      %v5044 = vpop.f32.mrb[0].mxu0
      %v5045 = vadd.f32 %v4868, %v5044
      %v5046 = vpop.f32.mrb[0].mxu0
      %5047 = vmatprep.mubr.bf16.mxu0 0
      %5048 = vmatmul.mubr.bf16.gmra.mrb[0].mxu0 %v3043
      %v5049 = vpop.f32.mrb[0].mxu0
      %v5050 = vadd.f32 %v4873, %v5049
      %v5051 = vpop.f32.mrb[0].mxu0
      %v5052 = vpop.f32.mrb[0].mxu0
      %v5053 = vadd.f32 %v4876, %v5052
      %v5054 = vpop.f32.mrb[0].mxu0
      %5055 = vmatprep.mubr.bf16.mxu0 0
      %5056 = vmatmul.mubr.bf16.gmra.mrb[0].mxu0 %v3046
      %v5057 = vpop.f32.mrb[0].mxu0
      %v5058 = vadd.f32 %v4881, %v5057
      %v5059 = vpop.f32.mrb[0].mxu0
      %v5060 = vpop.f32.mrb[0].mxu0
      %v5061 = vadd.f32 %v4884, %v5060
      %v5062 = vpop.f32.mrb[0].mxu0
      %5063 = vmatprep.mubr.bf16.mxu0 0
      %5064 = vmatmul.mubr.bf16.gmra.mrb[0].mxu0 %v3049
      %v5065 = vpop.f32.mrb[0].mxu0
      %v5066 = vadd.f32 %v4889, %v5065
      %v5067 = vpop.f32.mrb[0].mxu0
      %v5068 = vpop.f32.mrb[0].mxu0
      %v5069 = vadd.f32 %v4892, %v5068
      %v5070 = vpop.f32.mrb[0].mxu0
      %5071 = vmatprep.mubr.bf16.mxu0 0
      %5072 = vmatmul.mubr.bf16.gmra.mrb[0].mxu0 %v3052
      %v5073 = vpop.f32.mrb[0].mxu0
      %v5074 = vadd.f32 %v4897, %v5073
      %v5075 = vpop.f32.mrb[0].mxu0
      %v5076 = vpop.f32.mrb[0].mxu0
      %v5077 = vadd.f32 %v4900, %v5076
      %v5078 = vpop.f32.mrb[0].mxu0
      %5079 = vmatprep.mubr.bf16.mxu0 0
      %5080 = vmatmul.mubr.bf16.gmra.mrb[0].mxu0 %v3055
      %v5081 = vpop.f32.mrb[0].mxu0
      %v5082 = vadd.f32 %v4905, %v5081
      %v5083 = vpop.f32.mrb[0].mxu0
      %v5084 = vpop.f32.mrb[0].mxu0
      %v5085 = vadd.f32 %v4908, %v5084
      %v5086 = vpop.f32.mrb[0].mxu0
      %5087 = vmatprep.mubr.bf16.mxu0 0
      %5088 = vmatmul.mubr.bf16.gmra.mrb[0].mxu0 %v3058
      %v5089 = vpop.f32.mrb[0].mxu0
      %v5090 = vadd.f32 %v4913, %v5089
      %v5091 = vpop.f32.mrb[0].mxu0
      %v5092 = vpop.f32.mrb[0].mxu0
      %v5093 = vadd.f32 %v4916, %v5092
      %v5094 = vpop.f32.mrb[0].mxu0
      %5095 = vmatprep.mubr.bf16.mxu0 0
      %5096 = vmatmul.mubr.bf16.gmra.mrb[0].mxu0 %v3061
      %v5097 = vpop.f32.mrb[0].mxu0
      %v5098 = vadd.f32 %v4921, %v5097
      %v5099 = vpop.f32.mrb[0].mxu0
      %v5100 = vpop.f32.mrb[0].mxu0
      %v5101 = vadd.f32 %v4924, %v5100
      %v5102 = vpop.f32.mrb[0].mxu0
      %5103 = vmatprep.mubr.bf16.mxu0 0
      %5104 = vmatmul.mubr.bf16.gmra.mrb[0].mxu0 %v3064
      %v5105 = vpop.f32.mrb[0].mxu0
      %v5106 = vadd.f32 %v4929, %v5105
      %v5107 = vpop.f32.mrb[0].mxu0
      %v5108 = vpop.f32.mrb[0].mxu0
      %v5109 = vadd.f32 %v4932, %v5108
      %v5110 = vpop.f32.mrb[0].mxu0
      %5111 = vmatprep.mubr.bf16.mxu0 0
      %5112 = vmatmul.mubr.bf16.gmra.mrb[0].mxu0 %v3067
      %v5113 = vpop.f32.mrb[0].mxu0
      %v5114 = vadd.f32 %v4937, %v5113
      %v5115 = vpop.f32.mrb[0].mxu0
      %v5116 = vpop.f32.mrb[0].mxu0
      %v5117 = vadd.f32 %v4940, %v5116
      %v5118 = vpop.f32.mrb[0].mxu0
      %5119 = vmatprep.mubr.bf16.mxu0 0
      %5120 = vmatmul.mubr.bf16.gmra.mrb[0].mxu0 %v3070
      %v5121 = vpop.f32.mrb[0].mxu0
      %v5122 = vadd.f32 %v4945, %v5121
      %v5123 = vpop.f32.mrb[0].mxu0
      %v5124 = vpop.f32.mrb[0].mxu0
      %v5125 = vadd.f32 %v4948, %v5124
      %v5126 = vpop.f32.mrb[0].mxu0
      %5127 = vmatprep.mubr.bf16.mxu0 0
      %5128 = vmatmul.mubr.bf16.gmra.mrb[0].mxu0 %v3073
      %v5129 = vpop.f32.mrb[0].mxu0
      %v5130 = vadd.f32 %v4953, %v5129
      %v5131 = vpop.f32.mrb[0].mxu0
      %v5132 = vpop.f32.mrb[0].mxu0
      %v5133 = vadd.f32 %v4956, %v5132
      %v5134 = vpop.f32.mrb[0].mxu0
      %5135 = vmatprep.mubr.bf16.mxu0 0
      %5136 = vmatmul.mubr.bf16.gmra.mrb[0].mxu0 %v3076
      %v5137 = vpop.f32.mrb[0].mxu0
      %v5138 = vadd.f32 %v4961, %v5137
      %v5139 = vpop.f32.mrb[0].mxu0
      %v5140 = vpop.f32.mrb[0].mxu0
      %v5141 = vadd.f32 %v4964, %v5140
      %v5142 = vpop.f32.mrb[0].mxu0
      %5143 = vdwg.mxu0
      %5144 = vmatprep.subr.bf16.mxu0 0
      %5145 = vmatpush1.bf16.msra.mxu0 %v2736
      %5146 = vmatprep.subr.bf16.mxu0 0
      %5147 = vmatpush1.bf16.msra.mxu0 %v2737
      %5148 = vmatprep.subr.bf16.mxu0 0
      %5149 = vmatpush1.bf16.msra.mxu0 0
      %5150 = vmatprep.subr.bf16.mxu0 0
      %5151 = vmatpush1.bf16.msra.mxu0 0
      %5152 = vmatprep.subr.bf16.mxu0 0
      %5153 = vmatpush1.bf16.msra.mxu0 0
      %5154 = vmatprep.subr.bf16.mxu0 0
      %5155 = vmatpush1.bf16.msra.mxu0 0
      %5156 = vmatprep.subr.bf16.mxu0 0
      %5157 = vmatpush1.bf16.msra.mxu0 0
      %5158 = vmatprep.subr.bf16.mxu0 0
      %5159 = vmatpush1.bf16.msra.mxu0 0
      %5160 = vmatprep.subr.bf16.mxu0 0
      %5161 = vmatpush1.bf16.msra.mxu0 0
      %5162 = vmatprep.subr.bf16.mxu0 0
      %5163 = vmatpush1.bf16.msra.mxu0 0
      %5164 = vmatprep.subr.bf16.mxu0 0
      %5165 = vmatpush1.bf16.msra.mxu0 0
      %5166 = vmatprep.subr.bf16.mxu0 0
      %5167 = vmatpush1.bf16.msra.mxu0 0
      %5168 = vmatprep.subr.bf16.mxu0 0
      %5169 = vmatpush1.bf16.msra.mxu0 0
      %5170 = vmatprep.subr.bf16.mxu0 0
      %5171 = vmatpush1.bf16.msra.mxu0 0
      %5172 = vmatprep.subr.bf16.mxu0 0
      %5173 = vmatpush1.bf16.msra.mxu0 0
      %5174 = vmatprep.subr.bf16.mxu0 0
      %5175 = vmatpush1.bf16.msra.mxu0 0
      %5176 = vmatprep.mubr.bf16.mxu0 0
      %5177 = vmatmul.mubr.bf16.gmra.mrb[0].mxu0 %v3593
      %v5178 = vpop.f32.mrb[0].mxu0
      %v5179 = vadd.f32 0.0, %v5178
      %v5180 = vpop.f32.mrb[0].mxu0
      %v5181 = vpop.f32.mrb[0].mxu0
      %v5182 = vadd.f32 0.0, %v5181
      %v5183 = vpop.f32.mrb[0].mxu0
      %5184 = vmatprep.mubr.bf16.mxu0 0
      %5185 = vmatmul.mubr.bf16.gmra.mrb[0].mxu0 %v3596
      %v5186 = vpop.f32.mrb[0].mxu0
      %v5187 = vadd.f32 0.0, %v5186
      %v5188 = vpop.f32.mrb[0].mxu0
      %v5189 = vpop.f32.mrb[0].mxu0
      %v5190 = vadd.f32 0.0, %v5189
      %v5191 = vpop.f32.mrb[0].mxu0
      %5192 = vmatprep.mubr.bf16.mxu0 0
      %5193 = vmatmul.mubr.bf16.gmra.mrb[0].mxu0 %v3599
      %v5194 = vpop.f32.mrb[0].mxu0
      %v5195 = vadd.f32 0.0, %v5194
      %v5196 = vpop.f32.mrb[0].mxu0
      %v5197 = vpop.f32.mrb[0].mxu0
      %v5198 = vadd.f32 0.0, %v5197
      %v5199 = vpop.f32.mrb[0].mxu0
      %5200 = vmatprep.mubr.bf16.mxu0 0
      %5201 = vmatmul.mubr.bf16.gmra.mrb[0].mxu0 %v3602
      %v5202 = vpop.f32.mrb[0].mxu0
      %v5203 = vadd.f32 0.0, %v5202
      %v5204 = vpop.f32.mrb[0].mxu0
      %v5205 = vpop.f32.mrb[0].mxu0
      %v5206 = vadd.f32 0.0, %v5205
      %v5207 = vpop.f32.mrb[0].mxu0
      %5208 = vmatprep.mubr.bf16.mxu0 0
      %5209 = vmatmul.mubr.bf16.gmra.mrb[0].mxu0 %v3605
      %v5210 = vpop.f32.mrb[0].mxu0
      %v5211 = vadd.f32 0.0, %v5210
      %v5212 = vpop.f32.mrb[0].mxu0
      %v5213 = vpop.f32.mrb[0].mxu0
      %v5214 = vadd.f32 0.0, %v5213
      %v5215 = vpop.f32.mrb[0].mxu0
      %5216 = vmatprep.mubr.bf16.mxu0 0
      %5217 = vmatmul.mubr.bf16.gmra.mrb[0].mxu0 %v3608
      %v5218 = vpop.f32.mrb[0].mxu0
      %v5219 = vadd.f32 0.0, %v5218
      %v5220 = vpop.f32.mrb[0].mxu0
      %v5221 = vpop.f32.mrb[0].mxu0
      %v5222 = vadd.f32 0.0, %v5221
      %v5223 = vpop.f32.mrb[0].mxu0
      %5224 = vmatprep.mubr.bf16.mxu0 0
      %5225 = vmatmul.mubr.bf16.gmra.mrb[0].mxu0 %v3611
      %v5226 = vpop.f32.mrb[0].mxu0
      %v5227 = vadd.f32 0.0, %v5226
      %v5228 = vpop.f32.mrb[0].mxu0
      %v5229 = vpop.f32.mrb[0].mxu0
      %v5230 = vadd.f32 0.0, %v5229
      %v5231 = vpop.f32.mrb[0].mxu0
      %5232 = vmatprep.mubr.bf16.mxu0 0
      %5233 = vmatmul.mubr.bf16.gmra.mrb[0].mxu0 %v3614
      %v5234 = vpop.f32.mrb[0].mxu0
      %v5235 = vadd.f32 0.0, %v5234
      %v5236 = vpop.f32.mrb[0].mxu0
      %v5237 = vpop.f32.mrb[0].mxu0
      %v5238 = vadd.f32 0.0, %v5237
      %v5239 = vpop.f32.mrb[0].mxu0
      %5240 = vmatprep.mubr.bf16.mxu0 0
      %5241 = vmatmul.mubr.bf16.gmra.mrb[0].mxu0 %v3617
      %v5242 = vpop.f32.mrb[0].mxu0
      %v5243 = vadd.f32 0.0, %v5242
      %v5244 = vpop.f32.mrb[0].mxu0
      %v5245 = vpop.f32.mrb[0].mxu0
      %v5246 = vadd.f32 0.0, %v5245
      %v5247 = vpop.f32.mrb[0].mxu0
      %5248 = vmatprep.mubr.bf16.mxu0 0
      %5249 = vmatmul.mubr.bf16.gmra.mrb[0].mxu0 %v3620
      %v5250 = vpop.f32.mrb[0].mxu0
      %v5251 = vadd.f32 0.0, %v5250
      %v5252 = vpop.f32.mrb[0].mxu0
      %v5253 = vpop.f32.mrb[0].mxu0
      %v5254 = vadd.f32 0.0, %v5253
      %v5255 = vpop.f32.mrb[0].mxu0
      %5256 = vmatprep.mubr.bf16.mxu0 0
      %5257 = vmatmul.mubr.bf16.gmra.mrb[0].mxu0 %v3623
      %v5258 = vpop.f32.mrb[0].mxu0
      %v5259 = vadd.f32 0.0, %v5258
      %v5260 = vpop.f32.mrb[0].mxu0
      %v5261 = vpop.f32.mrb[0].mxu0
      %v5262 = vadd.f32 0.0, %v5261
      %v5263 = vpop.f32.mrb[0].mxu0
      %5264 = vmatprep.mubr.bf16.mxu0 0
      %5265 = vmatmul.mubr.bf16.gmra.mrb[0].mxu0 %v3626
      %v5266 = vpop.f32.mrb[0].mxu0
      %v5267 = vadd.f32 0.0, %v5266
      %v5268 = vpop.f32.mrb[0].mxu0
      %v5269 = vpop.f32.mrb[0].mxu0
      %v5270 = vadd.f32 0.0, %v5269
      %v5271 = vpop.f32.mrb[0].mxu0
      %5272 = vmatprep.mubr.bf16.mxu0 0
      %5273 = vmatmul.mubr.bf16.gmra.mrb[0].mxu0 %v3629
      %v5274 = vpop.f32.mrb[0].mxu0
      %v5275 = vadd.f32 0.0, %v5274
      %v5276 = vpop.f32.mrb[0].mxu0
      %v5277 = vpop.f32.mrb[0].mxu0
      %v5278 = vadd.f32 0.0, %v5277
      %v5279 = vpop.f32.mrb[0].mxu0
      %5280 = vmatprep.mubr.bf16.mxu0 0
      %5281 = vmatmul.mubr.bf16.gmra.mrb[0].mxu0 %v3632
      %v5282 = vpop.f32.mrb[0].mxu0
      %v5283 = vadd.f32 0.0, %v5282
      %v5284 = vpop.f32.mrb[0].mxu0
      %v5285 = vpop.f32.mrb[0].mxu0
      %v5286 = vadd.f32 0.0, %v5285
      %v5287 = vpop.f32.mrb[0].mxu0
      %5288 = vmatprep.mubr.bf16.mxu0 0
      %5289 = vmatmul.mubr.bf16.gmra.mrb[0].mxu0 %v3635
      %v5290 = vpop.f32.mrb[0].mxu0
      %v5291 = vadd.f32 0.0, %v5290
      %v5292 = vpop.f32.mrb[0].mxu0
      %v5293 = vpop.f32.mrb[0].mxu0
      %v5294 = vadd.f32 0.0, %v5293
      %v5295 = vpop.f32.mrb[0].mxu0
      %5296 = vmatprep.mubr.bf16.mxu0 0
      %5297 = vmatmul.mubr.bf16.gmra.mrb[0].mxu0 %v3638
      %v5298 = vpop.f32.mrb[0].mxu0
      %v5299 = vadd.f32 0.0, %v5298
      %v5300 = vpop.f32.mrb[0].mxu0
      %v5301 = vpop.f32.mrb[0].mxu0
      %v5302 = vadd.f32 0.0, %v5301
      %v5303 = vpop.f32.mrb[0].mxu0
      %5304 = vmatprep.mubr.bf16.mxu0 0
      %5305 = vmatmul.mubr.bf16.gmra.mrb[0].mxu0 %v3641
      %v5306 = vpop.f32.mrb[0].mxu0
      %v5307 = vadd.f32 0.0, %v5306
      %v5308 = vpop.f32.mrb[0].mxu0
      %v5309 = vpop.f32.mrb[0].mxu0
      %v5310 = vadd.f32 0.0, %v5309
      %v5311 = vpop.f32.mrb[0].mxu0
      %5312 = vmatprep.mubr.bf16.mxu0 0
      %5313 = vmatmul.mubr.bf16.gmra.mrb[0].mxu0 %v3644
      %v5314 = vpop.f32.mrb[0].mxu0
      %v5315 = vadd.f32 0.0, %v5314
      %v5316 = vpop.f32.mrb[0].mxu0
      %v5317 = vpop.f32.mrb[0].mxu0
      %v5318 = vadd.f32 0.0, %v5317
      %v5319 = vpop.f32.mrb[0].mxu0
      %5320 = vdwg.mxu0
      %v5321 = vadd.f32 %v5002, %v5179
      %v5322 = vadd.f32 %v5005, %v5182
      %v5323 = vadd.f32 %v5010, %v5187
      %v5324 = vadd.f32 %v5013, %v5190
      %v5325 = vadd.f32 %v5018, %v5195
      %v5326 = vadd.f32 %v5021, %v5198
      %v5327 = vadd.f32 %v5026, %v5203
      %v5328 = vadd.f32 %v5029, %v5206
      %v5329 = vadd.f32 %v5034, %v5211
      %v5330 = vadd.f32 %v5037, %v5214
      %v5331 = vadd.f32 %v5042, %v5219
      %v5332 = vadd.f32 %v5045, %v5222
      %v5333 = vadd.f32 %v5050, %v5227
      %v5334 = vadd.f32 %v5053, %v5230
      %v5335 = vadd.f32 %v5058, %v5235
      %v5336 = vadd.f32 %v5061, %v5238
      %v5337 = vadd.f32 %v5066, %v5243
      %v5338 = vadd.f32 %v5069, %v5246
      %v5339 = vadd.f32 %v5074, %v5251
      %v5340 = vadd.f32 %v5077, %v5254
      %v5341 = vadd.f32 %v5082, %v5259
      %v5342 = vadd.f32 %v5085, %v5262
      %v5343 = vadd.f32 %v5090, %v5267
      %v5344 = vadd.f32 %v5093, %v5270
      %v5345 = vadd.f32 %v5098, %v5275
      %v5346 = vadd.f32 %v5101, %v5278
      %v5347 = vadd.f32 %v5106, %v5283
      %v5348 = vadd.f32 %v5109, %v5286
      %v5349 = vadd.f32 %v5114, %v5291
      %v5350 = vadd.f32 %v5117, %v5294
      %v5351 = vadd.f32 %v5122, %v5299
      %v5352 = vadd.f32 %v5125, %v5302
      %v5353 = vadd.f32 %v5130, %v5307
      %v5354 = vadd.f32 %v5133, %v5310
      %v5355 = vadd.f32 %v5138, %v5315
      %v5356 = vadd.f32 %v5141, %v5318
      %5357 = vmatprep.subr.bf16.mxu0 0
      %5358 = vmatpush1.bf16.msra.mxu0 %v3020
      %5359 = vmatprep.subr.bf16.mxu0 0
      %5360 = vmatpush1.bf16.msra.mxu0 %v3021
      %5361 = vmatprep.subr.bf16.mxu0 0
      %5362 = vmatpush1.bf16.msra.mxu0 0
      %5363 = vmatprep.subr.bf16.mxu0 0
      %5364 = vmatpush1.bf16.msra.mxu0 0
      %5365 = vmatprep.subr.bf16.mxu0 0
      %5366 = vmatpush1.bf16.msra.mxu0 0
      %5367 = vmatprep.subr.bf16.mxu0 0
      %5368 = vmatpush1.bf16.msra.mxu0 0
      %5369 = vmatprep.subr.bf16.mxu0 0
      %5370 = vmatpush1.bf16.msra.mxu0 0
      %5371 = vmatprep.subr.bf16.mxu0 0
      %5372 = vmatpush1.bf16.msra.mxu0 0
      %5373 = vmatprep.subr.bf16.mxu0 0
      %5374 = vmatpush1.bf16.msra.mxu0 0
      %5375 = vmatprep.subr.bf16.mxu0 0
      %5376 = vmatpush1.bf16.msra.mxu0 0
      %5377 = vmatprep.subr.bf16.mxu0 0
      %5378 = vmatpush1.bf16.msra.mxu0 0
      %5379 = vmatprep.subr.bf16.mxu0 0
      %5380 = vmatpush1.bf16.msra.mxu0 0
      %5381 = vmatprep.subr.bf16.mxu0 0
      %5382 = vmatpush1.bf16.msra.mxu0 0
      %5383 = vmatprep.subr.bf16.mxu0 0
      %5384 = vmatpush1.bf16.msra.mxu0 0
      %5385 = vmatprep.subr.bf16.mxu0 0
      %5386 = vmatpush1.bf16.msra.mxu0 0
      %5387 = vmatprep.subr.bf16.mxu0 0
      %5388 = vmatpush1.bf16.msra.mxu0 0
      %5389 = vmatprep.mubr.bf16.mxu0 0
      %5390 = vmatmul.mubr.bf16.gmra.mrb[0].mxu0 %v3877
      %v5391 = vpop.f32.mrb[0].mxu0
      %v5392 = vadd.f32 0.0, %v5391
      %v5393 = vpop.f32.mrb[0].mxu0
      %v5394 = vpop.f32.mrb[0].mxu0
      %v5395 = vadd.f32 0.0, %v5394
      %v5396 = vpop.f32.mrb[0].mxu0
      %5397 = vmatprep.mubr.bf16.mxu0 0
      %5398 = vmatmul.mubr.bf16.gmra.mrb[0].mxu0 %v3880
      %v5399 = vpop.f32.mrb[0].mxu0
      %v5400 = vadd.f32 0.0, %v5399
      %v5401 = vpop.f32.mrb[0].mxu0
      %v5402 = vpop.f32.mrb[0].mxu0
      %v5403 = vadd.f32 0.0, %v5402
      %v5404 = vpop.f32.mrb[0].mxu0
      %5405 = vmatprep.mubr.bf16.mxu0 0
      %5406 = vmatmul.mubr.bf16.gmra.mrb[0].mxu0 %v3883
      %v5407 = vpop.f32.mrb[0].mxu0
      %v5408 = vadd.f32 0.0, %v5407
      %v5409 = vpop.f32.mrb[0].mxu0
      %v5410 = vpop.f32.mrb[0].mxu0
      %v5411 = vadd.f32 0.0, %v5410
      %v5412 = vpop.f32.mrb[0].mxu0
      %5413 = vmatprep.mubr.bf16.mxu0 0
      %5414 = vmatmul.mubr.bf16.gmra.mrb[0].mxu0 %v3886
      %v5415 = vpop.f32.mrb[0].mxu0
      %v5416 = vadd.f32 0.0, %v5415
      %v5417 = vpop.f32.mrb[0].mxu0
      %v5418 = vpop.f32.mrb[0].mxu0
      %v5419 = vadd.f32 0.0, %v5418
      %v5420 = vpop.f32.mrb[0].mxu0
      %5421 = vmatprep.mubr.bf16.mxu0 0
      %5422 = vmatmul.mubr.bf16.gmra.mrb[0].mxu0 %v3889
      %v5423 = vpop.f32.mrb[0].mxu0
      %v5424 = vadd.f32 0.0, %v5423
      %v5425 = vpop.f32.mrb[0].mxu0
      %v5426 = vpop.f32.mrb[0].mxu0
      %v5427 = vadd.f32 0.0, %v5426
      %v5428 = vpop.f32.mrb[0].mxu0
      %5429 = vmatprep.mubr.bf16.mxu0 0
      %5430 = vmatmul.mubr.bf16.gmra.mrb[0].mxu0 %v3892
      %v5431 = vpop.f32.mrb[0].mxu0
      %v5432 = vadd.f32 0.0, %v5431
      %v5433 = vpop.f32.mrb[0].mxu0
      %v5434 = vpop.f32.mrb[0].mxu0
      %v5435 = vadd.f32 0.0, %v5434
      %v5436 = vpop.f32.mrb[0].mxu0
      %5437 = vmatprep.mubr.bf16.mxu0 0
      %5438 = vmatmul.mubr.bf16.gmra.mrb[0].mxu0 %v3895
      %v5439 = vpop.f32.mrb[0].mxu0
      %v5440 = vadd.f32 0.0, %v5439
      %v5441 = vpop.f32.mrb[0].mxu0
      %v5442 = vpop.f32.mrb[0].mxu0
      %v5443 = vadd.f32 0.0, %v5442
      %v5444 = vpop.f32.mrb[0].mxu0
      %5445 = vmatprep.mubr.bf16.mxu0 0
      %5446 = vmatmul.mubr.bf16.gmra.mrb[0].mxu0 %v3898
      %v5447 = vpop.f32.mrb[0].mxu0
      %v5448 = vadd.f32 0.0, %v5447
      %v5449 = vpop.f32.mrb[0].mxu0
      %v5450 = vpop.f32.mrb[0].mxu0
      %v5451 = vadd.f32 0.0, %v5450
      %v5452 = vpop.f32.mrb[0].mxu0
      %5453 = vmatprep.mubr.bf16.mxu0 0
      %5454 = vmatmul.mubr.bf16.gmra.mrb[0].mxu0 %v3901
      %v5455 = vpop.f32.mrb[0].mxu0
      %v5456 = vadd.f32 0.0, %v5455
      %v5457 = vpop.f32.mrb[0].mxu0
      %v5458 = vpop.f32.mrb[0].mxu0
      %v5459 = vadd.f32 0.0, %v5458
      %v5460 = vpop.f32.mrb[0].mxu0
      %5461 = vmatprep.mubr.bf16.mxu0 0
      %5462 = vmatmul.mubr.bf16.gmra.mrb[0].mxu0 %v3904
      %v5463 = vpop.f32.mrb[0].mxu0
      %v5464 = vadd.f32 0.0, %v5463
      %v5465 = vpop.f32.mrb[0].mxu0
      %v5466 = vpop.f32.mrb[0].mxu0
      %v5467 = vadd.f32 0.0, %v5466
      %v5468 = vpop.f32.mrb[0].mxu0
      %5469 = vmatprep.mubr.bf16.mxu0 0
      %5470 = vmatmul.mubr.bf16.gmra.mrb[0].mxu0 %v3907
      %v5471 = vpop.f32.mrb[0].mxu0
      %v5472 = vadd.f32 0.0, %v5471
      %v5473 = vpop.f32.mrb[0].mxu0
      %v5474 = vpop.f32.mrb[0].mxu0
      %v5475 = vadd.f32 0.0, %v5474
      %v5476 = vpop.f32.mrb[0].mxu0
      %5477 = vmatprep.mubr.bf16.mxu0 0
      %5478 = vmatmul.mubr.bf16.gmra.mrb[0].mxu0 %v3910
      %v5479 = vpop.f32.mrb[0].mxu0
      %v5480 = vadd.f32 0.0, %v5479
      %v5481 = vpop.f32.mrb[0].mxu0
      %v5482 = vpop.f32.mrb[0].mxu0
      %v5483 = vadd.f32 0.0, %v5482
      %v5484 = vpop.f32.mrb[0].mxu0
      %5485 = vmatprep.mubr.bf16.mxu0 0
      %5486 = vmatmul.mubr.bf16.gmra.mrb[0].mxu0 %v3913
      %v5487 = vpop.f32.mrb[0].mxu0
      %v5488 = vadd.f32 0.0, %v5487
      %v5489 = vpop.f32.mrb[0].mxu0
      %v5490 = vpop.f32.mrb[0].mxu0
      %v5491 = vadd.f32 0.0, %v5490
      %v5492 = vpop.f32.mrb[0].mxu0
      %5493 = vmatprep.mubr.bf16.mxu0 0
      %5494 = vmatmul.mubr.bf16.gmra.mrb[0].mxu0 %v3916
      %v5495 = vpop.f32.mrb[0].mxu0
      %v5496 = vadd.f32 0.0, %v5495
      %v5497 = vpop.f32.mrb[0].mxu0
      %v5498 = vpop.f32.mrb[0].mxu0
      %v5499 = vadd.f32 0.0, %v5498
      %v5500 = vpop.f32.mrb[0].mxu0
      %5501 = vmatprep.mubr.bf16.mxu0 0
      %5502 = vmatmul.mubr.bf16.gmra.mrb[0].mxu0 %v3919
      %v5503 = vpop.f32.mrb[0].mxu0
      %v5504 = vadd.f32 0.0, %v5503
      %v5505 = vpop.f32.mrb[0].mxu0
      %v5506 = vpop.f32.mrb[0].mxu0
      %v5507 = vadd.f32 0.0, %v5506
      %v5508 = vpop.f32.mrb[0].mxu0
      %5509 = vmatprep.mubr.bf16.mxu0 0
      %5510 = vmatmul.mubr.bf16.gmra.mrb[0].mxu0 %v3922
      %v5511 = vpop.f32.mrb[0].mxu0
      %v5512 = vadd.f32 0.0, %v5511
      %v5513 = vpop.f32.mrb[0].mxu0
      %v5514 = vpop.f32.mrb[0].mxu0
      %v5515 = vadd.f32 0.0, %v5514
      %v5516 = vpop.f32.mrb[0].mxu0
      %5517 = vmatprep.mubr.bf16.mxu0 0
      %5518 = vmatmul.mubr.bf16.gmra.mrb[0].mxu0 %v3925
      %v5519 = vpop.f32.mrb[0].mxu0
      %v5520 = vadd.f32 0.0, %v5519
      %v5521 = vpop.f32.mrb[0].mxu0
      %v5522 = vpop.f32.mrb[0].mxu0
      %v5523 = vadd.f32 0.0, %v5522
      %v5524 = vpop.f32.mrb[0].mxu0
      %5525 = vmatprep.mubr.bf16.mxu0 0
      %5526 = vmatmul.mubr.bf16.gmra.mrb[0].mxu0 %v3928
      %v5527 = vpop.f32.mrb[0].mxu0
      %v5528 = vadd.f32 0.0, %v5527
      %v5529 = vpop.f32.mrb[0].mxu0
      %v5530 = vpop.f32.mrb[0].mxu0
      %v5531 = vadd.f32 0.0, %v5530
      %v5532 = vpop.f32.mrb[0].mxu0
      %5533 = vdwg.mxu0
      %v5534 = vadd.f32 %v5321, %v5392
      %v5535 = vadd.f32 %v5322, %v5395
      %v5536 = vadd.f32 %v5323, %v5400
      %v5537 = vadd.f32 %v5324, %v5403
      %v5538 = vadd.f32 %v5325, %v5408
      %v5539 = vadd.f32 %v5326, %v5411
      %v5540 = vadd.f32 %v5327, %v5416
      %v5541 = vadd.f32 %v5328, %v5419
      %v5542 = vadd.f32 %v5329, %v5424
      %v5543 = vadd.f32 %v5330, %v5427
      %v5544 = vadd.f32 %v5331, %v5432
      %v5545 = vadd.f32 %v5332, %v5435
      %v5546 = vadd.f32 %v5333, %v5440
      %v5547 = vadd.f32 %v5334, %v5443
      %v5548 = vadd.f32 %v5335, %v5448
      %v5549 = vadd.f32 %v5336, %v5451
      %v5550 = vadd.f32 %v5337, %v5456
      %v5551 = vadd.f32 %v5338, %v5459
      %v5552 = vadd.f32 %v5339, %v5464
      %v5553 = vadd.f32 %v5340, %v5467
      %v5554 = vadd.f32 %v5341, %v5472
      %v5555 = vadd.f32 %v5342, %v5475
      %v5556 = vadd.f32 %v5343, %v5480
      %v5557 = vadd.f32 %v5344, %v5483
      %v5558 = vadd.f32 %v5345, %v5488
      %v5559 = vadd.f32 %v5346, %v5491
      %v5560 = vadd.f32 %v5347, %v5496
      %v5561 = vadd.f32 %v5348, %v5499
      %v5562 = vadd.f32 %v5349, %v5504
      %v5563 = vadd.f32 %v5350, %v5507
      %v5564 = vadd.f32 %v5351, %v5512
      %v5565 = vadd.f32 %v5352, %v5515
      %v5566 = vadd.f32 %v5353, %v5520
      %v5567 = vadd.f32 %v5354, %v5523
      %v5568 = vadd.f32 %v5355, %v5528
      %v5569 = vadd.f32 %v5356, %v5531
      %5570 = vmatprep.subr.bf16.mxu0 0
      %5571 = vmatpush1.bf16.msra.mxu0 %v3304
      %5572 = vmatprep.subr.bf16.mxu0 0
      %5573 = vmatpush1.bf16.msra.mxu0 %v3305
      %5574 = vmatprep.subr.bf16.mxu0 0
      %5575 = vmatpush1.bf16.msra.mxu0 0
      %5576 = vmatprep.subr.bf16.mxu0 0
      %5577 = vmatpush1.bf16.msra.mxu0 0
      %5578 = vmatprep.subr.bf16.mxu0 0
      %5579 = vmatpush1.bf16.msra.mxu0 0
      %5580 = vmatprep.subr.bf16.mxu0 0
      %5581 = vmatpush1.bf16.msra.mxu0 0
      %5582 = vmatprep.subr.bf16.mxu0 0
      %5583 = vmatpush1.bf16.msra.mxu0 0
      %5584 = vmatprep.subr.bf16.mxu0 0
      %5585 = vmatpush1.bf16.msra.mxu0 0
      %5586 = vmatprep.subr.bf16.mxu0 0
      %5587 = vmatpush1.bf16.msra.mxu0 0
      %5588 = vmatprep.subr.bf16.mxu0 0
      %5589 = vmatpush1.bf16.msra.mxu0 0
      %5590 = vmatprep.subr.bf16.mxu0 0
      %5591 = vmatpush1.bf16.msra.mxu0 0
      %5592 = vmatprep.subr.bf16.mxu0 0
      %5593 = vmatpush1.bf16.msra.mxu0 0
      %5594 = vmatprep.subr.bf16.mxu0 0
      %5595 = vmatpush1.bf16.msra.mxu0 0
      %5596 = vmatprep.subr.bf16.mxu0 0
      %5597 = vmatpush1.bf16.msra.mxu0 0
      %5598 = vmatprep.subr.bf16.mxu0 0
      %5599 = vmatpush1.bf16.msra.mxu0 0
      %5600 = vmatprep.subr.bf16.mxu0 0
      %5601 = vmatpush1.bf16.msra.mxu0 0
      %5602 = vmatprep.mubr.bf16.mxu0 0
      %5603 = vmatmul.mubr.bf16.gmra.mrb[0].mxu0 %v4161
      %v5604 = vpop.f32.mrb[0].mxu0
      %v5605 = vadd.f32 0.0, %v5604
      %v5606 = vpop.f32.mrb[0].mxu0
      %v5607 = vpop.f32.mrb[0].mxu0
      %v5608 = vadd.f32 0.0, %v5607
      %v5609 = vpop.f32.mrb[0].mxu0
      %5610 = vmatprep.mubr.bf16.mxu0 0
      %5611 = vmatmul.mubr.bf16.gmra.mrb[0].mxu0 %v4164
      %v5612 = vpop.f32.mrb[0].mxu0
      %v5613 = vadd.f32 0.0, %v5612
      %v5614 = vpop.f32.mrb[0].mxu0
      %v5615 = vpop.f32.mrb[0].mxu0
      %v5616 = vadd.f32 0.0, %v5615
      %v5617 = vpop.f32.mrb[0].mxu0
      %5618 = vmatprep.mubr.bf16.mxu0 0
      %5619 = vmatmul.mubr.bf16.gmra.mrb[0].mxu0 %v4167
      %v5620 = vpop.f32.mrb[0].mxu0
      %v5621 = vadd.f32 0.0, %v5620
      %v5622 = vpop.f32.mrb[0].mxu0
      %v5623 = vpop.f32.mrb[0].mxu0
      %v5624 = vadd.f32 0.0, %v5623
      %v5625 = vpop.f32.mrb[0].mxu0
      %5626 = vmatprep.mubr.bf16.mxu0 0
      %5627 = vmatmul.mubr.bf16.gmra.mrb[0].mxu0 %v4170
      %v5628 = vpop.f32.mrb[0].mxu0
      %v5629 = vadd.f32 0.0, %v5628
      %v5630 = vpop.f32.mrb[0].mxu0
      %v5631 = vpop.f32.mrb[0].mxu0
      %v5632 = vadd.f32 0.0, %v5631
      %v5633 = vpop.f32.mrb[0].mxu0
      %5634 = vmatprep.mubr.bf16.mxu0 0
      %5635 = vmatmul.mubr.bf16.gmra.mrb[0].mxu0 %v4173
      %v5636 = vpop.f32.mrb[0].mxu0
      %v5637 = vadd.f32 0.0, %v5636
      %v5638 = vpop.f32.mrb[0].mxu0
      %v5639 = vpop.f32.mrb[0].mxu0
      %v5640 = vadd.f32 0.0, %v5639
      %v5641 = vpop.f32.mrb[0].mxu0
      %5642 = vmatprep.mubr.bf16.mxu0 0
      %5643 = vmatmul.mubr.bf16.gmra.mrb[0].mxu0 %v4176
      %v5644 = vpop.f32.mrb[0].mxu0
      %v5645 = vadd.f32 0.0, %v5644
      %v5646 = vpop.f32.mrb[0].mxu0
      %v5647 = vpop.f32.mrb[0].mxu0
      %v5648 = vadd.f32 0.0, %v5647
      %v5649 = vpop.f32.mrb[0].mxu0
      %5650 = vmatprep.mubr.bf16.mxu0 0
      %5651 = vmatmul.mubr.bf16.gmra.mrb[0].mxu0 %v4179
      %v5652 = vpop.f32.mrb[0].mxu0
      %v5653 = vadd.f32 0.0, %v5652
      %v5654 = vpop.f32.mrb[0].mxu0
      %v5655 = vpop.f32.mrb[0].mxu0
      %v5656 = vadd.f32 0.0, %v5655
      %v5657 = vpop.f32.mrb[0].mxu0
      %5658 = vmatprep.mubr.bf16.mxu0 0
      %5659 = vmatmul.mubr.bf16.gmra.mrb[0].mxu0 %v4182
      %v5660 = vpop.f32.mrb[0].mxu0
      %v5661 = vadd.f32 0.0, %v5660
      %v5662 = vpop.f32.mrb[0].mxu0
      %v5663 = vpop.f32.mrb[0].mxu0
      %v5664 = vadd.f32 0.0, %v5663
      %v5665 = vpop.f32.mrb[0].mxu0
      %5666 = vmatprep.mubr.bf16.mxu0 0
      %5667 = vmatmul.mubr.bf16.gmra.mrb[0].mxu0 %v4185
      %v5668 = vpop.f32.mrb[0].mxu0
      %v5669 = vadd.f32 0.0, %v5668
      %v5670 = vpop.f32.mrb[0].mxu0
      %v5671 = vpop.f32.mrb[0].mxu0
      %v5672 = vadd.f32 0.0, %v5671
      %v5673 = vpop.f32.mrb[0].mxu0
      %5674 = vmatprep.mubr.bf16.mxu0 0
      %5675 = vmatmul.mubr.bf16.gmra.mrb[0].mxu0 %v4188
      %v5676 = vpop.f32.mrb[0].mxu0
      %v5677 = vadd.f32 0.0, %v5676
      %v5678 = vpop.f32.mrb[0].mxu0
      %v5679 = vpop.f32.mrb[0].mxu0
      %v5680 = vadd.f32 0.0, %v5679
      %v5681 = vpop.f32.mrb[0].mxu0
      %5682 = vmatprep.mubr.bf16.mxu0 0
      %5683 = vmatmul.mubr.bf16.gmra.mrb[0].mxu0 %v4191
      %v5684 = vpop.f32.mrb[0].mxu0
      %v5685 = vadd.f32 0.0, %v5684
      %v5686 = vpop.f32.mrb[0].mxu0
      %v5687 = vpop.f32.mrb[0].mxu0
      %v5688 = vadd.f32 0.0, %v5687
      %v5689 = vpop.f32.mrb[0].mxu0
      %5690 = vmatprep.mubr.bf16.mxu0 0
      %5691 = vmatmul.mubr.bf16.gmra.mrb[0].mxu0 %v4194
      %v5692 = vpop.f32.mrb[0].mxu0
      %v5693 = vadd.f32 0.0, %v5692
      %v5694 = vpop.f32.mrb[0].mxu0
      %v5695 = vpop.f32.mrb[0].mxu0
      %v5696 = vadd.f32 0.0, %v5695
      %v5697 = vpop.f32.mrb[0].mxu0
      %5698 = vmatprep.mubr.bf16.mxu0 0
      %5699 = vmatmul.mubr.bf16.gmra.mrb[0].mxu0 %v4197
      %v5700 = vpop.f32.mrb[0].mxu0
      %v5701 = vadd.f32 0.0, %v5700
      %v5702 = vpop.f32.mrb[0].mxu0
      %v5703 = vpop.f32.mrb[0].mxu0
      %v5704 = vadd.f32 0.0, %v5703
      %v5705 = vpop.f32.mrb[0].mxu0
      %5706 = vmatprep.mubr.bf16.mxu0 0
      %5707 = vmatmul.mubr.bf16.gmra.mrb[0].mxu0 %v4200
      %v5708 = vpop.f32.mrb[0].mxu0
      %v5709 = vadd.f32 0.0, %v5708
      %v5710 = vpop.f32.mrb[0].mxu0
      %v5711 = vpop.f32.mrb[0].mxu0
      %v5712 = vadd.f32 0.0, %v5711
      %v5713 = vpop.f32.mrb[0].mxu0
      %5714 = vmatprep.mubr.bf16.mxu0 0
      %5715 = vmatmul.mubr.bf16.gmra.mrb[0].mxu0 %v4203
      %v5716 = vpop.f32.mrb[0].mxu0
      %v5717 = vadd.f32 0.0, %v5716
      %v5718 = vpop.f32.mrb[0].mxu0
      %v5719 = vpop.f32.mrb[0].mxu0
      %v5720 = vadd.f32 0.0, %v5719
      %v5721 = vpop.f32.mrb[0].mxu0
      %5722 = vmatprep.mubr.bf16.mxu0 0
      %5723 = vmatmul.mubr.bf16.gmra.mrb[0].mxu0 %v4206
      %v5724 = vpop.f32.mrb[0].mxu0
      %v5725 = vadd.f32 0.0, %v5724
      %v5726 = vpop.f32.mrb[0].mxu0
      %v5727 = vpop.f32.mrb[0].mxu0
      %v5728 = vadd.f32 0.0, %v5727
      %v5729 = vpop.f32.mrb[0].mxu0
      %5730 = vmatprep.mubr.bf16.mxu0 0
      %5731 = vmatmul.mubr.bf16.gmra.mrb[0].mxu0 %v4209
      %v5732 = vpop.f32.mrb[0].mxu0
      %v5733 = vadd.f32 0.0, %v5732
      %v5734 = vpop.f32.mrb[0].mxu0
      %v5735 = vpop.f32.mrb[0].mxu0
      %v5736 = vadd.f32 0.0, %v5735
      %v5737 = vpop.f32.mrb[0].mxu0
      %5738 = vmatprep.mubr.bf16.mxu0 0
      %5739 = vmatmul.mubr.bf16.gmra.mrb[0].mxu0 %v4212
      %v5740 = vpop.f32.mrb[0].mxu0
      %v5741 = vadd.f32 0.0, %v5740
      %v5742 = vpop.f32.mrb[0].mxu0
      %v5743 = vpop.f32.mrb[0].mxu0
      %v5744 = vadd.f32 0.0, %v5743
      %v5745 = vpop.f32.mrb[0].mxu0
      %5746 = vdwg.mxu0
      %v5747 = vadd.f32 %v5534, %v5605
      %v5748 = vadd.f32 %v5535, %v5608
      %v5749 = vadd.f32 %v5536, %v5613
      %v5750 = vadd.f32 %v5537, %v5616
      %v5751 = vadd.f32 %v5538, %v5621
      %v5752 = vadd.f32 %v5539, %v5624
      %v5753 = vadd.f32 %v5540, %v5629
      %v5754 = vadd.f32 %v5541, %v5632
      %v5755 = vadd.f32 %v5542, %v5637
      %v5756 = vadd.f32 %v5543, %v5640
      %v5757 = vadd.f32 %v5544, %v5645
      %v5758 = vadd.f32 %v5545, %v5648
      %v5759 = vadd.f32 %v5546, %v5653
      %v5760 = vadd.f32 %v5547, %v5656
      %v5761 = vadd.f32 %v5548, %v5661
      %v5762 = vadd.f32 %v5549, %v5664
      %v5763 = vadd.f32 %v5550, %v5669
      %v5764 = vadd.f32 %v5551, %v5672
      %v5765 = vadd.f32 %v5552, %v5677
      %v5766 = vadd.f32 %v5553, %v5680
      %v5767 = vadd.f32 %v5554, %v5685
      %v5768 = vadd.f32 %v5555, %v5688
      %v5769 = vadd.f32 %v5556, %v5693
      %v5770 = vadd.f32 %v5557, %v5696
      %v5771 = vadd.f32 %v5558, %v5701
      %v5772 = vadd.f32 %v5559, %v5704
      %v5773 = vadd.f32 %v5560, %v5709
      %v5774 = vadd.f32 %v5561, %v5712
      %v5775 = vadd.f32 %v5562, %v5717
      %v5776 = vadd.f32 %v5563, %v5720
      %v5777 = vadd.f32 %v5564, %v5725
      %v5778 = vadd.f32 %v5565, %v5728
      %v5779 = vadd.f32 %v5566, %v5733
      %v5780 = vadd.f32 %v5567, %v5736
      %v5781 = vadd.f32 %v5568, %v5741
      %v5782 = vadd.f32 %v5569, %v5744
      %5783 = vmatprep.subr.bf16.mxu0 0
      %5784 = vmatpush1.bf16.msra.mxu0 %v3588
      %5785 = vmatprep.subr.bf16.mxu0 0
      %5786 = vmatpush1.bf16.msra.mxu0 %v3589
      %5787 = vmatprep.subr.bf16.mxu0 0
      %5788 = vmatpush1.bf16.msra.mxu0 0
      %5789 = vmatprep.subr.bf16.mxu0 0
      %5790 = vmatpush1.bf16.msra.mxu0 0
      %5791 = vmatprep.subr.bf16.mxu0 0
      %5792 = vmatpush1.bf16.msra.mxu0 0
      %5793 = vmatprep.subr.bf16.mxu0 0
      %5794 = vmatpush1.bf16.msra.mxu0 0
      %5795 = vmatprep.subr.bf16.mxu0 0
      %5796 = vmatpush1.bf16.msra.mxu0 0
      %5797 = vmatprep.subr.bf16.mxu0 0
      %5798 = vmatpush1.bf16.msra.mxu0 0
      %5799 = vmatprep.subr.bf16.mxu0 0
      %5800 = vmatpush1.bf16.msra.mxu0 0
      %5801 = vmatprep.subr.bf16.mxu0 0
      %5802 = vmatpush1.bf16.msra.mxu0 0
      %5803 = vmatprep.subr.bf16.mxu0 0
      %5804 = vmatpush1.bf16.msra.mxu0 0
      %5805 = vmatprep.subr.bf16.mxu0 0
      %5806 = vmatpush1.bf16.msra.mxu0 0
      %5807 = vmatprep.subr.bf16.mxu0 0
      %5808 = vmatpush1.bf16.msra.mxu0 0
      %5809 = vmatprep.subr.bf16.mxu0 0
      %5810 = vmatpush1.bf16.msra.mxu0 0
      %5811 = vmatprep.subr.bf16.mxu0 0
      %5812 = vmatpush1.bf16.msra.mxu0 0
      %5813 = vmatprep.subr.bf16.mxu0 0
      %5814 = vmatpush1.bf16.msra.mxu0 0
      %5815 = vmatprep.mubr.bf16.mxu0 0
      %5816 = vmatmul.mubr.bf16.gmra.mrb[0].mxu0 %v4445
      %v5817 = vpop.f32.mrb[0].mxu0
      %v5818 = vadd.f32 0.0, %v5817
      %v5819 = vpop.f32.mrb[0].mxu0
      %v5820 = vpop.f32.mrb[0].mxu0
      %v5821 = vadd.f32 0.0, %v5820
      %v5822 = vpop.f32.mrb[0].mxu0
      %5823 = vmatprep.mubr.bf16.mxu0 0
      %5824 = vmatmul.mubr.bf16.gmra.mrb[0].mxu0 %v4448
      %v5825 = vpop.f32.mrb[0].mxu0
      %v5826 = vadd.f32 0.0, %v5825
      %v5827 = vpop.f32.mrb[0].mxu0
      %v5828 = vpop.f32.mrb[0].mxu0
      %v5829 = vadd.f32 0.0, %v5828
      %v5830 = vpop.f32.mrb[0].mxu0
      %5831 = vmatprep.mubr.bf16.mxu0 0
      %5832 = vmatmul.mubr.bf16.gmra.mrb[0].mxu0 %v4451
      %v5833 = vpop.f32.mrb[0].mxu0
      %v5834 = vadd.f32 0.0, %v5833
      %v5835 = vpop.f32.mrb[0].mxu0
      %v5836 = vpop.f32.mrb[0].mxu0
      %v5837 = vadd.f32 0.0, %v5836
      %v5838 = vpop.f32.mrb[0].mxu0
      %5839 = vmatprep.mubr.bf16.mxu0 0
      %5840 = vmatmul.mubr.bf16.gmra.mrb[0].mxu0 %v4454
      %v5841 = vpop.f32.mrb[0].mxu0
      %v5842 = vadd.f32 0.0, %v5841
      %v5843 = vpop.f32.mrb[0].mxu0
      %v5844 = vpop.f32.mrb[0].mxu0
      %v5845 = vadd.f32 0.0, %v5844
      %v5846 = vpop.f32.mrb[0].mxu0
      %5847 = vmatprep.mubr.bf16.mxu0 0
      %5848 = vmatmul.mubr.bf16.gmra.mrb[0].mxu0 %v4457
      %v5849 = vpop.f32.mrb[0].mxu0
      %v5850 = vadd.f32 0.0, %v5849
      %v5851 = vpop.f32.mrb[0].mxu0
      %v5852 = vpop.f32.mrb[0].mxu0
      %v5853 = vadd.f32 0.0, %v5852
      %v5854 = vpop.f32.mrb[0].mxu0
      %5855 = vmatprep.mubr.bf16.mxu0 0
      %5856 = vmatmul.mubr.bf16.gmra.mrb[0].mxu0 %v4460
      %v5857 = vpop.f32.mrb[0].mxu0
      %v5858 = vadd.f32 0.0, %v5857
      %v5859 = vpop.f32.mrb[0].mxu0
      %v5860 = vpop.f32.mrb[0].mxu0
      %v5861 = vadd.f32 0.0, %v5860
      %v5862 = vpop.f32.mrb[0].mxu0
      %5863 = vmatprep.mubr.bf16.mxu0 0
      %5864 = vmatmul.mubr.bf16.gmra.mrb[0].mxu0 %v4463
      %v5865 = vpop.f32.mrb[0].mxu0
      %v5866 = vadd.f32 0.0, %v5865
      %v5867 = vpop.f32.mrb[0].mxu0
      %v5868 = vpop.f32.mrb[0].mxu0
      %v5869 = vadd.f32 0.0, %v5868
      %v5870 = vpop.f32.mrb[0].mxu0
      %5871 = vmatprep.mubr.bf16.mxu0 0
      %5872 = vmatmul.mubr.bf16.gmra.mrb[0].mxu0 %v4466
      %v5873 = vpop.f32.mrb[0].mxu0
      %v5874 = vadd.f32 0.0, %v5873
      %v5875 = vpop.f32.mrb[0].mxu0
      %v5876 = vpop.f32.mrb[0].mxu0
      %v5877 = vadd.f32 0.0, %v5876
      %v5878 = vpop.f32.mrb[0].mxu0
      %5879 = vmatprep.mubr.bf16.mxu0 0
      %5880 = vmatmul.mubr.bf16.gmra.mrb[0].mxu0 %v4469
      %v5881 = vpop.f32.mrb[0].mxu0
      %v5882 = vadd.f32 0.0, %v5881
      %v5883 = vpop.f32.mrb[0].mxu0
      %v5884 = vpop.f32.mrb[0].mxu0
      %v5885 = vadd.f32 0.0, %v5884
      %v5886 = vpop.f32.mrb[0].mxu0
      %5887 = vmatprep.mubr.bf16.mxu0 0
      %5888 = vmatmul.mubr.bf16.gmra.mrb[0].mxu0 %v4472
      %v5889 = vpop.f32.mrb[0].mxu0
      %v5890 = vadd.f32 0.0, %v5889
      %v5891 = vpop.f32.mrb[0].mxu0
      %v5892 = vpop.f32.mrb[0].mxu0
      %v5893 = vadd.f32 0.0, %v5892
      %v5894 = vpop.f32.mrb[0].mxu0
      %5895 = vmatprep.mubr.bf16.mxu0 0
      %5896 = vmatmul.mubr.bf16.gmra.mrb[0].mxu0 %v4475
      %v5897 = vpop.f32.mrb[0].mxu0
      %v5898 = vadd.f32 0.0, %v5897
      %v5899 = vpop.f32.mrb[0].mxu0
      %v5900 = vpop.f32.mrb[0].mxu0
      %v5901 = vadd.f32 0.0, %v5900
      %v5902 = vpop.f32.mrb[0].mxu0
      %5903 = vmatprep.mubr.bf16.mxu0 0
      %5904 = vmatmul.mubr.bf16.gmra.mrb[0].mxu0 %v4478
      %v5905 = vpop.f32.mrb[0].mxu0
      %v5906 = vadd.f32 0.0, %v5905
      %v5907 = vpop.f32.mrb[0].mxu0
      %v5908 = vpop.f32.mrb[0].mxu0
      %v5909 = vadd.f32 0.0, %v5908
      %v5910 = vpop.f32.mrb[0].mxu0
      %5911 = vmatprep.mubr.bf16.mxu0 0
      %5912 = vmatmul.mubr.bf16.gmra.mrb[0].mxu0 %v4481
      %v5913 = vpop.f32.mrb[0].mxu0
      %v5914 = vadd.f32 0.0, %v5913
      %v5915 = vpop.f32.mrb[0].mxu0
      %v5916 = vpop.f32.mrb[0].mxu0
      %v5917 = vadd.f32 0.0, %v5916
      %v5918 = vpop.f32.mrb[0].mxu0
      %5919 = vmatprep.mubr.bf16.mxu0 0
      %5920 = vmatmul.mubr.bf16.gmra.mrb[0].mxu0 %v4484
      %v5921 = vpop.f32.mrb[0].mxu0
      %v5922 = vadd.f32 0.0, %v5921
      %v5923 = vpop.f32.mrb[0].mxu0
      %v5924 = vpop.f32.mrb[0].mxu0
      %v5925 = vadd.f32 0.0, %v5924
      %v5926 = vpop.f32.mrb[0].mxu0
      %5927 = vmatprep.mubr.bf16.mxu0 0
      %5928 = vmatmul.mubr.bf16.gmra.mrb[0].mxu0 %v4487
      %v5929 = vpop.f32.mrb[0].mxu0
      %v5930 = vadd.f32 0.0, %v5929
      %v5931 = vpop.f32.mrb[0].mxu0
      %v5932 = vpop.f32.mrb[0].mxu0
      %v5933 = vadd.f32 0.0, %v5932
      %v5934 = vpop.f32.mrb[0].mxu0
      %5935 = vmatprep.mubr.bf16.mxu0 0
      %5936 = vmatmul.mubr.bf16.gmra.mrb[0].mxu0 %v4490
      %v5937 = vpop.f32.mrb[0].mxu0
      %v5938 = vadd.f32 0.0, %v5937
      %v5939 = vpop.f32.mrb[0].mxu0
      %v5940 = vpop.f32.mrb[0].mxu0
      %v5941 = vadd.f32 0.0, %v5940
      %v5942 = vpop.f32.mrb[0].mxu0
      %5943 = vmatprep.mubr.bf16.mxu0 0
      %5944 = vmatmul.mubr.bf16.gmra.mrb[0].mxu0 %v4493
      %v5945 = vpop.f32.mrb[0].mxu0
      %v5946 = vadd.f32 0.0, %v5945
      %v5947 = vpop.f32.mrb[0].mxu0
      %v5948 = vpop.f32.mrb[0].mxu0
      %v5949 = vadd.f32 0.0, %v5948
      %v5950 = vpop.f32.mrb[0].mxu0
      %5951 = vmatprep.mubr.bf16.mxu0 0
      %5952 = vmatmul.mubr.bf16.gmra.mrb[0].mxu0 %v4496
      %v5953 = vpop.f32.mrb[0].mxu0
      %v5954 = vadd.f32 0.0, %v5953
      %v5955 = vpop.f32.mrb[0].mxu0
      %v5956 = vpop.f32.mrb[0].mxu0
      %v5957 = vadd.f32 0.0, %v5956
      %v5958 = vpop.f32.mrb[0].mxu0
      %5959 = vdwg.mxu0
      %v5960 = vadd.f32 %v5747, %v5818
      %v5961 = vadd.f32 %v5748, %v5821
      %v5962 = vadd.f32 %v5749, %v5826
      %v5963 = vadd.f32 %v5750, %v5829
      %v5964 = vadd.f32 %v5751, %v5834
      %v5965 = vadd.f32 %v5752, %v5837
      %v5966 = vadd.f32 %v5753, %v5842
      %v5967 = vadd.f32 %v5754, %v5845
      %v5968 = vadd.f32 %v5755, %v5850
      %v5969 = vadd.f32 %v5756, %v5853
      %v5970 = vadd.f32 %v5757, %v5858
      %v5971 = vadd.f32 %v5758, %v5861
      %v5972 = vadd.f32 %v5759, %v5866
      %v5973 = vadd.f32 %v5760, %v5869
      %v5974 = vadd.f32 %v5761, %v5874
      %v5975 = vadd.f32 %v5762, %v5877
      %v5976 = vadd.f32 %v5763, %v5882
      %v5977 = vadd.f32 %v5764, %v5885
      %v5978 = vadd.f32 %v5765, %v5890
      %v5979 = vadd.f32 %v5766, %v5893
      %v5980 = vadd.f32 %v5767, %v5898
      %v5981 = vadd.f32 %v5768, %v5901
      %v5982 = vadd.f32 %v5769, %v5906
      %v5983 = vadd.f32 %v5770, %v5909
      %v5984 = vadd.f32 %v5771, %v5914
      %v5985 = vadd.f32 %v5772, %v5917
      %v5986 = vadd.f32 %v5773, %v5922
      %v5987 = vadd.f32 %v5774, %v5925
      %v5988 = vadd.f32 %v5775, %v5930
      %v5989 = vadd.f32 %v5776, %v5933
      %v5990 = vadd.f32 %v5777, %v5938
      %v5991 = vadd.f32 %v5778, %v5941
      %v5992 = vadd.f32 %v5779, %v5946
      %v5993 = vadd.f32 %v5780, %v5949
      %v5994 = vadd.f32 %v5781, %v5954
      %v5995 = vadd.f32 %v5782, %v5957
      %v5997 = vsel %vm2248, %v2149, 0
      %v6000 = vsel %vm2248, %v2150, 0
      %v6003 = vsel %vm2248, %v2151, 0
      %v6006 = vsel %vm2248, %v2152, 0
      %v6009 = vsel %vm2248, %v2153, 0
      %v6012 = vsel %vm2248, %v2154, 0
      %v6015 = vsel %vm2248, %v2155, 0
      %v6018 = vsel %vm2248, %v2156, 0
      %v6021 = vsel %vm2248, %v2157, 0
      %v6024 = vsel %vm2248, %v2158, 0
      %v6027 = vsel %vm2248, %v2159, 0
      %v6030 = vsel %vm2248, %v2160, 0
      %v6033 = vsel %vm2248, %v2161, 0
      %v6036 = vsel %vm2248, %v2162, 0
      %v6039 = vsel %vm2248, %v2163, 0
      %v6042 = vsel %vm2248, %v2164, 0
      %v6045 = vsel %vm2248, %v2165, 0
      %v6048 = vsel %vm2248, %v2166, 0
      %6050 = vmatprep.subr.bf16.mxu0 0
      %6051 = vmatpush1.bf16.msra.mxu0 %v3872
      %6052 = vmatprep.subr.bf16.mxu0 0
      %6053 = vmatpush1.bf16.msra.mxu0 %v3873
      %6054 = vmatprep.subr.bf16.mxu0 0
      %6055 = vmatpush1.bf16.msra.mxu0 0
      %6056 = vmatprep.subr.bf16.mxu0 0
      %6057 = vmatpush1.bf16.msra.mxu0 0
      %6058 = vmatprep.subr.bf16.mxu0 0
      %6059 = vmatpush1.bf16.msra.mxu0 0
      %6060 = vmatprep.subr.bf16.mxu0 0
      %6061 = vmatpush1.bf16.msra.mxu0 0
      %6062 = vmatprep.subr.bf16.mxu0 0
      %6063 = vmatpush1.bf16.msra.mxu0 0
      %6064 = vmatprep.subr.bf16.mxu0 0
      %6065 = vmatpush1.bf16.msra.mxu0 0
      %6066 = vmatprep.subr.bf16.mxu0 0
      %6067 = vmatpush1.bf16.msra.mxu0 0
      %6068 = vmatprep.subr.bf16.mxu0 0
      %6069 = vmatpush1.bf16.msra.mxu0 0
      %6070 = vmatprep.subr.bf16.mxu0 0
      %6071 = vmatpush1.bf16.msra.mxu0 0
      %6072 = vmatprep.subr.bf16.mxu0 0
      %6073 = vmatpush1.bf16.msra.mxu0 0
      %6074 = vmatprep.subr.bf16.mxu0 0
      %6075 = vmatpush1.bf16.msra.mxu0 0
      %6076 = vmatprep.subr.bf16.mxu0 0
      %6077 = vmatpush1.bf16.msra.mxu0 0
      %6078 = vmatprep.subr.bf16.mxu0 0
      %6079 = vmatpush1.bf16.msra.mxu0 0
      %6080 = vmatprep.subr.bf16.mxu0 0
      %6081 = vmatpush1.bf16.msra.mxu0 0
      %6082 = vmatprep.mubr.bf16.mxu0 0
      %6083 = vmatmul.mubr.bf16.gmra.mrb[0].mxu0 %v5997
      %v6084 = vpop.f32.mrb[0].mxu0
      %v6085 = vadd.f32 0.0, %v6084
      %v6086 = vpop.f32.mrb[0].mxu0
      %v6087 = vpop.f32.mrb[0].mxu0
      %v6088 = vadd.f32 0.0, %v6087
      %v6089 = vpop.f32.mrb[0].mxu0
      %6090 = vmatprep.mubr.bf16.mxu0 0
      %6091 = vmatmul.mubr.bf16.gmra.mrb[0].mxu0 %v6000
      %v6092 = vpop.f32.mrb[0].mxu0
      %v6093 = vadd.f32 0.0, %v6092
      %v6094 = vpop.f32.mrb[0].mxu0
      %v6095 = vpop.f32.mrb[0].mxu0
      %v6096 = vadd.f32 0.0, %v6095
      %v6097 = vpop.f32.mrb[0].mxu0
      %6098 = vmatprep.mubr.bf16.mxu0 0
      %6099 = vmatmul.mubr.bf16.gmra.mrb[0].mxu0 %v6003
      %v6100 = vpop.f32.mrb[0].mxu0
      %v6101 = vadd.f32 0.0, %v6100
      %v6102 = vpop.f32.mrb[0].mxu0
      %v6103 = vpop.f32.mrb[0].mxu0
      %v6104 = vadd.f32 0.0, %v6103
      %v6105 = vpop.f32.mrb[0].mxu0
      %6106 = vmatprep.mubr.bf16.mxu0 0
      %6107 = vmatmul.mubr.bf16.gmra.mrb[0].mxu0 %v6006
      %v6108 = vpop.f32.mrb[0].mxu0
      %v6109 = vadd.f32 0.0, %v6108
      %v6110 = vpop.f32.mrb[0].mxu0
      %v6111 = vpop.f32.mrb[0].mxu0
      %v6112 = vadd.f32 0.0, %v6111
      %v6113 = vpop.f32.mrb[0].mxu0
      %6114 = vmatprep.mubr.bf16.mxu0 0
      %6115 = vmatmul.mubr.bf16.gmra.mrb[0].mxu0 %v6009
      %v6116 = vpop.f32.mrb[0].mxu0
      %v6117 = vadd.f32 0.0, %v6116
      %v6118 = vpop.f32.mrb[0].mxu0
      %v6119 = vpop.f32.mrb[0].mxu0
      %v6120 = vadd.f32 0.0, %v6119
      %v6121 = vpop.f32.mrb[0].mxu0
      %6122 = vmatprep.mubr.bf16.mxu0 0
      %6123 = vmatmul.mubr.bf16.gmra.mrb[0].mxu0 %v6012
      %v6124 = vpop.f32.mrb[0].mxu0
      %v6125 = vadd.f32 0.0, %v6124
      %v6126 = vpop.f32.mrb[0].mxu0
      %v6127 = vpop.f32.mrb[0].mxu0
      %v6128 = vadd.f32 0.0, %v6127
      %v6129 = vpop.f32.mrb[0].mxu0
      %6130 = vmatprep.mubr.bf16.mxu0 0
      %6131 = vmatmul.mubr.bf16.gmra.mrb[0].mxu0 %v6015
      %v6132 = vpop.f32.mrb[0].mxu0
      %v6133 = vadd.f32 0.0, %v6132
      %v6134 = vpop.f32.mrb[0].mxu0
      %v6135 = vpop.f32.mrb[0].mxu0
      %v6136 = vadd.f32 0.0, %v6135
      %v6137 = vpop.f32.mrb[0].mxu0
      %6138 = vmatprep.mubr.bf16.mxu0 0
      %6139 = vmatmul.mubr.bf16.gmra.mrb[0].mxu0 %v6018
      %v6140 = vpop.f32.mrb[0].mxu0
      %v6141 = vadd.f32 0.0, %v6140
      %v6142 = vpop.f32.mrb[0].mxu0
      %v6143 = vpop.f32.mrb[0].mxu0
      %v6144 = vadd.f32 0.0, %v6143
      %v6145 = vpop.f32.mrb[0].mxu0
      %6146 = vmatprep.mubr.bf16.mxu0 0
      %6147 = vmatmul.mubr.bf16.gmra.mrb[0].mxu0 %v6021
      %v6148 = vpop.f32.mrb[0].mxu0
      %v6149 = vadd.f32 0.0, %v6148
      %v6150 = vpop.f32.mrb[0].mxu0
      %v6151 = vpop.f32.mrb[0].mxu0
      %v6152 = vadd.f32 0.0, %v6151
      %v6153 = vpop.f32.mrb[0].mxu0
      %6154 = vmatprep.mubr.bf16.mxu0 0
      %6155 = vmatmul.mubr.bf16.gmra.mrb[0].mxu0 %v6024
      %v6156 = vpop.f32.mrb[0].mxu0
      %v6157 = vadd.f32 0.0, %v6156
      %v6158 = vpop.f32.mrb[0].mxu0
      %v6159 = vpop.f32.mrb[0].mxu0
      %v6160 = vadd.f32 0.0, %v6159
      %v6161 = vpop.f32.mrb[0].mxu0
      %6162 = vmatprep.mubr.bf16.mxu0 0
      %6163 = vmatmul.mubr.bf16.gmra.mrb[0].mxu0 %v6027
      %v6164 = vpop.f32.mrb[0].mxu0
      %v6165 = vadd.f32 0.0, %v6164
      %v6166 = vpop.f32.mrb[0].mxu0
      %v6167 = vpop.f32.mrb[0].mxu0
      %v6168 = vadd.f32 0.0, %v6167
      %v6169 = vpop.f32.mrb[0].mxu0
      %6170 = vmatprep.mubr.bf16.mxu0 0
      %6171 = vmatmul.mubr.bf16.gmra.mrb[0].mxu0 %v6030
      %v6172 = vpop.f32.mrb[0].mxu0
      %v6173 = vadd.f32 0.0, %v6172
      %v6174 = vpop.f32.mrb[0].mxu0
      %v6175 = vpop.f32.mrb[0].mxu0
      %v6176 = vadd.f32 0.0, %v6175
      %v6177 = vpop.f32.mrb[0].mxu0
      %6178 = vmatprep.mubr.bf16.mxu0 0
      %6179 = vmatmul.mubr.bf16.gmra.mrb[0].mxu0 %v6033
      %v6180 = vpop.f32.mrb[0].mxu0
      %v6181 = vadd.f32 0.0, %v6180
      %v6182 = vpop.f32.mrb[0].mxu0
      %v6183 = vpop.f32.mrb[0].mxu0
      %v6184 = vadd.f32 0.0, %v6183
      %v6185 = vpop.f32.mrb[0].mxu0
      %6186 = vmatprep.mubr.bf16.mxu0 0
      %6187 = vmatmul.mubr.bf16.gmra.mrb[0].mxu0 %v6036
      %v6188 = vpop.f32.mrb[0].mxu0
      %v6189 = vadd.f32 0.0, %v6188
      %v6190 = vpop.f32.mrb[0].mxu0
      %v6191 = vpop.f32.mrb[0].mxu0
      %v6192 = vadd.f32 0.0, %v6191
      %v6193 = vpop.f32.mrb[0].mxu0
      %6194 = vmatprep.mubr.bf16.mxu0 0
      %6195 = vmatmul.mubr.bf16.gmra.mrb[0].mxu0 %v6039
      %v6196 = vpop.f32.mrb[0].mxu0
      %v6197 = vadd.f32 0.0, %v6196
      %v6198 = vpop.f32.mrb[0].mxu0
      %v6199 = vpop.f32.mrb[0].mxu0
      %v6200 = vadd.f32 0.0, %v6199
      %v6201 = vpop.f32.mrb[0].mxu0
      %6202 = vmatprep.mubr.bf16.mxu0 0
      %6203 = vmatmul.mubr.bf16.gmra.mrb[0].mxu0 %v6042
      %v6204 = vpop.f32.mrb[0].mxu0
      %v6205 = vadd.f32 0.0, %v6204
      %v6206 = vpop.f32.mrb[0].mxu0
      %v6207 = vpop.f32.mrb[0].mxu0
      %v6208 = vadd.f32 0.0, %v6207
      %v6209 = vpop.f32.mrb[0].mxu0
      %6210 = vmatprep.mubr.bf16.mxu0 0
      %6211 = vmatmul.mubr.bf16.gmra.mrb[0].mxu0 %v6045
      %v6212 = vpop.f32.mrb[0].mxu0
      %v6213 = vadd.f32 0.0, %v6212
      %v6214 = vpop.f32.mrb[0].mxu0
      %v6215 = vpop.f32.mrb[0].mxu0
      %v6216 = vadd.f32 0.0, %v6215
      %v6217 = vpop.f32.mrb[0].mxu0
      %6218 = vmatprep.mubr.bf16.mxu0 0
      %6219 = vmatmul.mubr.bf16.gmra.mrb[0].mxu0 %v6048
      %v6220 = vpop.f32.mrb[0].mxu0
      %v6221 = vadd.f32 0.0, %v6220
      %v6222 = vpop.f32.mrb[0].mxu0
      %v6223 = vpop.f32.mrb[0].mxu0
      %v6224 = vadd.f32 0.0, %v6223
      %v6225 = vpop.f32.mrb[0].mxu0
      %6226 = vdwg.mxu0
      %v6227 = vadd.f32 %v5960, %v6085
      %v6228 = vadd.f32 %v5961, %v6088
      %v6229 = vadd.f32 %v5962, %v6093
      %v6230 = vadd.f32 %v5963, %v6096
      %v6231 = vadd.f32 %v5964, %v6101
      %v6232 = vadd.f32 %v5965, %v6104
      %v6233 = vadd.f32 %v5966, %v6109
      %v6234 = vadd.f32 %v5967, %v6112
      %v6235 = vadd.f32 %v5968, %v6117
      %v6236 = vadd.f32 %v5969, %v6120
      %v6237 = vadd.f32 %v5970, %v6125
      %v6238 = vadd.f32 %v5971, %v6128
      %v6239 = vadd.f32 %v5972, %v6133
      %v6240 = vadd.f32 %v5973, %v6136
      %v6241 = vadd.f32 %v5974, %v6141
      %v6242 = vadd.f32 %v5975, %v6144
      %v6243 = vadd.f32 %v5976, %v6149
      %v6244 = vadd.f32 %v5977, %v6152
      %v6245 = vadd.f32 %v5978, %v6157
      %v6246 = vadd.f32 %v5979, %v6160
      %v6247 = vadd.f32 %v5980, %v6165
      %v6248 = vadd.f32 %v5981, %v6168
      %v6249 = vadd.f32 %v5982, %v6173
      %v6250 = vadd.f32 %v5983, %v6176
      %v6251 = vadd.f32 %v5984, %v6181
      %v6252 = vadd.f32 %v5985, %v6184
      %v6253 = vadd.f32 %v5986, %v6189
      %v6254 = vadd.f32 %v5987, %v6192
      %v6255 = vadd.f32 %v5988, %v6197
      %v6256 = vadd.f32 %v5989, %v6200
      %v6257 = vadd.f32 %v5990, %v6205
      %v6258 = vadd.f32 %v5991, %v6208
      %v6259 = vadd.f32 %v5992, %v6213
      %v6260 = vadd.f32 %v5993, %v6216
      %v6261 = vadd.f32 %v5994, %v6221
      %v6262 = vadd.f32 %v5995, %v6224
      %v6264 = vsel %vm2248, %v2181, 0
      %v6267 = vsel %vm2248, %v2182, 0
      %v6270 = vsel %vm2248, %v2183, 0
      %v6273 = vsel %vm2248, %v2184, 0
      %v6276 = vsel %vm2248, %v2185, 0
      %v6279 = vsel %vm2248, %v2186, 0
      %v6282 = vsel %vm2248, %v2187, 0
      %v6285 = vsel %vm2248, %v2188, 0
      %v6288 = vsel %vm2248, %v2189, 0
      %v6291 = vsel %vm2248, %v2190, 0
      %v6294 = vsel %vm2248, %v2191, 0
      %v6297 = vsel %vm2248, %v2192, 0
      %v6300 = vsel %vm2248, %v2193, 0
      %v6303 = vsel %vm2248, %v2194, 0
      %v6306 = vsel %vm2248, %v2195, 0
      %v6309 = vsel %vm2248, %v2196, 0
      %v6312 = vsel %vm2248, %v2197, 0
      %v6315 = vsel %vm2248, %v2198, 0
      %6317 = vmatprep.subr.bf16.mxu0 0
      %6318 = vmatpush1.bf16.msra.mxu0 %v4156
      %6319 = vmatprep.subr.bf16.mxu0 0
      %6320 = vmatpush1.bf16.msra.mxu0 %v4157
      %6321 = vmatprep.subr.bf16.mxu0 0
      %6322 = vmatpush1.bf16.msra.mxu0 0
      %6323 = vmatprep.subr.bf16.mxu0 0
      %6324 = vmatpush1.bf16.msra.mxu0 0
      %6325 = vmatprep.subr.bf16.mxu0 0
      %6326 = vmatpush1.bf16.msra.mxu0 0
      %6327 = vmatprep.subr.bf16.mxu0 0
      %6328 = vmatpush1.bf16.msra.mxu0 0
      %6329 = vmatprep.subr.bf16.mxu0 0
      %6330 = vmatpush1.bf16.msra.mxu0 0
      %6331 = vmatprep.subr.bf16.mxu0 0
      %6332 = vmatpush1.bf16.msra.mxu0 0
      %6333 = vmatprep.subr.bf16.mxu0 0
      %6334 = vmatpush1.bf16.msra.mxu0 0
      %6335 = vmatprep.subr.bf16.mxu0 0
      %6336 = vmatpush1.bf16.msra.mxu0 0
      %6337 = vmatprep.subr.bf16.mxu0 0
      %6338 = vmatpush1.bf16.msra.mxu0 0
      %6339 = vmatprep.subr.bf16.mxu0 0
      %6340 = vmatpush1.bf16.msra.mxu0 0
      %6341 = vmatprep.subr.bf16.mxu0 0
      %6342 = vmatpush1.bf16.msra.mxu0 0
      %6343 = vmatprep.subr.bf16.mxu0 0
      %6344 = vmatpush1.bf16.msra.mxu0 0
      %6345 = vmatprep.subr.bf16.mxu0 0
      %6346 = vmatpush1.bf16.msra.mxu0 0
      %6347 = vmatprep.subr.bf16.mxu0 0
      %6348 = vmatpush1.bf16.msra.mxu0 0
      %6349 = vmatprep.mubr.bf16.mxu0 0
      %6350 = vmatmul.mubr.bf16.gmra.mrb[0].mxu0 %v6264
      %v6351 = vpop.f32.mrb[0].mxu0
      %v6352 = vadd.f32 0.0, %v6351
      %v6353 = vpop.f32.mrb[0].mxu0
      %v6354 = vpop.f32.mrb[0].mxu0
      %v6355 = vadd.f32 0.0, %v6354
      %v6356 = vpop.f32.mrb[0].mxu0
      %6357 = vmatprep.mubr.bf16.mxu0 0
      %6358 = vmatmul.mubr.bf16.gmra.mrb[0].mxu0 %v6267
      %v6359 = vpop.f32.mrb[0].mxu0
      %v6360 = vadd.f32 0.0, %v6359
      %v6361 = vpop.f32.mrb[0].mxu0
      %v6362 = vpop.f32.mrb[0].mxu0
      %v6363 = vadd.f32 0.0, %v6362
      %v6364 = vpop.f32.mrb[0].mxu0
      %6365 = vmatprep.mubr.bf16.mxu0 0
      %6366 = vmatmul.mubr.bf16.gmra.mrb[0].mxu0 %v6270
      %v6367 = vpop.f32.mrb[0].mxu0
      %v6368 = vadd.f32 0.0, %v6367
      %v6369 = vpop.f32.mrb[0].mxu0
      %v6370 = vpop.f32.mrb[0].mxu0
      %v6371 = vadd.f32 0.0, %v6370
      %v6372 = vpop.f32.mrb[0].mxu0
      %6373 = vmatprep.mubr.bf16.mxu0 0
      %6374 = vmatmul.mubr.bf16.gmra.mrb[0].mxu0 %v6273
      %v6375 = vpop.f32.mrb[0].mxu0
      %v6376 = vadd.f32 0.0, %v6375
      %v6377 = vpop.f32.mrb[0].mxu0
      %v6378 = vpop.f32.mrb[0].mxu0
      %v6379 = vadd.f32 0.0, %v6378
      %v6380 = vpop.f32.mrb[0].mxu0
      %6381 = vmatprep.mubr.bf16.mxu0 0
      %6382 = vmatmul.mubr.bf16.gmra.mrb[0].mxu0 %v6276
      %v6383 = vpop.f32.mrb[0].mxu0
      %v6384 = vadd.f32 0.0, %v6383
      %v6385 = vpop.f32.mrb[0].mxu0
      %v6386 = vpop.f32.mrb[0].mxu0
      %v6387 = vadd.f32 0.0, %v6386
      %v6388 = vpop.f32.mrb[0].mxu0
      %6389 = vmatprep.mubr.bf16.mxu0 0
      %6390 = vmatmul.mubr.bf16.gmra.mrb[0].mxu0 %v6279
      %v6391 = vpop.f32.mrb[0].mxu0
      %v6392 = vadd.f32 0.0, %v6391
      %v6393 = vpop.f32.mrb[0].mxu0
      %v6394 = vpop.f32.mrb[0].mxu0
      %v6395 = vadd.f32 0.0, %v6394
      %v6396 = vpop.f32.mrb[0].mxu0
      %6397 = vmatprep.mubr.bf16.mxu0 0
      %6398 = vmatmul.mubr.bf16.gmra.mrb[0].mxu0 %v6282
      %v6399 = vpop.f32.mrb[0].mxu0
      %v6400 = vadd.f32 0.0, %v6399
      %v6401 = vpop.f32.mrb[0].mxu0
      %v6402 = vpop.f32.mrb[0].mxu0
      %v6403 = vadd.f32 0.0, %v6402
      %v6404 = vpop.f32.mrb[0].mxu0
      %6405 = vmatprep.mubr.bf16.mxu0 0
      %6406 = vmatmul.mubr.bf16.gmra.mrb[0].mxu0 %v6285
      %v6407 = vpop.f32.mrb[0].mxu0
      %v6408 = vadd.f32 0.0, %v6407
      %v6409 = vpop.f32.mrb[0].mxu0
      %v6410 = vpop.f32.mrb[0].mxu0
      %v6411 = vadd.f32 0.0, %v6410
      %v6412 = vpop.f32.mrb[0].mxu0
      %6413 = vmatprep.mubr.bf16.mxu0 0
      %6414 = vmatmul.mubr.bf16.gmra.mrb[0].mxu0 %v6288
      %v6415 = vpop.f32.mrb[0].mxu0
      %v6416 = vadd.f32 0.0, %v6415
      %v6417 = vpop.f32.mrb[0].mxu0
      %v6418 = vpop.f32.mrb[0].mxu0
      %v6419 = vadd.f32 0.0, %v6418
      %v6420 = vpop.f32.mrb[0].mxu0
      %6421 = vmatprep.mubr.bf16.mxu0 0
      %6422 = vmatmul.mubr.bf16.gmra.mrb[0].mxu0 %v6291
      %v6423 = vpop.f32.mrb[0].mxu0
      %v6424 = vadd.f32 0.0, %v6423
      %v6425 = vpop.f32.mrb[0].mxu0
      %v6426 = vpop.f32.mrb[0].mxu0
      %v6427 = vadd.f32 0.0, %v6426
      %v6428 = vpop.f32.mrb[0].mxu0
      %6429 = vmatprep.mubr.bf16.mxu0 0
      %6430 = vmatmul.mubr.bf16.gmra.mrb[0].mxu0 %v6294
      %v6431 = vpop.f32.mrb[0].mxu0
      %v6432 = vadd.f32 0.0, %v6431
      %v6433 = vpop.f32.mrb[0].mxu0
      %v6434 = vpop.f32.mrb[0].mxu0
      %v6435 = vadd.f32 0.0, %v6434
      %v6436 = vpop.f32.mrb[0].mxu0
      %6437 = vmatprep.mubr.bf16.mxu0 0
      %6438 = vmatmul.mubr.bf16.gmra.mrb[0].mxu0 %v6297
      %v6439 = vpop.f32.mrb[0].mxu0
      %v6440 = vadd.f32 0.0, %v6439
      %v6441 = vpop.f32.mrb[0].mxu0
      %v6442 = vpop.f32.mrb[0].mxu0
      %v6443 = vadd.f32 0.0, %v6442
      %v6444 = vpop.f32.mrb[0].mxu0
      %6445 = vmatprep.mubr.bf16.mxu0 0
      %6446 = vmatmul.mubr.bf16.gmra.mrb[0].mxu0 %v6300
      %v6447 = vpop.f32.mrb[0].mxu0
      %v6448 = vadd.f32 0.0, %v6447
      %v6449 = vpop.f32.mrb[0].mxu0
      %v6450 = vpop.f32.mrb[0].mxu0
      %v6451 = vadd.f32 0.0, %v6450
      %v6452 = vpop.f32.mrb[0].mxu0
      %6453 = vmatprep.mubr.bf16.mxu0 0
      %6454 = vmatmul.mubr.bf16.gmra.mrb[0].mxu0 %v6303
      %v6455 = vpop.f32.mrb[0].mxu0
      %v6456 = vadd.f32 0.0, %v6455
      %v6457 = vpop.f32.mrb[0].mxu0
      %v6458 = vpop.f32.mrb[0].mxu0
      %v6459 = vadd.f32 0.0, %v6458
      %v6460 = vpop.f32.mrb[0].mxu0
      %6461 = vmatprep.mubr.bf16.mxu0 0
      %6462 = vmatmul.mubr.bf16.gmra.mrb[0].mxu0 %v6306
      %v6463 = vpop.f32.mrb[0].mxu0
      %v6464 = vadd.f32 0.0, %v6463
      %v6465 = vpop.f32.mrb[0].mxu0
      %v6466 = vpop.f32.mrb[0].mxu0
      %v6467 = vadd.f32 0.0, %v6466
      %v6468 = vpop.f32.mrb[0].mxu0
      %6469 = vmatprep.mubr.bf16.mxu0 0
      %6470 = vmatmul.mubr.bf16.gmra.mrb[0].mxu0 %v6309
      %v6471 = vpop.f32.mrb[0].mxu0
      %v6472 = vadd.f32 0.0, %v6471
      %v6473 = vpop.f32.mrb[0].mxu0
      %v6474 = vpop.f32.mrb[0].mxu0
      %v6475 = vadd.f32 0.0, %v6474
      %v6476 = vpop.f32.mrb[0].mxu0
      %6477 = vmatprep.mubr.bf16.mxu0 0
      %6478 = vmatmul.mubr.bf16.gmra.mrb[0].mxu0 %v6312
      %v6479 = vpop.f32.mrb[0].mxu0
      %v6480 = vadd.f32 0.0, %v6479
      %v6481 = vpop.f32.mrb[0].mxu0
      %v6482 = vpop.f32.mrb[0].mxu0
      %v6483 = vadd.f32 0.0, %v6482
      %v6484 = vpop.f32.mrb[0].mxu0
      %6485 = vmatprep.mubr.bf16.mxu0 0
      %6486 = vmatmul.mubr.bf16.gmra.mrb[0].mxu0 %v6315
      %v6487 = vpop.f32.mrb[0].mxu0
      %v6488 = vadd.f32 0.0, %v6487
      %v6489 = vpop.f32.mrb[0].mxu0
      %v6490 = vpop.f32.mrb[0].mxu0
      %v6491 = vadd.f32 0.0, %v6490
      %v6492 = vpop.f32.mrb[0].mxu0
      %6493 = vdwg.mxu0
      %v6494 = vadd.f32 %v6227, %v6352
      %v6495 = vadd.f32 %v6228, %v6355
      %v6496 = vadd.f32 %v6229, %v6360
      %v6497 = vadd.f32 %v6230, %v6363
      %v6498 = vadd.f32 %v6231, %v6368
      %v6499 = vadd.f32 %v6232, %v6371
      %v6500 = vadd.f32 %v6233, %v6376
      %v6501 = vadd.f32 %v6234, %v6379
      %v6502 = vadd.f32 %v6235, %v6384
      %v6503 = vadd.f32 %v6236, %v6387
      %v6504 = vadd.f32 %v6237, %v6392
      %v6505 = vadd.f32 %v6238, %v6395
      %v6506 = vadd.f32 %v6239, %v6400
      %v6507 = vadd.f32 %v6240, %v6403
      %v6508 = vadd.f32 %v6241, %v6408
      %v6509 = vadd.f32 %v6242, %v6411
      %v6510 = vadd.f32 %v6243, %v6416
      %v6511 = vadd.f32 %v6244, %v6419
      %v6512 = vadd.f32 %v6245, %v6424
      %v6513 = vadd.f32 %v6246, %v6427
      %v6514 = vadd.f32 %v6247, %v6432
      %v6515 = vadd.f32 %v6248, %v6435
      %v6516 = vadd.f32 %v6249, %v6440
      %v6517 = vadd.f32 %v6250, %v6443
      %v6518 = vadd.f32 %v6251, %v6448
      %v6519 = vadd.f32 %v6252, %v6451
      %v6520 = vadd.f32 %v6253, %v6456
      %v6521 = vadd.f32 %v6254, %v6459
      %v6522 = vadd.f32 %v6255, %v6464
      %v6523 = vadd.f32 %v6256, %v6467
      %v6524 = vadd.f32 %v6257, %v6472
      %v6525 = vadd.f32 %v6258, %v6475
      %v6526 = vadd.f32 %v6259, %v6480
      %v6527 = vadd.f32 %v6260, %v6483
      %v6528 = vadd.f32 %v6261, %v6488
      %v6529 = vadd.f32 %v6262, %v6491
      %v6531 = vsel %vm2248, %v2209, 0
      %v6534 = vsel %vm2248, %v2210, 0
      %v6537 = vsel %vm2248, %v2211, 0
      %v6540 = vsel %vm2248, %v2212, 0
      %v6543 = vsel %vm2248, %v2213, 0
      %v6546 = vsel %vm2248, %v2214, 0
      %v6549 = vsel %vm2248, %v2215, 0
      %v6552 = vsel %vm2248, %v2216, 0
      %v6555 = vsel %vm2248, %v2217, 0
      %v6558 = vsel %vm2248, %v2218, 0
      %v6561 = vsel %vm2248, %v2219, 0
      %v6564 = vsel %vm2248, %v2220, 0
      %v6567 = vsel %vm2248, %v2221, 0
      %v6570 = vsel %vm2248, %v2222, 0
      %v6573 = vsel %vm2248, %v2223, 0
      %v6576 = vsel %vm2248, %v2224, 0
      %v6579 = vsel %vm2248, %v2225, 0
      %v6582 = vsel %vm2248, %v2226, 0
      %6584 = vmatprep.subr.bf16.mxu0 0
      %6585 = vmatpush1.bf16.msra.mxu0 %v4440
      %6586 = vmatprep.subr.bf16.mxu0 0
      %6587 = vmatpush1.bf16.msra.mxu0 %v4441
      %6588 = vmatprep.subr.bf16.mxu0 0
      %6589 = vmatpush1.bf16.msra.mxu0 0
      %6590 = vmatprep.subr.bf16.mxu0 0
      %6591 = vmatpush1.bf16.msra.mxu0 0
      %6592 = vmatprep.subr.bf16.mxu0 0
      %6593 = vmatpush1.bf16.msra.mxu0 0
      %6594 = vmatprep.subr.bf16.mxu0 0
      %6595 = vmatpush1.bf16.msra.mxu0 0
      %6596 = vmatprep.subr.bf16.mxu0 0
      %6597 = vmatpush1.bf16.msra.mxu0 0
      %6598 = vmatprep.subr.bf16.mxu0 0
      %6599 = vmatpush1.bf16.msra.mxu0 0
      %6600 = vmatprep.subr.bf16.mxu0 0
      %6601 = vmatpush1.bf16.msra.mxu0 0
      %6602 = vmatprep.subr.bf16.mxu0 0
      %6603 = vmatpush1.bf16.msra.mxu0 0
      %6604 = vmatprep.subr.bf16.mxu0 0
      %6605 = vmatpush1.bf16.msra.mxu0 0
      %6606 = vmatprep.subr.bf16.mxu0 0
      %6607 = vmatpush1.bf16.msra.mxu0 0
      %6608 = vmatprep.subr.bf16.mxu0 0
      %6609 = vmatpush1.bf16.msra.mxu0 0
      %6610 = vmatprep.subr.bf16.mxu0 0
      %6611 = vmatpush1.bf16.msra.mxu0 0
      %6612 = vmatprep.subr.bf16.mxu0 0
      %6613 = vmatpush1.bf16.msra.mxu0 0
      %6614 = vmatprep.subr.bf16.mxu0 0
      %6615 = vmatpush1.bf16.msra.mxu0 0
      %6616 = vmatprep.mubr.bf16.mxu0 0
      %6617 = vmatmul.mubr.bf16.gmra.mrb[0].mxu0 %v6531
      %v6618 = vpop.f32.mrb[0].mxu0
      %v6619 = vadd.f32 0.0, %v6618
      %v6620 = vpop.f32.mrb[0].mxu0
      %v6621 = vpop.f32.mrb[0].mxu0
      %v6622 = vadd.f32 0.0, %v6621
      %v6623 = vpop.f32.mrb[0].mxu0
      %6624 = vmatprep.mubr.bf16.mxu0 0
      %6625 = vmatmul.mubr.bf16.gmra.mrb[0].mxu0 %v6534
      %v6626 = vpop.f32.mrb[0].mxu0
      %v6627 = vadd.f32 0.0, %v6626
      %v6628 = vpop.f32.mrb[0].mxu0
      %v6629 = vpop.f32.mrb[0].mxu0
      %v6630 = vadd.f32 0.0, %v6629
      %v6631 = vpop.f32.mrb[0].mxu0
      %6632 = vmatprep.mubr.bf16.mxu0 0
      %6633 = vmatmul.mubr.bf16.gmra.mrb[0].mxu0 %v6537
      %v6634 = vpop.f32.mrb[0].mxu0
      %v6635 = vadd.f32 0.0, %v6634
      %v6636 = vpop.f32.mrb[0].mxu0
      %v6637 = vpop.f32.mrb[0].mxu0
      %v6638 = vadd.f32 0.0, %v6637
      %v6639 = vpop.f32.mrb[0].mxu0
      %6640 = vmatprep.mubr.bf16.mxu0 0
      %6641 = vmatmul.mubr.bf16.gmra.mrb[0].mxu0 %v6540
      %v6642 = vpop.f32.mrb[0].mxu0
      %v6643 = vadd.f32 0.0, %v6642
      %v6644 = vpop.f32.mrb[0].mxu0
      %v6645 = vpop.f32.mrb[0].mxu0
      %v6646 = vadd.f32 0.0, %v6645
      %v6647 = vpop.f32.mrb[0].mxu0
      %6648 = vmatprep.mubr.bf16.mxu0 0
      %6649 = vmatmul.mubr.bf16.gmra.mrb[0].mxu0 %v6543
      %v6650 = vpop.f32.mrb[0].mxu0
      %v6651 = vadd.f32 0.0, %v6650
      %v6652 = vpop.f32.mrb[0].mxu0
      %v6653 = vpop.f32.mrb[0].mxu0
      %v6654 = vadd.f32 0.0, %v6653
      %v6655 = vpop.f32.mrb[0].mxu0
      %6656 = vmatprep.mubr.bf16.mxu0 0
      %6657 = vmatmul.mubr.bf16.gmra.mrb[0].mxu0 %v6546
      %v6658 = vpop.f32.mrb[0].mxu0
      %v6659 = vadd.f32 0.0, %v6658
      %v6660 = vpop.f32.mrb[0].mxu0
      %v6661 = vpop.f32.mrb[0].mxu0
      %v6662 = vadd.f32 0.0, %v6661
      %v6663 = vpop.f32.mrb[0].mxu0
      %6664 = vmatprep.mubr.bf16.mxu0 0
      %6665 = vmatmul.mubr.bf16.gmra.mrb[0].mxu0 %v6549
      %v6666 = vpop.f32.mrb[0].mxu0
      %v6667 = vadd.f32 0.0, %v6666
      %v6668 = vpop.f32.mrb[0].mxu0
      %v6669 = vpop.f32.mrb[0].mxu0
      %v6670 = vadd.f32 0.0, %v6669
      %v6671 = vpop.f32.mrb[0].mxu0
      %6672 = vmatprep.mubr.bf16.mxu0 0
      %6673 = vmatmul.mubr.bf16.gmra.mrb[0].mxu0 %v6552
      %v6674 = vpop.f32.mrb[0].mxu0
      %v6675 = vadd.f32 0.0, %v6674
      %v6676 = vpop.f32.mrb[0].mxu0
      %v6677 = vpop.f32.mrb[0].mxu0
      %v6678 = vadd.f32 0.0, %v6677
      %v6679 = vpop.f32.mrb[0].mxu0
      %6680 = vmatprep.mubr.bf16.mxu0 0
      %6681 = vmatmul.mubr.bf16.gmra.mrb[0].mxu0 %v6555
      %v6682 = vpop.f32.mrb[0].mxu0
      %v6683 = vadd.f32 0.0, %v6682
      %v6684 = vpop.f32.mrb[0].mxu0
      %v6685 = vpop.f32.mrb[0].mxu0
      %v6686 = vadd.f32 0.0, %v6685
      %v6687 = vpop.f32.mrb[0].mxu0
      %6688 = vmatprep.mubr.bf16.mxu0 0
      %6689 = vmatmul.mubr.bf16.gmra.mrb[0].mxu0 %v6558
      %v6690 = vpop.f32.mrb[0].mxu0
      %v6691 = vadd.f32 0.0, %v6690
      %v6692 = vpop.f32.mrb[0].mxu0
      %v6693 = vpop.f32.mrb[0].mxu0
      %v6694 = vadd.f32 0.0, %v6693
      %v6695 = vpop.f32.mrb[0].mxu0
      %6696 = vmatprep.mubr.bf16.mxu0 0
      %6697 = vmatmul.mubr.bf16.gmra.mrb[0].mxu0 %v6561
      %v6698 = vpop.f32.mrb[0].mxu0
      %v6699 = vadd.f32 0.0, %v6698
      %v6700 = vpop.f32.mrb[0].mxu0
      %v6701 = vpop.f32.mrb[0].mxu0
      %v6702 = vadd.f32 0.0, %v6701
      %v6703 = vpop.f32.mrb[0].mxu0
      %6704 = vmatprep.mubr.bf16.mxu0 0
      %6705 = vmatmul.mubr.bf16.gmra.mrb[0].mxu0 %v6564
      %v6706 = vpop.f32.mrb[0].mxu0
      %v6707 = vadd.f32 0.0, %v6706
      %v6708 = vpop.f32.mrb[0].mxu0
      %v6709 = vpop.f32.mrb[0].mxu0
      %v6710 = vadd.f32 0.0, %v6709
      %v6711 = vpop.f32.mrb[0].mxu0
      %6712 = vmatprep.mubr.bf16.mxu0 0
      %6713 = vmatmul.mubr.bf16.gmra.mrb[0].mxu0 %v6567
      %v6714 = vpop.f32.mrb[0].mxu0
      %v6715 = vadd.f32 0.0, %v6714
      %v6716 = vpop.f32.mrb[0].mxu0
      %v6717 = vpop.f32.mrb[0].mxu0
      %v6718 = vadd.f32 0.0, %v6717
      %v6719 = vpop.f32.mrb[0].mxu0
      %6720 = vmatprep.mubr.bf16.mxu0 0
      %6721 = vmatmul.mubr.bf16.gmra.mrb[0].mxu0 %v6570
      %v6722 = vpop.f32.mrb[0].mxu0
      %v6723 = vadd.f32 0.0, %v6722
      %v6724 = vpop.f32.mrb[0].mxu0
      %v6725 = vpop.f32.mrb[0].mxu0
      %v6726 = vadd.f32 0.0, %v6725
      %v6727 = vpop.f32.mrb[0].mxu0
      %6728 = vmatprep.mubr.bf16.mxu0 0
      %6729 = vmatmul.mubr.bf16.gmra.mrb[0].mxu0 %v6573
      %v6730 = vpop.f32.mrb[0].mxu0
      %v6731 = vadd.f32 0.0, %v6730
      %v6732 = vpop.f32.mrb[0].mxu0
      %v6733 = vpop.f32.mrb[0].mxu0
      %v6734 = vadd.f32 0.0, %v6733
      %v6735 = vpop.f32.mrb[0].mxu0
      %6736 = vmatprep.mubr.bf16.mxu0 0
      %6737 = vmatmul.mubr.bf16.gmra.mrb[0].mxu0 %v6576
      %v6738 = vpop.f32.mrb[0].mxu0
      %v6739 = vadd.f32 0.0, %v6738
      %v6740 = vpop.f32.mrb[0].mxu0
      %v6741 = vpop.f32.mrb[0].mxu0
      %v6742 = vadd.f32 0.0, %v6741
      %v6743 = vpop.f32.mrb[0].mxu0
      %6744 = vmatprep.mubr.bf16.mxu0 0
      %6745 = vmatmul.mubr.bf16.gmra.mrb[0].mxu0 %v6579
      %v6746 = vpop.f32.mrb[0].mxu0
      %v6747 = vadd.f32 0.0, %v6746
      %v6748 = vpop.f32.mrb[0].mxu0
      %v6749 = vpop.f32.mrb[0].mxu0
      %v6750 = vadd.f32 0.0, %v6749
      %v6751 = vpop.f32.mrb[0].mxu0
      %6752 = vmatprep.mubr.bf16.mxu0 0
      %6753 = vmatmul.mubr.bf16.gmra.mrb[0].mxu0 %v6582
      %v6754 = vpop.f32.mrb[0].mxu0
      %v6755 = vadd.f32 0.0, %v6754
      %v6756 = vpop.f32.mrb[0].mxu0
      %v6757 = vpop.f32.mrb[0].mxu0
      %v6758 = vadd.f32 0.0, %v6757
      %v6759 = vpop.f32.mrb[0].mxu0
      %6760 = vdwg.mxu0
      %v6761 = vadd.f32 %v6494, %v6619
      %v6762 = vadd.f32 %v6495, %v6622
      %v6763 = vadd.f32 %v6496, %v6627
      %v6764 = vadd.f32 %v6497, %v6630
      %v6765 = vadd.f32 %v6498, %v6635
      %v6766 = vadd.f32 %v6499, %v6638
      %v6767 = vadd.f32 %v6500, %v6643
      %v6768 = vadd.f32 %v6501, %v6646
      %v6769 = vadd.f32 %v6502, %v6651
      %v6770 = vadd.f32 %v6503, %v6654
      %v6771 = vadd.f32 %v6504, %v6659
      %v6772 = vadd.f32 %v6505, %v6662
      %v6773 = vadd.f32 %v6506, %v6667
      %v6774 = vadd.f32 %v6507, %v6670
      %v6775 = vadd.f32 %v6508, %v6675
      %v6776 = vadd.f32 %v6509, %v6678
      %v6777 = vadd.f32 %v6510, %v6683
      %v6778 = vadd.f32 %v6511, %v6686
      %v6779 = vadd.f32 %v6512, %v6691
      %v6780 = vadd.f32 %v6513, %v6694
      %v6781 = vadd.f32 %v6514, %v6699
      %v6782 = vadd.f32 %v6515, %v6702
      %v6783 = vadd.f32 %v6516, %v6707
      %v6784 = vadd.f32 %v6517, %v6710
      %v6785 = vadd.f32 %v6518, %v6715
      %v6786 = vadd.f32 %v6519, %v6718
      %v6787 = vadd.f32 %v6520, %v6723
      %v6788 = vadd.f32 %v6521, %v6726
      %v6789 = vadd.f32 %v6522, %v6731
      %v6790 = vadd.f32 %v6523, %v6734
      %v6791 = vadd.f32 %v6524, %v6739
      %v6792 = vadd.f32 %v6525, %v6742
      %v6793 = vadd.f32 %v6526, %v6747
      %v6794 = vadd.f32 %v6527, %v6750
      %v6795 = vadd.f32 %v6528, %v6755
      %v6796 = vadd.f32 %v6529, %v6758
      %v6797 = vadd.f32 %v6761, %v4716
      %v6798 = vadd.f32 %v6762, %v4716
      %v6799 = vadd.f32 %v6763, %v4716
      %v6800 = vadd.f32 %v6764, %v4716
      %v6801 = vadd.f32 %v6765, %v4716
      %v6802 = vadd.f32 %v6766, %v4716
      %v6803 = vadd.f32 %v6767, %v4716
      %v6804 = vadd.f32 %v6768, %v4716
      %v6805 = vadd.f32 %v6769, %v4716
      %v6806 = vadd.f32 %v6770, %v4716
      %v6807 = vadd.f32 %v6771, %v4716
      %v6808 = vadd.f32 %v6772, %v4716
      %v6809 = vadd.f32 %v6773, %v4716
      %v6810 = vadd.f32 %v6774, %v4716
      %v6811 = vadd.f32 %v6775, %v4716
      %v6812 = vadd.f32 %v6776, %v4716
      %v6813 = vadd.f32 %v6777, %v4716
      %v6814 = vadd.f32 %v6778, %v4716
      %v6815 = vadd.f32 %v6779, %v4716
      %v6816 = vadd.f32 %v6780, %v4716
      %v6817 = vadd.f32 %v6781, %v4716
      %v6818 = vadd.f32 %v6782, %v4716
      %v6819 = vadd.f32 %v6783, %v4716
      %v6820 = vadd.f32 %v6784, %v4716
      %v6821 = vadd.f32 %v6785, %v4716
      %v6822 = vadd.f32 %v6786, %v4716
      %v6823 = vadd.f32 %v6787, %v4716
      %v6824 = vadd.f32 %v6788, %v4716
      %v6825 = vadd.f32 %v6789, %v4716
      %v6826 = vadd.f32 %v6790, %v4716
      %v6827 = vadd.f32 %v6791, %v4716
      %v6828 = vadd.f32 %v6792, %v4716
      %v6829 = vadd.f32 %v6793, %v4716
      %v6830 = vadd.f32 %v6794, %v4716
      %v6831 = vadd.f32 %v6795, %v4716
      %v6832 = vadd.f32 %v6796, %v4716
      %v6833 = vmax.f32 %v6797, 0.0
      %v6834 = vmax.f32 %v6798, 0.0
      %v6835 = vmax.f32 %v6799, 0.0
      %v6836 = vmax.f32 %v6800, 0.0
      %v6837 = vmax.f32 %v6801, 0.0
      %v6838 = vmax.f32 %v6802, 0.0
      %v6839 = vmax.f32 %v6803, 0.0
      %v6840 = vmax.f32 %v6804, 0.0
      %v6841 = vmax.f32 %v6805, 0.0
      %v6842 = vmax.f32 %v6806, 0.0
      %v6843 = vmax.f32 %v6807, 0.0
      %v6844 = vmax.f32 %v6808, 0.0
      %v6845 = vmax.f32 %v6809, 0.0
      %v6846 = vmax.f32 %v6810, 0.0
      %v6847 = vmax.f32 %v6811, 0.0
      %v6848 = vmax.f32 %v6812, 0.0
      %v6849 = vmax.f32 %v6813, 0.0
      %v6850 = vmax.f32 %v6814, 0.0
      %v6851 = vmax.f32 %v6815, 0.0
      %v6852 = vmax.f32 %v6816, 0.0
      %v6853 = vmax.f32 %v6817, 0.0
      %v6854 = vmax.f32 %v6818, 0.0
      %v6855 = vmax.f32 %v6819, 0.0
      %v6856 = vmax.f32 %v6820, 0.0
      %v6857 = vmax.f32 %v6821, 0.0
      %v6858 = vmax.f32 %v6822, 0.0
      %v6859 = vmax.f32 %v6823, 0.0
      %v6860 = vmax.f32 %v6824, 0.0
      %v6861 = vmax.f32 %v6825, 0.0
      %v6862 = vmax.f32 %v6826, 0.0
      %v6863 = vmax.f32 %v6827, 0.0
      %v6864 = vmax.f32 %v6828, 0.0
      %v6865 = vmax.f32 %v6829, 0.0
      %v6866 = vmax.f32 %v6830, 0.0
      %v6867 = vmax.f32 %v6831, 0.0
      %v6868 = vmax.f32 %v6832, 0.0
      %v6869 = vmax.f32 %v4754, %v6833
      %v6870 = vmax.f32 %v4755, %v6834
      %v6871 = vmax.f32 %v4756, %v6835
      %v6872 = vmax.f32 %v4757, %v6836
      %v6873 = vmax.f32 %v4758, %v6837
      %v6874 = vmax.f32 %v4759, %v6838
      %v6875 = vmax.f32 %v4760, %v6839
      %v6876 = vmax.f32 %v4761, %v6840
      %v6877 = vmax.f32 %v4762, %v6841
      %v6878 = vmax.f32 %v4763, %v6842
      %v6879 = vmax.f32 %v4764, %v6843
      %v6880 = vmax.f32 %v4765, %v6844
      %v6881 = vmax.f32 %v4766, %v6845
      %v6882 = vmax.f32 %v4767, %v6846
      %v6883 = vmax.f32 %v4768, %v6847
      %v6884 = vmax.f32 %v4769, %v6848
      %v6885 = vmax.f32 %v4770, %v6849
      %v6886 = vmax.f32 %v4771, %v6850
      %v6887 = vmax.f32 %v4772, %v6851
      %v6888 = vmax.f32 %v4773, %v6852
      %v6889 = vmax.f32 %v4774, %v6853
      %v6890 = vmax.f32 %v4775, %v6854
      %v6891 = vmax.f32 %v4776, %v6855
      %v6892 = vmax.f32 %v4777, %v6856
      %v6893 = vmax.f32 %v4778, %v6857
      %v6894 = vmax.f32 %v4779, %v6858
      %v6895 = vmax.f32 %v4780, %v6859
      %v6896 = vmax.f32 %v4781, %v6860
      %v6897 = vmax.f32 %v4782, %v6861
      %v6898 = vmax.f32 %v4783, %v6862
      %v6899 = vmax.f32 %v4784, %v6863
      %v6900 = vmax.f32 %v4785, %v6864
      %v6901 = vmax.f32 %v4786, %v6865
      %v6902 = vmax.f32 %v4787, %v6866
      %v6903 = vmax.f32 %v4788, %v6867
      %v6904 = vmax.f32 %v4789, %v6868
      %v6905 = vpack.c.bf16 %v6870, %v6869
      %v6906 = vpack.c.bf16 %v6872, %v6871
      %v6907 = vpack.c.bf16 %v6874, %v6873
      %v6908 = vpack.c.bf16 %v6876, %v6875
      %v6909 = vpack.c.bf16 %v6878, %v6877
      %v6910 = vpack.c.bf16 %v6880, %v6879
      %v6911 = vpack.c.bf16 %v6882, %v6881
      %v6912 = vpack.c.bf16 %v6884, %v6883
      %v6913 = vpack.c.bf16 %v6886, %v6885
      %v6914 = vpack.c.bf16 %v6888, %v6887
      %v6915 = vpack.c.bf16 %v6890, %v6889
      %v6916 = vpack.c.bf16 %v6892, %v6891
      %v6917 = vpack.c.bf16 %v6894, %v6893
      %v6918 = vpack.c.bf16 %v6896, %v6895
      %v6919 = vpack.c.bf16 %v6898, %v6897
      %v6920 = vpack.c.bf16 %v6900, %v6899
      %v6921 = vpack.c.bf16 %v6902, %v6901
      %v6922 = vpack.c.bf16 %v6904, %v6903
      %v6941 = vunpack.c.l.b16 %v6905
      %v6942 = vunpack.c.h.b16 %v6905
      %v6943 = vunpack.c.l.b16 %v6906
      %v6944 = vunpack.c.h.b16 %v6906
      %v6945 = vunpack.c.l.b16 %v6907
      %v6946 = vunpack.c.h.b16 %v6907
      %v6947 = vunpack.c.l.b16 %v6908
      %v6948 = vunpack.c.h.b16 %v6908
      %v6949 = vunpack.c.l.b16 %v6909
      %v6950 = vunpack.c.h.b16 %v6909
      %v6951 = vunpack.c.l.b16 %v6910
      %v6952 = vunpack.c.h.b16 %v6910
      %v6953 = vunpack.c.l.b16 %v6911
      %v6954 = vunpack.c.h.b16 %v6911
      %v6955 = vunpack.c.l.b16 %v6912
      %v6956 = vunpack.c.h.b16 %v6912
      %v6957 = vunpack.c.l.b16 %v6913
      %v6958 = vunpack.c.h.b16 %v6913
      %v6959 = vunpack.c.l.b16 %v6914
      %v6960 = vunpack.c.h.b16 %v6914
      %v6961 = vunpack.c.l.b16 %v6915
      %v6962 = vunpack.c.h.b16 %v6915
      %v6963 = vunpack.c.l.b16 %v6916
      %v6964 = vunpack.c.h.b16 %v6916
      %v6965 = vunpack.c.l.b16 %v6917
      %v6966 = vunpack.c.h.b16 %v6917
      %v6967 = vunpack.c.l.b16 %v6918
      %v6968 = vunpack.c.h.b16 %v6918
      %v6969 = vunpack.c.l.b16 %v6919
      %v6970 = vunpack.c.h.b16 %v6919
      %v6971 = vunpack.c.l.b16 %v6920
      %v6972 = vunpack.c.h.b16 %v6920
      %v6973 = vunpack.c.l.b16 %v6921
      %v6974 = vunpack.c.h.b16 %v6921
      %v6975 = vunpack.c.l.b16 %v6922
      %v6976 = vunpack.c.h.b16 %v6922
      %v6977 = vpack.c.b16 %v6941, %v6941
      %v6978 = vpack.c.b16 %v6942, %v6942
      %v6979 = vpack.c.b16 %v6943, %v6943
      %v6980 = vpack.c.b16 %v6944, %v6944
      %v6981 = vpack.c.b16 %v6945, %v6945
      %v6982 = vpack.c.b16 %v6946, %v6946
      %v6983 = vpack.c.b16 %v6947, %v6947
      %v6984 = vpack.c.b16 %v6948, %v6948
      %v6985 = vpack.c.b16 %v6949, %v6949
      %v6986 = vpack.c.b16 %v6950, %v6950
      %v6987 = vpack.c.b16 %v6951, %v6951
      %v6988 = vpack.c.b16 %v6952, %v6952
      %v6989 = vpack.c.b16 %v6953, %v6953
      %v6990 = vpack.c.b16 %v6954, %v6954
      %v6991 = vpack.c.b16 %v6955, %v6955
      %v6992 = vpack.c.b16 %v6956, %v6956
      %v6993 = vpack.c.b16 %v6957, %v6957
      %v6994 = vpack.c.b16 %v6958, %v6958
      %v6995 = vpack.c.b16 %v6959, %v6959
      %v6996 = vpack.c.b16 %v6960, %v6960
      %v6997 = vpack.c.b16 %v6961, %v6961
      %v6998 = vpack.c.b16 %v6962, %v6962
      %v6999 = vpack.c.b16 %v6963, %v6963
      %v7000 = vpack.c.b16 %v6964, %v6964
      %v7001 = vpack.c.b16 %v6965, %v6965
      %v7002 = vpack.c.b16 %v6966, %v6966
      %v7003 = vpack.c.b16 %v6967, %v6967
      %v7004 = vpack.c.b16 %v6968, %v6968
      %v7005 = vpack.c.b16 %v6969, %v6969
      %v7006 = vpack.c.b16 %v6970, %v6970
      %v7007 = vpack.c.b16 %v6971, %v6971
      %v7008 = vpack.c.b16 %v6972, %v6972
      %v7009 = vpack.c.b16 %v6973, %v6973
      %v7010 = vpack.c.b16 %v6974, %v6974
      %v7011 = vpack.c.b16 %v6975, %v6975
      %v7012 = vpack.c.b16 %v6976, %v6976
      %vm7049 = vcmask 519168
      %7050 = vst.msk [vmem:[%s224] sm:$0xf] %vm7049, %v6977
      %7051 = vst.msk [vmem:[%s224 + $0x4] sm:$0xf] %vm7049, %v6978
      %7052 = vst.msk [vmem:[%s224 + $0x8] sm:$0xf] %vm7049, %v6979
      %7053 = vst.msk [vmem:[%s224 + $0xc] sm:$0xf] %vm7049, %v6980
      %7054 = vst.msk [vmem:[%s224 + $0x10] sm:$0xf] %vm7049, %v6981
      %7055 = vst.msk [vmem:[%s224 + $0x14] sm:$0xf] %vm7049, %v6982
      %7056 = vst.msk [vmem:[%s224 + $0x18] sm:$0xf] %vm7049, %v6983
      %7057 = vst.msk [vmem:[%s224 + $0x1c] sm:$0xf] %vm7049, %v6984
      %7058 = vst.msk [vmem:[%s224 + $0x20] sm:$0xf] %vm7049, %v6985
      %7059 = vst.msk [vmem:[%s224 + $0x24] sm:$0xf] %vm7049, %v6986
      %7060 = vst.msk [vmem:[%s224 + $0x28] sm:$0xf] %vm7049, %v6987
      %7061 = vst.msk [vmem:[%s224 + $0x2c] sm:$0xf] %vm7049, %v6988
      %7062 = vst.msk [vmem:[%s224 + $0x30] sm:$0xf] %vm7049, %v6989
      %7063 = vst.msk [vmem:[%s224 + $0x34] sm:$0xf] %vm7049, %v6990
      %7064 = vst.msk [vmem:[%s224 + $0x38] sm:$0xf] %vm7049, %v6991
      %7065 = vst.msk [vmem:[%s224 + $0x3c] sm:$0xf] %vm7049, %v6992
      %7066 = vst.msk [vmem:[%s224 + $0x40] sm:$0xf] %vm7049, %v6993
      %7067 = vst.msk [vmem:[%s224 + $0x44] sm:$0xf] %vm7049, %v6994
      %7068 = vst.msk [vmem:[%s224 + $0x48] sm:$0xf] %vm7049, %v6995
      %7069 = vst.msk [vmem:[%s224 + $0x4c] sm:$0xf] %vm7049, %v6996
      %7070 = vst.msk [vmem:[%s224 + $0x50] sm:$0xf] %vm7049, %v6997
      %7071 = vst.msk [vmem:[%s224 + $0x54] sm:$0xf] %vm7049, %v6998
      %7072 = vst.msk [vmem:[%s224 + $0x58] sm:$0xf] %vm7049, %v6999
      %7073 = vst.msk [vmem:[%s224 + $0x5c] sm:$0xf] %vm7049, %v7000
      %7074 = vst.msk [vmem:[%s224 + $0x60] sm:$0xf] %vm7049, %v7001
      %7075 = vst.msk [vmem:[%s224 + $0x64] sm:$0xf] %vm7049, %v7002
      %7076 = vst.msk [vmem:[%s224 + $0x68] sm:$0xf] %vm7049, %v7003
      %7077 = vst.msk [vmem:[%s224 + $0x6c] sm:$0xf] %vm7049, %v7004
      %7078 = vst.msk [vmem:[%s224 + $0x70] sm:$0xf] %vm7049, %v7005
      %7079 = vst.msk [vmem:[%s224 + $0x74] sm:$0xf] %vm7049, %v7006
      %7080 = vst.msk [vmem:[%s224 + $0x78] sm:$0xf] %vm7049, %v7007
      %7081 = vst.msk [vmem:[%s224 + $0x7c] sm:$0xf] %vm7049, %v7008
      %7082 = vst.msk [vmem:[%s224 + $0x80] sm:$0xf] %vm7049, %v7009
      %7083 = vst.msk [vmem:[%s224 + $0x84] sm:$0xf] %vm7049, %v7010
      %7084 = vst.msk [vmem:[%s224 + $0x88] sm:$0xf] %vm7049, %v7011
      %7085 = vst.msk [vmem:[%s224 + $0x8c] sm:$0xf] %vm7049, %v7012
      %p7086 = scmp.lt.s32.totalorder %s16, 1
      %s7087 = scalar_select %p7086, %s16, 1
      %s7088 = smul.addr %s7087, 36
      %s7089 = smul.addr %s7088, 4
      %s7090 = scalar_lea.vmem %s5, %s7089
      // Predicated region
      $region41: #{net_forward.2} parent=39 // pred_check
        %p7091 = pneg %p144
      $region42: #{net_forward.2} parent=39 // pred_check_branch
        %7093 = sbr.rel (%p7091) target = $region44
      $region43: #{net_forward.2} parent=39 // pred_region
        _
      $region44: #{net_forward.2} parent=39 // pred_fallthru
        _
    $region40: #{net_forward.2} parent=5 // pred_fallthru
      _
    %p7094 = scmp.le.s32.totalorder 2, %s11
    // Predicated region
    $region45: #{net_forward.2} parent=5 // pred_check
      %p7095 = pneg %p7094
    $region46: #{net_forward.2} parent=5 // pred_check_branch
      %7097 = sbr.rel (%p7095) target = $region48
    $region47: #{net_forward.2} parent=5 // pred_region
      %s7098 = ssub.s32 %s11, 2
      // Predicated region
      $region49: #{net_forward.2} parent=47 // pred_check
        %p7099 = pneg %p150
      $region50: #{net_forward.2} parent=47 // pred_check_branch
        %7101 = sbr.rel (%p7099) target = $region52
      $region51: #{net_forward.2} parent=47 // pred_region
        %p7102 = scmp.lt.s32.totalorder %s17, 1
        %s7103 = scalar_select %p7102, %s17, 1
        %s7104 = smul.addr %s7103, 36
        %s7105 = smul.addr %s7104, 4
        %s7106 = scalar_lea.vmem %s5, %s7105
      $region52: #{net_forward.2} parent=47 // pred_fallthru
        _
    $region48: #{net_forward.2} parent=5 // pred_fallthru
      _
  $region6: #{net_forward.2} parent=0 // loop_footer
    %s15 = sadd.s32 1, %s11
  $region7: #{net_forward.2} parent=0 // loop_footer_branch
    %10 = sbr.rel target = $region3
  $region8: #{net_forward.2} parent=0 // loop_exit
    _

// kernel: net_forward.3
$region0: #{net_forward.3}
  #allocation0 [shape = 'u32[]', space=smem, size = 0x4, offset = 0x4, fixed_abs, tag = 'smem constant byte address 0x4 - core index']
  #allocation1 [shape = 'u32[144,128]{1,0:T(1,128)}', space=vmem, size = 0x12000, scoped, tag = 'internal scratch']
  %s0 = inlined_call_operand.vmem [shape: bf16[8,9216], index: 0, kind: input, shape index: {}]
  %s1 = inlined_call_operand.vmem [shape: bf16[9216,128], index: 1, kind: input, shape index: {}]
  %s2 = inlined_call_operand.vmem [shape: f32[1,128], index: 2, kind: input, shape index: {}]
  %s3 = inlined_call_operand.vmem [shape: f32[128,10], index: 3, kind: input, shape index: {}]
  %s4 = inlined_call_operand.vmem [shape: f32[1,10], index: 4, kind: input, shape index: {}]
  %s5 = inlined_call_operand.vmem [shape: f32[8,10], index: 5, kind: output, shape index: {}]
  %s6 = sld [smem:[#allocation0]]
  $region30: #{net_forward.3} parent=0
    _
  %s8 = ssub.s32 1, %s6
  %s9 = scalar_select 0, %s8, %s6
  // Predicated region
  $region2: #{net_forward.3} parent=0 // pred_check
    _
  $region3: #{net_forward.3} parent=0 // pred_check_branch
    %11 = sbr.rel (0) target = $region5
  $region4: #{net_forward.3} parent=0 // pred_region
    _
  $region5: #{net_forward.3} parent=0 // pred_fallthru
    _
  // Predicated region
  $region6: #{net_forward.3} parent=0 // pred_check
    _
  $region7: #{net_forward.3} parent=0 // pred_check_branch
    %13 = sbr.rel (0) target = $region9
  $region8: #{net_forward.3} parent=0 // pred_region
    _
  $region9: #{net_forward.3} parent=0 // pred_fallthru
    _
  // Predicated region
  $region10: #{net_forward.3} parent=0 // pred_check
    _
  $region11: #{net_forward.3} parent=0 // pred_check_branch
    %15 = sbr.rel (0) target = $region13
  $region12: #{net_forward.3} parent=0 // pred_region
    _
  $region13: #{net_forward.3} parent=0 // pred_fallthru
    _
  // Predicated region
  $region14: #{net_forward.3} parent=0 // pred_check
    _
  $region15: #{net_forward.3} parent=0 // pred_check_branch
    %17 = sbr.rel (0) target = $region17
  $region16: #{net_forward.3} parent=0 // pred_region
    _
  $region17: #{net_forward.3} parent=0 // pred_fallthru
    _
  // Predicated region
  $region18: #{net_forward.3} parent=0 // pred_check
    _
  $region19: #{net_forward.3} parent=0 // pred_check_branch
    %19 = sbr.rel (0) target = $region21
  $region20: #{net_forward.3} parent=0 // pred_region
    _
  $region21: #{net_forward.3} parent=0 // pred_fallthru
    _
  %v21 = vld [vmem:[%s0] sm:$0xff]
  %v22 = vld [vmem:[%s0 + $0x8] sm:$0xff]
  %v23 = vld [vmem:[%s0 + $0x10] sm:$0xff]
  %v24 = vld [vmem:[%s0 + $0x18] sm:$0xff]
  %v25 = vld [vmem:[%s0 + $0x20] sm:$0xff]
  %v26 = vld [vmem:[%s0 + $0x28] sm:$0xff]
  %v27 = vld [vmem:[%s0 + $0x30] sm:$0xff]
  %v28 = vld [vmem:[%s0 + $0x38] sm:$0xff]
  %v29 = vld [vmem:[%s0 + $0x40] sm:$0xff]
  %v30 = vld [vmem:[%s0 + $0x48] sm:$0xff]
  %v31 = vld [vmem:[%s0 + $0x50] sm:$0xff]
  %v32 = vld [vmem:[%s0 + $0x58] sm:$0xff]
  %v33 = vld [vmem:[%s0 + $0x60] sm:$0xff]
  %v34 = vld [vmem:[%s0 + $0x68] sm:$0xff]
  %v35 = vld [vmem:[%s0 + $0x70] sm:$0xff]
  %v36 = vld [vmem:[%s0 + $0x78] sm:$0xff]
  %v37 = vld [vmem:[%s0 + $0x80] sm:$0xff]
  %v38 = vld [vmem:[%s0 + $0x88] sm:$0xff]
  %v39 = vld [vmem:[%s0 + $0x90] sm:$0xff]
  %v40 = vld [vmem:[%s0 + $0x98] sm:$0xff]
  %v41 = vld [vmem:[%s0 + $0xa0] sm:$0xff]
  %v42 = vld [vmem:[%s0 + $0xa8] sm:$0xff]
  %v43 = vld [vmem:[%s0 + $0xb0] sm:$0xff]
  %v44 = vld [vmem:[%s0 + $0xb8] sm:$0xff]
  %v45 = vld [vmem:[%s0 + $0xc0] sm:$0xff]
  %v46 = vld [vmem:[%s0 + $0xc8] sm:$0xff]
  %v47 = vld [vmem:[%s0 + $0xd0] sm:$0xff]
  %v48 = vld [vmem:[%s0 + $0xd8] sm:$0xff]
  %v49 = vld [vmem:[%s0 + $0xe0] sm:$0xff]
  %v50 = vld [vmem:[%s0 + $0xe8] sm:$0xff]
  %v51 = vld [vmem:[%s0 + $0xf0] sm:$0xff]
  %v52 = vld [vmem:[%s0 + $0xf8] sm:$0xff]
  %v53 = vld [vmem:[%s0 + $0x100] sm:$0xff]
  %v54 = vld [vmem:[%s0 + $0x108] sm:$0xff]
  %v55 = vld [vmem:[%s0 + $0x110] sm:$0xff]
  %v56 = vld [vmem:[%s0 + $0x118] sm:$0xff]
  %v57 = vld [vmem:[%s1] sm:$0xf]
  %v58 = vld [vmem:[%s1 + $0x4] sm:$0xf]
  %v59 = vld [vmem:[%s1 + $0x8] sm:$0xf]
  %v60 = vld [vmem:[%s1 + $0xc] sm:$0xf]
  %v61 = vld [vmem:[%s1 + $0x10] sm:$0xf]
  %v62 = vld [vmem:[%s1 + $0x14] sm:$0xf]
  %v63 = vld [vmem:[%s1 + $0x18] sm:$0xf]
  %v64 = vld [vmem:[%s1 + $0x1c] sm:$0xf]
  %v65 = vld [vmem:[%s1 + $0x20] sm:$0xf]
  %v66 = vld [vmem:[%s1 + $0x24] sm:$0xf]
  %v67 = vld [vmem:[%s1 + $0x28] sm:$0xf]
  %v68 = vld [vmem:[%s1 + $0x2c] sm:$0xf]
  %v69 = vld [vmem:[%s1 + $0x30] sm:$0xf]
  %v70 = vld [vmem:[%s1 + $0x34] sm:$0xf]
  %v71 = vld [vmem:[%s1 + $0x38] sm:$0xf]
  %v72 = vld [vmem:[%s1 + $0x3c] sm:$0xf]
  %v73 = vld [vmem:[%s1 + $0x40] sm:$0xf]
  %v74 = vld [vmem:[%s1 + $0x44] sm:$0xf]
  %v75 = vld [vmem:[%s1 + $0x48] sm:$0xf]
  %v76 = vld [vmem:[%s1 + $0x4c] sm:$0xf]
  %v77 = vld [vmem:[%s1 + $0x50] sm:$0xf]
  %v78 = vld [vmem:[%s1 + $0x54] sm:$0xf]
  %v79 = vld [vmem:[%s1 + $0x58] sm:$0xf]
  %v80 = vld [vmem:[%s1 + $0x5c] sm:$0xf]
  %v81 = vld [vmem:[%s1 + $0x60] sm:$0xf]
  %v82 = vld [vmem:[%s1 + $0x64] sm:$0xf]
  %v83 = vld [vmem:[%s1 + $0x68] sm:$0xf]
  %v84 = vld [vmem:[%s1 + $0x6c] sm:$0xf]
  %v85 = vld [vmem:[%s1 + $0x70] sm:$0xf]
  %v86 = vld [vmem:[%s1 + $0x74] sm:$0xf]
  %v87 = vld [vmem:[%s1 + $0x78] sm:$0xf]
  %v88 = vld [vmem:[%s1 + $0x7c] sm:$0xf]
  %v89 = vld [vmem:[%s1 + $0x80] sm:$0xf]
  %v90 = vld [vmem:[%s1 + $0x84] sm:$0xf]
  %v91 = vld [vmem:[%s1 + $0x88] sm:$0xf]
  %v92 = vld [vmem:[%s1 + $0x8c] sm:$0xf]
  %v93 = vld [vmem:[%s1 + $0x90] sm:$0xf]
  %v94 = vld [vmem:[%s1 + $0x94] sm:$0xf]
  %v95 = vld [vmem:[%s1 + $0x98] sm:$0xf]
  %v96 = vld [vmem:[%s1 + $0x9c] sm:$0xf]
  %v97 = vld [vmem:[%s1 + $0xa0] sm:$0xf]
  %v98 = vld [vmem:[%s1 + $0xa4] sm:$0xf]
  %v99 = vld [vmem:[%s1 + $0xa8] sm:$0xf]
  %v100 = vld [vmem:[%s1 + $0xac] sm:$0xf]
  %v101 = vld [vmem:[%s1 + $0xb0] sm:$0xf]
  %v102 = vld [vmem:[%s1 + $0xb4] sm:$0xf]
  %v103 = vld [vmem:[%s1 + $0xb8] sm:$0xf]
  %v104 = vld [vmem:[%s1 + $0xbc] sm:$0xf]
  %v105 = vld [vmem:[%s1 + $0xc0] sm:$0xf]
  %v106 = vld [vmem:[%s1 + $0xc4] sm:$0xf]
  %v107 = vld [vmem:[%s1 + $0xc8] sm:$0xf]
  %v108 = vld [vmem:[%s1 + $0xcc] sm:$0xf]
  %v109 = vld [vmem:[%s1 + $0xd0] sm:$0xf]
  %v110 = vld [vmem:[%s1 + $0xd4] sm:$0xf]
  %v111 = vld [vmem:[%s1 + $0xd8] sm:$0xf]
  %v112 = vld [vmem:[%s1 + $0xdc] sm:$0xf]
  %v113 = vld [vmem:[%s1 + $0xe0] sm:$0xf]
  %v114 = vld [vmem:[%s1 + $0xe4] sm:$0xf]
  %v115 = vld [vmem:[%s1 + $0xe8] sm:$0xf]
  %v116 = vld [vmem:[%s1 + $0xec] sm:$0xf]
  %v117 = vld [vmem:[%s1 + $0xf0] sm:$0xf]
  %v118 = vld [vmem:[%s1 + $0xf4] sm:$0xf]
  %v119 = vld [vmem:[%s1 + $0xf8] sm:$0xf]
  %v120 = vld [vmem:[%s1 + $0xfc] sm:$0xf]
  %v121 = vld [vmem:[%s1 + $0x100] sm:$0xf]
  %v122 = vld [vmem:[%s1 + $0x104] sm:$0xf]
  %v123 = vld [vmem:[%s1 + $0x108] sm:$0xf]
  %v124 = vld [vmem:[%s1 + $0x10c] sm:$0xf]
  %v125 = vld [vmem:[%s1 + $0x110] sm:$0xf]
  %v126 = vld [vmem:[%s1 + $0x114] sm:$0xf]
  %v127 = vld [vmem:[%s1 + $0x118] sm:$0xf]
  %v128 = vld [vmem:[%s1 + $0x11c] sm:$0xf]
  %v129 = vld [vmem:[%s1 + $0x120] sm:$0xf]
  %v130 = vld [vmem:[%s1 + $0x124] sm:$0xf]
  %v131 = vld [vmem:[%s1 + $0x128] sm:$0xf]
  %v132 = vld [vmem:[%s1 + $0x12c] sm:$0xf]
  %v133 = vld [vmem:[%s1 + $0x130] sm:$0xf]
  %v134 = vld [vmem:[%s1 + $0x134] sm:$0xf]
  %v135 = vld [vmem:[%s1 + $0x138] sm:$0xf]
  %v136 = vld [vmem:[%s1 + $0x13c] sm:$0xf]
  %v137 = vld [vmem:[%s1 + $0x140] sm:$0xf]
  %v138 = vld [vmem:[%s1 + $0x144] sm:$0xf]
  %v139 = vld [vmem:[%s1 + $0x148] sm:$0xf]
  %v140 = vld [vmem:[%s1 + $0x14c] sm:$0xf]
  %v141 = vld [vmem:[%s1 + $0x150] sm:$0xf]
  %v142 = vld [vmem:[%s1 + $0x154] sm:$0xf]
  %v143 = vld [vmem:[%s1 + $0x158] sm:$0xf]
  %v144 = vld [vmem:[%s1 + $0x15c] sm:$0xf]
  %v145 = vld [vmem:[%s1 + $0x160] sm:$0xf]
  %v146 = vld [vmem:[%s1 + $0x164] sm:$0xf]
  %v147 = vld [vmem:[%s1 + $0x168] sm:$0xf]
  %v148 = vld [vmem:[%s1 + $0x16c] sm:$0xf]
  %v149 = vld [vmem:[%s1 + $0x170] sm:$0xf]
  %v150 = vld [vmem:[%s1 + $0x174] sm:$0xf]
  %v151 = vld [vmem:[%s1 + $0x178] sm:$0xf]
  %v152 = vld [vmem:[%s1 + $0x17c] sm:$0xf]
  %v153 = vld [vmem:[%s1 + $0x180] sm:$0xf]
  %v154 = vld [vmem:[%s1 + $0x184] sm:$0xf]
  %v155 = vld [vmem:[%s1 + $0x188] sm:$0xf]
  %v156 = vld [vmem:[%s1 + $0x18c] sm:$0xf]
  %v157 = vld [vmem:[%s1 + $0x190] sm:$0xf]
  %v158 = vld [vmem:[%s1 + $0x194] sm:$0xf]
  %v159 = vld [vmem:[%s1 + $0x198] sm:$0xf]
  %v160 = vld [vmem:[%s1 + $0x19c] sm:$0xf]
  %v161 = vld [vmem:[%s1 + $0x1a0] sm:$0xf]
  %v162 = vld [vmem:[%s1 + $0x1a4] sm:$0xf]
  %v163 = vld [vmem:[%s1 + $0x1a8] sm:$0xf]
  %v164 = vld [vmem:[%s1 + $0x1ac] sm:$0xf]
  %v165 = vld [vmem:[%s1 + $0x1b0] sm:$0xf]
  %v166 = vld [vmem:[%s1 + $0x1b4] sm:$0xf]
  %v167 = vld [vmem:[%s1 + $0x1b8] sm:$0xf]
  %v168 = vld [vmem:[%s1 + $0x1bc] sm:$0xf]
  %v169 = vld [vmem:[%s1 + $0x1c0] sm:$0xf]
  %v170 = vld [vmem:[%s1 + $0x1c4] sm:$0xf]
  %v171 = vld [vmem:[%s1 + $0x1c8] sm:$0xf]
  %v172 = vld [vmem:[%s1 + $0x1cc] sm:$0xf]
  %v173 = vld [vmem:[%s1 + $0x1d0] sm:$0xf]
  %v174 = vld [vmem:[%s1 + $0x1d4] sm:$0xf]
  %v175 = vld [vmem:[%s1 + $0x1d8] sm:$0xf]
  %v176 = vld [vmem:[%s1 + $0x1dc] sm:$0xf]
  %v177 = vld [vmem:[%s1 + $0x1e0] sm:$0xf]
  %v178 = vld [vmem:[%s1 + $0x1e4] sm:$0xf]
  %v179 = vld [vmem:[%s1 + $0x1e8] sm:$0xf]
  %v180 = vld [vmem:[%s1 + $0x1ec] sm:$0xf]
  %v181 = vld [vmem:[%s1 + $0x1f0] sm:$0xf]
  %v182 = vld [vmem:[%s1 + $0x1f4] sm:$0xf]
  %v183 = vld [vmem:[%s1 + $0x1f8] sm:$0xf]
  %v184 = vld [vmem:[%s1 + $0x1fc] sm:$0xf]
  %v185 = vld [vmem:[%s1 + $0x200] sm:$0xf]
  %v186 = vld [vmem:[%s1 + $0x204] sm:$0xf]
  %v187 = vld [vmem:[%s1 + $0x208] sm:$0xf]
  %v188 = vld [vmem:[%s1 + $0x20c] sm:$0xf]
  %v189 = vld [vmem:[%s1 + $0x210] sm:$0xf]
  %v190 = vld [vmem:[%s1 + $0x214] sm:$0xf]
  %v191 = vld [vmem:[%s1 + $0x218] sm:$0xf]
  %v192 = vld [vmem:[%s1 + $0x21c] sm:$0xf]
  %v193 = vld [vmem:[%s1 + $0x220] sm:$0xf]
  %v194 = vld [vmem:[%s1 + $0x224] sm:$0xf]
  %v195 = vld [vmem:[%s1 + $0x228] sm:$0xf]
  %v196 = vld [vmem:[%s1 + $0x22c] sm:$0xf]
  %v197 = vld [vmem:[%s1 + $0x230] sm:$0xf]
  %v198 = vld [vmem:[%s1 + $0x234] sm:$0xf]
  %v199 = vld [vmem:[%s1 + $0x238] sm:$0xf]
  %v200 = vld [vmem:[%s1 + $0x23c] sm:$0xf]
  %v201 = vld [vmem:[%s1 + $0x240] sm:$0xf]
  %v202 = vld [vmem:[%s1 + $0x244] sm:$0xf]
  %v203 = vld [vmem:[%s1 + $0x248] sm:$0xf]
  %v204 = vld [vmem:[%s1 + $0x24c] sm:$0xf]
  %v205 = vld [vmem:[%s1 + $0x250] sm:$0xf]
  %v206 = vld [vmem:[%s1 + $0x254] sm:$0xf]
  %v207 = vld [vmem:[%s1 + $0x258] sm:$0xf]
  %v208 = vld [vmem:[%s1 + $0x25c] sm:$0xf]
  %v209 = vld [vmem:[%s1 + $0x260] sm:$0xf]
  %v210 = vld [vmem:[%s1 + $0x264] sm:$0xf]
  %v211 = vld [vmem:[%s1 + $0x268] sm:$0xf]
  %v212 = vld [vmem:[%s1 + $0x26c] sm:$0xf]
  %v213 = vld [vmem:[%s1 + $0x270] sm:$0xf]
  %v214 = vld [vmem:[%s1 + $0x274] sm:$0xf]
  %v215 = vld [vmem:[%s1 + $0x278] sm:$0xf]
  %v216 = vld [vmem:[%s1 + $0x27c] sm:$0xf]
  %v217 = vld [vmem:[%s1 + $0x280] sm:$0xf]
  %v218 = vld [vmem:[%s1 + $0x284] sm:$0xf]
  %v219 = vld [vmem:[%s1 + $0x288] sm:$0xf]
  %v220 = vld [vmem:[%s1 + $0x28c] sm:$0xf]
  %v221 = vld [vmem:[%s1 + $0x290] sm:$0xf]
  %v222 = vld [vmem:[%s1 + $0x294] sm:$0xf]
  %v223 = vld [vmem:[%s1 + $0x298] sm:$0xf]
  %v224 = vld [vmem:[%s1 + $0x29c] sm:$0xf]
  %v225 = vld [vmem:[%s1 + $0x2a0] sm:$0xf]
  %v226 = vld [vmem:[%s1 + $0x2a4] sm:$0xf]
  %v227 = vld [vmem:[%s1 + $0x2a8] sm:$0xf]
  %v228 = vld [vmem:[%s1 + $0x2ac] sm:$0xf]
  %v229 = vld [vmem:[%s1 + $0x2b0] sm:$0xf]
  %v230 = vld [vmem:[%s1 + $0x2b4] sm:$0xf]
  %v231 = vld [vmem:[%s1 + $0x2b8] sm:$0xf]
  %v232 = vld [vmem:[%s1 + $0x2bc] sm:$0xf]
  %v233 = vld [vmem:[%s1 + $0x2c0] sm:$0xf]
  %v234 = vld [vmem:[%s1 + $0x2c4] sm:$0xf]
  %v235 = vld [vmem:[%s1 + $0x2c8] sm:$0xf]
  %v236 = vld [vmem:[%s1 + $0x2cc] sm:$0xf]
  %v237 = vld [vmem:[%s1 + $0x2d0] sm:$0xf]
  %v238 = vld [vmem:[%s1 + $0x2d4] sm:$0xf]
  %v239 = vld [vmem:[%s1 + $0x2d8] sm:$0xf]
  %v240 = vld [vmem:[%s1 + $0x2dc] sm:$0xf]
  %v241 = vld [vmem:[%s1 + $0x2e0] sm:$0xf]
  %v242 = vld [vmem:[%s1 + $0x2e4] sm:$0xf]
  %v243 = vld [vmem:[%s1 + $0x2e8] sm:$0xf]
  %v244 = vld [vmem:[%s1 + $0x2ec] sm:$0xf]
  %v245 = vld [vmem:[%s1 + $0x2f0] sm:$0xf]
  %v246 = vld [vmem:[%s1 + $0x2f4] sm:$0xf]
  %v247 = vld [vmem:[%s1 + $0x2f8] sm:$0xf]
  %v248 = vld [vmem:[%s1 + $0x2fc] sm:$0xf]
  %v249 = vld [vmem:[%s1 + $0x300] sm:$0xf]
  %v250 = vld [vmem:[%s1 + $0x304] sm:$0xf]
  %v251 = vld [vmem:[%s1 + $0x308] sm:$0xf]
  %v252 = vld [vmem:[%s1 + $0x30c] sm:$0xf]
  %v253 = vld [vmem:[%s1 + $0x310] sm:$0xf]
  %v254 = vld [vmem:[%s1 + $0x314] sm:$0xf]
  %v255 = vld [vmem:[%s1 + $0x318] sm:$0xf]
  %v256 = vld [vmem:[%s1 + $0x31c] sm:$0xf]
  %v257 = vld [vmem:[%s1 + $0x320] sm:$0xf]
  %v258 = vld [vmem:[%s1 + $0x324] sm:$0xf]
  %v259 = vld [vmem:[%s1 + $0x328] sm:$0xf]
  %v260 = vld [vmem:[%s1 + $0x32c] sm:$0xf]
  %v261 = vld [vmem:[%s1 + $0x330] sm:$0xf]
  %v262 = vld [vmem:[%s1 + $0x334] sm:$0xf]
  %v263 = vld [vmem:[%s1 + $0x338] sm:$0xf]
  %v264 = vld [vmem:[%s1 + $0x33c] sm:$0xf]
  %v265 = vld [vmem:[%s1 + $0x340] sm:$0xf]
  %v266 = vld [vmem:[%s1 + $0x344] sm:$0xf]
  %v267 = vld [vmem:[%s1 + $0x348] sm:$0xf]
  %v268 = vld [vmem:[%s1 + $0x34c] sm:$0xf]
  %v269 = vld [vmem:[%s1 + $0x350] sm:$0xf]
  %v270 = vld [vmem:[%s1 + $0x354] sm:$0xf]
  %v271 = vld [vmem:[%s1 + $0x358] sm:$0xf]
  %v272 = vld [vmem:[%s1 + $0x35c] sm:$0xf]
  %v273 = vld [vmem:[%s1 + $0x360] sm:$0xf]
  %v274 = vld [vmem:[%s1 + $0x364] sm:$0xf]
  %v275 = vld [vmem:[%s1 + $0x368] sm:$0xf]
  %v276 = vld [vmem:[%s1 + $0x36c] sm:$0xf]
  %v277 = vld [vmem:[%s1 + $0x370] sm:$0xf]
  %v278 = vld [vmem:[%s1 + $0x374] sm:$0xf]
  %v279 = vld [vmem:[%s1 + $0x378] sm:$0xf]
  %v280 = vld [vmem:[%s1 + $0x37c] sm:$0xf]
  %v281 = vld [vmem:[%s1 + $0x380] sm:$0xf]
  %v282 = vld [vmem:[%s1 + $0x384] sm:$0xf]
  %v283 = vld [vmem:[%s1 + $0x388] sm:$0xf]
  %v284 = vld [vmem:[%s1 + $0x38c] sm:$0xf]
  %v285 = vld [vmem:[%s1 + $0x390] sm:$0xf]
  %v286 = vld [vmem:[%s1 + $0x394] sm:$0xf]
  %v287 = vld [vmem:[%s1 + $0x398] sm:$0xf]
  %v288 = vld [vmem:[%s1 + $0x39c] sm:$0xf]
  %v289 = vld [vmem:[%s1 + $0x3a0] sm:$0xf]
  %v290 = vld [vmem:[%s1 + $0x3a4] sm:$0xf]
  %v291 = vld [vmem:[%s1 + $0x3a8] sm:$0xf]
  %v292 = vld [vmem:[%s1 + $0x3ac] sm:$0xf]
  %v293 = vld [vmem:[%s1 + $0x3b0] sm:$0xf]
  %v294 = vld [vmem:[%s1 + $0x3b4] sm:$0xf]
  %v295 = vld [vmem:[%s1 + $0x3b8] sm:$0xf]
  %v296 = vld [vmem:[%s1 + $0x3bc] sm:$0xf]
  %v297 = vld [vmem:[%s1 + $0x3c0] sm:$0xf]
  %v298 = vld [vmem:[%s1 + $0x3c4] sm:$0xf]
  %v299 = vld [vmem:[%s1 + $0x3c8] sm:$0xf]
  %v300 = vld [vmem:[%s1 + $0x3cc] sm:$0xf]
  %v301 = vld [vmem:[%s1 + $0x3d0] sm:$0xf]
  %v302 = vld [vmem:[%s1 + $0x3d4] sm:$0xf]
  %v303 = vld [vmem:[%s1 + $0x3d8] sm:$0xf]
  %v304 = vld [vmem:[%s1 + $0x3dc] sm:$0xf]
  %v305 = vld [vmem:[%s1 + $0x3e0] sm:$0xf]
  %v306 = vld [vmem:[%s1 + $0x3e4] sm:$0xf]
  %v307 = vld [vmem:[%s1 + $0x3e8] sm:$0xf]
  %v308 = vld [vmem:[%s1 + $0x3ec] sm:$0xf]
  %v309 = vld [vmem:[%s1 + $0x3f0] sm:$0xf]
  %v310 = vld [vmem:[%s1 + $0x3f4] sm:$0xf]
  %v311 = vld [vmem:[%s1 + $0x3f8] sm:$0xf]
  %v312 = vld [vmem:[%s1 + $0x3fc] sm:$0xf]
  %v313 = vld [vmem:[%s1 + $0x400] sm:$0xf]
  %v314 = vld [vmem:[%s1 + $0x404] sm:$0xf]
  %v315 = vld [vmem:[%s1 + $0x408] sm:$0xf]
  %v316 = vld [vmem:[%s1 + $0x40c] sm:$0xf]
  %v317 = vld [vmem:[%s1 + $0x410] sm:$0xf]
  %v318 = vld [vmem:[%s1 + $0x414] sm:$0xf]
  %v319 = vld [vmem:[%s1 + $0x418] sm:$0xf]
  %v320 = vld [vmem:[%s1 + $0x41c] sm:$0xf]
  %v321 = vld [vmem:[%s1 + $0x420] sm:$0xf]
  %v322 = vld [vmem:[%s1 + $0x424] sm:$0xf]
  %v323 = vld [vmem:[%s1 + $0x428] sm:$0xf]
  %v324 = vld [vmem:[%s1 + $0x42c] sm:$0xf]
  %v325 = vld [vmem:[%s1 + $0x430] sm:$0xf]
  %v326 = vld [vmem:[%s1 + $0x434] sm:$0xf]
  %v327 = vld [vmem:[%s1 + $0x438] sm:$0xf]
  %v328 = vld [vmem:[%s1 + $0x43c] sm:$0xf]
  %v329 = vld [vmem:[%s1 + $0x440] sm:$0xf]
  %v330 = vld [vmem:[%s1 + $0x444] sm:$0xf]
  %v331 = vld [vmem:[%s1 + $0x448] sm:$0xf]
  %v332 = vld [vmem:[%s1 + $0x44c] sm:$0xf]
  %v333 = vld [vmem:[%s1 + $0x450] sm:$0xf]
  %v334 = vld [vmem:[%s1 + $0x454] sm:$0xf]
  %v335 = vld [vmem:[%s1 + $0x458] sm:$0xf]
  %v336 = vld [vmem:[%s1 + $0x45c] sm:$0xf]
  %v337 = vld [vmem:[%s1 + $0x460] sm:$0xf]
  %v338 = vld [vmem:[%s1 + $0x464] sm:$0xf]
  %v339 = vld [vmem:[%s1 + $0x468] sm:$0xf]
  %v340 = vld [vmem:[%s1 + $0x46c] sm:$0xf]
  %v341 = vld [vmem:[%s1 + $0x470] sm:$0xf]
  %v342 = vld [vmem:[%s1 + $0x474] sm:$0xf]
  %v343 = vld [vmem:[%s1 + $0x478] sm:$0xf]
  %v344 = vld [vmem:[%s1 + $0x47c] sm:$0xf]
  %v345 = vld [vmem:[%s1 + $0x480] sm:$0xf]
  %v346 = vld [vmem:[%s1 + $0x484] sm:$0xf]
  %v347 = vld [vmem:[%s1 + $0x488] sm:$0xf]
  %v348 = vld [vmem:[%s1 + $0x48c] sm:$0xf]
  %v349 = vld [vmem:[%s1 + $0x490] sm:$0xf]
  %v350 = vld [vmem:[%s1 + $0x494] sm:$0xf]
  %v351 = vld [vmem:[%s1 + $0x498] sm:$0xf]
  %v352 = vld [vmem:[%s1 + $0x49c] sm:$0xf]
  %v353 = vld [vmem:[%s1 + $0x4a0] sm:$0xf]
  %v354 = vld [vmem:[%s1 + $0x4a4] sm:$0xf]
  %v355 = vld [vmem:[%s1 + $0x4a8] sm:$0xf]
  %v356 = vld [vmem:[%s1 + $0x4ac] sm:$0xf]
  %v357 = vld [vmem:[%s1 + $0x4b0] sm:$0xf]
  %v358 = vld [vmem:[%s1 + $0x4b4] sm:$0xf]
  %v359 = vld [vmem:[%s1 + $0x4b8] sm:$0xf]
  %v360 = vld [vmem:[%s1 + $0x4bc] sm:$0xf]
  %v361 = vld [vmem:[%s1 + $0x4c0] sm:$0xf]
  %v362 = vld [vmem:[%s1 + $0x4c4] sm:$0xf]
  %v363 = vld [vmem:[%s1 + $0x4c8] sm:$0xf]
  %v364 = vld [vmem:[%s1 + $0x4cc] sm:$0xf]
  %v365 = vld [vmem:[%s1 + $0x4d0] sm:$0xf]
  %v366 = vld [vmem:[%s1 + $0x4d4] sm:$0xf]
  %v367 = vld [vmem:[%s1 + $0x4d8] sm:$0xf]
  %v368 = vld [vmem:[%s1 + $0x4dc] sm:$0xf]
  %v369 = vld [vmem:[%s1 + $0x4e0] sm:$0xf]
  %v370 = vld [vmem:[%s1 + $0x4e4] sm:$0xf]
  %v371 = vld [vmem:[%s1 + $0x4e8] sm:$0xf]
  %v372 = vld [vmem:[%s1 + $0x4ec] sm:$0xf]
  %v373 = vld [vmem:[%s1 + $0x4f0] sm:$0xf]
  %v374 = vld [vmem:[%s1 + $0x4f4] sm:$0xf]
  %v375 = vld [vmem:[%s1 + $0x4f8] sm:$0xf]
  %v376 = vld [vmem:[%s1 + $0x4fc] sm:$0xf]
  %v377 = vld [vmem:[%s1 + $0x500] sm:$0xf]
  %v378 = vld [vmem:[%s1 + $0x504] sm:$0xf]
  %v379 = vld [vmem:[%s1 + $0x508] sm:$0xf]
  %v380 = vld [vmem:[%s1 + $0x50c] sm:$0xf]
  %v381 = vld [vmem:[%s1 + $0x510] sm:$0xf]
  %v382 = vld [vmem:[%s1 + $0x514] sm:$0xf]
  %v383 = vld [vmem:[%s1 + $0x518] sm:$0xf]
  %v384 = vld [vmem:[%s1 + $0x51c] sm:$0xf]
  %v385 = vld [vmem:[%s1 + $0x520] sm:$0xf]
  %v386 = vld [vmem:[%s1 + $0x524] sm:$0xf]
  %v387 = vld [vmem:[%s1 + $0x528] sm:$0xf]
  %v388 = vld [vmem:[%s1 + $0x52c] sm:$0xf]
  %v389 = vld [vmem:[%s1 + $0x530] sm:$0xf]
  %v390 = vld [vmem:[%s1 + $0x534] sm:$0xf]
  %v391 = vld [vmem:[%s1 + $0x538] sm:$0xf]
  %v392 = vld [vmem:[%s1 + $0x53c] sm:$0xf]
  %v393 = vld [vmem:[%s1 + $0x540] sm:$0xf]
  %v394 = vld [vmem:[%s1 + $0x544] sm:$0xf]
  %v395 = vld [vmem:[%s1 + $0x548] sm:$0xf]
  %v396 = vld [vmem:[%s1 + $0x54c] sm:$0xf]
  %v397 = vld [vmem:[%s1 + $0x550] sm:$0xf]
  %v398 = vld [vmem:[%s1 + $0x554] sm:$0xf]
  %v399 = vld [vmem:[%s1 + $0x558] sm:$0xf]
  %v400 = vld [vmem:[%s1 + $0x55c] sm:$0xf]
  %v401 = vld [vmem:[%s1 + $0x560] sm:$0xf]
  %v402 = vld [vmem:[%s1 + $0x564] sm:$0xf]
  %v403 = vld [vmem:[%s1 + $0x568] sm:$0xf]
  %v404 = vld [vmem:[%s1 + $0x56c] sm:$0xf]
  %v405 = vld [vmem:[%s1 + $0x570] sm:$0xf]
  %v406 = vld [vmem:[%s1 + $0x574] sm:$0xf]
  %v407 = vld [vmem:[%s1 + $0x578] sm:$0xf]
  %v408 = vld [vmem:[%s1 + $0x57c] sm:$0xf]
  %v409 = vld [vmem:[%s1 + $0x580] sm:$0xf]
  %v410 = vld [vmem:[%s1 + $0x584] sm:$0xf]
  %v411 = vld [vmem:[%s1 + $0x588] sm:$0xf]
  %v412 = vld [vmem:[%s1 + $0x58c] sm:$0xf]
  %v413 = vld [vmem:[%s1 + $0x590] sm:$0xf]
  %v414 = vld [vmem:[%s1 + $0x594] sm:$0xf]
  %v415 = vld [vmem:[%s1 + $0x598] sm:$0xf]
  %v416 = vld [vmem:[%s1 + $0x59c] sm:$0xf]
  %v417 = vld [vmem:[%s1 + $0x5a0] sm:$0xf]
  %v418 = vld [vmem:[%s1 + $0x5a4] sm:$0xf]
  %v419 = vld [vmem:[%s1 + $0x5a8] sm:$0xf]
  %v420 = vld [vmem:[%s1 + $0x5ac] sm:$0xf]
  %v421 = vld [vmem:[%s1 + $0x5b0] sm:$0xf]
  %v422 = vld [vmem:[%s1 + $0x5b4] sm:$0xf]
  %v423 = vld [vmem:[%s1 + $0x5b8] sm:$0xf]
  %v424 = vld [vmem:[%s1 + $0x5bc] sm:$0xf]
  %v425 = vld [vmem:[%s1 + $0x5c0] sm:$0xf]
  %v426 = vld [vmem:[%s1 + $0x5c4] sm:$0xf]
  %v427 = vld [vmem:[%s1 + $0x5c8] sm:$0xf]
  %v428 = vld [vmem:[%s1 + $0x5cc] sm:$0xf]
  %v429 = vld [vmem:[%s1 + $0x5d0] sm:$0xf]
  %v430 = vld [vmem:[%s1 + $0x5d4] sm:$0xf]
  %v431 = vld [vmem:[%s1 + $0x5d8] sm:$0xf]
  %v432 = vld [vmem:[%s1 + $0x5dc] sm:$0xf]
  %v433 = vld [vmem:[%s1 + $0x5e0] sm:$0xf]
  %v434 = vld [vmem:[%s1 + $0x5e4] sm:$0xf]
  %v435 = vld [vmem:[%s1 + $0x5e8] sm:$0xf]
  %v436 = vld [vmem:[%s1 + $0x5ec] sm:$0xf]
  %v437 = vld [vmem:[%s1 + $0x5f0] sm:$0xf]
  %v438 = vld [vmem:[%s1 + $0x5f4] sm:$0xf]
  %v439 = vld [vmem:[%s1 + $0x5f8] sm:$0xf]
  %v440 = vld [vmem:[%s1 + $0x5fc] sm:$0xf]
  %v441 = vld [vmem:[%s1 + $0x600] sm:$0xf]
  %v442 = vld [vmem:[%s1 + $0x604] sm:$0xf]
  %v443 = vld [vmem:[%s1 + $0x608] sm:$0xf]
  %v444 = vld [vmem:[%s1 + $0x60c] sm:$0xf]
  %v445 = vld [vmem:[%s1 + $0x610] sm:$0xf]
  %v446 = vld [vmem:[%s1 + $0x614] sm:$0xf]
  %v447 = vld [vmem:[%s1 + $0x618] sm:$0xf]
  %v448 = vld [vmem:[%s1 + $0x61c] sm:$0xf]
  %v449 = vld [vmem:[%s1 + $0x620] sm:$0xf]
  %v450 = vld [vmem:[%s1 + $0x624] sm:$0xf]
  %v451 = vld [vmem:[%s1 + $0x628] sm:$0xf]
  %v452 = vld [vmem:[%s1 + $0x62c] sm:$0xf]
  %v453 = vld [vmem:[%s1 + $0x630] sm:$0xf]
  %v454 = vld [vmem:[%s1 + $0x634] sm:$0xf]
  %v455 = vld [vmem:[%s1 + $0x638] sm:$0xf]
  %v456 = vld [vmem:[%s1 + $0x63c] sm:$0xf]
  %v457 = vld [vmem:[%s1 + $0x640] sm:$0xf]
  %v458 = vld [vmem:[%s1 + $0x644] sm:$0xf]
  %v459 = vld [vmem:[%s1 + $0x648] sm:$0xf]
  %v460 = vld [vmem:[%s1 + $0x64c] sm:$0xf]
  %v461 = vld [vmem:[%s1 + $0x650] sm:$0xf]
  %v462 = vld [vmem:[%s1 + $0x654] sm:$0xf]
  %v463 = vld [vmem:[%s1 + $0x658] sm:$0xf]
  %v464 = vld [vmem:[%s1 + $0x65c] sm:$0xf]
  %v465 = vld [vmem:[%s1 + $0x660] sm:$0xf]
  %v466 = vld [vmem:[%s1 + $0x664] sm:$0xf]
  %v467 = vld [vmem:[%s1 + $0x668] sm:$0xf]
  %v468 = vld [vmem:[%s1 + $0x66c] sm:$0xf]
  %v469 = vld [vmem:[%s1 + $0x670] sm:$0xf]
  %v470 = vld [vmem:[%s1 + $0x674] sm:$0xf]
  %v471 = vld [vmem:[%s1 + $0x678] sm:$0xf]
  %v472 = vld [vmem:[%s1 + $0x67c] sm:$0xf]
  %v473 = vld [vmem:[%s1 + $0x680] sm:$0xf]
  %v474 = vld [vmem:[%s1 + $0x684] sm:$0xf]
  %v475 = vld [vmem:[%s1 + $0x688] sm:$0xf]
  %v476 = vld [vmem:[%s1 + $0x68c] sm:$0xf]
  %v477 = vld [vmem:[%s1 + $0x690] sm:$0xf]
  %v478 = vld [vmem:[%s1 + $0x694] sm:$0xf]
  %v479 = vld [vmem:[%s1 + $0x698] sm:$0xf]
  %v480 = vld [vmem:[%s1 + $0x69c] sm:$0xf]
  %v481 = vld [vmem:[%s1 + $0x6a0] sm:$0xf]
  %v482 = vld [vmem:[%s1 + $0x6a4] sm:$0xf]
  %v483 = vld [vmem:[%s1 + $0x6a8] sm:$0xf]
  %v484 = vld [vmem:[%s1 + $0x6ac] sm:$0xf]
  %v485 = vld [vmem:[%s1 + $0x6b0] sm:$0xf]
  %v486 = vld [vmem:[%s1 + $0x6b4] sm:$0xf]
  %v487 = vld [vmem:[%s1 + $0x6b8] sm:$0xf]
  %v488 = vld [vmem:[%s1 + $0x6bc] sm:$0xf]
  %v489 = vld [vmem:[%s1 + $0x6c0] sm:$0xf]
  %v490 = vld [vmem:[%s1 + $0x6c4] sm:$0xf]
  %v491 = vld [vmem:[%s1 + $0x6c8] sm:$0xf]
  %v492 = vld [vmem:[%s1 + $0x6cc] sm:$0xf]
  %v493 = vld [vmem:[%s1 + $0x6d0] sm:$0xf]
  %v494 = vld [vmem:[%s1 + $0x6d4] sm:$0xf]
  %v495 = vld [vmem:[%s1 + $0x6d8] sm:$0xf]
  %v496 = vld [vmem:[%s1 + $0x6dc] sm:$0xf]
  %v497 = vld [vmem:[%s1 + $0x6e0] sm:$0xf]
  %v498 = vld [vmem:[%s1 + $0x6e4] sm:$0xf]
  %v499 = vld [vmem:[%s1 + $0x6e8] sm:$0xf]
  %v500 = vld [vmem:[%s1 + $0x6ec] sm:$0xf]
  %v501 = vld [vmem:[%s1 + $0x6f0] sm:$0xf]
  %v502 = vld [vmem:[%s1 + $0x6f4] sm:$0xf]
  %v503 = vld [vmem:[%s1 + $0x6f8] sm:$0xf]
  %v504 = vld [vmem:[%s1 + $0x6fc] sm:$0xf]
  %v505 = vld [vmem:[%s1 + $0x700] sm:$0xf]
  %v506 = vld [vmem:[%s1 + $0x704] sm:$0xf]
  %v507 = vld [vmem:[%s1 + $0x708] sm:$0xf]
  %v508 = vld [vmem:[%s1 + $0x70c] sm:$0xf]
  %v509 = vld [vmem:[%s1 + $0x710] sm:$0xf]
  %v510 = vld [vmem:[%s1 + $0x714] sm:$0xf]
  %v511 = vld [vmem:[%s1 + $0x718] sm:$0xf]
  %v512 = vld [vmem:[%s1 + $0x71c] sm:$0xf]
  %v513 = vld [vmem:[%s1 + $0x720] sm:$0xf]
  %v514 = vld [vmem:[%s1 + $0x724] sm:$0xf]
  %v515 = vld [vmem:[%s1 + $0x728] sm:$0xf]
  %v516 = vld [vmem:[%s1 + $0x72c] sm:$0xf]
  %v517 = vld [vmem:[%s1 + $0x730] sm:$0xf]
  %v518 = vld [vmem:[%s1 + $0x734] sm:$0xf]
  %v519 = vld [vmem:[%s1 + $0x738] sm:$0xf]
  %v520 = vld [vmem:[%s1 + $0x73c] sm:$0xf]
  %v521 = vld [vmem:[%s1 + $0x740] sm:$0xf]
  %v522 = vld [vmem:[%s1 + $0x744] sm:$0xf]
  %v523 = vld [vmem:[%s1 + $0x748] sm:$0xf]
  %v524 = vld [vmem:[%s1 + $0x74c] sm:$0xf]
  %v525 = vld [vmem:[%s1 + $0x750] sm:$0xf]
  %v526 = vld [vmem:[%s1 + $0x754] sm:$0xf]
  %v527 = vld [vmem:[%s1 + $0x758] sm:$0xf]
  %v528 = vld [vmem:[%s1 + $0x75c] sm:$0xf]
  %v529 = vld [vmem:[%s1 + $0x760] sm:$0xf]
  %v530 = vld [vmem:[%s1 + $0x764] sm:$0xf]
  %v531 = vld [vmem:[%s1 + $0x768] sm:$0xf]
  %v532 = vld [vmem:[%s1 + $0x76c] sm:$0xf]
  %v533 = vld [vmem:[%s1 + $0x770] sm:$0xf]
  %v534 = vld [vmem:[%s1 + $0x774] sm:$0xf]
  %v535 = vld [vmem:[%s1 + $0x778] sm:$0xf]
  %v536 = vld [vmem:[%s1 + $0x77c] sm:$0xf]
  %v537 = vld [vmem:[%s1 + $0x780] sm:$0xf]
  %v538 = vld [vmem:[%s1 + $0x784] sm:$0xf]
  %v539 = vld [vmem:[%s1 + $0x788] sm:$0xf]
  %v540 = vld [vmem:[%s1 + $0x78c] sm:$0xf]
  %v541 = vld [vmem:[%s1 + $0x790] sm:$0xf]
  %v542 = vld [vmem:[%s1 + $0x794] sm:$0xf]
  %v543 = vld [vmem:[%s1 + $0x798] sm:$0xf]
  %v544 = vld [vmem:[%s1 + $0x79c] sm:$0xf]
  %v545 = vld [vmem:[%s1 + $0x7a0] sm:$0xf]
  %v546 = vld [vmem:[%s1 + $0x7a4] sm:$0xf]
  %v547 = vld [vmem:[%s1 + $0x7a8] sm:$0xf]
  %v548 = vld [vmem:[%s1 + $0x7ac] sm:$0xf]
  %v549 = vld [vmem:[%s1 + $0x7b0] sm:$0xf]
  %v550 = vld [vmem:[%s1 + $0x7b4] sm:$0xf]
  %v551 = vld [vmem:[%s1 + $0x7b8] sm:$0xf]
  %v552 = vld [vmem:[%s1 + $0x7bc] sm:$0xf]
  %v553 = vld [vmem:[%s1 + $0x7c0] sm:$0xf]
  %v554 = vld [vmem:[%s1 + $0x7c4] sm:$0xf]
  %v555 = vld [vmem:[%s1 + $0x7c8] sm:$0xf]
  %v556 = vld [vmem:[%s1 + $0x7cc] sm:$0xf]
  %v557 = vld [vmem:[%s1 + $0x7d0] sm:$0xf]
  %v558 = vld [vmem:[%s1 + $0x7d4] sm:$0xf]
  %v559 = vld [vmem:[%s1 + $0x7d8] sm:$0xf]
  %v560 = vld [vmem:[%s1 + $0x7dc] sm:$0xf]
  %v561 = vld [vmem:[%s1 + $0x7e0] sm:$0xf]
  %v562 = vld [vmem:[%s1 + $0x7e4] sm:$0xf]
  %v563 = vld [vmem:[%s1 + $0x7e8] sm:$0xf]
  %v564 = vld [vmem:[%s1 + $0x7ec] sm:$0xf]
  %v565 = vld [vmem:[%s1 + $0x7f0] sm:$0xf]
  %v566 = vld [vmem:[%s1 + $0x7f4] sm:$0xf]
  %v567 = vld [vmem:[%s1 + $0x7f8] sm:$0xf]
  %v568 = vld [vmem:[%s1 + $0x7fc] sm:$0xf]
  %v569 = vld [vmem:[%s1 + $0x800] sm:$0xf]
  %v570 = vld [vmem:[%s1 + $0x804] sm:$0xf]
  %v571 = vld [vmem:[%s1 + $0x808] sm:$0xf]
  %v572 = vld [vmem:[%s1 + $0x80c] sm:$0xf]
  %v573 = vld [vmem:[%s1 + $0x810] sm:$0xf]
  %v574 = vld [vmem:[%s1 + $0x814] sm:$0xf]
  %v575 = vld [vmem:[%s1 + $0x818] sm:$0xf]
  %v576 = vld [vmem:[%s1 + $0x81c] sm:$0xf]
  %v577 = vld [vmem:[%s1 + $0x820] sm:$0xf]
  %v578 = vld [vmem:[%s1 + $0x824] sm:$0xf]
  %v579 = vld [vmem:[%s1 + $0x828] sm:$0xf]
  %v580 = vld [vmem:[%s1 + $0x82c] sm:$0xf]
  %v581 = vld [vmem:[%s1 + $0x830] sm:$0xf]
  %v582 = vld [vmem:[%s1 + $0x834] sm:$0xf]
  %v583 = vld [vmem:[%s1 + $0x838] sm:$0xf]
  %v584 = vld [vmem:[%s1 + $0x83c] sm:$0xf]
  %v585 = vld [vmem:[%s1 + $0x840] sm:$0xf]
  %v586 = vld [vmem:[%s1 + $0x844] sm:$0xf]
  %v587 = vld [vmem:[%s1 + $0x848] sm:$0xf]
  %v588 = vld [vmem:[%s1 + $0x84c] sm:$0xf]
  %v589 = vld [vmem:[%s1 + $0x850] sm:$0xf]
  %v590 = vld [vmem:[%s1 + $0x854] sm:$0xf]
  %v591 = vld [vmem:[%s1 + $0x858] sm:$0xf]
  %v592 = vld [vmem:[%s1 + $0x85c] sm:$0xf]
  %v593 = vld [vmem:[%s1 + $0x860] sm:$0xf]
  %v594 = vld [vmem:[%s1 + $0x864] sm:$0xf]
  %v595 = vld [vmem:[%s1 + $0x868] sm:$0xf]
  %v596 = vld [vmem:[%s1 + $0x86c] sm:$0xf]
  %v597 = vld [vmem:[%s1 + $0x870] sm:$0xf]
  %v598 = vld [vmem:[%s1 + $0x874] sm:$0xf]
  %v599 = vld [vmem:[%s1 + $0x878] sm:$0xf]
  %v600 = vld [vmem:[%s1 + $0x87c] sm:$0xf]
  %v601 = vld [vmem:[%s1 + $0x880] sm:$0xf]
  %v602 = vld [vmem:[%s1 + $0x884] sm:$0xf]
  %v603 = vld [vmem:[%s1 + $0x888] sm:$0xf]
  %v604 = vld [vmem:[%s1 + $0x88c] sm:$0xf]
  %v605 = vld [vmem:[%s1 + $0x890] sm:$0xf]
  %v606 = vld [vmem:[%s1 + $0x894] sm:$0xf]
  %v607 = vld [vmem:[%s1 + $0x898] sm:$0xf]
  %v608 = vld [vmem:[%s1 + $0x89c] sm:$0xf]
  %v609 = vld [vmem:[%s1 + $0x8a0] sm:$0xf]
  %v610 = vld [vmem:[%s1 + $0x8a4] sm:$0xf]
  %v611 = vld [vmem:[%s1 + $0x8a8] sm:$0xf]
  %v612 = vld [vmem:[%s1 + $0x8ac] sm:$0xf]
  %v613 = vld [vmem:[%s1 + $0x8b0] sm:$0xf]
  %v614 = vld [vmem:[%s1 + $0x8b4] sm:$0xf]
  %v615 = vld [vmem:[%s1 + $0x8b8] sm:$0xf]
  %v616 = vld [vmem:[%s1 + $0x8bc] sm:$0xf]
  %v617 = vld [vmem:[%s1 + $0x8c0] sm:$0xf]
  %v618 = vld [vmem:[%s1 + $0x8c4] sm:$0xf]
  %v619 = vld [vmem:[%s1 + $0x8c8] sm:$0xf]
  %v620 = vld [vmem:[%s1 + $0x8cc] sm:$0xf]
  %v621 = vld [vmem:[%s1 + $0x8d0] sm:$0xf]
  %v622 = vld [vmem:[%s1 + $0x8d4] sm:$0xf]
  %v623 = vld [vmem:[%s1 + $0x8d8] sm:$0xf]
  %v624 = vld [vmem:[%s1 + $0x8dc] sm:$0xf]
  %v625 = vld [vmem:[%s1 + $0x8e0] sm:$0xf]
  %v626 = vld [vmem:[%s1 + $0x8e4] sm:$0xf]
  %v627 = vld [vmem:[%s1 + $0x8e8] sm:$0xf]
  %v628 = vld [vmem:[%s1 + $0x8ec] sm:$0xf]
  %v629 = vld [vmem:[%s1 + $0x8f0] sm:$0xf]
  %v630 = vld [vmem:[%s1 + $0x8f4] sm:$0xf]
  %v631 = vld [vmem:[%s1 + $0x8f8] sm:$0xf]
  %v632 = vld [vmem:[%s1 + $0x8fc] sm:$0xf]
  %v633 = vld [vmem:[%s1 + $0x900] sm:$0xf]
  %v634 = vld [vmem:[%s1 + $0x904] sm:$0xf]
  %v635 = vld [vmem:[%s1 + $0x908] sm:$0xf]
  %v636 = vld [vmem:[%s1 + $0x90c] sm:$0xf]
  %v637 = vld [vmem:[%s1 + $0x910] sm:$0xf]
  %v638 = vld [vmem:[%s1 + $0x914] sm:$0xf]
  %v639 = vld [vmem:[%s1 + $0x918] sm:$0xf]
  %v640 = vld [vmem:[%s1 + $0x91c] sm:$0xf]
  %v641 = vld [vmem:[%s1 + $0x920] sm:$0xf]
  %v642 = vld [vmem:[%s1 + $0x924] sm:$0xf]
  %v643 = vld [vmem:[%s1 + $0x928] sm:$0xf]
  %v644 = vld [vmem:[%s1 + $0x92c] sm:$0xf]
  %v645 = vld [vmem:[%s1 + $0x930] sm:$0xf]
  %v646 = vld [vmem:[%s1 + $0x934] sm:$0xf]
  %v647 = vld [vmem:[%s1 + $0x938] sm:$0xf]
  %v648 = vld [vmem:[%s1 + $0x93c] sm:$0xf]
  %v649 = vld [vmem:[%s1 + $0x940] sm:$0xf]
  %v650 = vld [vmem:[%s1 + $0x944] sm:$0xf]
  %v651 = vld [vmem:[%s1 + $0x948] sm:$0xf]
  %v652 = vld [vmem:[%s1 + $0x94c] sm:$0xf]
  %v653 = vld [vmem:[%s1 + $0x950] sm:$0xf]
  %v654 = vld [vmem:[%s1 + $0x954] sm:$0xf]
  %v655 = vld [vmem:[%s1 + $0x958] sm:$0xf]
  %v656 = vld [vmem:[%s1 + $0x95c] sm:$0xf]
  %v657 = vld [vmem:[%s1 + $0x960] sm:$0xf]
  %v658 = vld [vmem:[%s1 + $0x964] sm:$0xf]
  %v659 = vld [vmem:[%s1 + $0x968] sm:$0xf]
  %v660 = vld [vmem:[%s1 + $0x96c] sm:$0xf]
  %v661 = vld [vmem:[%s1 + $0x970] sm:$0xf]
  %v662 = vld [vmem:[%s1 + $0x974] sm:$0xf]
  %v663 = vld [vmem:[%s1 + $0x978] sm:$0xf]
  %v664 = vld [vmem:[%s1 + $0x97c] sm:$0xf]
  %v665 = vld [vmem:[%s1 + $0x980] sm:$0xf]
  %v666 = vld [vmem:[%s1 + $0x984] sm:$0xf]
  %v667 = vld [vmem:[%s1 + $0x988] sm:$0xf]
  %v668 = vld [vmem:[%s1 + $0x98c] sm:$0xf]
  %v669 = vld [vmem:[%s1 + $0x990] sm:$0xf]
  %v670 = vld [vmem:[%s1 + $0x994] sm:$0xf]
  %v671 = vld [vmem:[%s1 + $0x998] sm:$0xf]
  %v672 = vld [vmem:[%s1 + $0x99c] sm:$0xf]
  %v673 = vld [vmem:[%s1 + $0x9a0] sm:$0xf]
  %v674 = vld [vmem:[%s1 + $0x9a4] sm:$0xf]
  %v675 = vld [vmem:[%s1 + $0x9a8] sm:$0xf]
  %v676 = vld [vmem:[%s1 + $0x9ac] sm:$0xf]
  %v677 = vld [vmem:[%s1 + $0x9b0] sm:$0xf]
  %v678 = vld [vmem:[%s1 + $0x9b4] sm:$0xf]
  %v679 = vld [vmem:[%s1 + $0x9b8] sm:$0xf]
  %v680 = vld [vmem:[%s1 + $0x9bc] sm:$0xf]
  %v681 = vld [vmem:[%s1 + $0x9c0] sm:$0xf]
  %v682 = vld [vmem:[%s1 + $0x9c4] sm:$0xf]
  %v683 = vld [vmem:[%s1 + $0x9c8] sm:$0xf]
  %v684 = vld [vmem:[%s1 + $0x9cc] sm:$0xf]
  %v685 = vld [vmem:[%s1 + $0x9d0] sm:$0xf]
  %v686 = vld [vmem:[%s1 + $0x9d4] sm:$0xf]
  %v687 = vld [vmem:[%s1 + $0x9d8] sm:$0xf]
  %v688 = vld [vmem:[%s1 + $0x9dc] sm:$0xf]
  %v689 = vld [vmem:[%s1 + $0x9e0] sm:$0xf]
  %v690 = vld [vmem:[%s1 + $0x9e4] sm:$0xf]
  %v691 = vld [vmem:[%s1 + $0x9e8] sm:$0xf]
  %v692 = vld [vmem:[%s1 + $0x9ec] sm:$0xf]
  %v693 = vld [vmem:[%s1 + $0x9f0] sm:$0xf]
  %v694 = vld [vmem:[%s1 + $0x9f4] sm:$0xf]
  %v695 = vld [vmem:[%s1 + $0x9f8] sm:$0xf]
  %v696 = vld [vmem:[%s1 + $0x9fc] sm:$0xf]
  %v697 = vld [vmem:[%s1 + $0xa00] sm:$0xf]
  %v698 = vld [vmem:[%s1 + $0xa04] sm:$0xf]
  %v699 = vld [vmem:[%s1 + $0xa08] sm:$0xf]
  %v700 = vld [vmem:[%s1 + $0xa0c] sm:$0xf]
  %v701 = vld [vmem:[%s1 + $0xa10] sm:$0xf]
  %v702 = vld [vmem:[%s1 + $0xa14] sm:$0xf]
  %v703 = vld [vmem:[%s1 + $0xa18] sm:$0xf]
  %v704 = vld [vmem:[%s1 + $0xa1c] sm:$0xf]
  %v705 = vld [vmem:[%s1 + $0xa20] sm:$0xf]
  %v706 = vld [vmem:[%s1 + $0xa24] sm:$0xf]
  %v707 = vld [vmem:[%s1 + $0xa28] sm:$0xf]
  %v708 = vld [vmem:[%s1 + $0xa2c] sm:$0xf]
  %v709 = vld [vmem:[%s1 + $0xa30] sm:$0xf]
  %v710 = vld [vmem:[%s1 + $0xa34] sm:$0xf]
  %v711 = vld [vmem:[%s1 + $0xa38] sm:$0xf]
  %v712 = vld [vmem:[%s1 + $0xa3c] sm:$0xf]
  %v713 = vld [vmem:[%s1 + $0xa40] sm:$0xf]
  %v714 = vld [vmem:[%s1 + $0xa44] sm:$0xf]
  %v715 = vld [vmem:[%s1 + $0xa48] sm:$0xf]
  %v716 = vld [vmem:[%s1 + $0xa4c] sm:$0xf]
  %v717 = vld [vmem:[%s1 + $0xa50] sm:$0xf]
  %v718 = vld [vmem:[%s1 + $0xa54] sm:$0xf]
  %v719 = vld [vmem:[%s1 + $0xa58] sm:$0xf]
  %v720 = vld [vmem:[%s1 + $0xa5c] sm:$0xf]
  %v721 = vld [vmem:[%s1 + $0xa60] sm:$0xf]
  %v722 = vld [vmem:[%s1 + $0xa64] sm:$0xf]
  %v723 = vld [vmem:[%s1 + $0xa68] sm:$0xf]
  %v724 = vld [vmem:[%s1 + $0xa6c] sm:$0xf]
  %v725 = vld [vmem:[%s1 + $0xa70] sm:$0xf]
  %v726 = vld [vmem:[%s1 + $0xa74] sm:$0xf]
  %v727 = vld [vmem:[%s1 + $0xa78] sm:$0xf]
  %v728 = vld [vmem:[%s1 + $0xa7c] sm:$0xf]
  %v729 = vld [vmem:[%s1 + $0xa80] sm:$0xf]
  %v730 = vld [vmem:[%s1 + $0xa84] sm:$0xf]
  %v731 = vld [vmem:[%s1 + $0xa88] sm:$0xf]
  %v732 = vld [vmem:[%s1 + $0xa8c] sm:$0xf]
  %v733 = vld [vmem:[%s1 + $0xa90] sm:$0xf]
  %v734 = vld [vmem:[%s1 + $0xa94] sm:$0xf]
  %v735 = vld [vmem:[%s1 + $0xa98] sm:$0xf]
  %v736 = vld [vmem:[%s1 + $0xa9c] sm:$0xf]
  %v737 = vld [vmem:[%s1 + $0xaa0] sm:$0xf]
  %v738 = vld [vmem:[%s1 + $0xaa4] sm:$0xf]
  %v739 = vld [vmem:[%s1 + $0xaa8] sm:$0xf]
  %v740 = vld [vmem:[%s1 + $0xaac] sm:$0xf]
  %v741 = vld [vmem:[%s1 + $0xab0] sm:$0xf]
  %v742 = vld [vmem:[%s1 + $0xab4] sm:$0xf]
  %v743 = vld [vmem:[%s1 + $0xab8] sm:$0xf]
  %v744 = vld [vmem:[%s1 + $0xabc] sm:$0xf]
  %v745 = vld [vmem:[%s1 + $0xac0] sm:$0xf]
  %v746 = vld [vmem:[%s1 + $0xac4] sm:$0xf]
  %v747 = vld [vmem:[%s1 + $0xac8] sm:$0xf]
  %v748 = vld [vmem:[%s1 + $0xacc] sm:$0xf]
  %v749 = vld [vmem:[%s1 + $0xad0] sm:$0xf]
  %v750 = vld [vmem:[%s1 + $0xad4] sm:$0xf]
  %v751 = vld [vmem:[%s1 + $0xad8] sm:$0xf]
  %v752 = vld [vmem:[%s1 + $0xadc] sm:$0xf]
  %v753 = vld [vmem:[%s1 + $0xae0] sm:$0xf]
  %v754 = vld [vmem:[%s1 + $0xae4] sm:$0xf]
  %v755 = vld [vmem:[%s1 + $0xae8] sm:$0xf]
  %v756 = vld [vmem:[%s1 + $0xaec] sm:$0xf]
  %v757 = vld [vmem:[%s1 + $0xaf0] sm:$0xf]
  %v758 = vld [vmem:[%s1 + $0xaf4] sm:$0xf]
  %v759 = vld [vmem:[%s1 + $0xaf8] sm:$0xf]
  %v760 = vld [vmem:[%s1 + $0xafc] sm:$0xf]
  %v761 = vld [vmem:[%s1 + $0xb00] sm:$0xf]
  %v762 = vld [vmem:[%s1 + $0xb04] sm:$0xf]
  %v763 = vld [vmem:[%s1 + $0xb08] sm:$0xf]
  %v764 = vld [vmem:[%s1 + $0xb0c] sm:$0xf]
  %v765 = vld [vmem:[%s1 + $0xb10] sm:$0xf]
  %v766 = vld [vmem:[%s1 + $0xb14] sm:$0xf]
  %v767 = vld [vmem:[%s1 + $0xb18] sm:$0xf]
  %v768 = vld [vmem:[%s1 + $0xb1c] sm:$0xf]
  %v769 = vld [vmem:[%s1 + $0xb20] sm:$0xf]
  %v770 = vld [vmem:[%s1 + $0xb24] sm:$0xf]
  %v771 = vld [vmem:[%s1 + $0xb28] sm:$0xf]
  %v772 = vld [vmem:[%s1 + $0xb2c] sm:$0xf]
  %v773 = vld [vmem:[%s1 + $0xb30] sm:$0xf]
  %v774 = vld [vmem:[%s1 + $0xb34] sm:$0xf]
  %v775 = vld [vmem:[%s1 + $0xb38] sm:$0xf]
  %v776 = vld [vmem:[%s1 + $0xb3c] sm:$0xf]
  %v777 = vld [vmem:[%s1 + $0xb40] sm:$0xf]
  %v778 = vld [vmem:[%s1 + $0xb44] sm:$0xf]
  %v779 = vld [vmem:[%s1 + $0xb48] sm:$0xf]
  %v780 = vld [vmem:[%s1 + $0xb4c] sm:$0xf]
  %v781 = vld [vmem:[%s1 + $0xb50] sm:$0xf]
  %v782 = vld [vmem:[%s1 + $0xb54] sm:$0xf]
  %v783 = vld [vmem:[%s1 + $0xb58] sm:$0xf]
  %v784 = vld [vmem:[%s1 + $0xb5c] sm:$0xf]
  %v785 = vld [vmem:[%s1 + $0xb60] sm:$0xf]
  %v786 = vld [vmem:[%s1 + $0xb64] sm:$0xf]
  %v787 = vld [vmem:[%s1 + $0xb68] sm:$0xf]
  %v788 = vld [vmem:[%s1 + $0xb6c] sm:$0xf]
  %v789 = vld [vmem:[%s1 + $0xb70] sm:$0xf]
  %v790 = vld [vmem:[%s1 + $0xb74] sm:$0xf]
  %v791 = vld [vmem:[%s1 + $0xb78] sm:$0xf]
  %v792 = vld [vmem:[%s1 + $0xb7c] sm:$0xf]
  %v793 = vld [vmem:[%s1 + $0xb80] sm:$0xf]
  %v794 = vld [vmem:[%s1 + $0xb84] sm:$0xf]
  %v795 = vld [vmem:[%s1 + $0xb88] sm:$0xf]
  %v796 = vld [vmem:[%s1 + $0xb8c] sm:$0xf]
  %v797 = vld [vmem:[%s1 + $0xb90] sm:$0xf]
  %v798 = vld [vmem:[%s1 + $0xb94] sm:$0xf]
  %v799 = vld [vmem:[%s1 + $0xb98] sm:$0xf]
  %v800 = vld [vmem:[%s1 + $0xb9c] sm:$0xf]
  %v801 = vld [vmem:[%s1 + $0xba0] sm:$0xf]
  %v802 = vld [vmem:[%s1 + $0xba4] sm:$0xf]
  %v803 = vld [vmem:[%s1 + $0xba8] sm:$0xf]
  %v804 = vld [vmem:[%s1 + $0xbac] sm:$0xf]
  %v805 = vld [vmem:[%s1 + $0xbb0] sm:$0xf]
  %v806 = vld [vmem:[%s1 + $0xbb4] sm:$0xf]
  %v807 = vld [vmem:[%s1 + $0xbb8] sm:$0xf]
  %v808 = vld [vmem:[%s1 + $0xbbc] sm:$0xf]
  %v809 = vld [vmem:[%s1 + $0xbc0] sm:$0xf]
  %v810 = vld [vmem:[%s1 + $0xbc4] sm:$0xf]
  %v811 = vld [vmem:[%s1 + $0xbc8] sm:$0xf]
  %v812 = vld [vmem:[%s1 + $0xbcc] sm:$0xf]
  %v813 = vld [vmem:[%s1 + $0xbd0] sm:$0xf]
  %v814 = vld [vmem:[%s1 + $0xbd4] sm:$0xf]
  %v815 = vld [vmem:[%s1 + $0xbd8] sm:$0xf]
  %v816 = vld [vmem:[%s1 + $0xbdc] sm:$0xf]
  %v817 = vld [vmem:[%s1 + $0xbe0] sm:$0xf]
  %v818 = vld [vmem:[%s1 + $0xbe4] sm:$0xf]
  %v819 = vld [vmem:[%s1 + $0xbe8] sm:$0xf]
  %v820 = vld [vmem:[%s1 + $0xbec] sm:$0xf]
  %v821 = vld [vmem:[%s1 + $0xbf0] sm:$0xf]
  %v822 = vld [vmem:[%s1 + $0xbf4] sm:$0xf]
  %v823 = vld [vmem:[%s1 + $0xbf8] sm:$0xf]
  %v824 = vld [vmem:[%s1 + $0xbfc] sm:$0xf]
  %v825 = vld [vmem:[%s1 + $0xc00] sm:$0xf]
  %v826 = vld [vmem:[%s1 + $0xc04] sm:$0xf]
  %v827 = vld [vmem:[%s1 + $0xc08] sm:$0xf]
  %v828 = vld [vmem:[%s1 + $0xc0c] sm:$0xf]
  %v829 = vld [vmem:[%s1 + $0xc10] sm:$0xf]
  %v830 = vld [vmem:[%s1 + $0xc14] sm:$0xf]
  %v831 = vld [vmem:[%s1 + $0xc18] sm:$0xf]
  %v832 = vld [vmem:[%s1 + $0xc1c] sm:$0xf]
  %v833 = vld [vmem:[%s1 + $0xc20] sm:$0xf]
  %v834 = vld [vmem:[%s1 + $0xc24] sm:$0xf]
  %v835 = vld [vmem:[%s1 + $0xc28] sm:$0xf]
  %v836 = vld [vmem:[%s1 + $0xc2c] sm:$0xf]
  %v837 = vld [vmem:[%s1 + $0xc30] sm:$0xf]
  %v838 = vld [vmem:[%s1 + $0xc34] sm:$0xf]
  %v839 = vld [vmem:[%s1 + $0xc38] sm:$0xf]
  %v840 = vld [vmem:[%s1 + $0xc3c] sm:$0xf]
  %v841 = vld [vmem:[%s1 + $0xc40] sm:$0xf]
  %v842 = vld [vmem:[%s1 + $0xc44] sm:$0xf]
  %v843 = vld [vmem:[%s1 + $0xc48] sm:$0xf]
  %v844 = vld [vmem:[%s1 + $0xc4c] sm:$0xf]
  %v845 = vld [vmem:[%s1 + $0xc50] sm:$0xf]
  %v846 = vld [vmem:[%s1 + $0xc54] sm:$0xf]
  %v847 = vld [vmem:[%s1 + $0xc58] sm:$0xf]
  %v848 = vld [vmem:[%s1 + $0xc5c] sm:$0xf]
  %v849 = vld [vmem:[%s1 + $0xc60] sm:$0xf]
  %v850 = vld [vmem:[%s1 + $0xc64] sm:$0xf]
  %v851 = vld [vmem:[%s1 + $0xc68] sm:$0xf]
  %v852 = vld [vmem:[%s1 + $0xc6c] sm:$0xf]
  %v853 = vld [vmem:[%s1 + $0xc70] sm:$0xf]
  %v854 = vld [vmem:[%s1 + $0xc74] sm:$0xf]
  %v855 = vld [vmem:[%s1 + $0xc78] sm:$0xf]
  %v856 = vld [vmem:[%s1 + $0xc7c] sm:$0xf]
  %v857 = vld [vmem:[%s1 + $0xc80] sm:$0xf]
  %v858 = vld [vmem:[%s1 + $0xc84] sm:$0xf]
  %v859 = vld [vmem:[%s1 + $0xc88] sm:$0xf]
  %v860 = vld [vmem:[%s1 + $0xc8c] sm:$0xf]
  %v861 = vld [vmem:[%s1 + $0xc90] sm:$0xf]
  %v862 = vld [vmem:[%s1 + $0xc94] sm:$0xf]
  %v863 = vld [vmem:[%s1 + $0xc98] sm:$0xf]
  %v864 = vld [vmem:[%s1 + $0xc9c] sm:$0xf]
  %v865 = vld [vmem:[%s1 + $0xca0] sm:$0xf]
  %v866 = vld [vmem:[%s1 + $0xca4] sm:$0xf]
  %v867 = vld [vmem:[%s1 + $0xca8] sm:$0xf]
  %v868 = vld [vmem:[%s1 + $0xcac] sm:$0xf]
  %v869 = vld [vmem:[%s1 + $0xcb0] sm:$0xf]
  %v870 = vld [vmem:[%s1 + $0xcb4] sm:$0xf]
  %v871 = vld [vmem:[%s1 + $0xcb8] sm:$0xf]
  %v872 = vld [vmem:[%s1 + $0xcbc] sm:$0xf]
  %v873 = vld [vmem:[%s1 + $0xcc0] sm:$0xf]
  %v874 = vld [vmem:[%s1 + $0xcc4] sm:$0xf]
  %v875 = vld [vmem:[%s1 + $0xcc8] sm:$0xf]
  %v876 = vld [vmem:[%s1 + $0xccc] sm:$0xf]
  %v877 = vld [vmem:[%s1 + $0xcd0] sm:$0xf]
  %v878 = vld [vmem:[%s1 + $0xcd4] sm:$0xf]
  %v879 = vld [vmem:[%s1 + $0xcd8] sm:$0xf]
  %v880 = vld [vmem:[%s1 + $0xcdc] sm:$0xf]
  %v881 = vld [vmem:[%s1 + $0xce0] sm:$0xf]
  %v882 = vld [vmem:[%s1 + $0xce4] sm:$0xf]
  %v883 = vld [vmem:[%s1 + $0xce8] sm:$0xf]
  %v884 = vld [vmem:[%s1 + $0xcec] sm:$0xf]
  %v885 = vld [vmem:[%s1 + $0xcf0] sm:$0xf]
  %v886 = vld [vmem:[%s1 + $0xcf4] sm:$0xf]
  %v887 = vld [vmem:[%s1 + $0xcf8] sm:$0xf]
  %v888 = vld [vmem:[%s1 + $0xcfc] sm:$0xf]
  %v889 = vld [vmem:[%s1 + $0xd00] sm:$0xf]
  %v890 = vld [vmem:[%s1 + $0xd04] sm:$0xf]
  %v891 = vld [vmem:[%s1 + $0xd08] sm:$0xf]
  %v892 = vld [vmem:[%s1 + $0xd0c] sm:$0xf]
  %v893 = vld [vmem:[%s1 + $0xd10] sm:$0xf]
  %v894 = vld [vmem:[%s1 + $0xd14] sm:$0xf]
  %v895 = vld [vmem:[%s1 + $0xd18] sm:$0xf]
  %v896 = vld [vmem:[%s1 + $0xd1c] sm:$0xf]
  %v897 = vld [vmem:[%s1 + $0xd20] sm:$0xf]
  %v898 = vld [vmem:[%s1 + $0xd24] sm:$0xf]
  %v899 = vld [vmem:[%s1 + $0xd28] sm:$0xf]
  %v900 = vld [vmem:[%s1 + $0xd2c] sm:$0xf]
  %v901 = vld [vmem:[%s1 + $0xd30] sm:$0xf]
  %v902 = vld [vmem:[%s1 + $0xd34] sm:$0xf]
  %v903 = vld [vmem:[%s1 + $0xd38] sm:$0xf]
  %v904 = vld [vmem:[%s1 + $0xd3c] sm:$0xf]
  %v905 = vld [vmem:[%s1 + $0xd40] sm:$0xf]
  %v906 = vld [vmem:[%s1 + $0xd44] sm:$0xf]
  %v907 = vld [vmem:[%s1 + $0xd48] sm:$0xf]
  %v908 = vld [vmem:[%s1 + $0xd4c] sm:$0xf]
  %v909 = vld [vmem:[%s1 + $0xd50] sm:$0xf]
  %v910 = vld [vmem:[%s1 + $0xd54] sm:$0xf]
  %v911 = vld [vmem:[%s1 + $0xd58] sm:$0xf]
  %v912 = vld [vmem:[%s1 + $0xd5c] sm:$0xf]
  %v913 = vld [vmem:[%s1 + $0xd60] sm:$0xf]
  %v914 = vld [vmem:[%s1 + $0xd64] sm:$0xf]
  %v915 = vld [vmem:[%s1 + $0xd68] sm:$0xf]
  %v916 = vld [vmem:[%s1 + $0xd6c] sm:$0xf]
  %v917 = vld [vmem:[%s1 + $0xd70] sm:$0xf]
  %v918 = vld [vmem:[%s1 + $0xd74] sm:$0xf]
  %v919 = vld [vmem:[%s1 + $0xd78] sm:$0xf]
  %v920 = vld [vmem:[%s1 + $0xd7c] sm:$0xf]
  %v921 = vld [vmem:[%s1 + $0xd80] sm:$0xf]
  %v922 = vld [vmem:[%s1 + $0xd84] sm:$0xf]
  %v923 = vld [vmem:[%s1 + $0xd88] sm:$0xf]
  %v924 = vld [vmem:[%s1 + $0xd8c] sm:$0xf]
  %v925 = vld [vmem:[%s1 + $0xd90] sm:$0xf]
  %v926 = vld [vmem:[%s1 + $0xd94] sm:$0xf]
  %v927 = vld [vmem:[%s1 + $0xd98] sm:$0xf]
  %v928 = vld [vmem:[%s1 + $0xd9c] sm:$0xf]
  %v929 = vld [vmem:[%s1 + $0xda0] sm:$0xf]
  %v930 = vld [vmem:[%s1 + $0xda4] sm:$0xf]
  %v931 = vld [vmem:[%s1 + $0xda8] sm:$0xf]
  %v932 = vld [vmem:[%s1 + $0xdac] sm:$0xf]
  %v933 = vld [vmem:[%s1 + $0xdb0] sm:$0xf]
  %v934 = vld [vmem:[%s1 + $0xdb4] sm:$0xf]
  %v935 = vld [vmem:[%s1 + $0xdb8] sm:$0xf]
  %v936 = vld [vmem:[%s1 + $0xdbc] sm:$0xf]
  %v937 = vld [vmem:[%s1 + $0xdc0] sm:$0xf]
  %v938 = vld [vmem:[%s1 + $0xdc4] sm:$0xf]
  %v939 = vld [vmem:[%s1 + $0xdc8] sm:$0xf]
  %v940 = vld [vmem:[%s1 + $0xdcc] sm:$0xf]
  %v941 = vld [vmem:[%s1 + $0xdd0] sm:$0xf]
  %v942 = vld [vmem:[%s1 + $0xdd4] sm:$0xf]
  %v943 = vld [vmem:[%s1 + $0xdd8] sm:$0xf]
  %v944 = vld [vmem:[%s1 + $0xddc] sm:$0xf]
  %v945 = vld [vmem:[%s1 + $0xde0] sm:$0xf]
  %v946 = vld [vmem:[%s1 + $0xde4] sm:$0xf]
  %v947 = vld [vmem:[%s1 + $0xde8] sm:$0xf]
  %v948 = vld [vmem:[%s1 + $0xdec] sm:$0xf]
  %v949 = vld [vmem:[%s1 + $0xdf0] sm:$0xf]
  %v950 = vld [vmem:[%s1 + $0xdf4] sm:$0xf]
  %v951 = vld [vmem:[%s1 + $0xdf8] sm:$0xf]
  %v952 = vld [vmem:[%s1 + $0xdfc] sm:$0xf]
  %v953 = vld [vmem:[%s1 + $0xe00] sm:$0xf]
  %v954 = vld [vmem:[%s1 + $0xe04] sm:$0xf]
  %v955 = vld [vmem:[%s1 + $0xe08] sm:$0xf]
  %v956 = vld [vmem:[%s1 + $0xe0c] sm:$0xf]
  %v957 = vld [vmem:[%s1 + $0xe10] sm:$0xf]
  %v958 = vld [vmem:[%s1 + $0xe14] sm:$0xf]
  %v959 = vld [vmem:[%s1 + $0xe18] sm:$0xf]
  %v960 = vld [vmem:[%s1 + $0xe1c] sm:$0xf]
  %v961 = vld [vmem:[%s1 + $0xe20] sm:$0xf]
  %v962 = vld [vmem:[%s1 + $0xe24] sm:$0xf]
  %v963 = vld [vmem:[%s1 + $0xe28] sm:$0xf]
  %v964 = vld [vmem:[%s1 + $0xe2c] sm:$0xf]
  %v965 = vld [vmem:[%s1 + $0xe30] sm:$0xf]
  %v966 = vld [vmem:[%s1 + $0xe34] sm:$0xf]
  %v967 = vld [vmem:[%s1 + $0xe38] sm:$0xf]
  %v968 = vld [vmem:[%s1 + $0xe3c] sm:$0xf]
  %v969 = vld [vmem:[%s1 + $0xe40] sm:$0xf]
  %v970 = vld [vmem:[%s1 + $0xe44] sm:$0xf]
  %v971 = vld [vmem:[%s1 + $0xe48] sm:$0xf]
  %v972 = vld [vmem:[%s1 + $0xe4c] sm:$0xf]
  %v973 = vld [vmem:[%s1 + $0xe50] sm:$0xf]
  %v974 = vld [vmem:[%s1 + $0xe54] sm:$0xf]
  %v975 = vld [vmem:[%s1 + $0xe58] sm:$0xf]
  %v976 = vld [vmem:[%s1 + $0xe5c] sm:$0xf]
  %v977 = vld [vmem:[%s1 + $0xe60] sm:$0xf]
  %v978 = vld [vmem:[%s1 + $0xe64] sm:$0xf]
  %v979 = vld [vmem:[%s1 + $0xe68] sm:$0xf]
  %v980 = vld [vmem:[%s1 + $0xe6c] sm:$0xf]
  %v981 = vld [vmem:[%s1 + $0xe70] sm:$0xf]
  %v982 = vld [vmem:[%s1 + $0xe74] sm:$0xf]
  %v983 = vld [vmem:[%s1 + $0xe78] sm:$0xf]
  %v984 = vld [vmem:[%s1 + $0xe7c] sm:$0xf]
  %v985 = vld [vmem:[%s1 + $0xe80] sm:$0xf]
  %v986 = vld [vmem:[%s1 + $0xe84] sm:$0xf]
  %v987 = vld [vmem:[%s1 + $0xe88] sm:$0xf]
  %v988 = vld [vmem:[%s1 + $0xe8c] sm:$0xf]
  %v989 = vld [vmem:[%s1 + $0xe90] sm:$0xf]
  %v990 = vld [vmem:[%s1 + $0xe94] sm:$0xf]
  %v991 = vld [vmem:[%s1 + $0xe98] sm:$0xf]
  %v992 = vld [vmem:[%s1 + $0xe9c] sm:$0xf]
  %v993 = vld [vmem:[%s1 + $0xea0] sm:$0xf]
  %v994 = vld [vmem:[%s1 + $0xea4] sm:$0xf]
  %v995 = vld [vmem:[%s1 + $0xea8] sm:$0xf]
  %v996 = vld [vmem:[%s1 + $0xeac] sm:$0xf]
  %v997 = vld [vmem:[%s1 + $0xeb0] sm:$0xf]
  %v998 = vld [vmem:[%s1 + $0xeb4] sm:$0xf]
  %v999 = vld [vmem:[%s1 + $0xeb8] sm:$0xf]
  %v1000 = vld [vmem:[%s1 + $0xebc] sm:$0xf]
  %v1001 = vld [vmem:[%s1 + $0xec0] sm:$0xf]
  %v1002 = vld [vmem:[%s1 + $0xec4] sm:$0xf]
  %v1003 = vld [vmem:[%s1 + $0xec8] sm:$0xf]
  %v1004 = vld [vmem:[%s1 + $0xecc] sm:$0xf]
  %v1005 = vld [vmem:[%s1 + $0xed0] sm:$0xf]
  %v1006 = vld [vmem:[%s1 + $0xed4] sm:$0xf]
  %v1007 = vld [vmem:[%s1 + $0xed8] sm:$0xf]
  %v1008 = vld [vmem:[%s1 + $0xedc] sm:$0xf]
  %v1009 = vld [vmem:[%s1 + $0xee0] sm:$0xf]
  %v1010 = vld [vmem:[%s1 + $0xee4] sm:$0xf]
  %v1011 = vld [vmem:[%s1 + $0xee8] sm:$0xf]
  %v1012 = vld [vmem:[%s1 + $0xeec] sm:$0xf]
  %v1013 = vld [vmem:[%s1 + $0xef0] sm:$0xf]
  %v1014 = vld [vmem:[%s1 + $0xef4] sm:$0xf]
  %v1015 = vld [vmem:[%s1 + $0xef8] sm:$0xf]
  %v1016 = vld [vmem:[%s1 + $0xefc] sm:$0xf]
  %v1017 = vld [vmem:[%s1 + $0xf00] sm:$0xf]
  %v1018 = vld [vmem:[%s1 + $0xf04] sm:$0xf]
  %v1019 = vld [vmem:[%s1 + $0xf08] sm:$0xf]
  %v1020 = vld [vmem:[%s1 + $0xf0c] sm:$0xf]
  %v1021 = vld [vmem:[%s1 + $0xf10] sm:$0xf]
  %v1022 = vld [vmem:[%s1 + $0xf14] sm:$0xf]
  %v1023 = vld [vmem:[%s1 + $0xf18] sm:$0xf]
  %v1024 = vld [vmem:[%s1 + $0xf1c] sm:$0xf]
  %v1025 = vld [vmem:[%s1 + $0xf20] sm:$0xf]
  %v1026 = vld [vmem:[%s1 + $0xf24] sm:$0xf]
  %v1027 = vld [vmem:[%s1 + $0xf28] sm:$0xf]
  %v1028 = vld [vmem:[%s1 + $0xf2c] sm:$0xf]
  %v1029 = vld [vmem:[%s1 + $0xf30] sm:$0xf]
  %v1030 = vld [vmem:[%s1 + $0xf34] sm:$0xf]
  %v1031 = vld [vmem:[%s1 + $0xf38] sm:$0xf]
  %v1032 = vld [vmem:[%s1 + $0xf3c] sm:$0xf]
  %v1033 = vld [vmem:[%s1 + $0xf40] sm:$0xf]
  %v1034 = vld [vmem:[%s1 + $0xf44] sm:$0xf]
  %v1035 = vld [vmem:[%s1 + $0xf48] sm:$0xf]
  %v1036 = vld [vmem:[%s1 + $0xf4c] sm:$0xf]
  %v1037 = vld [vmem:[%s1 + $0xf50] sm:$0xf]
  %v1038 = vld [vmem:[%s1 + $0xf54] sm:$0xf]
  %v1039 = vld [vmem:[%s1 + $0xf58] sm:$0xf]
  %v1040 = vld [vmem:[%s1 + $0xf5c] sm:$0xf]
  %v1041 = vld [vmem:[%s1 + $0xf60] sm:$0xf]
  %v1042 = vld [vmem:[%s1 + $0xf64] sm:$0xf]
  %v1043 = vld [vmem:[%s1 + $0xf68] sm:$0xf]
  %v1044 = vld [vmem:[%s1 + $0xf6c] sm:$0xf]
  %v1045 = vld [vmem:[%s1 + $0xf70] sm:$0xf]
  %v1046 = vld [vmem:[%s1 + $0xf74] sm:$0xf]
  %v1047 = vld [vmem:[%s1 + $0xf78] sm:$0xf]
  %v1048 = vld [vmem:[%s1 + $0xf7c] sm:$0xf]
  %v1049 = vld [vmem:[%s1 + $0xf80] sm:$0xf]
  %v1050 = vld [vmem:[%s1 + $0xf84] sm:$0xf]
  %v1051 = vld [vmem:[%s1 + $0xf88] sm:$0xf]
  %v1052 = vld [vmem:[%s1 + $0xf8c] sm:$0xf]
  %v1053 = vld [vmem:[%s1 + $0xf90] sm:$0xf]
  %v1054 = vld [vmem:[%s1 + $0xf94] sm:$0xf]
  %v1055 = vld [vmem:[%s1 + $0xf98] sm:$0xf]
  %v1056 = vld [vmem:[%s1 + $0xf9c] sm:$0xf]
  %v1057 = vld [vmem:[%s1 + $0xfa0] sm:$0xf]
  %v1058 = vld [vmem:[%s1 + $0xfa4] sm:$0xf]
  %v1059 = vld [vmem:[%s1 + $0xfa8] sm:$0xf]
  %v1060 = vld [vmem:[%s1 + $0xfac] sm:$0xf]
  %v1061 = vld [vmem:[%s1 + $0xfb0] sm:$0xf]
  %v1062 = vld [vmem:[%s1 + $0xfb4] sm:$0xf]
  %v1063 = vld [vmem:[%s1 + $0xfb8] sm:$0xf]
  %v1064 = vld [vmem:[%s1 + $0xfbc] sm:$0xf]
  %v1065 = vld [vmem:[%s1 + $0xfc0] sm:$0xf]
  %v1066 = vld [vmem:[%s1 + $0xfc4] sm:$0xf]
  %v1067 = vld [vmem:[%s1 + $0xfc8] sm:$0xf]
  %v1068 = vld [vmem:[%s1 + $0xfcc] sm:$0xf]
  %v1069 = vld [vmem:[%s1 + $0xfd0] sm:$0xf]
  %v1070 = vld [vmem:[%s1 + $0xfd4] sm:$0xf]
  %v1071 = vld [vmem:[%s1 + $0xfd8] sm:$0xf]
  %v1072 = vld [vmem:[%s1 + $0xfdc] sm:$0xf]
  %v1073 = vld [vmem:[%s1 + $0xfe0] sm:$0xf]
  %v1074 = vld [vmem:[%s1 + $0xfe4] sm:$0xf]
  %v1075 = vld [vmem:[%s1 + $0xfe8] sm:$0xf]
  %v1076 = vld [vmem:[%s1 + $0xfec] sm:$0xf]
  %v1077 = vld [vmem:[%s1 + $0xff0] sm:$0xf]
  %v1078 = vld [vmem:[%s1 + $0xff4] sm:$0xf]
  %v1079 = vld [vmem:[%s1 + $0xff8] sm:$0xf]
  %v1080 = vld [vmem:[%s1 + $0xffc] sm:$0xf]
  %v1081 = vld [vmem:[%s1 + $0x1000] sm:$0xf]
  %v1082 = vld [vmem:[%s1 + $0x1004] sm:$0xf]
  %v1083 = vld [vmem:[%s1 + $0x1008] sm:$0xf]
  %v1084 = vld [vmem:[%s1 + $0x100c] sm:$0xf]
  %v1085 = vld [vmem:[%s1 + $0x1010] sm:$0xf]
  %v1086 = vld [vmem:[%s1 + $0x1014] sm:$0xf]
  %v1087 = vld [vmem:[%s1 + $0x1018] sm:$0xf]
  %v1088 = vld [vmem:[%s1 + $0x101c] sm:$0xf]
  %v1089 = vld [vmem:[%s1 + $0x1020] sm:$0xf]
  %v1090 = vld [vmem:[%s1 + $0x1024] sm:$0xf]
  %v1091 = vld [vmem:[%s1 + $0x1028] sm:$0xf]
  %v1092 = vld [vmem:[%s1 + $0x102c] sm:$0xf]
  %v1093 = vld [vmem:[%s1 + $0x1030] sm:$0xf]
  %v1094 = vld [vmem:[%s1 + $0x1034] sm:$0xf]
  %v1095 = vld [vmem:[%s1 + $0x1038] sm:$0xf]
  %v1096 = vld [vmem:[%s1 + $0x103c] sm:$0xf]
  %v1097 = vld [vmem:[%s1 + $0x1040] sm:$0xf]
  %v1098 = vld [vmem:[%s1 + $0x1044] sm:$0xf]
  %v1099 = vld [vmem:[%s1 + $0x1048] sm:$0xf]
  %v1100 = vld [vmem:[%s1 + $0x104c] sm:$0xf]
  %v1101 = vld [vmem:[%s1 + $0x1050] sm:$0xf]
  %v1102 = vld [vmem:[%s1 + $0x1054] sm:$0xf]
  %v1103 = vld [vmem:[%s1 + $0x1058] sm:$0xf]
  %v1104 = vld [vmem:[%s1 + $0x105c] sm:$0xf]
  %v1105 = vld [vmem:[%s1 + $0x1060] sm:$0xf]
  %v1106 = vld [vmem:[%s1 + $0x1064] sm:$0xf]
  %v1107 = vld [vmem:[%s1 + $0x1068] sm:$0xf]
  %v1108 = vld [vmem:[%s1 + $0x106c] sm:$0xf]
  %v1109 = vld [vmem:[%s1 + $0x1070] sm:$0xf]
  %v1110 = vld [vmem:[%s1 + $0x1074] sm:$0xf]
  %v1111 = vld [vmem:[%s1 + $0x1078] sm:$0xf]
  %v1112 = vld [vmem:[%s1 + $0x107c] sm:$0xf]
  %v1113 = vld [vmem:[%s1 + $0x1080] sm:$0xf]
  %v1114 = vld [vmem:[%s1 + $0x1084] sm:$0xf]
  %v1115 = vld [vmem:[%s1 + $0x1088] sm:$0xf]
  %v1116 = vld [vmem:[%s1 + $0x108c] sm:$0xf]
  %v1117 = vld [vmem:[%s1 + $0x1090] sm:$0xf]
  %v1118 = vld [vmem:[%s1 + $0x1094] sm:$0xf]
  %v1119 = vld [vmem:[%s1 + $0x1098] sm:$0xf]
  %v1120 = vld [vmem:[%s1 + $0x109c] sm:$0xf]
  %v1121 = vld [vmem:[%s1 + $0x10a0] sm:$0xf]
  %v1122 = vld [vmem:[%s1 + $0x10a4] sm:$0xf]
  %v1123 = vld [vmem:[%s1 + $0x10a8] sm:$0xf]
  %v1124 = vld [vmem:[%s1 + $0x10ac] sm:$0xf]
  %v1125 = vld [vmem:[%s1 + $0x10b0] sm:$0xf]
  %v1126 = vld [vmem:[%s1 + $0x10b4] sm:$0xf]
  %v1127 = vld [vmem:[%s1 + $0x10b8] sm:$0xf]
  %v1128 = vld [vmem:[%s1 + $0x10bc] sm:$0xf]
  %v1129 = vld [vmem:[%s1 + $0x10c0] sm:$0xf]
  %v1130 = vld [vmem:[%s1 + $0x10c4] sm:$0xf]
  %v1131 = vld [vmem:[%s1 + $0x10c8] sm:$0xf]
  %v1132 = vld [vmem:[%s1 + $0x10cc] sm:$0xf]
  %v1133 = vld [vmem:[%s1 + $0x10d0] sm:$0xf]
  %v1134 = vld [vmem:[%s1 + $0x10d4] sm:$0xf]
  %v1135 = vld [vmem:[%s1 + $0x10d8] sm:$0xf]
  %v1136 = vld [vmem:[%s1 + $0x10dc] sm:$0xf]
  %v1137 = vld [vmem:[%s1 + $0x10e0] sm:$0xf]
  %v1138 = vld [vmem:[%s1 + $0x10e4] sm:$0xf]
  %v1139 = vld [vmem:[%s1 + $0x10e8] sm:$0xf]
  %v1140 = vld [vmem:[%s1 + $0x10ec] sm:$0xf]
  %v1141 = vld [vmem:[%s1 + $0x10f0] sm:$0xf]
  %v1142 = vld [vmem:[%s1 + $0x10f4] sm:$0xf]
  %v1143 = vld [vmem:[%s1 + $0x10f8] sm:$0xf]
  %v1144 = vld [vmem:[%s1 + $0x10fc] sm:$0xf]
  %v1145 = vld [vmem:[%s1 + $0x1100] sm:$0xf]
  %v1146 = vld [vmem:[%s1 + $0x1104] sm:$0xf]
  %v1147 = vld [vmem:[%s1 + $0x1108] sm:$0xf]
  %v1148 = vld [vmem:[%s1 + $0x110c] sm:$0xf]
  %v1149 = vld [vmem:[%s1 + $0x1110] sm:$0xf]
  %v1150 = vld [vmem:[%s1 + $0x1114] sm:$0xf]
  %v1151 = vld [vmem:[%s1 + $0x1118] sm:$0xf]
  %v1152 = vld [vmem:[%s1 + $0x111c] sm:$0xf]
  %v1153 = vld [vmem:[%s1 + $0x1120] sm:$0xf]
  %v1154 = vld [vmem:[%s1 + $0x1124] sm:$0xf]
  %v1155 = vld [vmem:[%s1 + $0x1128] sm:$0xf]
  %v1156 = vld [vmem:[%s1 + $0x112c] sm:$0xf]
  %v1157 = vld [vmem:[%s1 + $0x1130] sm:$0xf]
  %v1158 = vld [vmem:[%s1 + $0x1134] sm:$0xf]
  %v1159 = vld [vmem:[%s1 + $0x1138] sm:$0xf]
  %v1160 = vld [vmem:[%s1 + $0x113c] sm:$0xf]
  %v1161 = vld [vmem:[%s1 + $0x1140] sm:$0xf]
  %v1162 = vld [vmem:[%s1 + $0x1144] sm:$0xf]
  %v1163 = vld [vmem:[%s1 + $0x1148] sm:$0xf]
  %v1164 = vld [vmem:[%s1 + $0x114c] sm:$0xf]
  %v1165 = vld [vmem:[%s1 + $0x1150] sm:$0xf]
  %v1166 = vld [vmem:[%s1 + $0x1154] sm:$0xf]
  %v1167 = vld [vmem:[%s1 + $0x1158] sm:$0xf]
  %v1168 = vld [vmem:[%s1 + $0x115c] sm:$0xf]
  %v1169 = vld [vmem:[%s1 + $0x1160] sm:$0xf]
  %v1170 = vld [vmem:[%s1 + $0x1164] sm:$0xf]
  %v1171 = vld [vmem:[%s1 + $0x1168] sm:$0xf]
  %v1172 = vld [vmem:[%s1 + $0x116c] sm:$0xf]
  %v1173 = vld [vmem:[%s1 + $0x1170] sm:$0xf]
  %v1174 = vld [vmem:[%s1 + $0x1174] sm:$0xf]
  %v1175 = vld [vmem:[%s1 + $0x1178] sm:$0xf]
  %v1176 = vld [vmem:[%s1 + $0x117c] sm:$0xf]
  %v1177 = vld [vmem:[%s1 + $0x1180] sm:$0xf]
  %v1178 = vld [vmem:[%s1 + $0x1184] sm:$0xf]
  %v1179 = vld [vmem:[%s1 + $0x1188] sm:$0xf]
  %v1180 = vld [vmem:[%s1 + $0x118c] sm:$0xf]
  %v1181 = vld [vmem:[%s1 + $0x1190] sm:$0xf]
  %v1182 = vld [vmem:[%s1 + $0x1194] sm:$0xf]
  %v1183 = vld [vmem:[%s1 + $0x1198] sm:$0xf]
  %v1184 = vld [vmem:[%s1 + $0x119c] sm:$0xf]
  %v1185 = vld [vmem:[%s1 + $0x11a0] sm:$0xf]
  %v1186 = vld [vmem:[%s1 + $0x11a4] sm:$0xf]
  %v1187 = vld [vmem:[%s1 + $0x11a8] sm:$0xf]
  %v1188 = vld [vmem:[%s1 + $0x11ac] sm:$0xf]
  %v1189 = vld [vmem:[%s1 + $0x11b0] sm:$0xf]
  %v1190 = vld [vmem:[%s1 + $0x11b4] sm:$0xf]
  %v1191 = vld [vmem:[%s1 + $0x11b8] sm:$0xf]
  %v1192 = vld [vmem:[%s1 + $0x11bc] sm:$0xf]
  %v1193 = vld [vmem:[%s1 + $0x11c0] sm:$0xf]
  %v1194 = vld [vmem:[%s1 + $0x11c4] sm:$0xf]
  %v1195 = vld [vmem:[%s1 + $0x11c8] sm:$0xf]
  %v1196 = vld [vmem:[%s1 + $0x11cc] sm:$0xf]
  %v1197 = vld [vmem:[%s1 + $0x11d0] sm:$0xf]
  %v1198 = vld [vmem:[%s1 + $0x11d4] sm:$0xf]
  %v1199 = vld [vmem:[%s1 + $0x11d8] sm:$0xf]
  %v1200 = vld [vmem:[%s1 + $0x11dc] sm:$0xf]
  %v1201 = vld [vmem:[%s1 + $0x11e0] sm:$0xf]
  %v1202 = vld [vmem:[%s1 + $0x11e4] sm:$0xf]
  %v1203 = vld [vmem:[%s1 + $0x11e8] sm:$0xf]
  %v1204 = vld [vmem:[%s1 + $0x11ec] sm:$0xf]
  %v1205 = vld [vmem:[%s1 + $0x11f0] sm:$0xf]
  %v1206 = vld [vmem:[%s1 + $0x11f4] sm:$0xf]
  %v1207 = vld [vmem:[%s1 + $0x11f8] sm:$0xf]
  %v1208 = vld [vmem:[%s1 + $0x11fc] sm:$0xf]
  %v1209 = vld [vmem:[%s2] sm:$0x1]
  %v1211 = vlaneseq
  %v1212 = vshrl.u32 %v1211, 7
  %v1213 = vsub.s32 0, %v1212
  %v1214 = vrot.slane %v1209, %v1213
  %v1252 = vunpack.c.l.b16 %v21
  %v1253 = vunpack.c.h.b16 %v21
  %v1254 = vunpack.c.l.b16 %v22
  %v1255 = vunpack.c.h.b16 %v22
  %v1256 = vunpack.c.l.b16 %v23
  %v1257 = vunpack.c.h.b16 %v23
  %v1258 = vunpack.c.l.b16 %v24
  %v1259 = vunpack.c.h.b16 %v24
  %v1260 = vunpack.c.l.b16 %v25
  %v1261 = vunpack.c.h.b16 %v25
  %v1262 = vunpack.c.l.b16 %v26
  %v1263 = vunpack.c.h.b16 %v26
  %v1264 = vunpack.c.l.b16 %v27
  %v1265 = vunpack.c.h.b16 %v27
  %v1266 = vunpack.c.l.b16 %v28
  %v1267 = vunpack.c.h.b16 %v28
  %v1268 = vunpack.c.l.b16 %v29
  %v1269 = vunpack.c.h.b16 %v29
  %v1270 = vunpack.c.l.b16 %v30
  %v1271 = vunpack.c.h.b16 %v30
  %v1272 = vunpack.c.l.b16 %v31
  %v1273 = vunpack.c.h.b16 %v31
  %v1274 = vunpack.c.l.b16 %v32
  %v1275 = vunpack.c.h.b16 %v32
  %v1276 = vunpack.c.l.b16 %v33
  %v1277 = vunpack.c.h.b16 %v33
  %v1278 = vunpack.c.l.b16 %v34
  %v1279 = vunpack.c.h.b16 %v34
  %v1280 = vunpack.c.l.b16 %v35
  %v1281 = vunpack.c.h.b16 %v35
  %v1282 = vunpack.c.l.b16 %v36
  %v1283 = vunpack.c.h.b16 %v36
  %v1284 = vunpack.c.l.b16 %v37
  %v1285 = vunpack.c.h.b16 %v37
  %v1286 = vunpack.c.l.b16 %v38
  %v1287 = vunpack.c.h.b16 %v38
  %v1288 = vunpack.c.l.b16 %v39
  %v1289 = vunpack.c.h.b16 %v39
  %v1290 = vunpack.c.l.b16 %v40
  %v1291 = vunpack.c.h.b16 %v40
  %v1292 = vunpack.c.l.b16 %v41
  %v1293 = vunpack.c.h.b16 %v41
  %v1294 = vunpack.c.l.b16 %v42
  %v1295 = vunpack.c.h.b16 %v42
  %v1296 = vunpack.c.l.b16 %v43
  %v1297 = vunpack.c.h.b16 %v43
  %v1298 = vunpack.c.l.b16 %v44
  %v1299 = vunpack.c.h.b16 %v44
  %v1300 = vunpack.c.l.b16 %v45
  %v1301 = vunpack.c.h.b16 %v45
  %v1302 = vunpack.c.l.b16 %v46
  %v1303 = vunpack.c.h.b16 %v46
  %v1304 = vunpack.c.l.b16 %v47
  %v1305 = vunpack.c.h.b16 %v47
  %v1306 = vunpack.c.l.b16 %v48
  %v1307 = vunpack.c.h.b16 %v48
  %v1308 = vunpack.c.l.b16 %v49
  %v1309 = vunpack.c.h.b16 %v49
  %v1310 = vunpack.c.l.b16 %v50
  %v1311 = vunpack.c.h.b16 %v50
  %v1312 = vunpack.c.l.b16 %v51
  %v1313 = vunpack.c.h.b16 %v51
  %v1314 = vunpack.c.l.b16 %v52
  %v1315 = vunpack.c.h.b16 %v52
  %v1316 = vunpack.c.l.b16 %v53
  %v1317 = vunpack.c.h.b16 %v53
  %v1318 = vunpack.c.l.b16 %v54
  %v1319 = vunpack.c.h.b16 %v54
  %v1320 = vunpack.c.l.b16 %v55
  %v1321 = vunpack.c.h.b16 %v55
  %v1322 = vunpack.c.l.b16 %v56
  %v1323 = vunpack.c.h.b16 %v56
  %v1324 = vpack.c.b16 %v1252, %v1252
  %v1325 = vpack.c.b16 %v1253, %v1253
  %v1326 = vpack.c.b16 %v1254, %v1254
  %v1327 = vpack.c.b16 %v1255, %v1255
  %v1328 = vpack.c.b16 %v1256, %v1256
  %v1329 = vpack.c.b16 %v1257, %v1257
  %v1330 = vpack.c.b16 %v1258, %v1258
  %v1331 = vpack.c.b16 %v1259, %v1259
  %v1332 = vpack.c.b16 %v1260, %v1260
  %v1333 = vpack.c.b16 %v1261, %v1261
  %v1334 = vpack.c.b16 %v1262, %v1262
  %v1335 = vpack.c.b16 %v1263, %v1263
  %v1336 = vpack.c.b16 %v1264, %v1264
  %v1337 = vpack.c.b16 %v1265, %v1265
  %v1338 = vpack.c.b16 %v1266, %v1266
  %v1339 = vpack.c.b16 %v1267, %v1267
  %v1340 = vpack.c.b16 %v1268, %v1268
  %v1341 = vpack.c.b16 %v1269, %v1269
  %v1342 = vpack.c.b16 %v1270, %v1270
  %v1343 = vpack.c.b16 %v1271, %v1271
  %v1344 = vpack.c.b16 %v1272, %v1272
  %v1345 = vpack.c.b16 %v1273, %v1273
  %v1346 = vpack.c.b16 %v1274, %v1274
  %v1347 = vpack.c.b16 %v1275, %v1275
  %v1348 = vpack.c.b16 %v1276, %v1276
  %v1349 = vpack.c.b16 %v1277, %v1277
  %v1350 = vpack.c.b16 %v1278, %v1278
  %v1351 = vpack.c.b16 %v1279, %v1279
  %v1352 = vpack.c.b16 %v1280, %v1280
  %v1353 = vpack.c.b16 %v1281, %v1281
  %v1354 = vpack.c.b16 %v1282, %v1282
  %v1355 = vpack.c.b16 %v1283, %v1283
  %v1356 = vpack.c.b16 %v1284, %v1284
  %v1357 = vpack.c.b16 %v1285, %v1285
  %v1358 = vpack.c.b16 %v1286, %v1286
  %v1359 = vpack.c.b16 %v1287, %v1287
  %v1360 = vpack.c.b16 %v1288, %v1288
  %v1361 = vpack.c.b16 %v1289, %v1289
  %v1362 = vpack.c.b16 %v1290, %v1290
  %v1363 = vpack.c.b16 %v1291, %v1291
  %v1364 = vpack.c.b16 %v1292, %v1292
  %v1365 = vpack.c.b16 %v1293, %v1293
  %v1366 = vpack.c.b16 %v1294, %v1294
  %v1367 = vpack.c.b16 %v1295, %v1295
  %v1368 = vpack.c.b16 %v1296, %v1296
  %v1369 = vpack.c.b16 %v1297, %v1297
  %v1370 = vpack.c.b16 %v1298, %v1298
  %v1371 = vpack.c.b16 %v1299, %v1299
  %v1372 = vpack.c.b16 %v1300, %v1300
  %v1373 = vpack.c.b16 %v1301, %v1301
  %v1374 = vpack.c.b16 %v1302, %v1302
  %v1375 = vpack.c.b16 %v1303, %v1303
  %v1376 = vpack.c.b16 %v1304, %v1304
  %v1377 = vpack.c.b16 %v1305, %v1305
  %v1378 = vpack.c.b16 %v1306, %v1306
  %v1379 = vpack.c.b16 %v1307, %v1307
  %v1380 = vpack.c.b16 %v1308, %v1308
  %v1381 = vpack.c.b16 %v1309, %v1309
  %v1382 = vpack.c.b16 %v1310, %v1310
  %v1383 = vpack.c.b16 %v1311, %v1311
  %v1384 = vpack.c.b16 %v1312, %v1312
  %v1385 = vpack.c.b16 %v1313, %v1313
  %v1386 = vpack.c.b16 %v1314, %v1314
  %v1387 = vpack.c.b16 %v1315, %v1315
  %v1388 = vpack.c.b16 %v1316, %v1316
  %v1389 = vpack.c.b16 %v1317, %v1317
  %v1390 = vpack.c.b16 %v1318, %v1318
  %v1391 = vpack.c.b16 %v1319, %v1319
  %v1392 = vpack.c.b16 %v1320, %v1320
  %v1393 = vpack.c.b16 %v1321, %v1321
  %v1394 = vpack.c.b16 %v1322, %v1322
  %v1395 = vpack.c.b16 %v1323, %v1323
  %v2620 = vunpack.c.l.b16 %v57
  %v2621 = vunpack.c.l.b16 %v58
  %v2622 = vunpack.c.l.b16 %v59
  %v2623 = vunpack.c.l.b16 %v60
  %v2624 = vunpack.c.l.b16 %v61
  %v2625 = vunpack.c.l.b16 %v62
  %v2626 = vunpack.c.l.b16 %v63
  %v2627 = vunpack.c.l.b16 %v64
  %v2628 = vunpack.c.l.b16 %v65
  %v2629 = vunpack.c.l.b16 %v66
  %v2630 = vunpack.c.l.b16 %v67
  %v2631 = vunpack.c.l.b16 %v68
  %v2632 = vunpack.c.l.b16 %v69
  %v2633 = vunpack.c.l.b16 %v70
  %v2634 = vunpack.c.l.b16 %v71
  %v2635 = vunpack.c.l.b16 %v72
  %v2636 = vunpack.c.l.b16 %v73
  %v2637 = vunpack.c.l.b16 %v74
  %v2638 = vunpack.c.l.b16 %v75
  %v2639 = vunpack.c.l.b16 %v76
  %v2640 = vunpack.c.l.b16 %v77
  %v2641 = vunpack.c.l.b16 %v78
  %v2642 = vunpack.c.l.b16 %v79
  %v2643 = vunpack.c.l.b16 %v80
  %v2644 = vunpack.c.l.b16 %v81
  %v2645 = vunpack.c.l.b16 %v82
  %v2646 = vunpack.c.l.b16 %v83
  %v2647 = vunpack.c.l.b16 %v84
  %v2648 = vunpack.c.l.b16 %v85
  %v2649 = vunpack.c.l.b16 %v86
  %v2650 = vunpack.c.l.b16 %v87
  %v2651 = vunpack.c.l.b16 %v88
  %v2652 = vunpack.c.l.b16 %v89
  %v2653 = vunpack.c.l.b16 %v90
  %v2654 = vunpack.c.l.b16 %v91
  %v2655 = vunpack.c.l.b16 %v92
  %v2656 = vunpack.c.l.b16 %v93
  %v2657 = vunpack.c.l.b16 %v94
  %v2658 = vunpack.c.l.b16 %v95
  %v2659 = vunpack.c.l.b16 %v96
  %v2660 = vunpack.c.l.b16 %v97
  %v2661 = vunpack.c.l.b16 %v98
  %v2662 = vunpack.c.l.b16 %v99
  %v2663 = vunpack.c.l.b16 %v100
  %v2664 = vunpack.c.l.b16 %v101
  %v2665 = vunpack.c.l.b16 %v102
  %v2666 = vunpack.c.l.b16 %v103
  %v2667 = vunpack.c.l.b16 %v104
  %v2668 = vunpack.c.l.b16 %v105
  %v2669 = vunpack.c.l.b16 %v106
  %v2670 = vunpack.c.l.b16 %v107
  %v2671 = vunpack.c.l.b16 %v108
  %v2672 = vunpack.c.l.b16 %v109
  %v2673 = vunpack.c.l.b16 %v110
  %v2674 = vunpack.c.l.b16 %v111
  %v2675 = vunpack.c.l.b16 %v112
  %v2676 = vunpack.c.l.b16 %v113
  %v2677 = vunpack.c.l.b16 %v114
  %v2678 = vunpack.c.l.b16 %v115
  %v2679 = vunpack.c.l.b16 %v116
  %v2680 = vunpack.c.l.b16 %v117
  %v2681 = vunpack.c.l.b16 %v118
  %v2682 = vunpack.c.l.b16 %v119
  %v2683 = vunpack.c.l.b16 %v120
  %v2684 = vunpack.c.l.b16 %v121
  %v2685 = vunpack.c.l.b16 %v122
  %v2686 = vunpack.c.l.b16 %v123
  %v2687 = vunpack.c.l.b16 %v124
  %v2688 = vunpack.c.l.b16 %v125
  %v2689 = vunpack.c.l.b16 %v126
  %v2690 = vunpack.c.l.b16 %v127
  %v2691 = vunpack.c.l.b16 %v128
  %v2692 = vunpack.c.l.b16 %v129
  %v2693 = vunpack.c.l.b16 %v130
  %v2694 = vunpack.c.l.b16 %v131
  %v2695 = vunpack.c.l.b16 %v132
  %v2696 = vunpack.c.l.b16 %v133
  %v2697 = vunpack.c.l.b16 %v134
  %v2698 = vunpack.c.l.b16 %v135
  %v2699 = vunpack.c.l.b16 %v136
  %v2700 = vunpack.c.l.b16 %v137
  %v2701 = vunpack.c.l.b16 %v138
  %v2702 = vunpack.c.l.b16 %v139
  %v2703 = vunpack.c.l.b16 %v140
  %v2704 = vunpack.c.l.b16 %v141
  %v2705 = vunpack.c.l.b16 %v142
  %v2706 = vunpack.c.l.b16 %v143
  %v2707 = vunpack.c.l.b16 %v144
  %v2708 = vunpack.c.l.b16 %v145
  %v2709 = vunpack.c.l.b16 %v146
  %v2710 = vunpack.c.l.b16 %v147
  %v2711 = vunpack.c.l.b16 %v148
  %v2712 = vunpack.c.l.b16 %v149
  %v2713 = vunpack.c.l.b16 %v150
  %v2714 = vunpack.c.l.b16 %v151
  %v2715 = vunpack.c.l.b16 %v152
  %v2716 = vunpack.c.l.b16 %v153
  %v2717 = vunpack.c.l.b16 %v154
  %v2718 = vunpack.c.l.b16 %v155
  %v2719 = vunpack.c.l.b16 %v156
  %v2720 = vunpack.c.l.b16 %v157
  %v2721 = vunpack.c.l.b16 %v158
  %v2722 = vunpack.c.l.b16 %v159
  %v2723 = vunpack.c.l.b16 %v160
  %v2724 = vunpack.c.l.b16 %v161
  %v2725 = vunpack.c.l.b16 %v162
  %v2726 = vunpack.c.l.b16 %v163
  %v2727 = vunpack.c.l.b16 %v164
  %v2728 = vunpack.c.l.b16 %v165
  %v2729 = vunpack.c.l.b16 %v166
  %v2730 = vunpack.c.l.b16 %v167
  %v2731 = vunpack.c.l.b16 %v168
  %v2732 = vunpack.c.l.b16 %v169
  %v2733 = vunpack.c.l.b16 %v170
  %v2734 = vunpack.c.l.b16 %v171
  %v2735 = vunpack.c.l.b16 %v172
  %v2736 = vunpack.c.l.b16 %v173
  %v2737 = vunpack.c.l.b16 %v174
  %v2738 = vunpack.c.l.b16 %v175
  %v2739 = vunpack.c.l.b16 %v176
  %v2740 = vunpack.c.l.b16 %v177
  %v2741 = vunpack.c.l.b16 %v178
  %v2742 = vunpack.c.l.b16 %v179
  %v2743 = vunpack.c.l.b16 %v180
  %v2744 = vunpack.c.l.b16 %v181
  %v2745 = vunpack.c.l.b16 %v182
  %v2746 = vunpack.c.l.b16 %v183
  %v2747 = vunpack.c.l.b16 %v184
  %v2748 = vunpack.c.l.b16 %v185
  %v2749 = vunpack.c.l.b16 %v186
  %v2750 = vunpack.c.l.b16 %v187
  %v2751 = vunpack.c.l.b16 %v188
  %v2752 = vunpack.c.l.b16 %v189
  %v2753 = vunpack.c.l.b16 %v190
  %v2754 = vunpack.c.l.b16 %v191
  %v2755 = vunpack.c.l.b16 %v192
  %v2756 = vunpack.c.l.b16 %v193
  %v2757 = vunpack.c.l.b16 %v194
  %v2758 = vunpack.c.l.b16 %v195
  %v2759 = vunpack.c.l.b16 %v196
  %v2760 = vunpack.c.l.b16 %v197
  %v2761 = vunpack.c.l.b16 %v198
  %v2762 = vunpack.c.l.b16 %v199
  %v2763 = vunpack.c.l.b16 %v200
  %v2764 = vunpack.c.l.b16 %v201
  %v2765 = vunpack.c.l.b16 %v202
  %v2766 = vunpack.c.l.b16 %v203
  %v2767 = vunpack.c.l.b16 %v204
  %v2768 = vunpack.c.l.b16 %v205
  %v2769 = vunpack.c.l.b16 %v206
  %v2770 = vunpack.c.l.b16 %v207
  %v2771 = vunpack.c.l.b16 %v208
  %v2772 = vunpack.c.l.b16 %v209
  %v2773 = vunpack.c.l.b16 %v210
  %v2774 = vunpack.c.l.b16 %v211
  %v2775 = vunpack.c.l.b16 %v212
  %v2776 = vunpack.c.l.b16 %v213
  %v2777 = vunpack.c.l.b16 %v214
  %v2778 = vunpack.c.l.b16 %v215
  %v2779 = vunpack.c.l.b16 %v216
  %v2780 = vunpack.c.l.b16 %v217
  %v2781 = vunpack.c.l.b16 %v218
  %v2782 = vunpack.c.l.b16 %v219
  %v2783 = vunpack.c.l.b16 %v220
  %v2784 = vunpack.c.l.b16 %v221
  %v2785 = vunpack.c.l.b16 %v222
  %v2786 = vunpack.c.l.b16 %v223
  %v2787 = vunpack.c.l.b16 %v224
  %v2788 = vunpack.c.l.b16 %v225
  %v2789 = vunpack.c.l.b16 %v226
  %v2790 = vunpack.c.l.b16 %v227
  %v2791 = vunpack.c.l.b16 %v228
  %v2792 = vunpack.c.l.b16 %v229
  %v2793 = vunpack.c.l.b16 %v230
  %v2794 = vunpack.c.l.b16 %v231
  %v2795 = vunpack.c.l.b16 %v232
  %v2796 = vunpack.c.l.b16 %v233
  %v2797 = vunpack.c.l.b16 %v234
  %v2798 = vunpack.c.l.b16 %v235
  %v2799 = vunpack.c.l.b16 %v236
  %v2800 = vunpack.c.l.b16 %v237
  %v2801 = vunpack.c.l.b16 %v238
  %v2802 = vunpack.c.l.b16 %v239
  %v2803 = vunpack.c.l.b16 %v240
  %v2804 = vunpack.c.l.b16 %v241
  %v2805 = vunpack.c.l.b16 %v242
  %v2806 = vunpack.c.l.b16 %v243
  %v2807 = vunpack.c.l.b16 %v244
  %v2808 = vunpack.c.l.b16 %v245
  %v2809 = vunpack.c.l.b16 %v246
  %v2810 = vunpack.c.l.b16 %v247
  %v2811 = vunpack.c.l.b16 %v248
  %v2812 = vunpack.c.l.b16 %v249
  %v2813 = vunpack.c.l.b16 %v250
  %v2814 = vunpack.c.l.b16 %v251
  %v2815 = vunpack.c.l.b16 %v252
  %v2816 = vunpack.c.l.b16 %v253
  %v2817 = vunpack.c.l.b16 %v254
  %v2818 = vunpack.c.l.b16 %v255
  %v2819 = vunpack.c.l.b16 %v256
  %v2820 = vunpack.c.l.b16 %v257
  %v2821 = vunpack.c.l.b16 %v258
  %v2822 = vunpack.c.l.b16 %v259
  %v2823 = vunpack.c.l.b16 %v260
  %v2824 = vunpack.c.l.b16 %v261
  %v2825 = vunpack.c.l.b16 %v262
  %v2826 = vunpack.c.l.b16 %v263
  %v2827 = vunpack.c.l.b16 %v264
  %v2828 = vunpack.c.l.b16 %v265
  %v2829 = vunpack.c.l.b16 %v266
  %v2830 = vunpack.c.l.b16 %v267
  %v2831 = vunpack.c.l.b16 %v268
  %v2832 = vunpack.c.l.b16 %v269
  %v2833 = vunpack.c.l.b16 %v270
  %v2834 = vunpack.c.l.b16 %v271
  %v2835 = vunpack.c.l.b16 %v272
  %v2836 = vunpack.c.l.b16 %v273
  %v2837 = vunpack.c.l.b16 %v274
  %v2838 = vunpack.c.l.b16 %v275
  %v2839 = vunpack.c.l.b16 %v276
  %v2840 = vunpack.c.l.b16 %v277
  %v2841 = vunpack.c.l.b16 %v278
  %v2842 = vunpack.c.l.b16 %v279
  %v2843 = vunpack.c.l.b16 %v280
  %v2844 = vunpack.c.l.b16 %v281
  %v2845 = vunpack.c.l.b16 %v282
  %v2846 = vunpack.c.l.b16 %v283
  %v2847 = vunpack.c.l.b16 %v284
  %v2848 = vunpack.c.l.b16 %v285
  %v2849 = vunpack.c.l.b16 %v286
  %v2850 = vunpack.c.l.b16 %v287
  %v2851 = vunpack.c.l.b16 %v288
  %v2852 = vunpack.c.l.b16 %v289
  %v2853 = vunpack.c.l.b16 %v290
  %v2854 = vunpack.c.l.b16 %v291
  %v2855 = vunpack.c.l.b16 %v292
  %v2856 = vunpack.c.l.b16 %v293
  %v2857 = vunpack.c.l.b16 %v294
  %v2858 = vunpack.c.l.b16 %v295
  %v2859 = vunpack.c.l.b16 %v296
  %v2860 = vunpack.c.l.b16 %v297
  %v2861 = vunpack.c.l.b16 %v298
  %v2862 = vunpack.c.l.b16 %v299
  %v2863 = vunpack.c.l.b16 %v300
  %v2864 = vunpack.c.l.b16 %v301
  %v2865 = vunpack.c.l.b16 %v302
  %v2866 = vunpack.c.l.b16 %v303
  %v2867 = vunpack.c.l.b16 %v304
  %v2868 = vunpack.c.l.b16 %v305
  %v2869 = vunpack.c.l.b16 %v306
  %v2870 = vunpack.c.l.b16 %v307
  %v2871 = vunpack.c.l.b16 %v308
  %v2872 = vunpack.c.l.b16 %v309
  %v2873 = vunpack.c.l.b16 %v310
  %v2874 = vunpack.c.l.b16 %v311
  %v2875 = vunpack.c.l.b16 %v312
  %v2876 = vunpack.c.l.b16 %v313
  %v2877 = vunpack.c.l.b16 %v314
  %v2878 = vunpack.c.l.b16 %v315
  %v2879 = vunpack.c.l.b16 %v316
  %v2880 = vunpack.c.l.b16 %v317
  %v2881 = vunpack.c.l.b16 %v318
  %v2882 = vunpack.c.l.b16 %v319
  %v2883 = vunpack.c.l.b16 %v320
  %v2884 = vunpack.c.l.b16 %v321
  %v2885 = vunpack.c.l.b16 %v322
  %v2886 = vunpack.c.l.b16 %v323
  %v2887 = vunpack.c.l.b16 %v324
  %v2888 = vunpack.c.l.b16 %v325
  %v2889 = vunpack.c.l.b16 %v326
  %v2890 = vunpack.c.l.b16 %v327
  %v2891 = vunpack.c.l.b16 %v328
  %v2892 = vunpack.c.l.b16 %v329
  %v2893 = vunpack.c.l.b16 %v330
  %v2894 = vunpack.c.l.b16 %v331
  %v2895 = vunpack.c.l.b16 %v332
  %v2896 = vunpack.c.l.b16 %v333
  %v2897 = vunpack.c.l.b16 %v334
  %v2898 = vunpack.c.l.b16 %v335
  %v2899 = vunpack.c.l.b16 %v336
  %v2900 = vunpack.c.l.b16 %v337
  %v2901 = vunpack.c.l.b16 %v338
  %v2902 = vunpack.c.l.b16 %v339
  %v2903 = vunpack.c.l.b16 %v340
  %v2904 = vunpack.c.l.b16 %v341
  %v2905 = vunpack.c.l.b16 %v342
  %v2906 = vunpack.c.l.b16 %v343
  %v2907 = vunpack.c.l.b16 %v344
  %v2908 = vunpack.c.l.b16 %v345
  %v2909 = vunpack.c.l.b16 %v346
  %v2910 = vunpack.c.l.b16 %v347
  %v2911 = vunpack.c.l.b16 %v348
  %v2912 = vunpack.c.l.b16 %v349
  %v2913 = vunpack.c.l.b16 %v350
  %v2914 = vunpack.c.l.b16 %v351
  %v2915 = vunpack.c.l.b16 %v352
  %v2916 = vunpack.c.l.b16 %v353
  %v2917 = vunpack.c.l.b16 %v354
  %v2918 = vunpack.c.l.b16 %v355
  %v2919 = vunpack.c.l.b16 %v356
  %v2920 = vunpack.c.l.b16 %v357
  %v2921 = vunpack.c.l.b16 %v358
  %v2922 = vunpack.c.l.b16 %v359
  %v2923 = vunpack.c.l.b16 %v360
  %v2924 = vunpack.c.l.b16 %v361
  %v2925 = vunpack.c.l.b16 %v362
  %v2926 = vunpack.c.l.b16 %v363
  %v2927 = vunpack.c.l.b16 %v364
  %v2928 = vunpack.c.l.b16 %v365
  %v2929 = vunpack.c.l.b16 %v366
  %v2930 = vunpack.c.l.b16 %v367
  %v2931 = vunpack.c.l.b16 %v368
  %v2932 = vunpack.c.l.b16 %v369
  %v2933 = vunpack.c.l.b16 %v370
  %v2934 = vunpack.c.l.b16 %v371
  %v2935 = vunpack.c.l.b16 %v372
  %v2936 = vunpack.c.l.b16 %v373
  %v2937 = vunpack.c.l.b16 %v374
  %v2938 = vunpack.c.l.b16 %v375
  %v2939 = vunpack.c.l.b16 %v376
  %v2940 = vunpack.c.l.b16 %v377
  %v2941 = vunpack.c.l.b16 %v378
  %v2942 = vunpack.c.l.b16 %v379
  %v2943 = vunpack.c.l.b16 %v380
  %v2944 = vunpack.c.l.b16 %v381
  %v2945 = vunpack.c.l.b16 %v382
  %v2946 = vunpack.c.l.b16 %v383
  %v2947 = vunpack.c.l.b16 %v384
  %v2948 = vunpack.c.l.b16 %v385
  %v2949 = vunpack.c.l.b16 %v386
  %v2950 = vunpack.c.l.b16 %v387
  %v2951 = vunpack.c.l.b16 %v388
  %v2952 = vunpack.c.l.b16 %v389
  %v2953 = vunpack.c.l.b16 %v390
  %v2954 = vunpack.c.l.b16 %v391
  %v2955 = vunpack.c.l.b16 %v392
  %v2956 = vunpack.c.l.b16 %v393
  %v2957 = vunpack.c.l.b16 %v394
  %v2958 = vunpack.c.l.b16 %v395
  %v2959 = vunpack.c.l.b16 %v396
  %v2960 = vunpack.c.l.b16 %v397
  %v2961 = vunpack.c.l.b16 %v398
  %v2962 = vunpack.c.l.b16 %v399
  %v2963 = vunpack.c.l.b16 %v400
  %v2964 = vunpack.c.l.b16 %v401
  %v2965 = vunpack.c.l.b16 %v402
  %v2966 = vunpack.c.l.b16 %v403
  %v2967 = vunpack.c.l.b16 %v404
  %v2968 = vunpack.c.l.b16 %v405
  %v2969 = vunpack.c.l.b16 %v406
  %v2970 = vunpack.c.l.b16 %v407
  %v2971 = vunpack.c.l.b16 %v408
  %v2972 = vunpack.c.l.b16 %v409
  %v2973 = vunpack.c.l.b16 %v410
  %v2974 = vunpack.c.l.b16 %v411
  %v2975 = vunpack.c.l.b16 %v412
  %v2976 = vunpack.c.l.b16 %v413
  %v2977 = vunpack.c.l.b16 %v414
  %v2978 = vunpack.c.l.b16 %v415
  %v2979 = vunpack.c.l.b16 %v416
  %v2980 = vunpack.c.l.b16 %v417
  %v2981 = vunpack.c.l.b16 %v418
  %v2982 = vunpack.c.l.b16 %v419
  %v2983 = vunpack.c.l.b16 %v420
  %v2984 = vunpack.c.l.b16 %v421
  %v2985 = vunpack.c.l.b16 %v422
  %v2986 = vunpack.c.l.b16 %v423
  %v2987 = vunpack.c.l.b16 %v424
  %v2988 = vunpack.c.l.b16 %v425
  %v2989 = vunpack.c.l.b16 %v426
  %v2990 = vunpack.c.l.b16 %v427
  %v2991 = vunpack.c.l.b16 %v428
  %v2992 = vunpack.c.l.b16 %v429
  %v2993 = vunpack.c.l.b16 %v430
  %v2994 = vunpack.c.l.b16 %v431
  %v2995 = vunpack.c.l.b16 %v432
  %v2996 = vunpack.c.l.b16 %v433
  %v2997 = vunpack.c.l.b16 %v434
  %v2998 = vunpack.c.l.b16 %v435
  %v2999 = vunpack.c.l.b16 %v436
  %v3000 = vunpack.c.l.b16 %v437
  %v3001 = vunpack.c.l.b16 %v438
  %v3002 = vunpack.c.l.b16 %v439
  %v3003 = vunpack.c.l.b16 %v440
  %v3004 = vunpack.c.l.b16 %v441
  %v3005 = vunpack.c.l.b16 %v442
  %v3006 = vunpack.c.l.b16 %v443
  %v3007 = vunpack.c.l.b16 %v444
  %v3008 = vunpack.c.l.b16 %v445
  %v3009 = vunpack.c.l.b16 %v446
  %v3010 = vunpack.c.l.b16 %v447
  %v3011 = vunpack.c.l.b16 %v448
  %v3012 = vunpack.c.l.b16 %v449
  %v3013 = vunpack.c.l.b16 %v450
  %v3014 = vunpack.c.l.b16 %v451
  %v3015 = vunpack.c.l.b16 %v452
  %v3016 = vunpack.c.l.b16 %v453
  %v3017 = vunpack.c.l.b16 %v454
  %v3018 = vunpack.c.l.b16 %v455
  %v3019 = vunpack.c.l.b16 %v456
  %v3020 = vunpack.c.l.b16 %v457
  %v3021 = vunpack.c.l.b16 %v458
  %v3022 = vunpack.c.l.b16 %v459
  %v3023 = vunpack.c.l.b16 %v460
  %v3024 = vunpack.c.l.b16 %v461
  %v3025 = vunpack.c.l.b16 %v462
  %v3026 = vunpack.c.l.b16 %v463
  %v3027 = vunpack.c.l.b16 %v464
  %v3028 = vunpack.c.l.b16 %v465
  %v3029 = vunpack.c.l.b16 %v466
  %v3030 = vunpack.c.l.b16 %v467
  %v3031 = vunpack.c.l.b16 %v468
  %v3032 = vunpack.c.l.b16 %v469
  %v3033 = vunpack.c.l.b16 %v470
  %v3034 = vunpack.c.l.b16 %v471
  %v3035 = vunpack.c.l.b16 %v472
  %v3036 = vunpack.c.l.b16 %v473
  %v3037 = vunpack.c.l.b16 %v474
  %v3038 = vunpack.c.l.b16 %v475
  %v3039 = vunpack.c.l.b16 %v476
  %v3040 = vunpack.c.l.b16 %v477
  %v3041 = vunpack.c.l.b16 %v478
  %v3042 = vunpack.c.l.b16 %v479
  %v3043 = vunpack.c.l.b16 %v480
  %v3044 = vunpack.c.l.b16 %v481
  %v3045 = vunpack.c.l.b16 %v482
  %v3046 = vunpack.c.l.b16 %v483
  %v3047 = vunpack.c.l.b16 %v484
  %v3048 = vunpack.c.l.b16 %v485
  %v3049 = vunpack.c.l.b16 %v486
  %v3050 = vunpack.c.l.b16 %v487
  %v3051 = vunpack.c.l.b16 %v488
  %v3052 = vunpack.c.l.b16 %v489
  %v3053 = vunpack.c.l.b16 %v490
  %v3054 = vunpack.c.l.b16 %v491
  %v3055 = vunpack.c.l.b16 %v492
  %v3056 = vunpack.c.l.b16 %v493
  %v3057 = vunpack.c.l.b16 %v494
  %v3058 = vunpack.c.l.b16 %v495
  %v3059 = vunpack.c.l.b16 %v496
  %v3060 = vunpack.c.l.b16 %v497
  %v3061 = vunpack.c.l.b16 %v498
  %v3062 = vunpack.c.l.b16 %v499
  %v3063 = vunpack.c.l.b16 %v500
  %v3064 = vunpack.c.l.b16 %v501
  %v3065 = vunpack.c.l.b16 %v502
  %v3066 = vunpack.c.l.b16 %v503
  %v3067 = vunpack.c.l.b16 %v504
  %v3068 = vunpack.c.l.b16 %v505
  %v3069 = vunpack.c.l.b16 %v506
  %v3070 = vunpack.c.l.b16 %v507
  %v3071 = vunpack.c.l.b16 %v508
  %v3072 = vunpack.c.l.b16 %v509
  %v3073 = vunpack.c.l.b16 %v510
  %v3074 = vunpack.c.l.b16 %v511
  %v3075 = vunpack.c.l.b16 %v512
  %v3076 = vunpack.c.l.b16 %v513
  %v3077 = vunpack.c.l.b16 %v514
  %v3078 = vunpack.c.l.b16 %v515
  %v3079 = vunpack.c.l.b16 %v516
  %v3080 = vunpack.c.l.b16 %v517
  %v3081 = vunpack.c.l.b16 %v518
  %v3082 = vunpack.c.l.b16 %v519
  %v3083 = vunpack.c.l.b16 %v520
  %v3084 = vunpack.c.l.b16 %v521
  %v3085 = vunpack.c.l.b16 %v522
  %v3086 = vunpack.c.l.b16 %v523
  %v3087 = vunpack.c.l.b16 %v524
  %v3088 = vunpack.c.l.b16 %v525
  %v3089 = vunpack.c.l.b16 %v526
  %v3090 = vunpack.c.l.b16 %v527
  %v3091 = vunpack.c.l.b16 %v528
  %v3092 = vunpack.c.l.b16 %v529
  %v3093 = vunpack.c.l.b16 %v530
  %v3094 = vunpack.c.l.b16 %v531
  %v3095 = vunpack.c.l.b16 %v532
  %v3096 = vunpack.c.l.b16 %v533
  %v3097 = vunpack.c.l.b16 %v534
  %v3098 = vunpack.c.l.b16 %v535
  %v3099 = vunpack.c.l.b16 %v536
  %v3100 = vunpack.c.l.b16 %v537
  %v3101 = vunpack.c.l.b16 %v538
  %v3102 = vunpack.c.l.b16 %v539
  %v3103 = vunpack.c.l.b16 %v540
  %v3104 = vunpack.c.l.b16 %v541
  %v3105 = vunpack.c.l.b16 %v542
  %v3106 = vunpack.c.l.b16 %v543
  %v3107 = vunpack.c.l.b16 %v544
  %v3108 = vunpack.c.l.b16 %v545
  %v3109 = vunpack.c.l.b16 %v546
  %v3110 = vunpack.c.l.b16 %v547
  %v3111 = vunpack.c.l.b16 %v548
  %v3112 = vunpack.c.l.b16 %v549
  %v3113 = vunpack.c.l.b16 %v550
  %v3114 = vunpack.c.l.b16 %v551
  %v3115 = vunpack.c.l.b16 %v552
  %v3116 = vunpack.c.l.b16 %v553
  %v3117 = vunpack.c.l.b16 %v554
  %v3118 = vunpack.c.l.b16 %v555
  %v3119 = vunpack.c.l.b16 %v556
  %v3120 = vunpack.c.l.b16 %v557
  %v3121 = vunpack.c.l.b16 %v558
  %v3122 = vunpack.c.l.b16 %v559
  %v3123 = vunpack.c.l.b16 %v560
  %v3124 = vunpack.c.l.b16 %v561
  %v3125 = vunpack.c.l.b16 %v562
  %v3126 = vunpack.c.l.b16 %v563
  %v3127 = vunpack.c.l.b16 %v564
  %v3128 = vunpack.c.l.b16 %v565
  %v3129 = vunpack.c.l.b16 %v566
  %v3130 = vunpack.c.l.b16 %v567
  %v3131 = vunpack.c.l.b16 %v568
  %v3132 = vunpack.c.l.b16 %v569
  %v3133 = vunpack.c.l.b16 %v570
  %v3134 = vunpack.c.l.b16 %v571
  %v3135 = vunpack.c.l.b16 %v572
  %v3136 = vunpack.c.l.b16 %v573
  %v3137 = vunpack.c.l.b16 %v574
  %v3138 = vunpack.c.l.b16 %v575
  %v3139 = vunpack.c.l.b16 %v576
  %v3140 = vunpack.c.l.b16 %v577
  %v3141 = vunpack.c.l.b16 %v578
  %v3142 = vunpack.c.l.b16 %v579
  %v3143 = vunpack.c.l.b16 %v580
  %v3144 = vunpack.c.l.b16 %v581
  %v3145 = vunpack.c.l.b16 %v582
  %v3146 = vunpack.c.l.b16 %v583
  %v3147 = vunpack.c.l.b16 %v584
  %v3148 = vunpack.c.l.b16 %v585
  %v3149 = vunpack.c.l.b16 %v586
  %v3150 = vunpack.c.l.b16 %v587
  %v3151 = vunpack.c.l.b16 %v588
  %v3152 = vunpack.c.l.b16 %v589
  %v3153 = vunpack.c.l.b16 %v590
  %v3154 = vunpack.c.l.b16 %v591
  %v3155 = vunpack.c.l.b16 %v592
  %v3156 = vunpack.c.l.b16 %v593
  %v3157 = vunpack.c.l.b16 %v594
  %v3158 = vunpack.c.l.b16 %v595
  %v3159 = vunpack.c.l.b16 %v596
  %v3160 = vunpack.c.l.b16 %v597
  %v3161 = vunpack.c.l.b16 %v598
  %v3162 = vunpack.c.l.b16 %v599
  %v3163 = vunpack.c.l.b16 %v600
  %v3164 = vunpack.c.l.b16 %v601
  %v3165 = vunpack.c.l.b16 %v602
  %v3166 = vunpack.c.l.b16 %v603
  %v3167 = vunpack.c.l.b16 %v604
  %v3168 = vunpack.c.l.b16 %v605
  %v3169 = vunpack.c.l.b16 %v606
  %v3170 = vunpack.c.l.b16 %v607
  %v3171 = vunpack.c.l.b16 %v608
  %v3172 = vunpack.c.l.b16 %v609
  %v3173 = vunpack.c.l.b16 %v610
  %v3174 = vunpack.c.l.b16 %v611
  %v3175 = vunpack.c.l.b16 %v612
  %v3176 = vunpack.c.l.b16 %v613
  %v3177 = vunpack.c.l.b16 %v614
  %v3178 = vunpack.c.l.b16 %v615
  %v3179 = vunpack.c.l.b16 %v616
  %v3180 = vunpack.c.l.b16 %v617
  %v3181 = vunpack.c.l.b16 %v618
  %v3182 = vunpack.c.l.b16 %v619
  %v3183 = vunpack.c.l.b16 %v620
  %v3184 = vunpack.c.l.b16 %v621
  %v3185 = vunpack.c.l.b16 %v622
  %v3186 = vunpack.c.l.b16 %v623
  %v3187 = vunpack.c.l.b16 %v624
  %v3188 = vunpack.c.l.b16 %v625
  %v3189 = vunpack.c.l.b16 %v626
  %v3190 = vunpack.c.l.b16 %v627
  %v3191 = vunpack.c.l.b16 %v628
  %v3192 = vunpack.c.l.b16 %v629
  %v3193 = vunpack.c.l.b16 %v630
  %v3194 = vunpack.c.l.b16 %v631
  %v3195 = vunpack.c.l.b16 %v632
  %v3196 = vunpack.c.l.b16 %v633
  %v3197 = vunpack.c.l.b16 %v634
  %v3198 = vunpack.c.l.b16 %v635
  %v3199 = vunpack.c.l.b16 %v636
  %v3200 = vunpack.c.l.b16 %v637
  %v3201 = vunpack.c.l.b16 %v638
  %v3202 = vunpack.c.l.b16 %v639
  %v3203 = vunpack.c.l.b16 %v640
  %v3204 = vunpack.c.l.b16 %v641
  %v3205 = vunpack.c.l.b16 %v642
  %v3206 = vunpack.c.l.b16 %v643
  %v3207 = vunpack.c.l.b16 %v644
  %v3208 = vunpack.c.l.b16 %v645
  %v3209 = vunpack.c.l.b16 %v646
  %v3210 = vunpack.c.l.b16 %v647
  %v3211 = vunpack.c.l.b16 %v648
  %v3212 = vunpack.c.l.b16 %v649
  %v3213 = vunpack.c.l.b16 %v650
  %v3214 = vunpack.c.l.b16 %v651
  %v3215 = vunpack.c.l.b16 %v652
  %v3216 = vunpack.c.l.b16 %v653
  %v3217 = vunpack.c.l.b16 %v654
  %v3218 = vunpack.c.l.b16 %v655
  %v3219 = vunpack.c.l.b16 %v656
  %v3220 = vunpack.c.l.b16 %v657
  %v3221 = vunpack.c.l.b16 %v658
  %v3222 = vunpack.c.l.b16 %v659
  %v3223 = vunpack.c.l.b16 %v660
  %v3224 = vunpack.c.l.b16 %v661
  %v3225 = vunpack.c.l.b16 %v662
  %v3226 = vunpack.c.l.b16 %v663
  %v3227 = vunpack.c.l.b16 %v664
  %v3228 = vunpack.c.l.b16 %v665
  %v3229 = vunpack.c.l.b16 %v666
  %v3230 = vunpack.c.l.b16 %v667
  %v3231 = vunpack.c.l.b16 %v668
  %v3232 = vunpack.c.l.b16 %v669
  %v3233 = vunpack.c.l.b16 %v670
  %v3234 = vunpack.c.l.b16 %v671
  %v3235 = vunpack.c.l.b16 %v672
  %v3236 = vunpack.c.l.b16 %v673
  %v3237 = vunpack.c.l.b16 %v674
  %v3238 = vunpack.c.l.b16 %v675
  %v3239 = vunpack.c.l.b16 %v676
  %v3240 = vunpack.c.l.b16 %v677
  %v3241 = vunpack.c.l.b16 %v678
  %v3242 = vunpack.c.l.b16 %v679
  %v3243 = vunpack.c.l.b16 %v680
  %v3244 = vunpack.c.l.b16 %v681
  %v3245 = vunpack.c.l.b16 %v682
  %v3246 = vunpack.c.l.b16 %v683
  %v3247 = vunpack.c.l.b16 %v684
  %v3248 = vunpack.c.l.b16 %v685
  %v3249 = vunpack.c.l.b16 %v686
  %v3250 = vunpack.c.l.b16 %v687
  %v3251 = vunpack.c.l.b16 %v688
  %v3252 = vunpack.c.l.b16 %v689
  %v3253 = vunpack.c.l.b16 %v690
  %v3254 = vunpack.c.l.b16 %v691
  %v3255 = vunpack.c.l.b16 %v692
  %v3256 = vunpack.c.l.b16 %v693
  %v3257 = vunpack.c.l.b16 %v694
  %v3258 = vunpack.c.l.b16 %v695
  %v3259 = vunpack.c.l.b16 %v696
  %v3260 = vunpack.c.l.b16 %v697
  %v3261 = vunpack.c.l.b16 %v698
  %v3262 = vunpack.c.l.b16 %v699
  %v3263 = vunpack.c.l.b16 %v700
  %v3264 = vunpack.c.l.b16 %v701
  %v3265 = vunpack.c.l.b16 %v702
  %v3266 = vunpack.c.l.b16 %v703
  %v3267 = vunpack.c.l.b16 %v704
  %v3268 = vunpack.c.l.b16 %v705
  %v3269 = vunpack.c.l.b16 %v706
  %v3270 = vunpack.c.l.b16 %v707
  %v3271 = vunpack.c.l.b16 %v708
  %v3272 = vunpack.c.l.b16 %v709
  %v3273 = vunpack.c.l.b16 %v710
  %v3274 = vunpack.c.l.b16 %v711
  %v3275 = vunpack.c.l.b16 %v712
  %v3276 = vunpack.c.l.b16 %v713
  %v3277 = vunpack.c.l.b16 %v714
  %v3278 = vunpack.c.l.b16 %v715
  %v3279 = vunpack.c.l.b16 %v716
  %v3280 = vunpack.c.l.b16 %v717
  %v3281 = vunpack.c.l.b16 %v718
  %v3282 = vunpack.c.l.b16 %v719
  %v3283 = vunpack.c.l.b16 %v720
  %v3284 = vunpack.c.l.b16 %v721
  %v3285 = vunpack.c.l.b16 %v722
  %v3286 = vunpack.c.l.b16 %v723
  %v3287 = vunpack.c.l.b16 %v724
  %v3288 = vunpack.c.l.b16 %v725
  %v3289 = vunpack.c.l.b16 %v726
  %v3290 = vunpack.c.l.b16 %v727
  %v3291 = vunpack.c.l.b16 %v728
  %v3292 = vunpack.c.l.b16 %v729
  %v3293 = vunpack.c.l.b16 %v730
  %v3294 = vunpack.c.l.b16 %v731
  %v3295 = vunpack.c.l.b16 %v732
  %v3296 = vunpack.c.l.b16 %v733
  %v3297 = vunpack.c.l.b16 %v734
  %v3298 = vunpack.c.l.b16 %v735
  %v3299 = vunpack.c.l.b16 %v736
  %v3300 = vunpack.c.l.b16 %v737
  %v3301 = vunpack.c.l.b16 %v738
  %v3302 = vunpack.c.l.b16 %v739
  %v3303 = vunpack.c.l.b16 %v740
  %v3304 = vunpack.c.l.b16 %v741
  %v3305 = vunpack.c.l.b16 %v742
  %v3306 = vunpack.c.l.b16 %v743
  %v3307 = vunpack.c.l.b16 %v744
  %v3308 = vunpack.c.l.b16 %v745
  %v3309 = vunpack.c.l.b16 %v746
  %v3310 = vunpack.c.l.b16 %v747
  %v3311 = vunpack.c.l.b16 %v748
  %v3312 = vunpack.c.l.b16 %v749
  %v3313 = vunpack.c.l.b16 %v750
  %v3314 = vunpack.c.l.b16 %v751
  %v3315 = vunpack.c.l.b16 %v752
  %v3316 = vunpack.c.l.b16 %v753
  %v3317 = vunpack.c.l.b16 %v754
  %v3318 = vunpack.c.l.b16 %v755
  %v3319 = vunpack.c.l.b16 %v756
  %v3320 = vunpack.c.l.b16 %v757
  %v3321 = vunpack.c.l.b16 %v758
  %v3322 = vunpack.c.l.b16 %v759
  %v3323 = vunpack.c.l.b16 %v760
  %v3324 = vunpack.c.l.b16 %v761
  %v3325 = vunpack.c.l.b16 %v762
  %v3326 = vunpack.c.l.b16 %v763
  %v3327 = vunpack.c.l.b16 %v764
  %v3328 = vunpack.c.l.b16 %v765
  %v3329 = vunpack.c.l.b16 %v766
  %v3330 = vunpack.c.l.b16 %v767
  %v3331 = vunpack.c.l.b16 %v768
  %v3332 = vunpack.c.l.b16 %v769
  %v3333 = vunpack.c.l.b16 %v770
  %v3334 = vunpack.c.l.b16 %v771
  %v3335 = vunpack.c.l.b16 %v772
  %v3336 = vunpack.c.l.b16 %v773
  %v3337 = vunpack.c.l.b16 %v774
  %v3338 = vunpack.c.l.b16 %v775
  %v3339 = vunpack.c.l.b16 %v776
  %v3340 = vunpack.c.l.b16 %v777
  %v3341 = vunpack.c.l.b16 %v778
  %v3342 = vunpack.c.l.b16 %v779
  %v3343 = vunpack.c.l.b16 %v780
  %v3344 = vunpack.c.l.b16 %v781
  %v3345 = vunpack.c.l.b16 %v782
  %v3346 = vunpack.c.l.b16 %v783
  %v3347 = vunpack.c.l.b16 %v784
  %v3348 = vunpack.c.l.b16 %v785
  %v3349 = vunpack.c.l.b16 %v786
  %v3350 = vunpack.c.l.b16 %v787
  %v3351 = vunpack.c.l.b16 %v788
  %v3352 = vunpack.c.l.b16 %v789
  %v3353 = vunpack.c.l.b16 %v790
  %v3354 = vunpack.c.l.b16 %v791
  %v3355 = vunpack.c.l.b16 %v792
  %v3356 = vunpack.c.l.b16 %v793
  %v3357 = vunpack.c.l.b16 %v794
  %v3358 = vunpack.c.l.b16 %v795
  %v3359 = vunpack.c.l.b16 %v796
  %v3360 = vunpack.c.l.b16 %v797
  %v3361 = vunpack.c.l.b16 %v798
  %v3362 = vunpack.c.l.b16 %v799
  %v3363 = vunpack.c.l.b16 %v800
  %v3364 = vunpack.c.l.b16 %v801
  %v3365 = vunpack.c.l.b16 %v802
  %v3366 = vunpack.c.l.b16 %v803
  %v3367 = vunpack.c.l.b16 %v804
  %v3368 = vunpack.c.l.b16 %v805
  %v3369 = vunpack.c.l.b16 %v806
  %v3370 = vunpack.c.l.b16 %v807
  %v3371 = vunpack.c.l.b16 %v808
  %v3372 = vunpack.c.l.b16 %v809
  %v3373 = vunpack.c.l.b16 %v810
  %v3374 = vunpack.c.l.b16 %v811
  %v3375 = vunpack.c.l.b16 %v812
  %v3376 = vunpack.c.l.b16 %v813
  %v3377 = vunpack.c.l.b16 %v814
  %v3378 = vunpack.c.l.b16 %v815
  %v3379 = vunpack.c.l.b16 %v816
  %v3380 = vunpack.c.l.b16 %v817
  %v3381 = vunpack.c.l.b16 %v818
  %v3382 = vunpack.c.l.b16 %v819
  %v3383 = vunpack.c.l.b16 %v820
  %v3384 = vunpack.c.l.b16 %v821
  %v3385 = vunpack.c.l.b16 %v822
  %v3386 = vunpack.c.l.b16 %v823
  %v3387 = vunpack.c.l.b16 %v824
  %v3388 = vunpack.c.l.b16 %v825
  %v3389 = vunpack.c.l.b16 %v826
  %v3390 = vunpack.c.l.b16 %v827
  %v3391 = vunpack.c.l.b16 %v828
  %v3392 = vunpack.c.l.b16 %v829
  %v3393 = vunpack.c.l.b16 %v830
  %v3394 = vunpack.c.l.b16 %v831
  %v3395 = vunpack.c.l.b16 %v832
  %v3396 = vunpack.c.l.b16 %v833
  %v3397 = vunpack.c.l.b16 %v834
  %v3398 = vunpack.c.l.b16 %v835
  %v3399 = vunpack.c.l.b16 %v836
  %v3400 = vunpack.c.l.b16 %v837
  %v3401 = vunpack.c.l.b16 %v838
  %v3402 = vunpack.c.l.b16 %v839
  %v3403 = vunpack.c.l.b16 %v840
  %v3404 = vunpack.c.l.b16 %v841
  %v3405 = vunpack.c.l.b16 %v842
  %v3406 = vunpack.c.l.b16 %v843
  %v3407 = vunpack.c.l.b16 %v844
  %v3408 = vunpack.c.l.b16 %v845
  %v3409 = vunpack.c.l.b16 %v846
  %v3410 = vunpack.c.l.b16 %v847
  %v3411 = vunpack.c.l.b16 %v848
  %v3412 = vunpack.c.l.b16 %v849
  %v3413 = vunpack.c.l.b16 %v850
  %v3414 = vunpack.c.l.b16 %v851
  %v3415 = vunpack.c.l.b16 %v852
  %v3416 = vunpack.c.l.b16 %v853
  %v3417 = vunpack.c.l.b16 %v854
  %v3418 = vunpack.c.l.b16 %v855
  %v3419 = vunpack.c.l.b16 %v856
  %v3420 = vunpack.c.l.b16 %v857
  %v3421 = vunpack.c.l.b16 %v858
  %v3422 = vunpack.c.l.b16 %v859
  %v3423 = vunpack.c.l.b16 %v860
  %v3424 = vunpack.c.l.b16 %v861
  %v3425 = vunpack.c.l.b16 %v862
  %v3426 = vunpack.c.l.b16 %v863
  %v3427 = vunpack.c.l.b16 %v864
  %v3428 = vunpack.c.l.b16 %v865
  %v3429 = vunpack.c.l.b16 %v866
  %v3430 = vunpack.c.l.b16 %v867
  %v3431 = vunpack.c.l.b16 %v868
  %v3432 = vunpack.c.l.b16 %v869
  %v3433 = vunpack.c.l.b16 %v870
  %v3434 = vunpack.c.l.b16 %v871
  %v3435 = vunpack.c.l.b16 %v872
  %v3436 = vunpack.c.l.b16 %v873
  %v3437 = vunpack.c.l.b16 %v874
  %v3438 = vunpack.c.l.b16 %v875
  %v3439 = vunpack.c.l.b16 %v876
  %v3440 = vunpack.c.l.b16 %v877
  %v3441 = vunpack.c.l.b16 %v878
  %v3442 = vunpack.c.l.b16 %v879
  %v3443 = vunpack.c.l.b16 %v880
  %v3444 = vunpack.c.l.b16 %v881
  %v3445 = vunpack.c.l.b16 %v882
  %v3446 = vunpack.c.l.b16 %v883
  %v3447 = vunpack.c.l.b16 %v884
  %v3448 = vunpack.c.l.b16 %v885
  %v3449 = vunpack.c.l.b16 %v886
  %v3450 = vunpack.c.l.b16 %v887
  %v3451 = vunpack.c.l.b16 %v888
  %v3452 = vunpack.c.l.b16 %v889
  %v3453 = vunpack.c.l.b16 %v890
  %v3454 = vunpack.c.l.b16 %v891
  %v3455 = vunpack.c.l.b16 %v892
  %v3456 = vunpack.c.l.b16 %v893
  %v3457 = vunpack.c.l.b16 %v894
  %v3458 = vunpack.c.l.b16 %v895
  %v3459 = vunpack.c.l.b16 %v896
  %v3460 = vunpack.c.l.b16 %v897
  %v3461 = vunpack.c.l.b16 %v898
  %v3462 = vunpack.c.l.b16 %v899
  %v3463 = vunpack.c.l.b16 %v900
  %v3464 = vunpack.c.l.b16 %v901
  %v3465 = vunpack.c.l.b16 %v902
  %v3466 = vunpack.c.l.b16 %v903
  %v3467 = vunpack.c.l.b16 %v904
  %v3468 = vunpack.c.l.b16 %v905
  %v3469 = vunpack.c.l.b16 %v906
  %v3470 = vunpack.c.l.b16 %v907
  %v3471 = vunpack.c.l.b16 %v908
  %v3472 = vunpack.c.l.b16 %v909
  %v3473 = vunpack.c.l.b16 %v910
  %v3474 = vunpack.c.l.b16 %v911
  %v3475 = vunpack.c.l.b16 %v912
  %v3476 = vunpack.c.l.b16 %v913
  %v3477 = vunpack.c.l.b16 %v914
  %v3478 = vunpack.c.l.b16 %v915
  %v3479 = vunpack.c.l.b16 %v916
  %v3480 = vunpack.c.l.b16 %v917
  %v3481 = vunpack.c.l.b16 %v918
  %v3482 = vunpack.c.l.b16 %v919
  %v3483 = vunpack.c.l.b16 %v920
  %v3484 = vunpack.c.l.b16 %v921
  %v3485 = vunpack.c.l.b16 %v922
  %v3486 = vunpack.c.l.b16 %v923
  %v3487 = vunpack.c.l.b16 %v924
  %v3488 = vunpack.c.l.b16 %v925
  %v3489 = vunpack.c.l.b16 %v926
  %v3490 = vunpack.c.l.b16 %v927
  %v3491 = vunpack.c.l.b16 %v928
  %v3492 = vunpack.c.l.b16 %v929
  %v3493 = vunpack.c.l.b16 %v930
  %v3494 = vunpack.c.l.b16 %v931
  %v3495 = vunpack.c.l.b16 %v932
  %v3496 = vunpack.c.l.b16 %v933
  %v3497 = vunpack.c.l.b16 %v934
  %v3498 = vunpack.c.l.b16 %v935
  %v3499 = vunpack.c.l.b16 %v936
  %v3500 = vunpack.c.l.b16 %v937
  %v3501 = vunpack.c.l.b16 %v938
  %v3502 = vunpack.c.l.b16 %v939
  %v3503 = vunpack.c.l.b16 %v940
  %v3504 = vunpack.c.l.b16 %v941
  %v3505 = vunpack.c.l.b16 %v942
  %v3506 = vunpack.c.l.b16 %v943
  %v3507 = vunpack.c.l.b16 %v944
  %v3508 = vunpack.c.l.b16 %v945
  %v3509 = vunpack.c.l.b16 %v946
  %v3510 = vunpack.c.l.b16 %v947
  %v3511 = vunpack.c.l.b16 %v948
  %v3512 = vunpack.c.l.b16 %v949
  %v3513 = vunpack.c.l.b16 %v950
  %v3514 = vunpack.c.l.b16 %v951
  %v3515 = vunpack.c.l.b16 %v952
  %v3516 = vunpack.c.l.b16 %v953
  %v3517 = vunpack.c.l.b16 %v954
  %v3518 = vunpack.c.l.b16 %v955
  %v3519 = vunpack.c.l.b16 %v956
  %v3520 = vunpack.c.l.b16 %v957
  %v3521 = vunpack.c.l.b16 %v958
  %v3522 = vunpack.c.l.b16 %v959
  %v3523 = vunpack.c.l.b16 %v960
  %v3524 = vunpack.c.l.b16 %v961
  %v3525 = vunpack.c.l.b16 %v962
  %v3526 = vunpack.c.l.b16 %v963
  %v3527 = vunpack.c.l.b16 %v964
  %v3528 = vunpack.c.l.b16 %v965
  %v3529 = vunpack.c.l.b16 %v966
  %v3530 = vunpack.c.l.b16 %v967
  %v3531 = vunpack.c.l.b16 %v968
  %v3532 = vunpack.c.l.b16 %v969
  %v3533 = vunpack.c.l.b16 %v970
  %v3534 = vunpack.c.l.b16 %v971
  %v3535 = vunpack.c.l.b16 %v972
  %v3536 = vunpack.c.l.b16 %v973
  %v3537 = vunpack.c.l.b16 %v974
  %v3538 = vunpack.c.l.b16 %v975
  %v3539 = vunpack.c.l.b16 %v976
  %v3540 = vunpack.c.l.b16 %v977
  %v3541 = vunpack.c.l.b16 %v978
  %v3542 = vunpack.c.l.b16 %v979
  %v3543 = vunpack.c.l.b16 %v980
  %v3544 = vunpack.c.l.b16 %v981
  %v3545 = vunpack.c.l.b16 %v982
  %v3546 = vunpack.c.l.b16 %v983
  %v3547 = vunpack.c.l.b16 %v984
  %v3548 = vunpack.c.l.b16 %v985
  %v3549 = vunpack.c.l.b16 %v986
  %v3550 = vunpack.c.l.b16 %v987
  %v3551 = vunpack.c.l.b16 %v988
  %v3552 = vunpack.c.l.b16 %v989
  %v3553 = vunpack.c.l.b16 %v990
  %v3554 = vunpack.c.l.b16 %v991
  %v3555 = vunpack.c.l.b16 %v992
  %v3556 = vunpack.c.l.b16 %v993
  %v3557 = vunpack.c.l.b16 %v994
  %v3558 = vunpack.c.l.b16 %v995
  %v3559 = vunpack.c.l.b16 %v996
  %v3560 = vunpack.c.l.b16 %v997
  %v3561 = vunpack.c.l.b16 %v998
  %v3562 = vunpack.c.l.b16 %v999
  %v3563 = vunpack.c.l.b16 %v1000
  %v3564 = vunpack.c.l.b16 %v1001
  %v3565 = vunpack.c.l.b16 %v1002
  %v3566 = vunpack.c.l.b16 %v1003
  %v3567 = vunpack.c.l.b16 %v1004
  %v3568 = vunpack.c.l.b16 %v1005
  %v3569 = vunpack.c.l.b16 %v1006
  %v3570 = vunpack.c.l.b16 %v1007
  %v3571 = vunpack.c.l.b16 %v1008
  %v3572 = vunpack.c.l.b16 %v1009
  %v3573 = vunpack.c.l.b16 %v1010
  %v3574 = vunpack.c.l.b16 %v1011
  %v3575 = vunpack.c.l.b16 %v1012
  %v3576 = vunpack.c.l.b16 %v1013
  %v3577 = vunpack.c.l.b16 %v1014
  %v3578 = vunpack.c.l.b16 %v1015
  %v3579 = vunpack.c.l.b16 %v1016
  %v3580 = vunpack.c.l.b16 %v1017
  %v3581 = vunpack.c.l.b16 %v1018
  %v3582 = vunpack.c.l.b16 %v1019
  %v3583 = vunpack.c.l.b16 %v1020
  %v3584 = vunpack.c.l.b16 %v1021
  %v3585 = vunpack.c.l.b16 %v1022
  %v3586 = vunpack.c.l.b16 %v1023
  %v3587 = vunpack.c.l.b16 %v1024
  %v3588 = vunpack.c.l.b16 %v1025
  %v3589 = vunpack.c.l.b16 %v1026
  %v3590 = vunpack.c.l.b16 %v1027
  %v3591 = vunpack.c.l.b16 %v1028
  %v3592 = vunpack.c.l.b16 %v1029
  %v3593 = vunpack.c.l.b16 %v1030
  %v3594 = vunpack.c.l.b16 %v1031
  %v3595 = vunpack.c.l.b16 %v1032
  %v3596 = vunpack.c.l.b16 %v1033
  %v3597 = vunpack.c.l.b16 %v1034
  %v3598 = vunpack.c.l.b16 %v1035
  %v3599 = vunpack.c.l.b16 %v1036
  %v3600 = vunpack.c.l.b16 %v1037
  %v3601 = vunpack.c.l.b16 %v1038
  %v3602 = vunpack.c.l.b16 %v1039
  %v3603 = vunpack.c.l.b16 %v1040
  %v3604 = vunpack.c.l.b16 %v1041
  %v3605 = vunpack.c.l.b16 %v1042
  %v3606 = vunpack.c.l.b16 %v1043
  %v3607 = vunpack.c.l.b16 %v1044
  %v3608 = vunpack.c.l.b16 %v1045
  %v3609 = vunpack.c.l.b16 %v1046
  %v3610 = vunpack.c.l.b16 %v1047
  %v3611 = vunpack.c.l.b16 %v1048
  %v3612 = vunpack.c.l.b16 %v1049
  %v3613 = vunpack.c.l.b16 %v1050
  %v3614 = vunpack.c.l.b16 %v1051
  %v3615 = vunpack.c.l.b16 %v1052
  %v3616 = vunpack.c.l.b16 %v1053
  %v3617 = vunpack.c.l.b16 %v1054
  %v3618 = vunpack.c.l.b16 %v1055
  %v3619 = vunpack.c.l.b16 %v1056
  %v3620 = vunpack.c.l.b16 %v1057
  %v3621 = vunpack.c.l.b16 %v1058
  %v3622 = vunpack.c.l.b16 %v1059
  %v3623 = vunpack.c.l.b16 %v1060
  %v3624 = vunpack.c.l.b16 %v1061
  %v3625 = vunpack.c.l.b16 %v1062
  %v3626 = vunpack.c.l.b16 %v1063
  %v3627 = vunpack.c.l.b16 %v1064
  %v3628 = vunpack.c.l.b16 %v1065
  %v3629 = vunpack.c.l.b16 %v1066
  %v3630 = vunpack.c.l.b16 %v1067
  %v3631 = vunpack.c.l.b16 %v1068
  %v3632 = vunpack.c.l.b16 %v1069
  %v3633 = vunpack.c.l.b16 %v1070
  %v3634 = vunpack.c.l.b16 %v1071
  %v3635 = vunpack.c.l.b16 %v1072
  %v3636 = vunpack.c.l.b16 %v1073
  %v3637 = vunpack.c.l.b16 %v1074
  %v3638 = vunpack.c.l.b16 %v1075
  %v3639 = vunpack.c.l.b16 %v1076
  %v3640 = vunpack.c.l.b16 %v1077
  %v3641 = vunpack.c.l.b16 %v1078
  %v3642 = vunpack.c.l.b16 %v1079
  %v3643 = vunpack.c.l.b16 %v1080
  %v3644 = vunpack.c.l.b16 %v1081
  %v3645 = vunpack.c.l.b16 %v1082
  %v3646 = vunpack.c.l.b16 %v1083
  %v3647 = vunpack.c.l.b16 %v1084
  %v3648 = vunpack.c.l.b16 %v1085
  %v3649 = vunpack.c.l.b16 %v1086
  %v3650 = vunpack.c.l.b16 %v1087
  %v3651 = vunpack.c.l.b16 %v1088
  %v3652 = vunpack.c.l.b16 %v1089
  %v3653 = vunpack.c.l.b16 %v1090
  %v3654 = vunpack.c.l.b16 %v1091
  %v3655 = vunpack.c.l.b16 %v1092
  %v3656 = vunpack.c.l.b16 %v1093
  %v3657 = vunpack.c.l.b16 %v1094
  %v3658 = vunpack.c.l.b16 %v1095
  %v3659 = vunpack.c.l.b16 %v1096
  %v3660 = vunpack.c.l.b16 %v1097
  %v3661 = vunpack.c.l.b16 %v1098
  %v3662 = vunpack.c.l.b16 %v1099
  %v3663 = vunpack.c.l.b16 %v1100
  %v3664 = vunpack.c.l.b16 %v1101
  %v3665 = vunpack.c.l.b16 %v1102
  %v3666 = vunpack.c.l.b16 %v1103
  %v3667 = vunpack.c.l.b16 %v1104
  %v3668 = vunpack.c.l.b16 %v1105
  %v3669 = vunpack.c.l.b16 %v1106
  %v3670 = vunpack.c.l.b16 %v1107
  %v3671 = vunpack.c.l.b16 %v1108
  %v3672 = vunpack.c.l.b16 %v1109
  %v3673 = vunpack.c.l.b16 %v1110
  %v3674 = vunpack.c.l.b16 %v1111
  %v3675 = vunpack.c.l.b16 %v1112
  %v3676 = vunpack.c.l.b16 %v1113
  %v3677 = vunpack.c.l.b16 %v1114
  %v3678 = vunpack.c.l.b16 %v1115
  %v3679 = vunpack.c.l.b16 %v1116
  %v3680 = vunpack.c.l.b16 %v1117
  %v3681 = vunpack.c.l.b16 %v1118
  %v3682 = vunpack.c.l.b16 %v1119
  %v3683 = vunpack.c.l.b16 %v1120
  %v3684 = vunpack.c.l.b16 %v1121
  %v3685 = vunpack.c.l.b16 %v1122
  %v3686 = vunpack.c.l.b16 %v1123
  %v3687 = vunpack.c.l.b16 %v1124
  %v3688 = vunpack.c.l.b16 %v1125
  %v3689 = vunpack.c.l.b16 %v1126
  %v3690 = vunpack.c.l.b16 %v1127
  %v3691 = vunpack.c.l.b16 %v1128
  %v3692 = vunpack.c.l.b16 %v1129
  %v3693 = vunpack.c.l.b16 %v1130
  %v3694 = vunpack.c.l.b16 %v1131
  %v3695 = vunpack.c.l.b16 %v1132
  %v3696 = vunpack.c.l.b16 %v1133
  %v3697 = vunpack.c.l.b16 %v1134
  %v3698 = vunpack.c.l.b16 %v1135
  %v3699 = vunpack.c.l.b16 %v1136
  %v3700 = vunpack.c.l.b16 %v1137
  %v3701 = vunpack.c.l.b16 %v1138
  %v3702 = vunpack.c.l.b16 %v1139
  %v3703 = vunpack.c.l.b16 %v1140
  %v3704 = vunpack.c.l.b16 %v1141
  %v3705 = vunpack.c.l.b16 %v1142
  %v3706 = vunpack.c.l.b16 %v1143
  %v3707 = vunpack.c.l.b16 %v1144
  %v3708 = vunpack.c.l.b16 %v1145
  %v3709 = vunpack.c.l.b16 %v1146
  %v3710 = vunpack.c.l.b16 %v1147
  %v3711 = vunpack.c.l.b16 %v1148
  %v3712 = vunpack.c.l.b16 %v1149
  %v3713 = vunpack.c.l.b16 %v1150
  %v3714 = vunpack.c.l.b16 %v1151
  %v3715 = vunpack.c.l.b16 %v1152
  %v3716 = vunpack.c.l.b16 %v1153
  %v3717 = vunpack.c.l.b16 %v1154
  %v3718 = vunpack.c.l.b16 %v1155
  %v3719 = vunpack.c.l.b16 %v1156
  %v3720 = vunpack.c.l.b16 %v1157
  %v3721 = vunpack.c.l.b16 %v1158
  %v3722 = vunpack.c.l.b16 %v1159
  %v3723 = vunpack.c.l.b16 %v1160
  %v3724 = vunpack.c.l.b16 %v1161
  %v3725 = vunpack.c.l.b16 %v1162
  %v3726 = vunpack.c.l.b16 %v1163
  %v3727 = vunpack.c.l.b16 %v1164
  %v3728 = vunpack.c.l.b16 %v1165
  %v3729 = vunpack.c.l.b16 %v1166
  %v3730 = vunpack.c.l.b16 %v1167
  %v3731 = vunpack.c.l.b16 %v1168
  %v3732 = vunpack.c.l.b16 %v1169
  %v3733 = vunpack.c.l.b16 %v1170
  %v3734 = vunpack.c.l.b16 %v1171
  %v3735 = vunpack.c.l.b16 %v1172
  %v3736 = vunpack.c.l.b16 %v1173
  %v3737 = vunpack.c.l.b16 %v1174
  %v3738 = vunpack.c.l.b16 %v1175
  %v3739 = vunpack.c.l.b16 %v1176
  %v3740 = vunpack.c.l.b16 %v1177
  %v3741 = vunpack.c.l.b16 %v1178
  %v3742 = vunpack.c.l.b16 %v1179
  %v3743 = vunpack.c.l.b16 %v1180
  %v3744 = vunpack.c.l.b16 %v1181
  %v3745 = vunpack.c.l.b16 %v1182
  %v3746 = vunpack.c.l.b16 %v1183
  %v3747 = vunpack.c.l.b16 %v1184
  %v3748 = vunpack.c.l.b16 %v1185
  %v3749 = vunpack.c.l.b16 %v1186
  %v3750 = vunpack.c.l.b16 %v1187
  %v3751 = vunpack.c.l.b16 %v1188
  %v3752 = vunpack.c.l.b16 %v1189
  %v3753 = vunpack.c.l.b16 %v1190
  %v3754 = vunpack.c.l.b16 %v1191
  %v3755 = vunpack.c.l.b16 %v1192
  %v3756 = vunpack.c.l.b16 %v1193
  %v3757 = vunpack.c.l.b16 %v1194
  %v3758 = vunpack.c.l.b16 %v1195
  %v3759 = vunpack.c.l.b16 %v1196
  %v3760 = vunpack.c.l.b16 %v1197
  %v3761 = vunpack.c.l.b16 %v1198
  %v3762 = vunpack.c.l.b16 %v1199
  %v3763 = vunpack.c.l.b16 %v1200
  %v3764 = vunpack.c.l.b16 %v1201
  %v3765 = vunpack.c.l.b16 %v1202
  %v3766 = vunpack.c.l.b16 %v1203
  %v3767 = vunpack.c.l.b16 %v1204
  %v3768 = vunpack.c.l.b16 %v1205
  %v3769 = vunpack.c.l.b16 %v1206
  %v3770 = vunpack.c.l.b16 %v1207
  %v3771 = vunpack.c.l.b16 %v1208
  %v3772 = vpack.c.b16 %v2621, %v2620
  %v3773 = vpack.c.b16 %v2623, %v2622
  %v3774 = vpack.c.b16 %v2625, %v2624
  %v3775 = vpack.c.b16 %v2627, %v2626
  %v3776 = vpack.c.b16 %v2629, %v2628
  %v3777 = vpack.c.b16 %v2631, %v2630
  %v3778 = vpack.c.b16 %v2633, %v2632
  %v3779 = vpack.c.b16 %v2635, %v2634
  %v3780 = vpack.c.b16 %v2637, %v2636
  %v3781 = vpack.c.b16 %v2639, %v2638
  %v3782 = vpack.c.b16 %v2641, %v2640
  %v3783 = vpack.c.b16 %v2643, %v2642
  %v3784 = vpack.c.b16 %v2645, %v2644
  %v3785 = vpack.c.b16 %v2647, %v2646
  %v3786 = vpack.c.b16 %v2649, %v2648
  %v3787 = vpack.c.b16 %v2651, %v2650
  %v3788 = vpack.c.b16 %v2653, %v2652
  %v3789 = vpack.c.b16 %v2655, %v2654
  %v3790 = vpack.c.b16 %v2657, %v2656
  %v3791 = vpack.c.b16 %v2659, %v2658
  %v3792 = vpack.c.b16 %v2661, %v2660
  %v3793 = vpack.c.b16 %v2663, %v2662
  %v3794 = vpack.c.b16 %v2665, %v2664
  %v3795 = vpack.c.b16 %v2667, %v2666
  %v3796 = vpack.c.b16 %v2669, %v2668
  %v3797 = vpack.c.b16 %v2671, %v2670
  %v3798 = vpack.c.b16 %v2673, %v2672
  %v3799 = vpack.c.b16 %v2675, %v2674
  %v3800 = vpack.c.b16 %v2677, %v2676
  %v3801 = vpack.c.b16 %v2679, %v2678
  %v3802 = vpack.c.b16 %v2681, %v2680
  %v3803 = vpack.c.b16 %v2683, %v2682
  %v3804 = vpack.c.b16 %v2685, %v2684
  %v3805 = vpack.c.b16 %v2687, %v2686
  %v3806 = vpack.c.b16 %v2689, %v2688
  %v3807 = vpack.c.b16 %v2691, %v2690
  %v3808 = vpack.c.b16 %v2693, %v2692
  %v3809 = vpack.c.b16 %v2695, %v2694
  %v3810 = vpack.c.b16 %v2697, %v2696
  %v3811 = vpack.c.b16 %v2699, %v2698
  %v3812 = vpack.c.b16 %v2701, %v2700
  %v3813 = vpack.c.b16 %v2703, %v2702
  %v3814 = vpack.c.b16 %v2705, %v2704
  %v3815 = vpack.c.b16 %v2707, %v2706
  %v3816 = vpack.c.b16 %v2709, %v2708
  %v3817 = vpack.c.b16 %v2711, %v2710
  %v3818 = vpack.c.b16 %v2713, %v2712
  %v3819 = vpack.c.b16 %v2715, %v2714
  %v3820 = vpack.c.b16 %v2717, %v2716
  %v3821 = vpack.c.b16 %v2719, %v2718
  %v3822 = vpack.c.b16 %v2721, %v2720
  %v3823 = vpack.c.b16 %v2723, %v2722
  %v3824 = vpack.c.b16 %v2725, %v2724
  %v3825 = vpack.c.b16 %v2727, %v2726
  %v3826 = vpack.c.b16 %v2729, %v2728
  %v3827 = vpack.c.b16 %v2731, %v2730
  %v3828 = vpack.c.b16 %v2733, %v2732
  %v3829 = vpack.c.b16 %v2735, %v2734
  %v3830 = vpack.c.b16 %v2737, %v2736
  %v3831 = vpack.c.b16 %v2739, %v2738
  %v3832 = vpack.c.b16 %v2741, %v2740
  %v3833 = vpack.c.b16 %v2743, %v2742
  %v3834 = vpack.c.b16 %v2745, %v2744
  %v3835 = vpack.c.b16 %v2747, %v2746
  %v3836 = vpack.c.b16 %v2749, %v2748
  %v3837 = vpack.c.b16 %v2751, %v2750
  %v3838 = vpack.c.b16 %v2753, %v2752
  %v3839 = vpack.c.b16 %v2755, %v2754
  %v3840 = vpack.c.b16 %v2757, %v2756
  %v3841 = vpack.c.b16 %v2759, %v2758
  %v3842 = vpack.c.b16 %v2761, %v2760
  %v3843 = vpack.c.b16 %v2763, %v2762
  %v3844 = vpack.c.b16 %v2765, %v2764
  %v3845 = vpack.c.b16 %v2767, %v2766
  %v3846 = vpack.c.b16 %v2769, %v2768
  %v3847 = vpack.c.b16 %v2771, %v2770
  %v3848 = vpack.c.b16 %v2773, %v2772
  %v3849 = vpack.c.b16 %v2775, %v2774
  %v3850 = vpack.c.b16 %v2777, %v2776
  %v3851 = vpack.c.b16 %v2779, %v2778
  %v3852 = vpack.c.b16 %v2781, %v2780
  %v3853 = vpack.c.b16 %v2783, %v2782
  %v3854 = vpack.c.b16 %v2785, %v2784
  %v3855 = vpack.c.b16 %v2787, %v2786
  %v3856 = vpack.c.b16 %v2789, %v2788
  %v3857 = vpack.c.b16 %v2791, %v2790
  %v3858 = vpack.c.b16 %v2793, %v2792
  %v3859 = vpack.c.b16 %v2795, %v2794
  %v3860 = vpack.c.b16 %v2797, %v2796
  %v3861 = vpack.c.b16 %v2799, %v2798
  %v3862 = vpack.c.b16 %v2801, %v2800
  %v3863 = vpack.c.b16 %v2803, %v2802
  %v3864 = vpack.c.b16 %v2805, %v2804
  %v3865 = vpack.c.b16 %v2807, %v2806
  %v3866 = vpack.c.b16 %v2809, %v2808
  %v3867 = vpack.c.b16 %v2811, %v2810
  %v3868 = vpack.c.b16 %v2813, %v2812
  %v3869 = vpack.c.b16 %v2815, %v2814
  %v3870 = vpack.c.b16 %v2817, %v2816
  %v3871 = vpack.c.b16 %v2819, %v2818
  %v3872 = vpack.c.b16 %v2821, %v2820
  %v3873 = vpack.c.b16 %v2823, %v2822
  %v3874 = vpack.c.b16 %v2825, %v2824
  %v3875 = vpack.c.b16 %v2827, %v2826
  %v3876 = vpack.c.b16 %v2829, %v2828
  %v3877 = vpack.c.b16 %v2831, %v2830
  %v3878 = vpack.c.b16 %v2833, %v2832
  %v3879 = vpack.c.b16 %v2835, %v2834
  %v3880 = vpack.c.b16 %v2837, %v2836
  %v3881 = vpack.c.b16 %v2839, %v2838
  %v3882 = vpack.c.b16 %v2841, %v2840
  %v3883 = vpack.c.b16 %v2843, %v2842
  %v3884 = vpack.c.b16 %v2845, %v2844
  %v3885 = vpack.c.b16 %v2847, %v2846
  %v3886 = vpack.c.b16 %v2849, %v2848
  %v3887 = vpack.c.b16 %v2851, %v2850
  %v3888 = vpack.c.b16 %v2853, %v2852
  %v3889 = vpack.c.b16 %v2855, %v2854
  %v3890 = vpack.c.b16 %v2857, %v2856
  %v3891 = vpack.c.b16 %v2859, %v2858
  %v3892 = vpack.c.b16 %v2861, %v2860
  %v3893 = vpack.c.b16 %v2863, %v2862
  %v3894 = vpack.c.b16 %v2865, %v2864
  %v3895 = vpack.c.b16 %v2867, %v2866
  %v3896 = vpack.c.b16 %v2869, %v2868
  %v3897 = vpack.c.b16 %v2871, %v2870
  %v3898 = vpack.c.b16 %v2873, %v2872
  %v3899 = vpack.c.b16 %v2875, %v2874
  %v3900 = vpack.c.b16 %v2877, %v2876
  %v3901 = vpack.c.b16 %v2879, %v2878
  %v3902 = vpack.c.b16 %v2881, %v2880
  %v3903 = vpack.c.b16 %v2883, %v2882
  %v3904 = vpack.c.b16 %v2885, %v2884
  %v3905 = vpack.c.b16 %v2887, %v2886
  %v3906 = vpack.c.b16 %v2889, %v2888
  %v3907 = vpack.c.b16 %v2891, %v2890
  %v3908 = vpack.c.b16 %v2893, %v2892
  %v3909 = vpack.c.b16 %v2895, %v2894
  %v3910 = vpack.c.b16 %v2897, %v2896
  %v3911 = vpack.c.b16 %v2899, %v2898
  %v3912 = vpack.c.b16 %v2901, %v2900
  %v3913 = vpack.c.b16 %v2903, %v2902
  %v3914 = vpack.c.b16 %v2905, %v2904
  %v3915 = vpack.c.b16 %v2907, %v2906
  %v3916 = vpack.c.b16 %v2909, %v2908
  %v3917 = vpack.c.b16 %v2911, %v2910
  %v3918 = vpack.c.b16 %v2913, %v2912
  %v3919 = vpack.c.b16 %v2915, %v2914
  %v3920 = vpack.c.b16 %v2917, %v2916
  %v3921 = vpack.c.b16 %v2919, %v2918
  %v3922 = vpack.c.b16 %v2921, %v2920
  %v3923 = vpack.c.b16 %v2923, %v2922
  %v3924 = vpack.c.b16 %v2925, %v2924
  %v3925 = vpack.c.b16 %v2927, %v2926
  %v3926 = vpack.c.b16 %v2929, %v2928
  %v3927 = vpack.c.b16 %v2931, %v2930
  %v3928 = vpack.c.b16 %v2933, %v2932
  %v3929 = vpack.c.b16 %v2935, %v2934
  %v3930 = vpack.c.b16 %v2937, %v2936
  %v3931 = vpack.c.b16 %v2939, %v2938
  %v3932 = vpack.c.b16 %v2941, %v2940
  %v3933 = vpack.c.b16 %v2943, %v2942
  %v3934 = vpack.c.b16 %v2945, %v2944
  %v3935 = vpack.c.b16 %v2947, %v2946
  %v3936 = vpack.c.b16 %v2949, %v2948
  %v3937 = vpack.c.b16 %v2951, %v2950
  %v3938 = vpack.c.b16 %v2953, %v2952
  %v3939 = vpack.c.b16 %v2955, %v2954
  %v3940 = vpack.c.b16 %v2957, %v2956
  %v3941 = vpack.c.b16 %v2959, %v2958
  %v3942 = vpack.c.b16 %v2961, %v2960
  %v3943 = vpack.c.b16 %v2963, %v2962
  %v3944 = vpack.c.b16 %v2965, %v2964
  %v3945 = vpack.c.b16 %v2967, %v2966
  %v3946 = vpack.c.b16 %v2969, %v2968
  %v3947 = vpack.c.b16 %v2971, %v2970
  %v3948 = vpack.c.b16 %v2973, %v2972
  %v3949 = vpack.c.b16 %v2975, %v2974
  %v3950 = vpack.c.b16 %v2977, %v2976
  %v3951 = vpack.c.b16 %v2979, %v2978
  %v3952 = vpack.c.b16 %v2981, %v2980
  %v3953 = vpack.c.b16 %v2983, %v2982
  %v3954 = vpack.c.b16 %v2985, %v2984
  %v3955 = vpack.c.b16 %v2987, %v2986
  %v3956 = vpack.c.b16 %v2989, %v2988
  %v3957 = vpack.c.b16 %v2991, %v2990
  %v3958 = vpack.c.b16 %v2993, %v2992
  %v3959 = vpack.c.b16 %v2995, %v2994
  %v3960 = vpack.c.b16 %v2997, %v2996
  %v3961 = vpack.c.b16 %v2999, %v2998
  %v3962 = vpack.c.b16 %v3001, %v3000
  %v3963 = vpack.c.b16 %v3003, %v3002
  %v3964 = vpack.c.b16 %v3005, %v3004
  %v3965 = vpack.c.b16 %v3007, %v3006
  %v3966 = vpack.c.b16 %v3009, %v3008
  %v3967 = vpack.c.b16 %v3011, %v3010
  %v3968 = vpack.c.b16 %v3013, %v3012
  %v3969 = vpack.c.b16 %v3015, %v3014
  %v3970 = vpack.c.b16 %v3017, %v3016
  %v3971 = vpack.c.b16 %v3019, %v3018
  %v3972 = vpack.c.b16 %v3021, %v3020
  %v3973 = vpack.c.b16 %v3023, %v3022
  %v3974 = vpack.c.b16 %v3025, %v3024
  %v3975 = vpack.c.b16 %v3027, %v3026
  %v3976 = vpack.c.b16 %v3029, %v3028
  %v3977 = vpack.c.b16 %v3031, %v3030
  %v3978 = vpack.c.b16 %v3033, %v3032
  %v3979 = vpack.c.b16 %v3035, %v3034
  %v3980 = vpack.c.b16 %v3037, %v3036
  %v3981 = vpack.c.b16 %v3039, %v3038
  %v3982 = vpack.c.b16 %v3041, %v3040
  %v3983 = vpack.c.b16 %v3043, %v3042
  %v3984 = vpack.c.b16 %v3045, %v3044
  %v3985 = vpack.c.b16 %v3047, %v3046
  %v3986 = vpack.c.b16 %v3049, %v3048
  %v3987 = vpack.c.b16 %v3051, %v3050
  %v3988 = vpack.c.b16 %v3053, %v3052
  %v3989 = vpack.c.b16 %v3055, %v3054
  %v3990 = vpack.c.b16 %v3057, %v3056
  %v3991 = vpack.c.b16 %v3059, %v3058
  %v3992 = vpack.c.b16 %v3061, %v3060
  %v3993 = vpack.c.b16 %v3063, %v3062
  %v3994 = vpack.c.b16 %v3065, %v3064
  %v3995 = vpack.c.b16 %v3067, %v3066
  %v3996 = vpack.c.b16 %v3069, %v3068
  %v3997 = vpack.c.b16 %v3071, %v3070
  %v3998 = vpack.c.b16 %v3073, %v3072
  %v3999 = vpack.c.b16 %v3075, %v3074
  %v4000 = vpack.c.b16 %v3077, %v3076
  %v4001 = vpack.c.b16 %v3079, %v3078
  %v4002 = vpack.c.b16 %v3081, %v3080
  %v4003 = vpack.c.b16 %v3083, %v3082
  %v4004 = vpack.c.b16 %v3085, %v3084
  %v4005 = vpack.c.b16 %v3087, %v3086
  %v4006 = vpack.c.b16 %v3089, %v3088
  %v4007 = vpack.c.b16 %v3091, %v3090
  %v4008 = vpack.c.b16 %v3093, %v3092
  %v4009 = vpack.c.b16 %v3095, %v3094
  %v4010 = vpack.c.b16 %v3097, %v3096
  %v4011 = vpack.c.b16 %v3099, %v3098
  %v4012 = vpack.c.b16 %v3101, %v3100
  %v4013 = vpack.c.b16 %v3103, %v3102
  %v4014 = vpack.c.b16 %v3105, %v3104
  %v4015 = vpack.c.b16 %v3107, %v3106
  %v4016 = vpack.c.b16 %v3109, %v3108
  %v4017 = vpack.c.b16 %v3111, %v3110
  %v4018 = vpack.c.b16 %v3113, %v3112
  %v4019 = vpack.c.b16 %v3115, %v3114
  %v4020 = vpack.c.b16 %v3117, %v3116
  %v4021 = vpack.c.b16 %v3119, %v3118
  %v4022 = vpack.c.b16 %v3121, %v3120
  %v4023 = vpack.c.b16 %v3123, %v3122
  %v4024 = vpack.c.b16 %v3125, %v3124
  %v4025 = vpack.c.b16 %v3127, %v3126
  %v4026 = vpack.c.b16 %v3129, %v3128
  %v4027 = vpack.c.b16 %v3131, %v3130
  %v4028 = vpack.c.b16 %v3133, %v3132
  %v4029 = vpack.c.b16 %v3135, %v3134
  %v4030 = vpack.c.b16 %v3137, %v3136
  %v4031 = vpack.c.b16 %v3139, %v3138
  %v4032 = vpack.c.b16 %v3141, %v3140
  %v4033 = vpack.c.b16 %v3143, %v3142
  %v4034 = vpack.c.b16 %v3145, %v3144
  %v4035 = vpack.c.b16 %v3147, %v3146
  %v4036 = vpack.c.b16 %v3149, %v3148
  %v4037 = vpack.c.b16 %v3151, %v3150
  %v4038 = vpack.c.b16 %v3153, %v3152
  %v4039 = vpack.c.b16 %v3155, %v3154
  %v4040 = vpack.c.b16 %v3157, %v3156
  %v4041 = vpack.c.b16 %v3159, %v3158
  %v4042 = vpack.c.b16 %v3161, %v3160
  %v4043 = vpack.c.b16 %v3163, %v3162
  %v4044 = vpack.c.b16 %v3165, %v3164
  %v4045 = vpack.c.b16 %v3167, %v3166
  %v4046 = vpack.c.b16 %v3169, %v3168
  %v4047 = vpack.c.b16 %v3171, %v3170
  %v4048 = vpack.c.b16 %v3173, %v3172
  %v4049 = vpack.c.b16 %v3175, %v3174
  %v4050 = vpack.c.b16 %v3177, %v3176
  %v4051 = vpack.c.b16 %v3179, %v3178
  %v4052 = vpack.c.b16 %v3181, %v3180
  %v4053 = vpack.c.b16 %v3183, %v3182
  %v4054 = vpack.c.b16 %v3185, %v3184
  %v4055 = vpack.c.b16 %v3187, %v3186
  %v4056 = vpack.c.b16 %v3189, %v3188
  %v4057 = vpack.c.b16 %v3191, %v3190
  %v4058 = vpack.c.b16 %v3193, %v3192
  %v4059 = vpack.c.b16 %v3195, %v3194
  %v4060 = vpack.c.b16 %v3197, %v3196
  %v4061 = vpack.c.b16 %v3199, %v3198
  %v4062 = vpack.c.b16 %v3201, %v3200
  %v4063 = vpack.c.b16 %v3203, %v3202
  %v4064 = vpack.c.b16 %v3205, %v3204
  %v4065 = vpack.c.b16 %v3207, %v3206
  %v4066 = vpack.c.b16 %v3209, %v3208
  %v4067 = vpack.c.b16 %v3211, %v3210
  %v4068 = vpack.c.b16 %v3213, %v3212
  %v4069 = vpack.c.b16 %v3215, %v3214
  %v4070 = vpack.c.b16 %v3217, %v3216
  %v4071 = vpack.c.b16 %v3219, %v3218
  %v4072 = vpack.c.b16 %v3221, %v3220
  %v4073 = vpack.c.b16 %v3223, %v3222
  %v4074 = vpack.c.b16 %v3225, %v3224
  %v4075 = vpack.c.b16 %v3227, %v3226
  %v4076 = vpack.c.b16 %v3229, %v3228
  %v4077 = vpack.c.b16 %v3231, %v3230
  %v4078 = vpack.c.b16 %v3233, %v3232
  %v4079 = vpack.c.b16 %v3235, %v3234
  %v4080 = vpack.c.b16 %v3237, %v3236
  %v4081 = vpack.c.b16 %v3239, %v3238
  %v4082 = vpack.c.b16 %v3241, %v3240
  %v4083 = vpack.c.b16 %v3243, %v3242
  %v4084 = vpack.c.b16 %v3245, %v3244
  %v4085 = vpack.c.b16 %v3247, %v3246
  %v4086 = vpack.c.b16 %v3249, %v3248
  %v4087 = vpack.c.b16 %v3251, %v3250
  %v4088 = vpack.c.b16 %v3253, %v3252
  %v4089 = vpack.c.b16 %v3255, %v3254
  %v4090 = vpack.c.b16 %v3257, %v3256
  %v4091 = vpack.c.b16 %v3259, %v3258
  %v4092 = vpack.c.b16 %v3261, %v3260
  %v4093 = vpack.c.b16 %v3263, %v3262
  %v4094 = vpack.c.b16 %v3265, %v3264
  %v4095 = vpack.c.b16 %v3267, %v3266
  %v4096 = vpack.c.b16 %v3269, %v3268
  %v4097 = vpack.c.b16 %v3271, %v3270
  %v4098 = vpack.c.b16 %v3273, %v3272
  %v4099 = vpack.c.b16 %v3275, %v3274
  %v4100 = vpack.c.b16 %v3277, %v3276
  %v4101 = vpack.c.b16 %v3279, %v3278
  %v4102 = vpack.c.b16 %v3281, %v3280
  %v4103 = vpack.c.b16 %v3283, %v3282
  %v4104 = vpack.c.b16 %v3285, %v3284
  %v4105 = vpack.c.b16 %v3287, %v3286
  %v4106 = vpack.c.b16 %v3289, %v3288
  %v4107 = vpack.c.b16 %v3291, %v3290
  %v4108 = vpack.c.b16 %v3293, %v3292
  %v4109 = vpack.c.b16 %v3295, %v3294
  %v4110 = vpack.c.b16 %v3297, %v3296
  %v4111 = vpack.c.b16 %v3299, %v3298
  %v4112 = vpack.c.b16 %v3301, %v3300
  %v4113 = vpack.c.b16 %v3303, %v3302
  %v4114 = vpack.c.b16 %v3305, %v3304
  %v4115 = vpack.c.b16 %v3307, %v3306
  %v4116 = vpack.c.b16 %v3309, %v3308
  %v4117 = vpack.c.b16 %v3311, %v3310
  %v4118 = vpack.c.b16 %v3313, %v3312
  %v4119 = vpack.c.b16 %v3315, %v3314
  %v4120 = vpack.c.b16 %v3317, %v3316
  %v4121 = vpack.c.b16 %v3319, %v3318
  %v4122 = vpack.c.b16 %v3321, %v3320
  %v4123 = vpack.c.b16 %v3323, %v3322
  %v4124 = vpack.c.b16 %v3325, %v3324
  %v4125 = vpack.c.b16 %v3327, %v3326
  %v4126 = vpack.c.b16 %v3329, %v3328
  %v4127 = vpack.c.b16 %v3331, %v3330
  %v4128 = vpack.c.b16 %v3333, %v3332
  %v4129 = vpack.c.b16 %v3335, %v3334
  %v4130 = vpack.c.b16 %v3337, %v3336
  %v4131 = vpack.c.b16 %v3339, %v3338
  %v4132 = vpack.c.b16 %v3341, %v3340
  %v4133 = vpack.c.b16 %v3343, %v3342
  %v4134 = vpack.c.b16 %v3345, %v3344
  %v4135 = vpack.c.b16 %v3347, %v3346
  %v4136 = vpack.c.b16 %v3349, %v3348
  %v4137 = vpack.c.b16 %v3351, %v3350
  %v4138 = vpack.c.b16 %v3353, %v3352
  %v4139 = vpack.c.b16 %v3355, %v3354
  %v4140 = vpack.c.b16 %v3357, %v3356
  %v4141 = vpack.c.b16 %v3359, %v3358
  %v4142 = vpack.c.b16 %v3361, %v3360
  %v4143 = vpack.c.b16 %v3363, %v3362
  %v4144 = vpack.c.b16 %v3365, %v3364
  %v4145 = vpack.c.b16 %v3367, %v3366
  %v4146 = vpack.c.b16 %v3369, %v3368
  %v4147 = vpack.c.b16 %v3371, %v3370
  %v4148 = vpack.c.b16 %v3373, %v3372
  %v4149 = vpack.c.b16 %v3375, %v3374
  %v4150 = vpack.c.b16 %v3377, %v3376
  %v4151 = vpack.c.b16 %v3379, %v3378
  %v4152 = vpack.c.b16 %v3381, %v3380
  %v4153 = vpack.c.b16 %v3383, %v3382
  %v4154 = vpack.c.b16 %v3385, %v3384
  %v4155 = vpack.c.b16 %v3387, %v3386
  %v4156 = vpack.c.b16 %v3389, %v3388
  %v4157 = vpack.c.b16 %v3391, %v3390
  %v4158 = vpack.c.b16 %v3393, %v3392
  %v4159 = vpack.c.b16 %v3395, %v3394
  %v4160 = vpack.c.b16 %v3397, %v3396
  %v4161 = vpack.c.b16 %v3399, %v3398
  %v4162 = vpack.c.b16 %v3401, %v3400
  %v4163 = vpack.c.b16 %v3403, %v3402
  %v4164 = vpack.c.b16 %v3405, %v3404
  %v4165 = vpack.c.b16 %v3407, %v3406
  %v4166 = vpack.c.b16 %v3409, %v3408
  %v4167 = vpack.c.b16 %v3411, %v3410
  %v4168 = vpack.c.b16 %v3413, %v3412
  %v4169 = vpack.c.b16 %v3415, %v3414
  %v4170 = vpack.c.b16 %v3417, %v3416
  %v4171 = vpack.c.b16 %v3419, %v3418
  %v4172 = vpack.c.b16 %v3421, %v3420
  %v4173 = vpack.c.b16 %v3423, %v3422
  %v4174 = vpack.c.b16 %v3425, %v3424
  %v4175 = vpack.c.b16 %v3427, %v3426
  %v4176 = vpack.c.b16 %v3429, %v3428
  %v4177 = vpack.c.b16 %v3431, %v3430
  %v4178 = vpack.c.b16 %v3433, %v3432
  %v4179 = vpack.c.b16 %v3435, %v3434
  %v4180 = vpack.c.b16 %v3437, %v3436
  %v4181 = vpack.c.b16 %v3439, %v3438
  %v4182 = vpack.c.b16 %v3441, %v3440
  %v4183 = vpack.c.b16 %v3443, %v3442
  %v4184 = vpack.c.b16 %v3445, %v3444
  %v4185 = vpack.c.b16 %v3447, %v3446
  %v4186 = vpack.c.b16 %v3449, %v3448
  %v4187 = vpack.c.b16 %v3451, %v3450
  %v4188 = vpack.c.b16 %v3453, %v3452
  %v4189 = vpack.c.b16 %v3455, %v3454
  %v4190 = vpack.c.b16 %v3457, %v3456
  %v4191 = vpack.c.b16 %v3459, %v3458
  %v4192 = vpack.c.b16 %v3461, %v3460
  %v4193 = vpack.c.b16 %v3463, %v3462
  %v4194 = vpack.c.b16 %v3465, %v3464
  %v4195 = vpack.c.b16 %v3467, %v3466
  %v4196 = vpack.c.b16 %v3469, %v3468
  %v4197 = vpack.c.b16 %v3471, %v3470
  %v4198 = vpack.c.b16 %v3473, %v3472
  %v4199 = vpack.c.b16 %v3475, %v3474
  %v4200 = vpack.c.b16 %v3477, %v3476
  %v4201 = vpack.c.b16 %v3479, %v3478
  %v4202 = vpack.c.b16 %v3481, %v3480
  %v4203 = vpack.c.b16 %v3483, %v3482
  %v4204 = vpack.c.b16 %v3485, %v3484
  %v4205 = vpack.c.b16 %v3487, %v3486
  %v4206 = vpack.c.b16 %v3489, %v3488
  %v4207 = vpack.c.b16 %v3491, %v3490
  %v4208 = vpack.c.b16 %v3493, %v3492
  %v4209 = vpack.c.b16 %v3495, %v3494
  %v4210 = vpack.c.b16 %v3497, %v3496
  %v4211 = vpack.c.b16 %v3499, %v3498
  %v4212 = vpack.c.b16 %v3501, %v3500
  %v4213 = vpack.c.b16 %v3503, %v3502
  %v4214 = vpack.c.b16 %v3505, %v3504
  %v4215 = vpack.c.b16 %v3507, %v3506
  %v4216 = vpack.c.b16 %v3509, %v3508
  %v4217 = vpack.c.b16 %v3511, %v3510
  %v4218 = vpack.c.b16 %v3513, %v3512
  %v4219 = vpack.c.b16 %v3515, %v3514
  %v4220 = vpack.c.b16 %v3517, %v3516
  %v4221 = vpack.c.b16 %v3519, %v3518
  %v4222 = vpack.c.b16 %v3521, %v3520
  %v4223 = vpack.c.b16 %v3523, %v3522
  %v4224 = vpack.c.b16 %v3525, %v3524
  %v4225 = vpack.c.b16 %v3527, %v3526
  %v4226 = vpack.c.b16 %v3529, %v3528
  %v4227 = vpack.c.b16 %v3531, %v3530
  %v4228 = vpack.c.b16 %v3533, %v3532
  %v4229 = vpack.c.b16 %v3535, %v3534
  %v4230 = vpack.c.b16 %v3537, %v3536
  %v4231 = vpack.c.b16 %v3539, %v3538
  %v4232 = vpack.c.b16 %v3541, %v3540
  %v4233 = vpack.c.b16 %v3543, %v3542
  %v4234 = vpack.c.b16 %v3545, %v3544
  %v4235 = vpack.c.b16 %v3547, %v3546
  %v4236 = vpack.c.b16 %v3549, %v3548
  %v4237 = vpack.c.b16 %v3551, %v3550
  %v4238 = vpack.c.b16 %v3553, %v3552
  %v4239 = vpack.c.b16 %v3555, %v3554
  %v4240 = vpack.c.b16 %v3557, %v3556
  %v4241 = vpack.c.b16 %v3559, %v3558
  %v4242 = vpack.c.b16 %v3561, %v3560
  %v4243 = vpack.c.b16 %v3563, %v3562
  %v4244 = vpack.c.b16 %v3565, %v3564
  %v4245 = vpack.c.b16 %v3567, %v3566
  %v4246 = vpack.c.b16 %v3569, %v3568
  %v4247 = vpack.c.b16 %v3571, %v3570
  %v4248 = vpack.c.b16 %v3573, %v3572
  %v4249 = vpack.c.b16 %v3575, %v3574
  %v4250 = vpack.c.b16 %v3577, %v3576
  %v4251 = vpack.c.b16 %v3579, %v3578
  %v4252 = vpack.c.b16 %v3581, %v3580
  %v4253 = vpack.c.b16 %v3583, %v3582
  %v4254 = vpack.c.b16 %v3585, %v3584
  %v4255 = vpack.c.b16 %v3587, %v3586
  %v4256 = vpack.c.b16 %v3589, %v3588
  %v4257 = vpack.c.b16 %v3591, %v3590
  %v4258 = vpack.c.b16 %v3593, %v3592
  %v4259 = vpack.c.b16 %v3595, %v3594
  %v4260 = vpack.c.b16 %v3597, %v3596
  %v4261 = vpack.c.b16 %v3599, %v3598
  %v4262 = vpack.c.b16 %v3601, %v3600
  %v4263 = vpack.c.b16 %v3603, %v3602
  %v4264 = vpack.c.b16 %v3605, %v3604
  %v4265 = vpack.c.b16 %v3607, %v3606
  %v4266 = vpack.c.b16 %v3609, %v3608
  %v4267 = vpack.c.b16 %v3611, %v3610
  %v4268 = vpack.c.b16 %v3613, %v3612
  %v4269 = vpack.c.b16 %v3615, %v3614
  %v4270 = vpack.c.b16 %v3617, %v3616
  %v4271 = vpack.c.b16 %v3619, %v3618
  %v4272 = vpack.c.b16 %v3621, %v3620
  %v4273 = vpack.c.b16 %v3623, %v3622
  %v4274 = vpack.c.b16 %v3625, %v3624
  %v4275 = vpack.c.b16 %v3627, %v3626
  %v4276 = vpack.c.b16 %v3629, %v3628
  %v4277 = vpack.c.b16 %v3631, %v3630
  %v4278 = vpack.c.b16 %v3633, %v3632
  %v4279 = vpack.c.b16 %v3635, %v3634
  %v4280 = vpack.c.b16 %v3637, %v3636
  %v4281 = vpack.c.b16 %v3639, %v3638
  %v4282 = vpack.c.b16 %v3641, %v3640
  %v4283 = vpack.c.b16 %v3643, %v3642
  %v4284 = vpack.c.b16 %v3645, %v3644
  %v4285 = vpack.c.b16 %v3647, %v3646
  %v4286 = vpack.c.b16 %v3649, %v3648
  %v4287 = vpack.c.b16 %v3651, %v3650
  %v4288 = vpack.c.b16 %v3653, %v3652
  %v4289 = vpack.c.b16 %v3655, %v3654
  %v4290 = vpack.c.b16 %v3657, %v3656
  %v4291 = vpack.c.b16 %v3659, %v3658
  %v4292 = vpack.c.b16 %v3661, %v3660
  %v4293 = vpack.c.b16 %v3663, %v3662
  %v4294 = vpack.c.b16 %v3665, %v3664
  %v4295 = vpack.c.b16 %v3667, %v3666
  %v4296 = vpack.c.b16 %v3669, %v3668
  %v4297 = vpack.c.b16 %v3671, %v3670
  %v4298 = vpack.c.b16 %v3673, %v3672
  %v4299 = vpack.c.b16 %v3675, %v3674
  %v4300 = vpack.c.b16 %v3677, %v3676
  %v4301 = vpack.c.b16 %v3679, %v3678
  %v4302 = vpack.c.b16 %v3681, %v3680
  %v4303 = vpack.c.b16 %v3683, %v3682
  %v4304 = vpack.c.b16 %v3685, %v3684
  %v4305 = vpack.c.b16 %v3687, %v3686
  %v4306 = vpack.c.b16 %v3689, %v3688
  %v4307 = vpack.c.b16 %v3691, %v3690
  %v4308 = vpack.c.b16 %v3693, %v3692
  %v4309 = vpack.c.b16 %v3695, %v3694
  %v4310 = vpack.c.b16 %v3697, %v3696
  %v4311 = vpack.c.b16 %v3699, %v3698
  %v4312 = vpack.c.b16 %v3701, %v3700
  %v4313 = vpack.c.b16 %v3703, %v3702
  %v4314 = vpack.c.b16 %v3705, %v3704
  %v4315 = vpack.c.b16 %v3707, %v3706
  %v4316 = vpack.c.b16 %v3709, %v3708
  %v4317 = vpack.c.b16 %v3711, %v3710
  %v4318 = vpack.c.b16 %v3713, %v3712
  %v4319 = vpack.c.b16 %v3715, %v3714
  %v4320 = vpack.c.b16 %v3717, %v3716
  %v4321 = vpack.c.b16 %v3719, %v3718
  %v4322 = vpack.c.b16 %v3721, %v3720
  %v4323 = vpack.c.b16 %v3723, %v3722
  %v4324 = vpack.c.b16 %v3725, %v3724
  %v4325 = vpack.c.b16 %v3727, %v3726
  %v4326 = vpack.c.b16 %v3729, %v3728
  %v4327 = vpack.c.b16 %v3731, %v3730
  %v4328 = vpack.c.b16 %v3733, %v3732
  %v4329 = vpack.c.b16 %v3735, %v3734
  %v4330 = vpack.c.b16 %v3737, %v3736
  %v4331 = vpack.c.b16 %v3739, %v3738
  %v4332 = vpack.c.b16 %v3741, %v3740
  %v4333 = vpack.c.b16 %v3743, %v3742
  %v4334 = vpack.c.b16 %v3745, %v3744
  %v4335 = vpack.c.b16 %v3747, %v3746
  %v4336 = vpack.c.b16 %v3749, %v3748
  %v4337 = vpack.c.b16 %v3751, %v3750
  %v4338 = vpack.c.b16 %v3753, %v3752
  %v4339 = vpack.c.b16 %v3755, %v3754
  %v4340 = vpack.c.b16 %v3757, %v3756
  %v4341 = vpack.c.b16 %v3759, %v3758
  %v4342 = vpack.c.b16 %v3761, %v3760
  %v4343 = vpack.c.b16 %v3763, %v3762
  %v4344 = vpack.c.b16 %v3765, %v3764
  %v4345 = vpack.c.b16 %v3767, %v3766
  %v4346 = vpack.c.b16 %v3769, %v3768
  %v4347 = vpack.c.b16 %v3771, %v3770
  %4924 = vmatprep.subr.bf16.mxu0 0
  %4925 = vmatpush1.bf16.msra.mxu0 %v3772
  %4926 = vmatprep.subr.bf16.mxu0 0
  %4927 = vmatpush1.bf16.msra.mxu0 %v3773
  %4928 = vmatprep.subr.bf16.mxu0 0
  %4929 = vmatpush1.bf16.msra.mxu0 %v3774
  %4930 = vmatprep.subr.bf16.mxu0 0
  %4931 = vmatpush1.bf16.msra.mxu0 %v3775
  %4932 = vmatprep.subr.bf16.mxu0 0
  %4933 = vmatpush1.bf16.msra.mxu0 %v3776
  %4934 = vmatprep.subr.bf16.mxu0 0
  %4935 = vmatpush1.bf16.msra.mxu0 %v3777
  %4936 = vmatprep.subr.bf16.mxu0 0
  %4937 = vmatpush1.bf16.msra.mxu0 %v3778
  %4938 = vmatprep.subr.bf16.mxu0 0
  %4939 = vmatpush1.bf16.msra.mxu0 %v3779
  %4940 = vmatprep.subr.bf16.mxu0 0
  %4941 = vmatpush1.bf16.msra.mxu0 %v3780
  %4942 = vmatprep.subr.bf16.mxu0 0
  %4943 = vmatpush1.bf16.msra.mxu0 %v3781
  %4944 = vmatprep.subr.bf16.mxu0 0
  %4945 = vmatpush1.bf16.msra.mxu0 %v3782
  %4946 = vmatprep.subr.bf16.mxu0 0
  %4947 = vmatpush1.bf16.msra.mxu0 %v3783
  %4948 = vmatprep.subr.bf16.mxu0 0
  %4949 = vmatpush1.bf16.msra.mxu0 %v3784
  %4950 = vmatprep.subr.bf16.mxu0 0
  %4951 = vmatpush1.bf16.msra.mxu0 %v3785
  %4952 = vmatprep.subr.bf16.mxu0 0
  %4953 = vmatpush1.bf16.msra.mxu0 %v3786
  %4954 = vmatprep.subr.bf16.mxu0 0
  %4955 = vmatpush1.bf16.msra.mxu0 %v3787
  %4956 = vmatprep.mubr.bf16.mxu0 %v1325
  %4957 = vmatmul.mubr.bf16.gmra.mrb[0].mxu0 %v1324
  %v4958 = vpop.f32.mrb[0].mxu0
  %v4959 = vadd.f32 %v1214, %v4958
  %v4960 = vpop.f32.mrb[0].mxu0
  %v4961 = vpop.f32.mrb[0].mxu0
  %v4962 = vpop.f32.mrb[0].mxu0
  %4963 = vdwg.mxu0
  %4964 = vmatprep.subr.bf16.mxu0 0
  %4965 = vmatpush1.bf16.msra.mxu0 %v3788
  %4966 = vmatprep.subr.bf16.mxu0 0
  %4967 = vmatpush1.bf16.msra.mxu0 %v3789
  %4968 = vmatprep.subr.bf16.mxu0 0
  %4969 = vmatpush1.bf16.msra.mxu0 %v3790
  %4970 = vmatprep.subr.bf16.mxu0 0
  %4971 = vmatpush1.bf16.msra.mxu0 %v3791
  %4972 = vmatprep.subr.bf16.mxu0 0
  %4973 = vmatpush1.bf16.msra.mxu0 %v3792
  %4974 = vmatprep.subr.bf16.mxu0 0
  %4975 = vmatpush1.bf16.msra.mxu0 %v3793
  %4976 = vmatprep.subr.bf16.mxu0 0
  %4977 = vmatpush1.bf16.msra.mxu0 %v3794
  %4978 = vmatprep.subr.bf16.mxu0 0
  %4979 = vmatpush1.bf16.msra.mxu0 %v3795
  %4980 = vmatprep.subr.bf16.mxu0 0
  %4981 = vmatpush1.bf16.msra.mxu0 %v3796
  %4982 = vmatprep.subr.bf16.mxu0 0
  %4983 = vmatpush1.bf16.msra.mxu0 %v3797
  %4984 = vmatprep.subr.bf16.mxu0 0
  %4985 = vmatpush1.bf16.msra.mxu0 %v3798
  %4986 = vmatprep.subr.bf16.mxu0 0
  %4987 = vmatpush1.bf16.msra.mxu0 %v3799
  %4988 = vmatprep.subr.bf16.mxu0 0
  %4989 = vmatpush1.bf16.msra.mxu0 %v3800
  %4990 = vmatprep.subr.bf16.mxu0 0
  %4991 = vmatpush1.bf16.msra.mxu0 %v3801
  %4992 = vmatprep.subr.bf16.mxu0 0
  %4993 = vmatpush1.bf16.msra.mxu0 %v3802
  %4994 = vmatprep.subr.bf16.mxu0 0
  %4995 = vmatpush1.bf16.msra.mxu0 %v3803
  %4996 = vmatprep.mubr.bf16.mxu0 %v1327
  %4997 = vmatmul.mubr.bf16.gmra.mrb[0].mxu0 %v1326
  %v4998 = vpop.f32.mrb[0].mxu0
  %v4999 = vadd.f32 %v4959, %v4998
  %v5000 = vpop.f32.mrb[0].mxu0
  %v5001 = vpop.f32.mrb[0].mxu0
  %v5002 = vpop.f32.mrb[0].mxu0
  %5003 = vdwg.mxu0
  %5004 = vmatprep.subr.bf16.mxu0 0
  %5005 = vmatpush1.bf16.msra.mxu0 %v3804
  %5006 = vmatprep.subr.bf16.mxu0 0
  %5007 = vmatpush1.bf16.msra.mxu0 %v3805
  %5008 = vmatprep.subr.bf16.mxu0 0
  %5009 = vmatpush1.bf16.msra.mxu0 %v3806
  %5010 = vmatprep.subr.bf16.mxu0 0
  %5011 = vmatpush1.bf16.msra.mxu0 %v3807
  %5012 = vmatprep.subr.bf16.mxu0 0
  %5013 = vmatpush1.bf16.msra.mxu0 %v3808
  %5014 = vmatprep.subr.bf16.mxu0 0
  %5015 = vmatpush1.bf16.msra.mxu0 %v3809
  %5016 = vmatprep.subr.bf16.mxu0 0
  %5017 = vmatpush1.bf16.msra.mxu0 %v3810
  %5018 = vmatprep.subr.bf16.mxu0 0
  %5019 = vmatpush1.bf16.msra.mxu0 %v3811
  %5020 = vmatprep.subr.bf16.mxu0 0
  %5021 = vmatpush1.bf16.msra.mxu0 %v3812
  %5022 = vmatprep.subr.bf16.mxu0 0
  %5023 = vmatpush1.bf16.msra.mxu0 %v3813
  %5024 = vmatprep.subr.bf16.mxu0 0
  %5025 = vmatpush1.bf16.msra.mxu0 %v3814
  %5026 = vmatprep.subr.bf16.mxu0 0
  %5027 = vmatpush1.bf16.msra.mxu0 %v3815
  %5028 = vmatprep.subr.bf16.mxu0 0
  %5029 = vmatpush1.bf16.msra.mxu0 %v3816
  %5030 = vmatprep.subr.bf16.mxu0 0
  %5031 = vmatpush1.bf16.msra.mxu0 %v3817
  %5032 = vmatprep.subr.bf16.mxu0 0
  %5033 = vmatpush1.bf16.msra.mxu0 %v3818
  %5034 = vmatprep.subr.bf16.mxu0 0
  %5035 = vmatpush1.bf16.msra.mxu0 %v3819
  %5036 = vmatprep.mubr.bf16.mxu0 %v1329
  %5037 = vmatmul.mubr.bf16.gmra.mrb[0].mxu0 %v1328
  %v5038 = vpop.f32.mrb[0].mxu0
  %v5039 = vadd.f32 %v4999, %v5038
  %v5040 = vpop.f32.mrb[0].mxu0
  %v5041 = vpop.f32.mrb[0].mxu0
  %v5042 = vpop.f32.mrb[0].mxu0
  %5043 = vdwg.mxu0
  %5044 = vmatprep.subr.bf16.mxu0 0
  %5045 = vmatpush1.bf16.msra.mxu0 %v3820
  %5046 = vmatprep.subr.bf16.mxu0 0
  %5047 = vmatpush1.bf16.msra.mxu0 %v3821
  %5048 = vmatprep.subr.bf16.mxu0 0
  %5049 = vmatpush1.bf16.msra.mxu0 %v3822
  %5050 = vmatprep.subr.bf16.mxu0 0
  %5051 = vmatpush1.bf16.msra.mxu0 %v3823
  %5052 = vmatprep.subr.bf16.mxu0 0
  %5053 = vmatpush1.bf16.msra.mxu0 %v3824
  %5054 = vmatprep.subr.bf16.mxu0 0
  %5055 = vmatpush1.bf16.msra.mxu0 %v3825
  %5056 = vmatprep.subr.bf16.mxu0 0
  %5057 = vmatpush1.bf16.msra.mxu0 %v3826
  %5058 = vmatprep.subr.bf16.mxu0 0
  %5059 = vmatpush1.bf16.msra.mxu0 %v3827
  %5060 = vmatprep.subr.bf16.mxu0 0
  %5061 = vmatpush1.bf16.msra.mxu0 %v3828
  %5062 = vmatprep.subr.bf16.mxu0 0
  %5063 = vmatpush1.bf16.msra.mxu0 %v3829
  %5064 = vmatprep.subr.bf16.mxu0 0
  %5065 = vmatpush1.bf16.msra.mxu0 %v3830
  %5066 = vmatprep.subr.bf16.mxu0 0
  %5067 = vmatpush1.bf16.msra.mxu0 %v3831
  %5068 = vmatprep.subr.bf16.mxu0 0
  %5069 = vmatpush1.bf16.msra.mxu0 %v3832
  %5070 = vmatprep.subr.bf16.mxu0 0
  %5071 = vmatpush1.bf16.msra.mxu0 %v3833
  %5072 = vmatprep.subr.bf16.mxu0 0
  %5073 = vmatpush1.bf16.msra.mxu0 %v3834
  %5074 = vmatprep.subr.bf16.mxu0 0
  %5075 = vmatpush1.bf16.msra.mxu0 %v3835
  %5076 = vmatprep.mubr.bf16.mxu0 %v1331
  %5077 = vmatmul.mubr.bf16.gmra.mrb[0].mxu0 %v1330
  %v5078 = vpop.f32.mrb[0].mxu0
  %v5079 = vadd.f32 %v5039, %v5078
  %v5080 = vpop.f32.mrb[0].mxu0
  %v5081 = vpop.f32.mrb[0].mxu0
  %v5082 = vpop.f32.mrb[0].mxu0
  %5083 = vdwg.mxu0
  %5084 = vmatprep.subr.bf16.mxu0 0
  %5085 = vmatpush1.bf16.msra.mxu0 %v3836
  %5086 = vmatprep.subr.bf16.mxu0 0
  %5087 = vmatpush1.bf16.msra.mxu0 %v3837
  %5088 = vmatprep.subr.bf16.mxu0 0
  %5089 = vmatpush1.bf16.msra.mxu0 %v3838
  %5090 = vmatprep.subr.bf16.mxu0 0
  %5091 = vmatpush1.bf16.msra.mxu0 %v3839
  %5092 = vmatprep.subr.bf16.mxu0 0
  %5093 = vmatpush1.bf16.msra.mxu0 %v3840
  %5094 = vmatprep.subr.bf16.mxu0 0
  %5095 = vmatpush1.bf16.msra.mxu0 %v3841
  %5096 = vmatprep.subr.bf16.mxu0 0
  %5097 = vmatpush1.bf16.msra.mxu0 %v3842
  %5098 = vmatprep.subr.bf16.mxu0 0
  %5099 = vmatpush1.bf16.msra.mxu0 %v3843
  %5100 = vmatprep.subr.bf16.mxu0 0
  %5101 = vmatpush1.bf16.msra.mxu0 %v3844
  %5102 = vmatprep.subr.bf16.mxu0 0
  %5103 = vmatpush1.bf16.msra.mxu0 %v3845
  %5104 = vmatprep.subr.bf16.mxu0 0
  %5105 = vmatpush1.bf16.msra.mxu0 %v3846
  %5106 = vmatprep.subr.bf16.mxu0 0
  %5107 = vmatpush1.bf16.msra.mxu0 %v3847
  %5108 = vmatprep.subr.bf16.mxu0 0
  %5109 = vmatpush1.bf16.msra.mxu0 %v3848
  %5110 = vmatprep.subr.bf16.mxu0 0
  %5111 = vmatpush1.bf16.msra.mxu0 %v3849
  %5112 = vmatprep.subr.bf16.mxu0 0
  %5113 = vmatpush1.bf16.msra.mxu0 %v3850
  %5114 = vmatprep.subr.bf16.mxu0 0
  %5115 = vmatpush1.bf16.msra.mxu0 %v3851
  %5116 = vmatprep.mubr.bf16.mxu0 %v1333
  %5117 = vmatmul.mubr.bf16.gmra.mrb[0].mxu0 %v1332
  %v5118 = vpop.f32.mrb[0].mxu0
  %v5119 = vadd.f32 %v5079, %v5118
  %v5120 = vpop.f32.mrb[0].mxu0
  %v5121 = vpop.f32.mrb[0].mxu0
  %v5122 = vpop.f32.mrb[0].mxu0
  %5123 = vdwg.mxu0
  %5124 = vmatprep.subr.bf16.mxu0 0
  %5125 = vmatpush1.bf16.msra.mxu0 %v3852
  %5126 = vmatprep.subr.bf16.mxu0 0
  %5127 = vmatpush1.bf16.msra.mxu0 %v3853
  %5128 = vmatprep.subr.bf16.mxu0 0
  %5129 = vmatpush1.bf16.msra.mxu0 %v3854
  %5130 = vmatprep.subr.bf16.mxu0 0
  %5131 = vmatpush1.bf16.msra.mxu0 %v3855
  %5132 = vmatprep.subr.bf16.mxu0 0
  %5133 = vmatpush1.bf16.msra.mxu0 %v3856
  %5134 = vmatprep.subr.bf16.mxu0 0
  %5135 = vmatpush1.bf16.msra.mxu0 %v3857
  %5136 = vmatprep.subr.bf16.mxu0 0
  %5137 = vmatpush1.bf16.msra.mxu0 %v3858
  %5138 = vmatprep.subr.bf16.mxu0 0
  %5139 = vmatpush1.bf16.msra.mxu0 %v3859
  %5140 = vmatprep.subr.bf16.mxu0 0
  %5141 = vmatpush1.bf16.msra.mxu0 %v3860
  %5142 = vmatprep.subr.bf16.mxu0 0
  %5143 = vmatpush1.bf16.msra.mxu0 %v3861
  %5144 = vmatprep.subr.bf16.mxu0 0
  %5145 = vmatpush1.bf16.msra.mxu0 %v3862
  %5146 = vmatprep.subr.bf16.mxu0 0
  %5147 = vmatpush1.bf16.msra.mxu0 %v3863
  %5148 = vmatprep.subr.bf16.mxu0 0
  %5149 = vmatpush1.bf16.msra.mxu0 %v3864
  %5150 = vmatprep.subr.bf16.mxu0 0
  %5151 = vmatpush1.bf16.msra.mxu0 %v3865
  %5152 = vmatprep.subr.bf16.mxu0 0
  %5153 = vmatpush1.bf16.msra.mxu0 %v3866
  %5154 = vmatprep.subr.bf16.mxu0 0
  %5155 = vmatpush1.bf16.msra.mxu0 %v3867
  %5156 = vmatprep.mubr.bf16.mxu0 %v1335
  %5157 = vmatmul.mubr.bf16.gmra.mrb[0].mxu0 %v1334
  %v5158 = vpop.f32.mrb[0].mxu0
  %v5159 = vadd.f32 %v5119, %v5158
  %v5160 = vpop.f32.mrb[0].mxu0
  %v5161 = vpop.f32.mrb[0].mxu0
  %v5162 = vpop.f32.mrb[0].mxu0
  %5163 = vdwg.mxu0
  %5164 = vmatprep.subr.bf16.mxu0 0
  %5165 = vmatpush1.bf16.msra.mxu0 %v3868
  %5166 = vmatprep.subr.bf16.mxu0 0
  %5167 = vmatpush1.bf16.msra.mxu0 %v3869
  %5168 = vmatprep.subr.bf16.mxu0 0
  %5169 = vmatpush1.bf16.msra.mxu0 %v3870
  %5170 = vmatprep.subr.bf16.mxu0 0
  %5171 = vmatpush1.bf16.msra.mxu0 %v3871
  %5172 = vmatprep.subr.bf16.mxu0 0
  %5173 = vmatpush1.bf16.msra.mxu0 %v3872
  %5174 = vmatprep.subr.bf16.mxu0 0
  %5175 = vmatpush1.bf16.msra.mxu0 %v3873
  %5176 = vmatprep.subr.bf16.mxu0 0
  %5177 = vmatpush1.bf16.msra.mxu0 %v3874
  %5178 = vmatprep.subr.bf16.mxu0 0
  %5179 = vmatpush1.bf16.msra.mxu0 %v3875
  %5180 = vmatprep.subr.bf16.mxu0 0
  %5181 = vmatpush1.bf16.msra.mxu0 %v3876
  %5182 = vmatprep.subr.bf16.mxu0 0
  %5183 = vmatpush1.bf16.msra.mxu0 %v3877
  %5184 = vmatprep.subr.bf16.mxu0 0
  %5185 = vmatpush1.bf16.msra.mxu0 %v3878
  %5186 = vmatprep.subr.bf16.mxu0 0
  %5187 = vmatpush1.bf16.msra.mxu0 %v3879
  %5188 = vmatprep.subr.bf16.mxu0 0
  %5189 = vmatpush1.bf16.msra.mxu0 %v3880
  %5190 = vmatprep.subr.bf16.mxu0 0
  %5191 = vmatpush1.bf16.msra.mxu0 %v3881
  %5192 = vmatprep.subr.bf16.mxu0 0
  %5193 = vmatpush1.bf16.msra.mxu0 %v3882
  %5194 = vmatprep.subr.bf16.mxu0 0
  %5195 = vmatpush1.bf16.msra.mxu0 %v3883
  %5196 = vmatprep.mubr.bf16.mxu0 %v1337
  %5197 = vmatmul.mubr.bf16.gmra.mrb[0].mxu0 %v1336
  %v5198 = vpop.f32.mrb[0].mxu0
  %v5199 = vadd.f32 %v5159, %v5198
  %v5200 = vpop.f32.mrb[0].mxu0
  %v5201 = vpop.f32.mrb[0].mxu0
  %v5202 = vpop.f32.mrb[0].mxu0
  %5203 = vdwg.mxu0
  %5204 = vmatprep.subr.bf16.mxu0 0
  %5205 = vmatpush1.bf16.msra.mxu0 %v3884
  %5206 = vmatprep.subr.bf16.mxu0 0
  %5207 = vmatpush1.bf16.msra.mxu0 %v3885
  %5208 = vmatprep.subr.bf16.mxu0 0
  %5209 = vmatpush1.bf16.msra.mxu0 %v3886
  %5210 = vmatprep.subr.bf16.mxu0 0
  %5211 = vmatpush1.bf16.msra.mxu0 %v3887
  %5212 = vmatprep.subr.bf16.mxu0 0
  %5213 = vmatpush1.bf16.msra.mxu0 %v3888
  %5214 = vmatprep.subr.bf16.mxu0 0
  %5215 = vmatpush1.bf16.msra.mxu0 %v3889
  %5216 = vmatprep.subr.bf16.mxu0 0
  %5217 = vmatpush1.bf16.msra.mxu0 %v3890
  %5218 = vmatprep.subr.bf16.mxu0 0
  %5219 = vmatpush1.bf16.msra.mxu0 %v3891
  %5220 = vmatprep.subr.bf16.mxu0 0
  %5221 = vmatpush1.bf16.msra.mxu0 %v3892
  %5222 = vmatprep.subr.bf16.mxu0 0
  %5223 = vmatpush1.bf16.msra.mxu0 %v3893
  %5224 = vmatprep.subr.bf16.mxu0 0
  %5225 = vmatpush1.bf16.msra.mxu0 %v3894
  %5226 = vmatprep.subr.bf16.mxu0 0
  %5227 = vmatpush1.bf16.msra.mxu0 %v3895
  %5228 = vmatprep.subr.bf16.mxu0 0
  %5229 = vmatpush1.bf16.msra.mxu0 %v3896
  %5230 = vmatprep.subr.bf16.mxu0 0
  %5231 = vmatpush1.bf16.msra.mxu0 %v3897
  %5232 = vmatprep.subr.bf16.mxu0 0
  %5233 = vmatpush1.bf16.msra.mxu0 %v3898
  %5234 = vmatprep.subr.bf16.mxu0 0
  %5235 = vmatpush1.bf16.msra.mxu0 %v3899
  %5236 = vmatprep.mubr.bf16.mxu0 %v1339
  %5237 = vmatmul.mubr.bf16.gmra.mrb[0].mxu0 %v1338
  %v5238 = vpop.f32.mrb[0].mxu0
  %v5239 = vadd.f32 %v5199, %v5238
  %v5240 = vpop.f32.mrb[0].mxu0
  %v5241 = vpop.f32.mrb[0].mxu0
  %v5242 = vpop.f32.mrb[0].mxu0
  %5243 = vdwg.mxu0
  %5244 = vmatprep.subr.bf16.mxu0 0
  %5245 = vmatpush1.bf16.msra.mxu0 %v3900
  %5246 = vmatprep.subr.bf16.mxu0 0
  %5247 = vmatpush1.bf16.msra.mxu0 %v3901
  %5248 = vmatprep.subr.bf16.mxu0 0
  %5249 = vmatpush1.bf16.msra.mxu0 %v3902
  %5250 = vmatprep.subr.bf16.mxu0 0
  %5251 = vmatpush1.bf16.msra.mxu0 %v3903
  %5252 = vmatprep.subr.bf16.mxu0 0
  %5253 = vmatpush1.bf16.msra.mxu0 %v3904
  %5254 = vmatprep.subr.bf16.mxu0 0
  %5255 = vmatpush1.bf16.msra.mxu0 %v3905
  %5256 = vmatprep.subr.bf16.mxu0 0
  %5257 = vmatpush1.bf16.msra.mxu0 %v3906
  %5258 = vmatprep.subr.bf16.mxu0 0
  %5259 = vmatpush1.bf16.msra.mxu0 %v3907
  %5260 = vmatprep.subr.bf16.mxu0 0
  %5261 = vmatpush1.bf16.msra.mxu0 %v3908
  %5262 = vmatprep.subr.bf16.mxu0 0
  %5263 = vmatpush1.bf16.msra.mxu0 %v3909
  %5264 = vmatprep.subr.bf16.mxu0 0
  %5265 = vmatpush1.bf16.msra.mxu0 %v3910
  %5266 = vmatprep.subr.bf16.mxu0 0
  %5267 = vmatpush1.bf16.msra.mxu0 %v3911
  %5268 = vmatprep.subr.bf16.mxu0 0
  %5269 = vmatpush1.bf16.msra.mxu0 %v3912
  %5270 = vmatprep.subr.bf16.mxu0 0
  %5271 = vmatpush1.bf16.msra.mxu0 %v3913
  %5272 = vmatprep.subr.bf16.mxu0 0
  %5273 = vmatpush1.bf16.msra.mxu0 %v3914
  %5274 = vmatprep.subr.bf16.mxu0 0
  %5275 = vmatpush1.bf16.msra.mxu0 %v3915
  %5276 = vmatprep.mubr.bf16.mxu0 %v1341
  %5277 = vmatmul.mubr.bf16.gmra.mrb[0].mxu0 %v1340
  %v5278 = vpop.f32.mrb[0].mxu0
  %v5279 = vadd.f32 %v5239, %v5278
  %v5280 = vpop.f32.mrb[0].mxu0
  %v5281 = vpop.f32.mrb[0].mxu0
  %v5282 = vpop.f32.mrb[0].mxu0
  %5283 = vdwg.mxu0
  %5284 = vmatprep.subr.bf16.mxu0 0
  %5285 = vmatpush1.bf16.msra.mxu0 %v3916
  %5286 = vmatprep.subr.bf16.mxu0 0
  %5287 = vmatpush1.bf16.msra.mxu0 %v3917
  %5288 = vmatprep.subr.bf16.mxu0 0
  %5289 = vmatpush1.bf16.msra.mxu0 %v3918
  %5290 = vmatprep.subr.bf16.mxu0 0
  %5291 = vmatpush1.bf16.msra.mxu0 %v3919
  %5292 = vmatprep.subr.bf16.mxu0 0
  %5293 = vmatpush1.bf16.msra.mxu0 %v3920
  %5294 = vmatprep.subr.bf16.mxu0 0
  %5295 = vmatpush1.bf16.msra.mxu0 %v3921
  %5296 = vmatprep.subr.bf16.mxu0 0
  %5297 = vmatpush1.bf16.msra.mxu0 %v3922
  %5298 = vmatprep.subr.bf16.mxu0 0
  %5299 = vmatpush1.bf16.msra.mxu0 %v3923
  %5300 = vmatprep.subr.bf16.mxu0 0
  %5301 = vmatpush1.bf16.msra.mxu0 %v3924
  %5302 = vmatprep.subr.bf16.mxu0 0
  %5303 = vmatpush1.bf16.msra.mxu0 %v3925
  %5304 = vmatprep.subr.bf16.mxu0 0
  %5305 = vmatpush1.bf16.msra.mxu0 %v3926
  %5306 = vmatprep.subr.bf16.mxu0 0
  %5307 = vmatpush1.bf16.msra.mxu0 %v3927
  %5308 = vmatprep.subr.bf16.mxu0 0
  %5309 = vmatpush1.bf16.msra.mxu0 %v3928
  %5310 = vmatprep.subr.bf16.mxu0 0
  %5311 = vmatpush1.bf16.msra.mxu0 %v3929
  %5312 = vmatprep.subr.bf16.mxu0 0
  %5313 = vmatpush1.bf16.msra.mxu0 %v3930
  %5314 = vmatprep.subr.bf16.mxu0 0
  %5315 = vmatpush1.bf16.msra.mxu0 %v3931
  %5316 = vmatprep.mubr.bf16.mxu0 %v1343
  %5317 = vmatmul.mubr.bf16.gmra.mrb[0].mxu0 %v1342
  %v5318 = vpop.f32.mrb[0].mxu0
  %v5319 = vadd.f32 %v5279, %v5318
  %v5320 = vpop.f32.mrb[0].mxu0
  %v5321 = vpop.f32.mrb[0].mxu0
  %v5322 = vpop.f32.mrb[0].mxu0
  %5323 = vdwg.mxu0
  %5324 = vmatprep.subr.bf16.mxu0 0
  %5325 = vmatpush1.bf16.msra.mxu0 %v3932
  %5326 = vmatprep.subr.bf16.mxu0 0
  %5327 = vmatpush1.bf16.msra.mxu0 %v3933
  %5328 = vmatprep.subr.bf16.mxu0 0
  %5329 = vmatpush1.bf16.msra.mxu0 %v3934
  %5330 = vmatprep.subr.bf16.mxu0 0
  %5331 = vmatpush1.bf16.msra.mxu0 %v3935
  %5332 = vmatprep.subr.bf16.mxu0 0
  %5333 = vmatpush1.bf16.msra.mxu0 %v3936
  %5334 = vmatprep.subr.bf16.mxu0 0
  %5335 = vmatpush1.bf16.msra.mxu0 %v3937
  %5336 = vmatprep.subr.bf16.mxu0 0
  %5337 = vmatpush1.bf16.msra.mxu0 %v3938
  %5338 = vmatprep.subr.bf16.mxu0 0
  %5339 = vmatpush1.bf16.msra.mxu0 %v3939
  %5340 = vmatprep.subr.bf16.mxu0 0
  %5341 = vmatpush1.bf16.msra.mxu0 %v3940
  %5342 = vmatprep.subr.bf16.mxu0 0
  %5343 = vmatpush1.bf16.msra.mxu0 %v3941
  %5344 = vmatprep.subr.bf16.mxu0 0
  %5345 = vmatpush1.bf16.msra.mxu0 %v3942
  %5346 = vmatprep.subr.bf16.mxu0 0
  %5347 = vmatpush1.bf16.msra.mxu0 %v3943
  %5348 = vmatprep.subr.bf16.mxu0 0
  %5349 = vmatpush1.bf16.msra.mxu0 %v3944
  %5350 = vmatprep.subr.bf16.mxu0 0
  %5351 = vmatpush1.bf16.msra.mxu0 %v3945
  %5352 = vmatprep.subr.bf16.mxu0 0
  %5353 = vmatpush1.bf16.msra.mxu0 %v3946
  %5354 = vmatprep.subr.bf16.mxu0 0
  %5355 = vmatpush1.bf16.msra.mxu0 %v3947
  %5356 = vmatprep.mubr.bf16.mxu0 %v1345
  %5357 = vmatmul.mubr.bf16.gmra.mrb[0].mxu0 %v1344
  %v5358 = vpop.f32.mrb[0].mxu0
  %v5359 = vadd.f32 %v5319, %v5358
  %v5360 = vpop.f32.mrb[0].mxu0
  %v5361 = vpop.f32.mrb[0].mxu0
  %v5362 = vpop.f32.mrb[0].mxu0
  %5363 = vdwg.mxu0
  %5364 = vmatprep.subr.bf16.mxu0 0
  %5365 = vmatpush1.bf16.msra.mxu0 %v3948
  %5366 = vmatprep.subr.bf16.mxu0 0
  %5367 = vmatpush1.bf16.msra.mxu0 %v3949
  %5368 = vmatprep.subr.bf16.mxu0 0
  %5369 = vmatpush1.bf16.msra.mxu0 %v3950
  %5370 = vmatprep.subr.bf16.mxu0 0
  %5371 = vmatpush1.bf16.msra.mxu0 %v3951
  %5372 = vmatprep.subr.bf16.mxu0 0
  %5373 = vmatpush1.bf16.msra.mxu0 %v3952
  %5374 = vmatprep.subr.bf16.mxu0 0
  %5375 = vmatpush1.bf16.msra.mxu0 %v3953
  %5376 = vmatprep.subr.bf16.mxu0 0
  %5377 = vmatpush1.bf16.msra.mxu0 %v3954
  %5378 = vmatprep.subr.bf16.mxu0 0
  %5379 = vmatpush1.bf16.msra.mxu0 %v3955
  %5380 = vmatprep.subr.bf16.mxu0 0
  %5381 = vmatpush1.bf16.msra.mxu0 %v3956
  %5382 = vmatprep.subr.bf16.mxu0 0
  %5383 = vmatpush1.bf16.msra.mxu0 %v3957
  %5384 = vmatprep.subr.bf16.mxu0 0
  %5385 = vmatpush1.bf16.msra.mxu0 %v3958
  %5386 = vmatprep.subr.bf16.mxu0 0
  %5387 = vmatpush1.bf16.msra.mxu0 %v3959
  %5388 = vmatprep.subr.bf16.mxu0 0
  %5389 = vmatpush1.bf16.msra.mxu0 %v3960
  %5390 = vmatprep.subr.bf16.mxu0 0
  %5391 = vmatpush1.bf16.msra.mxu0 %v3961
  %5392 = vmatprep.subr.bf16.mxu0 0
  %5393 = vmatpush1.bf16.msra.mxu0 %v3962
  %5394 = vmatprep.subr.bf16.mxu0 0
  %5395 = vmatpush1.bf16.msra.mxu0 %v3963
  %5396 = vmatprep.mubr.bf16.mxu0 %v1347
  %5397 = vmatmul.mubr.bf16.gmra.mrb[0].mxu0 %v1346
  %v5398 = vpop.f32.mrb[0].mxu0
  %v5399 = vadd.f32 %v5359, %v5398
  %v5400 = vpop.f32.mrb[0].mxu0
  %v5401 = vpop.f32.mrb[0].mxu0
  %v5402 = vpop.f32.mrb[0].mxu0
  %5403 = vdwg.mxu0
  %5404 = vmatprep.subr.bf16.mxu0 0
  %5405 = vmatpush1.bf16.msra.mxu0 %v3964
  %5406 = vmatprep.subr.bf16.mxu0 0
  %5407 = vmatpush1.bf16.msra.mxu0 %v3965
  %5408 = vmatprep.subr.bf16.mxu0 0
  %5409 = vmatpush1.bf16.msra.mxu0 %v3966
  %5410 = vmatprep.subr.bf16.mxu0 0
  %5411 = vmatpush1.bf16.msra.mxu0 %v3967
  %5412 = vmatprep.subr.bf16.mxu0 0
  %5413 = vmatpush1.bf16.msra.mxu0 %v3968
  %5414 = vmatprep.subr.bf16.mxu0 0
  %5415 = vmatpush1.bf16.msra.mxu0 %v3969
  %5416 = vmatprep.subr.bf16.mxu0 0
  %5417 = vmatpush1.bf16.msra.mxu0 %v3970
  %5418 = vmatprep.subr.bf16.mxu0 0
  %5419 = vmatpush1.bf16.msra.mxu0 %v3971
  %5420 = vmatprep.subr.bf16.mxu0 0
  %5421 = vmatpush1.bf16.msra.mxu0 %v3972
  %5422 = vmatprep.subr.bf16.mxu0 0
  %5423 = vmatpush1.bf16.msra.mxu0 %v3973
  %5424 = vmatprep.subr.bf16.mxu0 0
  %5425 = vmatpush1.bf16.msra.mxu0 %v3974
  %5426 = vmatprep.subr.bf16.mxu0 0
  %5427 = vmatpush1.bf16.msra.mxu0 %v3975
  %5428 = vmatprep.subr.bf16.mxu0 0
  %5429 = vmatpush1.bf16.msra.mxu0 %v3976
  %5430 = vmatprep.subr.bf16.mxu0 0
  %5431 = vmatpush1.bf16.msra.mxu0 %v3977
  %5432 = vmatprep.subr.bf16.mxu0 0
  %5433 = vmatpush1.bf16.msra.mxu0 %v3978
  %5434 = vmatprep.subr.bf16.mxu0 0
  %5435 = vmatpush1.bf16.msra.mxu0 %v3979
  %5436 = vmatprep.mubr.bf16.mxu0 %v1349
  %5437 = vmatmul.mubr.bf16.gmra.mrb[0].mxu0 %v1348
  %v5438 = vpop.f32.mrb[0].mxu0
  %v5439 = vadd.f32 %v5399, %v5438
  %v5440 = vpop.f32.mrb[0].mxu0
  %v5441 = vpop.f32.mrb[0].mxu0
  %v5442 = vpop.f32.mrb[0].mxu0
  %5443 = vdwg.mxu0
  %5444 = vmatprep.subr.bf16.mxu0 0
  %5445 = vmatpush1.bf16.msra.mxu0 %v3980
  %5446 = vmatprep.subr.bf16.mxu0 0
  %5447 = vmatpush1.bf16.msra.mxu0 %v3981
  %5448 = vmatprep.subr.bf16.mxu0 0
  %5449 = vmatpush1.bf16.msra.mxu0 %v3982
  %5450 = vmatprep.subr.bf16.mxu0 0
  %5451 = vmatpush1.bf16.msra.mxu0 %v3983
  %5452 = vmatprep.subr.bf16.mxu0 0
  %5453 = vmatpush1.bf16.msra.mxu0 %v3984
  %5454 = vmatprep.subr.bf16.mxu0 0
  %5455 = vmatpush1.bf16.msra.mxu0 %v3985
  %5456 = vmatprep.subr.bf16.mxu0 0
  %5457 = vmatpush1.bf16.msra.mxu0 %v3986
  %5458 = vmatprep.subr.bf16.mxu0 0
  %5459 = vmatpush1.bf16.msra.mxu0 %v3987
  %5460 = vmatprep.subr.bf16.mxu0 0
  %5461 = vmatpush1.bf16.msra.mxu0 %v3988
  %5462 = vmatprep.subr.bf16.mxu0 0
  %5463 = vmatpush1.bf16.msra.mxu0 %v3989
  %5464 = vmatprep.subr.bf16.mxu0 0
  %5465 = vmatpush1.bf16.msra.mxu0 %v3990
  %5466 = vmatprep.subr.bf16.mxu0 0
  %5467 = vmatpush1.bf16.msra.mxu0 %v3991
  %5468 = vmatprep.subr.bf16.mxu0 0
  %5469 = vmatpush1.bf16.msra.mxu0 %v3992
  %5470 = vmatprep.subr.bf16.mxu0 0
  %5471 = vmatpush1.bf16.msra.mxu0 %v3993
  %5472 = vmatprep.subr.bf16.mxu0 0
  %5473 = vmatpush1.bf16.msra.mxu0 %v3994
  %5474 = vmatprep.subr.bf16.mxu0 0
  %5475 = vmatpush1.bf16.msra.mxu0 %v3995
  %5476 = vmatprep.mubr.bf16.mxu0 %v1351
  %5477 = vmatmul.mubr.bf16.gmra.mrb[0].mxu0 %v1350
  %v5478 = vpop.f32.mrb[0].mxu0
  %v5479 = vadd.f32 %v5439, %v5478
  %v5480 = vpop.f32.mrb[0].mxu0
  %v5481 = vpop.f32.mrb[0].mxu0
  %v5482 = vpop.f32.mrb[0].mxu0
  %5483 = vdwg.mxu0
  %5484 = vmatprep.subr.bf16.mxu0 0
  %5485 = vmatpush1.bf16.msra.mxu0 %v3996
  %5486 = vmatprep.subr.bf16.mxu0 0
  %5487 = vmatpush1.bf16.msra.mxu0 %v3997
  %5488 = vmatprep.subr.bf16.mxu0 0
  %5489 = vmatpush1.bf16.msra.mxu0 %v3998
  %5490 = vmatprep.subr.bf16.mxu0 0
  %5491 = vmatpush1.bf16.msra.mxu0 %v3999
  %5492 = vmatprep.subr.bf16.mxu0 0
  %5493 = vmatpush1.bf16.msra.mxu0 %v4000
  %5494 = vmatprep.subr.bf16.mxu0 0
  %5495 = vmatpush1.bf16.msra.mxu0 %v4001
  %5496 = vmatprep.subr.bf16.mxu0 0
  %5497 = vmatpush1.bf16.msra.mxu0 %v4002
  %5498 = vmatprep.subr.bf16.mxu0 0
  %5499 = vmatpush1.bf16.msra.mxu0 %v4003
  %5500 = vmatprep.subr.bf16.mxu0 0
  %5501 = vmatpush1.bf16.msra.mxu0 %v4004
  %5502 = vmatprep.subr.bf16.mxu0 0
  %5503 = vmatpush1.bf16.msra.mxu0 %v4005
  %5504 = vmatprep.subr.bf16.mxu0 0
  %5505 = vmatpush1.bf16.msra.mxu0 %v4006
  %5506 = vmatprep.subr.bf16.mxu0 0
  %5507 = vmatpush1.bf16.msra.mxu0 %v4007
  %5508 = vmatprep.subr.bf16.mxu0 0
  %5509 = vmatpush1.bf16.msra.mxu0 %v4008
  %5510 = vmatprep.subr.bf16.mxu0 0
  %5511 = vmatpush1.bf16.msra.mxu0 %v4009
  %5512 = vmatprep.subr.bf16.mxu0 0
  %5513 = vmatpush1.bf16.msra.mxu0 %v4010
  %5514 = vmatprep.subr.bf16.mxu0 0
  %5515 = vmatpush1.bf16.msra.mxu0 %v4011
  %5516 = vmatprep.mubr.bf16.mxu0 %v1353
  %5517 = vmatmul.mubr.bf16.gmra.mrb[0].mxu0 %v1352
  %v5518 = vpop.f32.mrb[0].mxu0
  %v5519 = vadd.f32 %v5479, %v5518
  %v5520 = vpop.f32.mrb[0].mxu0
  %v5521 = vpop.f32.mrb[0].mxu0
  %v5522 = vpop.f32.mrb[0].mxu0
  %5523 = vdwg.mxu0
  %5524 = vmatprep.subr.bf16.mxu0 0
  %5525 = vmatpush1.bf16.msra.mxu0 %v4012
  %5526 = vmatprep.subr.bf16.mxu0 0
  %5527 = vmatpush1.bf16.msra.mxu0 %v4013
  %5528 = vmatprep.subr.bf16.mxu0 0
  %5529 = vmatpush1.bf16.msra.mxu0 %v4014
  %5530 = vmatprep.subr.bf16.mxu0 0
  %5531 = vmatpush1.bf16.msra.mxu0 %v4015
  %5532 = vmatprep.subr.bf16.mxu0 0
  %5533 = vmatpush1.bf16.msra.mxu0 %v4016
  %5534 = vmatprep.subr.bf16.mxu0 0
  %5535 = vmatpush1.bf16.msra.mxu0 %v4017
  %5536 = vmatprep.subr.bf16.mxu0 0
  %5537 = vmatpush1.bf16.msra.mxu0 %v4018
  %5538 = vmatprep.subr.bf16.mxu0 0
  %5539 = vmatpush1.bf16.msra.mxu0 %v4019
  %5540 = vmatprep.subr.bf16.mxu0 0
  %5541 = vmatpush1.bf16.msra.mxu0 %v4020
  %5542 = vmatprep.subr.bf16.mxu0 0
  %5543 = vmatpush1.bf16.msra.mxu0 %v4021
  %5544 = vmatprep.subr.bf16.mxu0 0
  %5545 = vmatpush1.bf16.msra.mxu0 %v4022
  %5546 = vmatprep.subr.bf16.mxu0 0
  %5547 = vmatpush1.bf16.msra.mxu0 %v4023
  %5548 = vmatprep.subr.bf16.mxu0 0
  %5549 = vmatpush1.bf16.msra.mxu0 %v4024
  %5550 = vmatprep.subr.bf16.mxu0 0
  %5551 = vmatpush1.bf16.msra.mxu0 %v4025
  %5552 = vmatprep.subr.bf16.mxu0 0
  %5553 = vmatpush1.bf16.msra.mxu0 %v4026
  %5554 = vmatprep.subr.bf16.mxu0 0
  %5555 = vmatpush1.bf16.msra.mxu0 %v4027
  %5556 = vmatprep.mubr.bf16.mxu0 %v1355
  %5557 = vmatmul.mubr.bf16.gmra.mrb[0].mxu0 %v1354
  %v5558 = vpop.f32.mrb[0].mxu0
  %v5559 = vadd.f32 %v5519, %v5558
  %v5560 = vpop.f32.mrb[0].mxu0
  %v5561 = vpop.f32.mrb[0].mxu0
  %v5562 = vpop.f32.mrb[0].mxu0
  %5563 = vdwg.mxu0
  %5564 = vmatprep.subr.bf16.mxu0 0
  %5565 = vmatpush1.bf16.msra.mxu0 %v4028
  %5566 = vmatprep.subr.bf16.mxu0 0
  %5567 = vmatpush1.bf16.msra.mxu0 %v4029
  %5568 = vmatprep.subr.bf16.mxu0 0
  %5569 = vmatpush1.bf16.msra.mxu0 %v4030
  %5570 = vmatprep.subr.bf16.mxu0 0
  %5571 = vmatpush1.bf16.msra.mxu0 %v4031
  %5572 = vmatprep.subr.bf16.mxu0 0
  %5573 = vmatpush1.bf16.msra.mxu0 %v4032
  %5574 = vmatprep.subr.bf16.mxu0 0
  %5575 = vmatpush1.bf16.msra.mxu0 %v4033
  %5576 = vmatprep.subr.bf16.mxu0 0
  %5577 = vmatpush1.bf16.msra.mxu0 %v4034
  %5578 = vmatprep.subr.bf16.mxu0 0
  %5579 = vmatpush1.bf16.msra.mxu0 %v4035
  %5580 = vmatprep.subr.bf16.mxu0 0
  %5581 = vmatpush1.bf16.msra.mxu0 %v4036
  %5582 = vmatprep.subr.bf16.mxu0 0
  %5583 = vmatpush1.bf16.msra.mxu0 %v4037
  %5584 = vmatprep.subr.bf16.mxu0 0
  %5585 = vmatpush1.bf16.msra.mxu0 %v4038
  %5586 = vmatprep.subr.bf16.mxu0 0
  %5587 = vmatpush1.bf16.msra.mxu0 %v4039
  %5588 = vmatprep.subr.bf16.mxu0 0
  %5589 = vmatpush1.bf16.msra.mxu0 %v4040
  %5590 = vmatprep.subr.bf16.mxu0 0
  %5591 = vmatpush1.bf16.msra.mxu0 %v4041
  %5592 = vmatprep.subr.bf16.mxu0 0
  %5593 = vmatpush1.bf16.msra.mxu0 %v4042
  %5594 = vmatprep.subr.bf16.mxu0 0
  %5595 = vmatpush1.bf16.msra.mxu0 %v4043
  %5596 = vmatprep.mubr.bf16.mxu0 %v1357
  %5597 = vmatmul.mubr.bf16.gmra.mrb[0].mxu0 %v1356
  %v5598 = vpop.f32.mrb[0].mxu0
  %v5599 = vadd.f32 %v5559, %v5598
  %v5600 = vpop.f32.mrb[0].mxu0
  %v5601 = vpop.f32.mrb[0].mxu0
  %v5602 = vpop.f32.mrb[0].mxu0
  %5603 = vdwg.mxu0
  %5604 = vmatprep.subr.bf16.mxu0 0
  %5605 = vmatpush1.bf16.msra.mxu0 %v4044
  %5606 = vmatprep.subr.bf16.mxu0 0
  %5607 = vmatpush1.bf16.msra.mxu0 %v4045
  %5608 = vmatprep.subr.bf16.mxu0 0
  %5609 = vmatpush1.bf16.msra.mxu0 %v4046
  %5610 = vmatprep.subr.bf16.mxu0 0
  %5611 = vmatpush1.bf16.msra.mxu0 %v4047
  %5612 = vmatprep.subr.bf16.mxu0 0
  %5613 = vmatpush1.bf16.msra.mxu0 %v4048
  %5614 = vmatprep.subr.bf16.mxu0 0
  %5615 = vmatpush1.bf16.msra.mxu0 %v4049
  %5616 = vmatprep.subr.bf16.mxu0 0
  %5617 = vmatpush1.bf16.msra.mxu0 %v4050
  %5618 = vmatprep.subr.bf16.mxu0 0
  %5619 = vmatpush1.bf16.msra.mxu0 %v4051
  %5620 = vmatprep.subr.bf16.mxu0 0
  %5621 = vmatpush1.bf16.msra.mxu0 %v4052
  %5622 = vmatprep.subr.bf16.mxu0 0
  %5623 = vmatpush1.bf16.msra.mxu0 %v4053
  %5624 = vmatprep.subr.bf16.mxu0 0
  %5625 = vmatpush1.bf16.msra.mxu0 %v4054
  %5626 = vmatprep.subr.bf16.mxu0 0
  %5627 = vmatpush1.bf16.msra.mxu0 %v4055
  %5628 = vmatprep.subr.bf16.mxu0 0
  %5629 = vmatpush1.bf16.msra.mxu0 %v4056
  %5630 = vmatprep.subr.bf16.mxu0 0
  %5631 = vmatpush1.bf16.msra.mxu0 %v4057
  %5632 = vmatprep.subr.bf16.mxu0 0
  %5633 = vmatpush1.bf16.msra.mxu0 %v4058
  %5634 = vmatprep.subr.bf16.mxu0 0
  %5635 = vmatpush1.bf16.msra.mxu0 %v4059
  %5636 = vmatprep.mubr.bf16.mxu0 %v1359
  %5637 = vmatmul.mubr.bf16.gmra.mrb[0].mxu0 %v1358
  %v5638 = vpop.f32.mrb[0].mxu0
  %v5639 = vadd.f32 %v5599, %v5638
  %v5640 = vpop.f32.mrb[0].mxu0
  %v5641 = vpop.f32.mrb[0].mxu0
  %v5642 = vpop.f32.mrb[0].mxu0
  %5643 = vdwg.mxu0
  %5644 = vmatprep.subr.bf16.mxu0 0
  %5645 = vmatpush1.bf16.msra.mxu0 %v4060
  %5646 = vmatprep.subr.bf16.mxu0 0
  %5647 = vmatpush1.bf16.msra.mxu0 %v4061
  %5648 = vmatprep.subr.bf16.mxu0 0
  %5649 = vmatpush1.bf16.msra.mxu0 %v4062
  %5650 = vmatprep.subr.bf16.mxu0 0
  %5651 = vmatpush1.bf16.msra.mxu0 %v4063
  %5652 = vmatprep.subr.bf16.mxu0 0
  %5653 = vmatpush1.bf16.msra.mxu0 %v4064
  %5654 = vmatprep.subr.bf16.mxu0 0
  %5655 = vmatpush1.bf16.msra.mxu0 %v4065
  %5656 = vmatprep.subr.bf16.mxu0 0
  %5657 = vmatpush1.bf16.msra.mxu0 %v4066
  %5658 = vmatprep.subr.bf16.mxu0 0
  %5659 = vmatpush1.bf16.msra.mxu0 %v4067
  %5660 = vmatprep.subr.bf16.mxu0 0
  %5661 = vmatpush1.bf16.msra.mxu0 %v4068
  %5662 = vmatprep.subr.bf16.mxu0 0
  %5663 = vmatpush1.bf16.msra.mxu0 %v4069
  %5664 = vmatprep.subr.bf16.mxu0 0
  %5665 = vmatpush1.bf16.msra.mxu0 %v4070
  %5666 = vmatprep.subr.bf16.mxu0 0
  %5667 = vmatpush1.bf16.msra.mxu0 %v4071
  %5668 = vmatprep.subr.bf16.mxu0 0
  %5669 = vmatpush1.bf16.msra.mxu0 %v4072
  %5670 = vmatprep.subr.bf16.mxu0 0
  %5671 = vmatpush1.bf16.msra.mxu0 %v4073
  %5672 = vmatprep.subr.bf16.mxu0 0
  %5673 = vmatpush1.bf16.msra.mxu0 %v4074
  %5674 = vmatprep.subr.bf16.mxu0 0
  %5675 = vmatpush1.bf16.msra.mxu0 %v4075
  %5676 = vmatprep.mubr.bf16.mxu0 %v1361
  %5677 = vmatmul.mubr.bf16.gmra.mrb[0].mxu0 %v1360
  %v5678 = vpop.f32.mrb[0].mxu0
  %v5679 = vadd.f32 %v5639, %v5678
  %v5680 = vpop.f32.mrb[0].mxu0
  %v5681 = vpop.f32.mrb[0].mxu0
  %v5682 = vpop.f32.mrb[0].mxu0
  %5683 = vdwg.mxu0
  %5684 = vmatprep.subr.bf16.mxu0 0
  %5685 = vmatpush1.bf16.msra.mxu0 %v4076
  %5686 = vmatprep.subr.bf16.mxu0 0
  %5687 = vmatpush1.bf16.msra.mxu0 %v4077
  %5688 = vmatprep.subr.bf16.mxu0 0
  %5689 = vmatpush1.bf16.msra.mxu0 %v4078
  %5690 = vmatprep.subr.bf16.mxu0 0
  %5691 = vmatpush1.bf16.msra.mxu0 %v4079
  %5692 = vmatprep.subr.bf16.mxu0 0
  %5693 = vmatpush1.bf16.msra.mxu0 %v4080
  %5694 = vmatprep.subr.bf16.mxu0 0
  %5695 = vmatpush1.bf16.msra.mxu0 %v4081
  %5696 = vmatprep.subr.bf16.mxu0 0
  %5697 = vmatpush1.bf16.msra.mxu0 %v4082
  %5698 = vmatprep.subr.bf16.mxu0 0
  %5699 = vmatpush1.bf16.msra.mxu0 %v4083
  %5700 = vmatprep.subr.bf16.mxu0 0
  %5701 = vmatpush1.bf16.msra.mxu0 %v4084
  %5702 = vmatprep.subr.bf16.mxu0 0
  %5703 = vmatpush1.bf16.msra.mxu0 %v4085
  %5704 = vmatprep.subr.bf16.mxu0 0
  %5705 = vmatpush1.bf16.msra.mxu0 %v4086
  %5706 = vmatprep.subr.bf16.mxu0 0
  %5707 = vmatpush1.bf16.msra.mxu0 %v4087
  %5708 = vmatprep.subr.bf16.mxu0 0
  %5709 = vmatpush1.bf16.msra.mxu0 %v4088
  %5710 = vmatprep.subr.bf16.mxu0 0
  %5711 = vmatpush1.bf16.msra.mxu0 %v4089
  %5712 = vmatprep.subr.bf16.mxu0 0
  %5713 = vmatpush1.bf16.msra.mxu0 %v4090
  %5714 = vmatprep.subr.bf16.mxu0 0
  %5715 = vmatpush1.bf16.msra.mxu0 %v4091
  %5716 = vmatprep.mubr.bf16.mxu0 %v1363
  %5717 = vmatmul.mubr.bf16.gmra.mrb[0].mxu0 %v1362
  %v5718 = vpop.f32.mrb[0].mxu0
  %v5719 = vadd.f32 %v5679, %v5718
  %v5720 = vpop.f32.mrb[0].mxu0
  %v5721 = vpop.f32.mrb[0].mxu0
  %v5722 = vpop.f32.mrb[0].mxu0
  %5723 = vdwg.mxu0
  %5724 = vmatprep.subr.bf16.mxu0 0
  %5725 = vmatpush1.bf16.msra.mxu0 %v4092
  %5726 = vmatprep.subr.bf16.mxu0 0
  %5727 = vmatpush1.bf16.msra.mxu0 %v4093
  %5728 = vmatprep.subr.bf16.mxu0 0
  %5729 = vmatpush1.bf16.msra.mxu0 %v4094
  %5730 = vmatprep.subr.bf16.mxu0 0
  %5731 = vmatpush1.bf16.msra.mxu0 %v4095
  %5732 = vmatprep.subr.bf16.mxu0 0
  %5733 = vmatpush1.bf16.msra.mxu0 %v4096
  %5734 = vmatprep.subr.bf16.mxu0 0
  %5735 = vmatpush1.bf16.msra.mxu0 %v4097
  %5736 = vmatprep.subr.bf16.mxu0 0
  %5737 = vmatpush1.bf16.msra.mxu0 %v4098
  %5738 = vmatprep.subr.bf16.mxu0 0
  %5739 = vmatpush1.bf16.msra.mxu0 %v4099
  %5740 = vmatprep.subr.bf16.mxu0 0
  %5741 = vmatpush1.bf16.msra.mxu0 %v4100
  %5742 = vmatprep.subr.bf16.mxu0 0
  %5743 = vmatpush1.bf16.msra.mxu0 %v4101
  %5744 = vmatprep.subr.bf16.mxu0 0
  %5745 = vmatpush1.bf16.msra.mxu0 %v4102
  %5746 = vmatprep.subr.bf16.mxu0 0
  %5747 = vmatpush1.bf16.msra.mxu0 %v4103
  %5748 = vmatprep.subr.bf16.mxu0 0
  %5749 = vmatpush1.bf16.msra.mxu0 %v4104
  %5750 = vmatprep.subr.bf16.mxu0 0
  %5751 = vmatpush1.bf16.msra.mxu0 %v4105
  %5752 = vmatprep.subr.bf16.mxu0 0
  %5753 = vmatpush1.bf16.msra.mxu0 %v4106
  %5754 = vmatprep.subr.bf16.mxu0 0
  %5755 = vmatpush1.bf16.msra.mxu0 %v4107
  %5756 = vmatprep.mubr.bf16.mxu0 %v1365
  %5757 = vmatmul.mubr.bf16.gmra.mrb[0].mxu0 %v1364
  %v5758 = vpop.f32.mrb[0].mxu0
  %v5759 = vadd.f32 %v5719, %v5758
  %v5760 = vpop.f32.mrb[0].mxu0
  %v5761 = vpop.f32.mrb[0].mxu0
  %v5762 = vpop.f32.mrb[0].mxu0
  %5763 = vdwg.mxu0
  %5764 = vmatprep.subr.bf16.mxu0 0
  %5765 = vmatpush1.bf16.msra.mxu0 %v4108
  %5766 = vmatprep.subr.bf16.mxu0 0
  %5767 = vmatpush1.bf16.msra.mxu0 %v4109
  %5768 = vmatprep.subr.bf16.mxu0 0
  %5769 = vmatpush1.bf16.msra.mxu0 %v4110
  %5770 = vmatprep.subr.bf16.mxu0 0
  %5771 = vmatpush1.bf16.msra.mxu0 %v4111
  %5772 = vmatprep.subr.bf16.mxu0 0
  %5773 = vmatpush1.bf16.msra.mxu0 %v4112
  %5774 = vmatprep.subr.bf16.mxu0 0
  %5775 = vmatpush1.bf16.msra.mxu0 %v4113
  %5776 = vmatprep.subr.bf16.mxu0 0
  %5777 = vmatpush1.bf16.msra.mxu0 %v4114
  %5778 = vmatprep.subr.bf16.mxu0 0
  %5779 = vmatpush1.bf16.msra.mxu0 %v4115
  %5780 = vmatprep.subr.bf16.mxu0 0
  %5781 = vmatpush1.bf16.msra.mxu0 %v4116
  %5782 = vmatprep.subr.bf16.mxu0 0
  %5783 = vmatpush1.bf16.msra.mxu0 %v4117
  %5784 = vmatprep.subr.bf16.mxu0 0
  %5785 = vmatpush1.bf16.msra.mxu0 %v4118
  %5786 = vmatprep.subr.bf16.mxu0 0
  %5787 = vmatpush1.bf16.msra.mxu0 %v4119
  %5788 = vmatprep.subr.bf16.mxu0 0
  %5789 = vmatpush1.bf16.msra.mxu0 %v4120
  %5790 = vmatprep.subr.bf16.mxu0 0
  %5791 = vmatpush1.bf16.msra.mxu0 %v4121
  %5792 = vmatprep.subr.bf16.mxu0 0
  %5793 = vmatpush1.bf16.msra.mxu0 %v4122
  %5794 = vmatprep.subr.bf16.mxu0 0
  %5795 = vmatpush1.bf16.msra.mxu0 %v4123
  %5796 = vmatprep.mubr.bf16.mxu0 %v1367
  %5797 = vmatmul.mubr.bf16.gmra.mrb[0].mxu0 %v1366
  %v5798 = vpop.f32.mrb[0].mxu0
  %v5799 = vadd.f32 %v5759, %v5798
  %v5800 = vpop.f32.mrb[0].mxu0
  %v5801 = vpop.f32.mrb[0].mxu0
  %v5802 = vpop.f32.mrb[0].mxu0
  %5803 = vdwg.mxu0
  %5804 = vmatprep.subr.bf16.mxu0 0
  %5805 = vmatpush1.bf16.msra.mxu0 %v4124
  %5806 = vmatprep.subr.bf16.mxu0 0
  %5807 = vmatpush1.bf16.msra.mxu0 %v4125
  %5808 = vmatprep.subr.bf16.mxu0 0
  %5809 = vmatpush1.bf16.msra.mxu0 %v4126
  %5810 = vmatprep.subr.bf16.mxu0 0
  %5811 = vmatpush1.bf16.msra.mxu0 %v4127
  %5812 = vmatprep.subr.bf16.mxu0 0
  %5813 = vmatpush1.bf16.msra.mxu0 %v4128
  %5814 = vmatprep.subr.bf16.mxu0 0
  %5815 = vmatpush1.bf16.msra.mxu0 %v4129
  %5816 = vmatprep.subr.bf16.mxu0 0
  %5817 = vmatpush1.bf16.msra.mxu0 %v4130
  %5818 = vmatprep.subr.bf16.mxu0 0
  %5819 = vmatpush1.bf16.msra.mxu0 %v4131
  %5820 = vmatprep.subr.bf16.mxu0 0
  %5821 = vmatpush1.bf16.msra.mxu0 %v4132
  %5822 = vmatprep.subr.bf16.mxu0 0
  %5823 = vmatpush1.bf16.msra.mxu0 %v4133
  %5824 = vmatprep.subr.bf16.mxu0 0
  %5825 = vmatpush1.bf16.msra.mxu0 %v4134
  %5826 = vmatprep.subr.bf16.mxu0 0
  %5827 = vmatpush1.bf16.msra.mxu0 %v4135
  %5828 = vmatprep.subr.bf16.mxu0 0
  %5829 = vmatpush1.bf16.msra.mxu0 %v4136
  %5830 = vmatprep.subr.bf16.mxu0 0
  %5831 = vmatpush1.bf16.msra.mxu0 %v4137
  %5832 = vmatprep.subr.bf16.mxu0 0
  %5833 = vmatpush1.bf16.msra.mxu0 %v4138
  %5834 = vmatprep.subr.bf16.mxu0 0
  %5835 = vmatpush1.bf16.msra.mxu0 %v4139
  %5836 = vmatprep.mubr.bf16.mxu0 %v1369
  %5837 = vmatmul.mubr.bf16.gmra.mrb[0].mxu0 %v1368
  %v5838 = vpop.f32.mrb[0].mxu0
  %v5839 = vadd.f32 %v5799, %v5838
  %v5840 = vpop.f32.mrb[0].mxu0
  %v5841 = vpop.f32.mrb[0].mxu0
  %v5842 = vpop.f32.mrb[0].mxu0
  %5843 = vdwg.mxu0
  %5844 = vmatprep.subr.bf16.mxu0 0
  %5845 = vmatpush1.bf16.msra.mxu0 %v4140
  %5846 = vmatprep.subr.bf16.mxu0 0
  %5847 = vmatpush1.bf16.msra.mxu0 %v4141
  %5848 = vmatprep.subr.bf16.mxu0 0
  %5849 = vmatpush1.bf16.msra.mxu0 %v4142
  %5850 = vmatprep.subr.bf16.mxu0 0
  %5851 = vmatpush1.bf16.msra.mxu0 %v4143
  %5852 = vmatprep.subr.bf16.mxu0 0
  %5853 = vmatpush1.bf16.msra.mxu0 %v4144
  %5854 = vmatprep.subr.bf16.mxu0 0
  %5855 = vmatpush1.bf16.msra.mxu0 %v4145
  %5856 = vmatprep.subr.bf16.mxu0 0
  %5857 = vmatpush1.bf16.msra.mxu0 %v4146
  %5858 = vmatprep.subr.bf16.mxu0 0
  %5859 = vmatpush1.bf16.msra.mxu0 %v4147
  %5860 = vmatprep.subr.bf16.mxu0 0
  %5861 = vmatpush1.bf16.msra.mxu0 %v4148
  %5862 = vmatprep.subr.bf16.mxu0 0
  %5863 = vmatpush1.bf16.msra.mxu0 %v4149
  %5864 = vmatprep.subr.bf16.mxu0 0
  %5865 = vmatpush1.bf16.msra.mxu0 %v4150
  %5866 = vmatprep.subr.bf16.mxu0 0
  %5867 = vmatpush1.bf16.msra.mxu0 %v4151
  %5868 = vmatprep.subr.bf16.mxu0 0
  %5869 = vmatpush1.bf16.msra.mxu0 %v4152
  %5870 = vmatprep.subr.bf16.mxu0 0
  %5871 = vmatpush1.bf16.msra.mxu0 %v4153
  %5872 = vmatprep.subr.bf16.mxu0 0
  %5873 = vmatpush1.bf16.msra.mxu0 %v4154
  %5874 = vmatprep.subr.bf16.mxu0 0
  %5875 = vmatpush1.bf16.msra.mxu0 %v4155
  %5876 = vmatprep.mubr.bf16.mxu0 %v1371
  %5877 = vmatmul.mubr.bf16.gmra.mrb[0].mxu0 %v1370
  %v5878 = vpop.f32.mrb[0].mxu0
  %v5879 = vadd.f32 %v5839, %v5878
  %v5880 = vpop.f32.mrb[0].mxu0
  %v5881 = vpop.f32.mrb[0].mxu0
  %v5882 = vpop.f32.mrb[0].mxu0
  %5883 = vdwg.mxu0
  %5884 = vmatprep.subr.bf16.mxu0 0
  %5885 = vmatpush1.bf16.msra.mxu0 %v4156
  %5886 = vmatprep.subr.bf16.mxu0 0
  %5887 = vmatpush1.bf16.msra.mxu0 %v4157
  %5888 = vmatprep.subr.bf16.mxu0 0
  %5889 = vmatpush1.bf16.msra.mxu0 %v4158
  %5890 = vmatprep.subr.bf16.mxu0 0
  %5891 = vmatpush1.bf16.msra.mxu0 %v4159
  %5892 = vmatprep.subr.bf16.mxu0 0
  %5893 = vmatpush1.bf16.msra.mxu0 %v4160
  %5894 = vmatprep.subr.bf16.mxu0 0
  %5895 = vmatpush1.bf16.msra.mxu0 %v4161
  %5896 = vmatprep.subr.bf16.mxu0 0
  %5897 = vmatpush1.bf16.msra.mxu0 %v4162
  %5898 = vmatprep.subr.bf16.mxu0 0
  %5899 = vmatpush1.bf16.msra.mxu0 %v4163
  %5900 = vmatprep.subr.bf16.mxu0 0
  %5901 = vmatpush1.bf16.msra.mxu0 %v4164
  %5902 = vmatprep.subr.bf16.mxu0 0
  %5903 = vmatpush1.bf16.msra.mxu0 %v4165
  %5904 = vmatprep.subr.bf16.mxu0 0
  %5905 = vmatpush1.bf16.msra.mxu0 %v4166
  %5906 = vmatprep.subr.bf16.mxu0 0
  %5907 = vmatpush1.bf16.msra.mxu0 %v4167
  %5908 = vmatprep.subr.bf16.mxu0 0
  %5909 = vmatpush1.bf16.msra.mxu0 %v4168
  %5910 = vmatprep.subr.bf16.mxu0 0
  %5911 = vmatpush1.bf16.msra.mxu0 %v4169
  %5912 = vmatprep.subr.bf16.mxu0 0
  %5913 = vmatpush1.bf16.msra.mxu0 %v4170
  %5914 = vmatprep.subr.bf16.mxu0 0
  %5915 = vmatpush1.bf16.msra.mxu0 %v4171
  %5916 = vmatprep.mubr.bf16.mxu0 %v1373
  %5917 = vmatmul.mubr.bf16.gmra.mrb[0].mxu0 %v1372
  %v5918 = vpop.f32.mrb[0].mxu0
  %v5919 = vadd.f32 %v5879, %v5918
  %v5920 = vpop.f32.mrb[0].mxu0
  %v5921 = vpop.f32.mrb[0].mxu0
  %v5922 = vpop.f32.mrb[0].mxu0
  %5923 = vdwg.mxu0
  %5924 = vmatprep.subr.bf16.mxu0 0
  %5925 = vmatpush1.bf16.msra.mxu0 %v4172
  %5926 = vmatprep.subr.bf16.mxu0 0
  %5927 = vmatpush1.bf16.msra.mxu0 %v4173
  %5928 = vmatprep.subr.bf16.mxu0 0
  %5929 = vmatpush1.bf16.msra.mxu0 %v4174
  %5930 = vmatprep.subr.bf16.mxu0 0
  %5931 = vmatpush1.bf16.msra.mxu0 %v4175
  %5932 = vmatprep.subr.bf16.mxu0 0
  %5933 = vmatpush1.bf16.msra.mxu0 %v4176
  %5934 = vmatprep.subr.bf16.mxu0 0
  %5935 = vmatpush1.bf16.msra.mxu0 %v4177
  %5936 = vmatprep.subr.bf16.mxu0 0
  %5937 = vmatpush1.bf16.msra.mxu0 %v4178
  %5938 = vmatprep.subr.bf16.mxu0 0
  %5939 = vmatpush1.bf16.msra.mxu0 %v4179
  %5940 = vmatprep.subr.bf16.mxu0 0
  %5941 = vmatpush1.bf16.msra.mxu0 %v4180
  %5942 = vmatprep.subr.bf16.mxu0 0
  %5943 = vmatpush1.bf16.msra.mxu0 %v4181
  %5944 = vmatprep.subr.bf16.mxu0 0
  %5945 = vmatpush1.bf16.msra.mxu0 %v4182
  %5946 = vmatprep.subr.bf16.mxu0 0
  %5947 = vmatpush1.bf16.msra.mxu0 %v4183
  %5948 = vmatprep.subr.bf16.mxu0 0
  %5949 = vmatpush1.bf16.msra.mxu0 %v4184
  %5950 = vmatprep.subr.bf16.mxu0 0
  %5951 = vmatpush1.bf16.msra.mxu0 %v4185
  %5952 = vmatprep.subr.bf16.mxu0 0
  %5953 = vmatpush1.bf16.msra.mxu0 %v4186
  %5954 = vmatprep.subr.bf16.mxu0 0
  %5955 = vmatpush1.bf16.msra.mxu0 %v4187
  %5956 = vmatprep.mubr.bf16.mxu0 %v1375
  %5957 = vmatmul.mubr.bf16.gmra.mrb[0].mxu0 %v1374
  %v5958 = vpop.f32.mrb[0].mxu0
  %v5959 = vadd.f32 %v5919, %v5958
  %v5960 = vpop.f32.mrb[0].mxu0
  %v5961 = vpop.f32.mrb[0].mxu0
  %v5962 = vpop.f32.mrb[0].mxu0
  %5963 = vdwg.mxu0
  %5964 = vmatprep.subr.bf16.mxu0 0
  %5965 = vmatpush1.bf16.msra.mxu0 %v4188
  %5966 = vmatprep.subr.bf16.mxu0 0
  %5967 = vmatpush1.bf16.msra.mxu0 %v4189
  %5968 = vmatprep.subr.bf16.mxu0 0
  %5969 = vmatpush1.bf16.msra.mxu0 %v4190
  %5970 = vmatprep.subr.bf16.mxu0 0
  %5971 = vmatpush1.bf16.msra.mxu0 %v4191
  %5972 = vmatprep.subr.bf16.mxu0 0
  %5973 = vmatpush1.bf16.msra.mxu0 %v4192
  %5974 = vmatprep.subr.bf16.mxu0 0
  %5975 = vmatpush1.bf16.msra.mxu0 %v4193
  %5976 = vmatprep.subr.bf16.mxu0 0
  %5977 = vmatpush1.bf16.msra.mxu0 %v4194
  %5978 = vmatprep.subr.bf16.mxu0 0
  %5979 = vmatpush1.bf16.msra.mxu0 %v4195
  %5980 = vmatprep.subr.bf16.mxu0 0
  %5981 = vmatpush1.bf16.msra.mxu0 %v4196
  %5982 = vmatprep.subr.bf16.mxu0 0
  %5983 = vmatpush1.bf16.msra.mxu0 %v4197
  %5984 = vmatprep.subr.bf16.mxu0 0
  %5985 = vmatpush1.bf16.msra.mxu0 %v4198
  %5986 = vmatprep.subr.bf16.mxu0 0
  %5987 = vmatpush1.bf16.msra.mxu0 %v4199
  %5988 = vmatprep.subr.bf16.mxu0 0
  %5989 = vmatpush1.bf16.msra.mxu0 %v4200
  %5990 = vmatprep.subr.bf16.mxu0 0
  %5991 = vmatpush1.bf16.msra.mxu0 %v4201
  %5992 = vmatprep.subr.bf16.mxu0 0
  %5993 = vmatpush1.bf16.msra.mxu0 %v4202
  %5994 = vmatprep.subr.bf16.mxu0 0
  %5995 = vmatpush1.bf16.msra.mxu0 %v4203
  %5996 = vmatprep.mubr.bf16.mxu0 %v1377
  %5997 = vmatmul.mubr.bf16.gmra.mrb[0].mxu0 %v1376
  %v5998 = vpop.f32.mrb[0].mxu0
  %v5999 = vadd.f32 %v5959, %v5998
  %v6000 = vpop.f32.mrb[0].mxu0
  %v6001 = vpop.f32.mrb[0].mxu0
  %v6002 = vpop.f32.mrb[0].mxu0
  %6003 = vdwg.mxu0
  %6004 = vmatprep.subr.bf16.mxu0 0
  %6005 = vmatpush1.bf16.msra.mxu0 %v4204
  %6006 = vmatprep.subr.bf16.mxu0 0
  %6007 = vmatpush1.bf16.msra.mxu0 %v4205
  %6008 = vmatprep.subr.bf16.mxu0 0
  %6009 = vmatpush1.bf16.msra.mxu0 %v4206
  %6010 = vmatprep.subr.bf16.mxu0 0
  %6011 = vmatpush1.bf16.msra.mxu0 %v4207
  %6012 = vmatprep.subr.bf16.mxu0 0
  %6013 = vmatpush1.bf16.msra.mxu0 %v4208
  %6014 = vmatprep.subr.bf16.mxu0 0
  %6015 = vmatpush1.bf16.msra.mxu0 %v4209
  %6016 = vmatprep.subr.bf16.mxu0 0
  %6017 = vmatpush1.bf16.msra.mxu0 %v4210
  %6018 = vmatprep.subr.bf16.mxu0 0
  %6019 = vmatpush1.bf16.msra.mxu0 %v4211
  %6020 = vmatprep.subr.bf16.mxu0 0
  %6021 = vmatpush1.bf16.msra.mxu0 %v4212
  %6022 = vmatprep.subr.bf16.mxu0 0
  %6023 = vmatpush1.bf16.msra.mxu0 %v4213
  %6024 = vmatprep.subr.bf16.mxu0 0
  %6025 = vmatpush1.bf16.msra.mxu0 %v4214
  %6026 = vmatprep.subr.bf16.mxu0 0
  %6027 = vmatpush1.bf16.msra.mxu0 %v4215
  %6028 = vmatprep.subr.bf16.mxu0 0
  %6029 = vmatpush1.bf16.msra.mxu0 %v4216
  %6030 = vmatprep.subr.bf16.mxu0 0
  %6031 = vmatpush1.bf16.msra.mxu0 %v4217
  %6032 = vmatprep.subr.bf16.mxu0 0
  %6033 = vmatpush1.bf16.msra.mxu0 %v4218
  %6034 = vmatprep.subr.bf16.mxu0 0
  %6035 = vmatpush1.bf16.msra.mxu0 %v4219
  %6036 = vmatprep.mubr.bf16.mxu0 %v1379
  %6037 = vmatmul.mubr.bf16.gmra.mrb[0].mxu0 %v1378
  %v6038 = vpop.f32.mrb[0].mxu0
  %v6039 = vadd.f32 %v5999, %v6038
  %v6040 = vpop.f32.mrb[0].mxu0
  %v6041 = vpop.f32.mrb[0].mxu0
  %v6042 = vpop.f32.mrb[0].mxu0
  %6043 = vdwg.mxu0
  %6044 = vmatprep.subr.bf16.mxu0 0
  %6045 = vmatpush1.bf16.msra.mxu0 %v4220
  %6046 = vmatprep.subr.bf16.mxu0 0
  %6047 = vmatpush1.bf16.msra.mxu0 %v4221
  %6048 = vmatprep.subr.bf16.mxu0 0
  %6049 = vmatpush1.bf16.msra.mxu0 %v4222
  %6050 = vmatprep.subr.bf16.mxu0 0
  %6051 = vmatpush1.bf16.msra.mxu0 %v4223
  %6052 = vmatprep.subr.bf16.mxu0 0
  %6053 = vmatpush1.bf16.msra.mxu0 %v4224
  %6054 = vmatprep.subr.bf16.mxu0 0
  %6055 = vmatpush1.bf16.msra.mxu0 %v4225
  %6056 = vmatprep.subr.bf16.mxu0 0
  %6057 = vmatpush1.bf16.msra.mxu0 %v4226
  %6058 = vmatprep.subr.bf16.mxu0 0
  %6059 = vmatpush1.bf16.msra.mxu0 %v4227
  %6060 = vmatprep.subr.bf16.mxu0 0
  %6061 = vmatpush1.bf16.msra.mxu0 %v4228
  %6062 = vmatprep.subr.bf16.mxu0 0
  %6063 = vmatpush1.bf16.msra.mxu0 %v4229
  %6064 = vmatprep.subr.bf16.mxu0 0
  %6065 = vmatpush1.bf16.msra.mxu0 %v4230
  %6066 = vmatprep.subr.bf16.mxu0 0
  %6067 = vmatpush1.bf16.msra.mxu0 %v4231
  %6068 = vmatprep.subr.bf16.mxu0 0
  %6069 = vmatpush1.bf16.msra.mxu0 %v4232
  %6070 = vmatprep.subr.bf16.mxu0 0
  %6071 = vmatpush1.bf16.msra.mxu0 %v4233
  %6072 = vmatprep.subr.bf16.mxu0 0
  %6073 = vmatpush1.bf16.msra.mxu0 %v4234
  %6074 = vmatprep.subr.bf16.mxu0 0
  %6075 = vmatpush1.bf16.msra.mxu0 %v4235
  %6076 = vmatprep.mubr.bf16.mxu0 %v1381
  %6077 = vmatmul.mubr.bf16.gmra.mrb[0].mxu0 %v1380
  %v6078 = vpop.f32.mrb[0].mxu0
  %v6079 = vadd.f32 %v6039, %v6078
  %v6080 = vpop.f32.mrb[0].mxu0
  %v6081 = vpop.f32.mrb[0].mxu0
  %v6082 = vpop.f32.mrb[0].mxu0
  %6083 = vdwg.mxu0
  %6084 = vmatprep.subr.bf16.mxu0 0
  %6085 = vmatpush1.bf16.msra.mxu0 %v4236
  %6086 = vmatprep.subr.bf16.mxu0 0
  %6087 = vmatpush1.bf16.msra.mxu0 %v4237
  %6088 = vmatprep.subr.bf16.mxu0 0
  %6089 = vmatpush1.bf16.msra.mxu0 %v4238
  %6090 = vmatprep.subr.bf16.mxu0 0
  %6091 = vmatpush1.bf16.msra.mxu0 %v4239
  %6092 = vmatprep.subr.bf16.mxu0 0
  %6093 = vmatpush1.bf16.msra.mxu0 %v4240
  %6094 = vmatprep.subr.bf16.mxu0 0
  %6095 = vmatpush1.bf16.msra.mxu0 %v4241
  %6096 = vmatprep.subr.bf16.mxu0 0
  %6097 = vmatpush1.bf16.msra.mxu0 %v4242
  %6098 = vmatprep.subr.bf16.mxu0 0
  %6099 = vmatpush1.bf16.msra.mxu0 %v4243
  %6100 = vmatprep.subr.bf16.mxu0 0
  %6101 = vmatpush1.bf16.msra.mxu0 %v4244
  %6102 = vmatprep.subr.bf16.mxu0 0
  %6103 = vmatpush1.bf16.msra.mxu0 %v4245
  %6104 = vmatprep.subr.bf16.mxu0 0
  %6105 = vmatpush1.bf16.msra.mxu0 %v4246
  %6106 = vmatprep.subr.bf16.mxu0 0
  %6107 = vmatpush1.bf16.msra.mxu0 %v4247
  %6108 = vmatprep.subr.bf16.mxu0 0
  %6109 = vmatpush1.bf16.msra.mxu0 %v4248
  %6110 = vmatprep.subr.bf16.mxu0 0
  %6111 = vmatpush1.bf16.msra.mxu0 %v4249
  %6112 = vmatprep.subr.bf16.mxu0 0
  %6113 = vmatpush1.bf16.msra.mxu0 %v4250
  %6114 = vmatprep.subr.bf16.mxu0 0
  %6115 = vmatpush1.bf16.msra.mxu0 %v4251
  %6116 = vmatprep.mubr.bf16.mxu0 %v1383
  %6117 = vmatmul.mubr.bf16.gmra.mrb[0].mxu0 %v1382
  %v6118 = vpop.f32.mrb[0].mxu0
  %v6119 = vadd.f32 %v6079, %v6118
  %v6120 = vpop.f32.mrb[0].mxu0
  %v6121 = vpop.f32.mrb[0].mxu0
  %v6122 = vpop.f32.mrb[0].mxu0
  %6123 = vdwg.mxu0
  %6124 = vmatprep.subr.bf16.mxu0 0
  %6125 = vmatpush1.bf16.msra.mxu0 %v4252
  %6126 = vmatprep.subr.bf16.mxu0 0
  %6127 = vmatpush1.bf16.msra.mxu0 %v4253
  %6128 = vmatprep.subr.bf16.mxu0 0
  %6129 = vmatpush1.bf16.msra.mxu0 %v4254
  %6130 = vmatprep.subr.bf16.mxu0 0
  %6131 = vmatpush1.bf16.msra.mxu0 %v4255
  %6132 = vmatprep.subr.bf16.mxu0 0
  %6133 = vmatpush1.bf16.msra.mxu0 %v4256
  %6134 = vmatprep.subr.bf16.mxu0 0
  %6135 = vmatpush1.bf16.msra.mxu0 %v4257
  %6136 = vmatprep.subr.bf16.mxu0 0
  %6137 = vmatpush1.bf16.msra.mxu0 %v4258
  %6138 = vmatprep.subr.bf16.mxu0 0
  %6139 = vmatpush1.bf16.msra.mxu0 %v4259
  %6140 = vmatprep.subr.bf16.mxu0 0
  %6141 = vmatpush1.bf16.msra.mxu0 %v4260
  %6142 = vmatprep.subr.bf16.mxu0 0
  %6143 = vmatpush1.bf16.msra.mxu0 %v4261
  %6144 = vmatprep.subr.bf16.mxu0 0
  %6145 = vmatpush1.bf16.msra.mxu0 %v4262
  %6146 = vmatprep.subr.bf16.mxu0 0
  %6147 = vmatpush1.bf16.msra.mxu0 %v4263
  %6148 = vmatprep.subr.bf16.mxu0 0
  %6149 = vmatpush1.bf16.msra.mxu0 %v4264
  %6150 = vmatprep.subr.bf16.mxu0 0
  %6151 = vmatpush1.bf16.msra.mxu0 %v4265
  %6152 = vmatprep.subr.bf16.mxu0 0
  %6153 = vmatpush1.bf16.msra.mxu0 %v4266
  %6154 = vmatprep.subr.bf16.mxu0 0
  %6155 = vmatpush1.bf16.msra.mxu0 %v4267
  %6156 = vmatprep.mubr.bf16.mxu0 %v1385
  %6157 = vmatmul.mubr.bf16.gmra.mrb[0].mxu0 %v1384
  %v6158 = vpop.f32.mrb[0].mxu0
  %v6159 = vadd.f32 %v6119, %v6158
  %v6160 = vpop.f32.mrb[0].mxu0
  %v6161 = vpop.f32.mrb[0].mxu0
  %v6162 = vpop.f32.mrb[0].mxu0
  %6163 = vdwg.mxu0
  %6164 = vmatprep.subr.bf16.mxu0 0
  %6165 = vmatpush1.bf16.msra.mxu0 %v4268
  %6166 = vmatprep.subr.bf16.mxu0 0
  %6167 = vmatpush1.bf16.msra.mxu0 %v4269
  %6168 = vmatprep.subr.bf16.mxu0 0
  %6169 = vmatpush1.bf16.msra.mxu0 %v4270
  %6170 = vmatprep.subr.bf16.mxu0 0
  %6171 = vmatpush1.bf16.msra.mxu0 %v4271
  %6172 = vmatprep.subr.bf16.mxu0 0
  %6173 = vmatpush1.bf16.msra.mxu0 %v4272
  %6174 = vmatprep.subr.bf16.mxu0 0
  %6175 = vmatpush1.bf16.msra.mxu0 %v4273
  %6176 = vmatprep.subr.bf16.mxu0 0
  %6177 = vmatpush1.bf16.msra.mxu0 %v4274
  %6178 = vmatprep.subr.bf16.mxu0 0
  %6179 = vmatpush1.bf16.msra.mxu0 %v4275
  %6180 = vmatprep.subr.bf16.mxu0 0
  %6181 = vmatpush1.bf16.msra.mxu0 %v4276
  %6182 = vmatprep.subr.bf16.mxu0 0
  %6183 = vmatpush1.bf16.msra.mxu0 %v4277
  %6184 = vmatprep.subr.bf16.mxu0 0
  %6185 = vmatpush1.bf16.msra.mxu0 %v4278
  %6186 = vmatprep.subr.bf16.mxu0 0
  %6187 = vmatpush1.bf16.msra.mxu0 %v4279
  %6188 = vmatprep.subr.bf16.mxu0 0
  %6189 = vmatpush1.bf16.msra.mxu0 %v4280
  %6190 = vmatprep.subr.bf16.mxu0 0
  %6191 = vmatpush1.bf16.msra.mxu0 %v4281
  %6192 = vmatprep.subr.bf16.mxu0 0
  %6193 = vmatpush1.bf16.msra.mxu0 %v4282
  %6194 = vmatprep.subr.bf16.mxu0 0
  %6195 = vmatpush1.bf16.msra.mxu0 %v4283
  %6196 = vmatprep.mubr.bf16.mxu0 %v1387
  %6197 = vmatmul.mubr.bf16.gmra.mrb[0].mxu0 %v1386
  %v6198 = vpop.f32.mrb[0].mxu0
  %v6199 = vadd.f32 %v6159, %v6198
  %v6200 = vpop.f32.mrb[0].mxu0
  %v6201 = vpop.f32.mrb[0].mxu0
  %v6202 = vpop.f32.mrb[0].mxu0
  %6203 = vdwg.mxu0
  %6204 = vmatprep.subr.bf16.mxu0 0
  %6205 = vmatpush1.bf16.msra.mxu0 %v4284
  %6206 = vmatprep.subr.bf16.mxu0 0
  %6207 = vmatpush1.bf16.msra.mxu0 %v4285
  %6208 = vmatprep.subr.bf16.mxu0 0
  %6209 = vmatpush1.bf16.msra.mxu0 %v4286
  %6210 = vmatprep.subr.bf16.mxu0 0
  %6211 = vmatpush1.bf16.msra.mxu0 %v4287
  %6212 = vmatprep.subr.bf16.mxu0 0
  %6213 = vmatpush1.bf16.msra.mxu0 %v4288
  %6214 = vmatprep.subr.bf16.mxu0 0
  %6215 = vmatpush1.bf16.msra.mxu0 %v4289
  %6216 = vmatprep.subr.bf16.mxu0 0
  %6217 = vmatpush1.bf16.msra.mxu0 %v4290
  %6218 = vmatprep.subr.bf16.mxu0 0
  %6219 = vmatpush1.bf16.msra.mxu0 %v4291
  %6220 = vmatprep.subr.bf16.mxu0 0
  %6221 = vmatpush1.bf16.msra.mxu0 %v4292
  %6222 = vmatprep.subr.bf16.mxu0 0
  %6223 = vmatpush1.bf16.msra.mxu0 %v4293
  %6224 = vmatprep.subr.bf16.mxu0 0
  %6225 = vmatpush1.bf16.msra.mxu0 %v4294
  %6226 = vmatprep.subr.bf16.mxu0 0
  %6227 = vmatpush1.bf16.msra.mxu0 %v4295
  %6228 = vmatprep.subr.bf16.mxu0 0
  %6229 = vmatpush1.bf16.msra.mxu0 %v4296
  %6230 = vmatprep.subr.bf16.mxu0 0
  %6231 = vmatpush1.bf16.msra.mxu0 %v4297
  %6232 = vmatprep.subr.bf16.mxu0 0
  %6233 = vmatpush1.bf16.msra.mxu0 %v4298
  %6234 = vmatprep.subr.bf16.mxu0 0
  %6235 = vmatpush1.bf16.msra.mxu0 %v4299
  %6236 = vmatprep.mubr.bf16.mxu0 %v1389
  %6237 = vmatmul.mubr.bf16.gmra.mrb[0].mxu0 %v1388
  %v6238 = vpop.f32.mrb[0].mxu0
  %v6239 = vadd.f32 %v6199, %v6238
  %v6240 = vpop.f32.mrb[0].mxu0
  %v6241 = vpop.f32.mrb[0].mxu0
  %v6242 = vpop.f32.mrb[0].mxu0
  %6243 = vdwg.mxu0
  %6244 = vmatprep.subr.bf16.mxu0 0
  %6245 = vmatpush1.bf16.msra.mxu0 %v4300
  %6246 = vmatprep.subr.bf16.mxu0 0
  %6247 = vmatpush1.bf16.msra.mxu0 %v4301
  %6248 = vmatprep.subr.bf16.mxu0 0
  %6249 = vmatpush1.bf16.msra.mxu0 %v4302
  %6250 = vmatprep.subr.bf16.mxu0 0
  %6251 = vmatpush1.bf16.msra.mxu0 %v4303
  %6252 = vmatprep.subr.bf16.mxu0 0
  %6253 = vmatpush1.bf16.msra.mxu0 %v4304
  %6254 = vmatprep.subr.bf16.mxu0 0
  %6255 = vmatpush1.bf16.msra.mxu0 %v4305
  %6256 = vmatprep.subr.bf16.mxu0 0
  %6257 = vmatpush1.bf16.msra.mxu0 %v4306
  %6258 = vmatprep.subr.bf16.mxu0 0
  %6259 = vmatpush1.bf16.msra.mxu0 %v4307
  %6260 = vmatprep.subr.bf16.mxu0 0
  %6261 = vmatpush1.bf16.msra.mxu0 %v4308
  %6262 = vmatprep.subr.bf16.mxu0 0
  %6263 = vmatpush1.bf16.msra.mxu0 %v4309
  %6264 = vmatprep.subr.bf16.mxu0 0
  %6265 = vmatpush1.bf16.msra.mxu0 %v4310
  %6266 = vmatprep.subr.bf16.mxu0 0
  %6267 = vmatpush1.bf16.msra.mxu0 %v4311
  %6268 = vmatprep.subr.bf16.mxu0 0
  %6269 = vmatpush1.bf16.msra.mxu0 %v4312
  %6270 = vmatprep.subr.bf16.mxu0 0
  %6271 = vmatpush1.bf16.msra.mxu0 %v4313
  %6272 = vmatprep.subr.bf16.mxu0 0
  %6273 = vmatpush1.bf16.msra.mxu0 %v4314
  %6274 = vmatprep.subr.bf16.mxu0 0
  %6275 = vmatpush1.bf16.msra.mxu0 %v4315
  %6276 = vmatprep.mubr.bf16.mxu0 %v1391
  %6277 = vmatmul.mubr.bf16.gmra.mrb[0].mxu0 %v1390
  %v6278 = vpop.f32.mrb[0].mxu0
  %v6279 = vadd.f32 %v6239, %v6278
  %v6280 = vpop.f32.mrb[0].mxu0
  %v6281 = vpop.f32.mrb[0].mxu0
  %v6282 = vpop.f32.mrb[0].mxu0
  %6283 = vdwg.mxu0
  %6284 = vmatprep.subr.bf16.mxu0 0
  %6285 = vmatpush1.bf16.msra.mxu0 %v4316
  %6286 = vmatprep.subr.bf16.mxu0 0
  %6287 = vmatpush1.bf16.msra.mxu0 %v4317
  %6288 = vmatprep.subr.bf16.mxu0 0
  %6289 = vmatpush1.bf16.msra.mxu0 %v4318
  %6290 = vmatprep.subr.bf16.mxu0 0
  %6291 = vmatpush1.bf16.msra.mxu0 %v4319
  %6292 = vmatprep.subr.bf16.mxu0 0
  %6293 = vmatpush1.bf16.msra.mxu0 %v4320
  %6294 = vmatprep.subr.bf16.mxu0 0
  %6295 = vmatpush1.bf16.msra.mxu0 %v4321
  %6296 = vmatprep.subr.bf16.mxu0 0
  %6297 = vmatpush1.bf16.msra.mxu0 %v4322
  %6298 = vmatprep.subr.bf16.mxu0 0
  %6299 = vmatpush1.bf16.msra.mxu0 %v4323
  %6300 = vmatprep.subr.bf16.mxu0 0
  %6301 = vmatpush1.bf16.msra.mxu0 %v4324
  %6302 = vmatprep.subr.bf16.mxu0 0
  %6303 = vmatpush1.bf16.msra.mxu0 %v4325
  %6304 = vmatprep.subr.bf16.mxu0 0
  %6305 = vmatpush1.bf16.msra.mxu0 %v4326
  %6306 = vmatprep.subr.bf16.mxu0 0
  %6307 = vmatpush1.bf16.msra.mxu0 %v4327
  %6308 = vmatprep.subr.bf16.mxu0 0
  %6309 = vmatpush1.bf16.msra.mxu0 %v4328
  %6310 = vmatprep.subr.bf16.mxu0 0
  %6311 = vmatpush1.bf16.msra.mxu0 %v4329
  %6312 = vmatprep.subr.bf16.mxu0 0
  %6313 = vmatpush1.bf16.msra.mxu0 %v4330
  %6314 = vmatprep.subr.bf16.mxu0 0
  %6315 = vmatpush1.bf16.msra.mxu0 %v4331
  %6316 = vmatprep.mubr.bf16.mxu0 %v1393
  %6317 = vmatmul.mubr.bf16.gmra.mrb[0].mxu0 %v1392
  %v6318 = vpop.f32.mrb[0].mxu0
  %v6319 = vadd.f32 %v6279, %v6318
  %v6320 = vpop.f32.mrb[0].mxu0
  %v6321 = vpop.f32.mrb[0].mxu0
  %v6322 = vpop.f32.mrb[0].mxu0
  %6323 = vdwg.mxu0
  %6324 = vmatprep.subr.bf16.mxu0 0
  %6325 = vmatpush1.bf16.msra.mxu0 %v4332
  %6326 = vmatprep.subr.bf16.mxu0 0
  %6327 = vmatpush1.bf16.msra.mxu0 %v4333
  %6328 = vmatprep.subr.bf16.mxu0 0
  %6329 = vmatpush1.bf16.msra.mxu0 %v4334
  %6330 = vmatprep.subr.bf16.mxu0 0
  %6331 = vmatpush1.bf16.msra.mxu0 %v4335
  %6332 = vmatprep.subr.bf16.mxu0 0
  %6333 = vmatpush1.bf16.msra.mxu0 %v4336
  %6334 = vmatprep.subr.bf16.mxu0 0
  %6335 = vmatpush1.bf16.msra.mxu0 %v4337
  %6336 = vmatprep.subr.bf16.mxu0 0
  %6337 = vmatpush1.bf16.msra.mxu0 %v4338
  %6338 = vmatprep.subr.bf16.mxu0 0
  %6339 = vmatpush1.bf16.msra.mxu0 %v4339
  %6340 = vmatprep.subr.bf16.mxu0 0
  %6341 = vmatpush1.bf16.msra.mxu0 %v4340
  %6342 = vmatprep.subr.bf16.mxu0 0
  %6343 = vmatpush1.bf16.msra.mxu0 %v4341
  %6344 = vmatprep.subr.bf16.mxu0 0
  %6345 = vmatpush1.bf16.msra.mxu0 %v4342
  %6346 = vmatprep.subr.bf16.mxu0 0
  %6347 = vmatpush1.bf16.msra.mxu0 %v4343
  %6348 = vmatprep.subr.bf16.mxu0 0
  %6349 = vmatpush1.bf16.msra.mxu0 %v4344
  %6350 = vmatprep.subr.bf16.mxu0 0
  %6351 = vmatpush1.bf16.msra.mxu0 %v4345
  %6352 = vmatprep.subr.bf16.mxu0 0
  %6353 = vmatpush1.bf16.msra.mxu0 %v4346
  %6354 = vmatprep.subr.bf16.mxu0 0
  %6355 = vmatpush1.bf16.msra.mxu0 %v4347
  %6356 = vmatprep.mubr.bf16.mxu0 %v1395
  %6357 = vmatmul.mubr.bf16.gmra.mrb[0].mxu0 %v1394
  %v6358 = vpop.f32.mrb[0].mxu0
  %v6359 = vadd.f32 %v6319, %v6358
  %v6360 = vpop.f32.mrb[0].mxu0
  %v6361 = vpop.f32.mrb[0].mxu0
  %v6362 = vpop.f32.mrb[0].mxu0
  %6363 = vdwg.mxu0
  %v6364 = vmax.f32 %v6359, 0.0
  %v6365 = vld [vmem:[%s3] sm:$0xff]
  %v6366 = vld [vmem:[%s3 + $0x8] sm:$0xff]
  %v6367 = vld [vmem:[%s3 + $0x10] sm:$0xff]
  %v6368 = vld [vmem:[%s3 + $0x18] sm:$0xff]
  %v6369 = vld [vmem:[%s3 + $0x20] sm:$0xff]
  %v6370 = vld [vmem:[%s3 + $0x28] sm:$0xff]
  %v6371 = vld [vmem:[%s3 + $0x30] sm:$0xff]
  %v6372 = vld [vmem:[%s3 + $0x38] sm:$0xff]
  %v6373 = vld [vmem:[%s3 + $0x40] sm:$0xff]
  %v6374 = vld [vmem:[%s3 + $0x48] sm:$0xff]
  %v6375 = vld [vmem:[%s3 + $0x50] sm:$0xff]
  %v6376 = vld [vmem:[%s3 + $0x58] sm:$0xff]
  %v6377 = vld [vmem:[%s3 + $0x60] sm:$0xff]
  %v6378 = vld [vmem:[%s3 + $0x68] sm:$0xff]
  %v6379 = vld [vmem:[%s3 + $0x70] sm:$0xff]
  %v6380 = vld [vmem:[%s3 + $0x78] sm:$0xff]
  %v6381 = vld [vmem:[%s4] sm:$0x1]
  %v6383 = vlaneseq
  %v6384 = vshrl.u32 %v6383, 7
  %v6385 = vsub.s32 0, %v6384
  %v6386 = vrot.slane %v6381, %v6385
  %6388 = vmatprep.subr.mxu0 0.0
  %6389 = vmatpush1.msra.mxu0 %v6365
  %6390 = vmatprep.subr.mxu0 0.0
  %6391 = vmatpush1.msra.mxu0 %v6366
  %6392 = vmatprep.subr.mxu0 0.0
  %6393 = vmatpush1.msra.mxu0 %v6367
  %6394 = vmatprep.subr.mxu0 0.0
  %6395 = vmatpush1.msra.mxu0 %v6368
  %6396 = vmatprep.subr.mxu0 0.0
  %6397 = vmatpush1.msra.mxu0 %v6369
  %6398 = vmatprep.subr.mxu0 0.0
  %6399 = vmatpush1.msra.mxu0 %v6370
  %6400 = vmatprep.subr.mxu0 0.0
  %6401 = vmatpush1.msra.mxu0 %v6371
  %6402 = vmatprep.subr.mxu0 0.0
  %6403 = vmatpush1.msra.mxu0 %v6372
  %6404 = vmatprep.subr.mxu0 0.0
  %6405 = vmatpush1.msra.mxu0 %v6373
  %6406 = vmatprep.subr.mxu0 0.0
  %6407 = vmatpush1.msra.mxu0 %v6374
  %6408 = vmatprep.subr.mxu0 0.0
  %6409 = vmatpush1.msra.mxu0 %v6375
  %6410 = vmatprep.subr.mxu0 0.0
  %6411 = vmatpush1.msra.mxu0 %v6376
  %6412 = vmatprep.subr.mxu0 0.0
  %6413 = vmatpush1.msra.mxu0 %v6377
  %6414 = vmatprep.subr.mxu0 0.0
  %6415 = vmatpush1.msra.mxu0 %v6378
  %6416 = vmatprep.subr.mxu0 0.0
  %6417 = vmatpush1.msra.mxu0 %v6379
  %6418 = vmatprep.subr.mxu0 0.0
  %6419 = vmatpush1.msra.mxu0 %v6380
  %6420 = vmatprep.subr.mxu0 0.0
  %6421 = vmatpush1.msra.mxu0 0.0
  %6422 = vmatprep.subr.mxu0 0.0
  %6423 = vmatpush1.msra.mxu0 0.0
  %6424 = vmatprep.subr.mxu0 0.0
  %6425 = vmatpush1.msra.mxu0 0.0
  %6426 = vmatprep.subr.mxu0 0.0
  %6427 = vmatpush1.msra.mxu0 0.0
  %6428 = vmatprep.subr.mxu0 0.0
  %6429 = vmatpush1.msra.mxu0 0.0
  %6430 = vmatprep.subr.mxu0 0.0
  %6431 = vmatpush1.msra.mxu0 0.0
  %6432 = vmatprep.subr.mxu0 0.0
  %6433 = vmatpush1.msra.mxu0 0.0
  %6434 = vmatprep.subr.mxu0 0.0
  %6435 = vmatpush1.msra.mxu0 0.0
  %6436 = vmatprep.subr.mxu0 0.0
  %6437 = vmatpush1.msra.mxu0 0.0
  %6438 = vmatprep.subr.mxu0 0.0
  %6439 = vmatpush1.msra.mxu0 0.0
  %6440 = vmatprep.subr.mxu0 0.0
  %6441 = vmatpush1.msra.mxu0 0.0
  %6442 = vmatprep.subr.mxu0 0.0
  %6443 = vmatpush1.msra.mxu0 0.0
  %6444 = vmatprep.subr.mxu0 0.0
  %6445 = vmatpush1.msra.mxu0 0.0
  %6446 = vmatprep.subr.mxu0 0.0
  %6447 = vmatpush1.msra.mxu0 0.0
  %6448 = vmatprep.subr.mxu0 0.0
  %6449 = vmatpush1.msra.mxu0 0.0
  %6450 = vmatprep.subr.mxu0 0.0
  %6451 = vmatpush1.msra.mxu0 0.0
  %6452 = vmatprep.mubr.f32.mxu0 0.0
  %6453 = vmatmul.mubr.f32.gmra.mrb[0].mxu0 %v6364
  %v6454 = vpop.f32.mrb[0].mxu0
  %v6455 = vadd.f32 %v6386, %v6454
  %v6456 = vpop.f32.mrb[0].mxu0
  %6457 = vdwg.mxu0
  %vm6458 = vcmask 80896
  %v6459 = vsel %vm6458, %v6455, -inf
  %6460 = vmax.xlane.f32.xlu0 %v6459
  %v6461 = vpop.xlane.xlu0 %6460
  %v6462 = vsub.f32 %v6455, %v6461
  %v6463 = vmul.f32 %v6462, 1.442695
  %v6464 = vpow.pop %v6463
  %v6465 = vsel %vm6458, %v6464, 0.0
  %6466 = vadd.xlane.f32.xlu0 %v6465
  %v6467 = vpop.xlane.xlu0 %6466
  %v6468 = vlog2.pop %v6467
  %v6469 = vmul.f32 %v6468, 0.6931472
  %v6470 = vsub.f32 %v6462, %v6469
  %6471 = vst.msk [vmem:[%s5] sm:$0xff] %vm6458, %v6470
  // Predicated region
  $region22: #{net_forward.3} parent=0 // pred_check
    _
  $region23: #{net_forward.3} parent=0 // pred_check_branch
    %6473 = sbr.rel (0) target = $region25
  $region24: #{net_forward.3} parent=0 // pred_region
    _
  $region25: #{net_forward.3} parent=0 // pred_fallthru
    _
  // Predicated region
  $region26: #{net_forward.3} parent=0 // pred_check
    _
  $region27: #{net_forward.3} parent=0 // pred_check_branch
    %6475 = sbr.rel (0) target = $region29
  $region28: #{net_forward.3} parent=0 // pred_region
    _
  $region29: #{net_forward.3} parent=0 // pred_fallthru
    _

</llo_original>
